<compile_context>
chip_gen: v7x
topology: tpu7x:2x2x1
jax: 0.10.0
libtpu: 0.0.40
codegen_flags: <defaults>
</compile_context>

<pallas_src>
import jax
import jax.numpy as jnp
from jax import lax
from jax.experimental import pallas as pl
from jax.experimental.pallas import tpu as pltpu

PMAX = 15  # half width of the largest depthwise kernel (31)

# Depthwise tap-slab layout: (name, kh, kw).  Offsets are static.
_DW_LAYOUT = (
    ("dw3", 3, 3),       # dwConv3
    ("dw5", 5, 5),       # dwConv5
    ("dw7", 7, 7),       # conv_spatial
    ("dw11w", 1, 11),    # Conv11[0]
    ("dw11h", 11, 1),    # Conv11[1]
    ("dw21w", 1, 21),    # Conv21[1]
    ("dw21h", 21, 1),    # Conv21[2]
    ("dw31w", 1, 31),    # Conv31[1]
    ("dw31h", 31, 1),    # Conv31[2]
)
_DW_OFFSETS = {}
_o = 0
for _n, _kh, _kw in _DW_LAYOUT:
    _DW_OFFSETS[_n] = _o
    _o += _kh * _kw
TOTAL_TAPS = _o                      # 209
_DW_BIDX = {n: i for i, (n, _, _) in enumerate(_DW_LAYOUT)}


def _silu(v):
    return v * (1.0 / (1.0 + jnp.exp(-v)))


# --------------------------------- kernel -----------------------------------

def _make_kernel(dim, hidden, H, W):
    HW = H * W

    def kernel(x_ref, w01_ref, b01_ref, pw_w_ref, pw_b_ref,
               dwt_ref, dwb_ref, hmask_ref, wmask_ref, o_ref):
        x = x_ref[0]                                   # (dim, HW) f32

        # ---- mask rows (loaded once per distinct offset, cached) ----
        hrow_cache, wrow_cache = {}, {}

        def hrow(di):
            if di not in hrow_cache:
                hrow_cache[di] = hmask_ref[di + PMAX:di + PMAX + 1, :]
            return hrow_cache[di]

        def wrow(dj):
            if dj not in wrow_cache:
                wrow_cache[dj] = wmask_ref[dj + PMAX:dj + PMAX + 1, :]
            return wrow_cache[dj]

        def pw(i, v):
            """Packed 1x1 conv i: (hidden,hidden) @ (hidden,HW) + bias."""
            return (jnp.dot(pw_w_ref[i], v, preferred_element_type=jnp.float32)
                    + pw_b_ref[i])

        def dw(v, name, kh, kw):
            """Depthwise (kh,kw) conv, 'same' zero padding, bias at the end.

            Shift decomposition: for each kernel row the vertical roll and
            its row mask are done once, then each tap only needs one
            horizontal roll + one column-mask mult + one tap FMA.
            """
            off = _DW_OFFSETS[name]
            bidx = _DW_BIDX[name]
            taps = dwt_ref[:, off:off + kh * kw]       # (hidden, kh*kw)
            ph, pwd = kh // 2, kw // 2
            acc = None
            t = 0
            for i in range(kh):
                di = i - ph
                if di != 0:
                    vr = pltpu.roll(v, shift=(-di * W) % HW, axis=1) * hrow(di)
                else:
                    vr = v
                for j in range(kw):
                    dj = j - pwd
                    if dj != 0:
                        sv = pltpu.roll(vr, shift=(-dj) % HW, axis=1) * wrow(dj)
                    else:
                        sv = vr
                    term = sv * taps[:, t:t + 1]
                    acc = term if acc is None else acc + term
                    t += 1
            return acc + dwb_ref[:, bidx:bidx + 1]

        # ---- fused conv1_0 / conv1_1 (both consume x) ----
        ua = (jnp.dot(w01_ref[...], x, preferred_element_type=jnp.float32)
              + b01_ref[...])                          # (2*hidden, HW)
        u = ua[:hidden]                                # conv1_0(x) (rows>=dim are 0)
        attn = _silu(ua[hidden:])                      # act(conv1_1(x))

        attn = dw(attn, "dw3", 3, 3)                   # dwConv3
        u1 = attn
        attn = dw(pw(0, attn), "dw5", 5, 5)            # conv1_2 -> dwConv5
        attn = _silu(attn + u1)
        u2 = attn
        attn = dw(pw(1, attn), "dw7", 7, 7)            # conv1_3 -> conv_spatial
        attn = _silu(attn + u2)
        u3 = attn
        attn = pw(2, attn)                             # conv1_4
        attn = dw(attn, "dw11w", 1, 11)                # Conv11
        attn = dw(attn, "dw11h", 11, 1)
        attn = _silu(attn + u3)
        u4 = attn
        attn = pw(3, attn)                             # Conv21: 1x1 + strips
        attn = dw(attn, "dw21w", 1, 21)
        attn = dw(attn, "dw21h", 21, 1)
        attn = _silu(attn + u4)
        u5 = attn
        attn = pw(4, attn)                             # Conv31: 1x1 + strips
        attn = dw(attn, "dw31w", 1, 31)
        attn = dw(attn, "dw31h", 31, 1)
        attn = _silu(attn + u5)
        attn = pw(5, attn)                             # conv1_5 (rows>=dim are 0)

        out = pw(6, u * attn)                          # proj_1
        o_ref[0] = out[:dim, :]

    return kernel


# -------------------------------- wrapper ------------------------------------

def lka_forward(x_nchw, packed):
    N, dim, H, W = x_nchw.shape
    hidden = 2 * dim
    HW = H * W
    x = x_nchw.reshape(N, dim, HW).astype(jnp.float32)

    w01, b01, pw_w, pw_b, dwt, dwb = packed

    # Precomputed edge masks: row di+PMAX of hmask is 1 where (h+di) is inside
    # the image (flat H*W coordinates), likewise wmask for (w+dj).
    offs = jnp.arange(-PMAX, PMAX + 1, dtype=jnp.int32)            # (31,)
    pos = jnp.arange(HW, dtype=jnp.int32)
    w_idx = pos % W
    h_idx = pos // W
    wmask = ((w_idx[None, :] + offs[:, None] >= 0)
             & (w_idx[None, :] + offs[:, None] < W)).astype(jnp.float32)
    hmask = ((h_idx[None, :] + offs[:, None] >= 0)
             & (h_idx[None, :] + offs[:, None] < H)).astype(jnp.float32)

    consts = (w01, b01, pw_w, pw_b, dwt, dwb, hmask, wmask)
    kernel = _make_kernel(dim, hidden, H, W)

    def full_spec(a):
        nd = a.ndim
        return pl.BlockSpec(a.shape, lambda n, _nd=nd: (0,) * _nd)

    out = pl.pallas_call(
        kernel,
        out_shape=jax.ShapeDtypeStruct((N, dim, HW), jnp.float32),
        grid_spec=pltpu.PrefetchScalarGridSpec(
            num_scalar_prefetch=0,
            grid=(N,),
            in_specs=[pl.BlockSpec((1, dim, HW), lambda n: (n, 0, 0))]
                    + [full_spec(a) for a in consts],
            out_specs=pl.BlockSpec((1, dim, HW), lambda n: (n, 0, 0)),
        ),
        compiler_params=pltpu.CompilerParams(
            dimension_semantics=("parallel",),     # batch shards across TCs on v7x
            vmem_limit_bytes=32 * 1024 * 1024,
        ),
    )(x, *consts)
    return out.reshape(N, dim, H, W)


# ------------------------- parameters & packing -------------------------------

def init_params(key, dim):
    hidden = 2 * dim
    specs = {
        "conv1_0_w": (dim, dim),        "conv1_0_b": (dim,),
        "conv1_1_w": (hidden, dim),     "conv1_1_b": (hidden,),
        "dw3_w": (hidden, 9),           "dw3_b": (hidden,),
        "conv1_2_w": (hidden, hidden),  "conv1_2_b": (hidden,),
        "dw5_w": (hidden, 25),          "dw5_b": (hidden,),
        "conv1_3_w": (hidden, hidden),  "conv1_3_b": (hidden,),
        "dw7_w": (hidden, 49),          "dw7_b": (hidden,),
        "conv1_4_w": (hidden, hidden),  "conv1_4_b": (hidden,),
        "dw11w_w": (hidden, 11),        "dw11w_b": (hidden,),
        "dw11h_w": (hidden, 11),        "dw11h_b": (hidden,),
        "conv21_pw_w": (hidden, hidden), "conv21_pw_b": (hidden,),
        "dw21w_w": (hidden, 21),        "dw21w_b": (hidden,),
        "dw21h_w": (hidden, 21),        "dw21h_b": (hidden,),
        "conv31_pw_w": (hidden, hidden), "conv31_pw_b": (hidden,),
        "dw31w_w": (hidden, 31),        "dw31w_b": (hidden,),
        "dw31h_w": (hidden, 31),        "dw31h_b": (hidden,),
        "conv1_5_w": (dim, hidden),     "conv1_5_b": (dim,),
        "proj_1_w": (dim, dim),         "proj_1_b": (dim,),
    }
    params = {}
    keys = jax.random.split(key, len(specs))
    for k, (name, shp) in zip(keys, sorted(specs.items())):
        params[name] = 0.1 * jax.random.normal(k, shp, jnp.float32)
    return params


def pack_params(p, dim):
    hidden = 2 * dim
    f32 = jnp.float32

    # Fused conv1_0 / conv1_1: (2*hidden, dim) @ x(dim, HW).
    w01 = jnp.zeros((2 * hidden, dim), f32)
    w01 = w01.at[:dim, :].set(p["conv1_0_w"])
    w01 = w01.at[hidden:, :].set(p["conv1_1_w"])
    b01 = jnp.zeros((2 * hidden, 1), f32)
    b01 = b01.at[:dim, 0].set(p["conv1_0_b"])
    b01 = b01.at[hidden:, 0].set(p["conv1_1_b"])

    def pad_pw(w, b):
        wp = jnp.zeros((hidden, hidden), f32).at[:w.shape[0], :w.shape[1]].set(w)
        bp = jnp.zeros((hidden, 1), f32).at[:b.shape[0], 0].set(b)
        return wp, bp

    pw_list = [
        ("conv1_2_w", "conv1_2_b"),
        ("conv1_3_w", "conv1_3_b"),
        ("conv1_4_w", "conv1_4_b"),
        ("conv21_pw_w", "conv21_pw_b"),
        ("conv31_pw_w", "conv31_pw_b"),
        ("conv1_5_w", "conv1_5_b"),
        ("proj_1_w", "proj_1_b"),
    ]
    padded = [pad_pw(p[wn], p[bn]) for wn, bn in pw_list]
    pw_w = jnp.stack([w for w, _ in padded])                       # (7, hidden, hidden)
    pw_b = jnp.stack([b for _, b in padded])                       # (7, hidden, 1)

    dwt = jnp.concatenate([p[n + "_w"] for n, _, _ in _DW_LAYOUT], axis=1)  # (hidden, 209)
    dwb = jnp.stack([p[n + "_b"] for n, _, _ in _DW_LAYOUT], axis=1)        # (hidden, 9)
    return (w01, b01, pw_w, pw_b, dwt, dwb)


# ------------------------------ JAX reference ---------------------------------

def ref_forward(x, p):
    """Pure-JAX (XLA) NCHW reference matching the PyTorch forward."""
    act = jax.nn.silu

    def pw(v, w, b):
        return jnp.einsum("cd,ndhw->nchw", w, v) + b.reshape(1, -1, 1, 1)

    def dw(v, taps, b, kh, kw):
        C = v.shape[1]
        filt = taps.reshape(C, 1, kh, kw)
        y = lax.conv_general_dilated(
            v, filt, (1, 1),
            padding=((kh // 2, kh // 2), (kw // 2, kw // 2)),
            dimension_numbers=("NCHW", "OIHW", "NCHW"),
            feature_group_count=C)
        return y + b.reshape(1, -1, 1, 1)

    u = pw(x, p["conv1_0_w"], p["conv1_0_b"])
    attn = act(pw(x, p["conv1_1_w"], p["conv1_1_b"]))
    attn = dw(attn, p["dw3_w"], p["dw3_b"], 3, 3)
    u1 = attn
    attn = dw(pw(attn, p["conv1_2_w"], p["conv1_2_b"]), p["dw5_w"], p["dw5_b"], 5, 5)
    attn = act(attn + u1)
    u2 = attn
    attn = dw(pw(attn, p["conv1_3_w"], p["conv1_3_b"]), p["dw7_w"], p["dw7_b"], 7, 7)
    attn = act(attn + u2)
    u3 = attn
    attn = pw(attn, p["conv1_4_w"], p["conv1_4_b"])
    attn = dw(attn, p["dw11w_w"], p["dw11w_b"], 1, 11)
    attn = dw(attn, p["dw11h_w"], p["dw11h_b"], 11, 1)
    attn = act(attn + u3)
    u4 = attn
    attn = pw(attn, p["conv21_pw_w"], p["conv21_pw_b"])
    attn = dw(attn, p["dw21w_w"], p["dw21w_b"], 1, 21)
    attn = dw(attn, p["dw21h_w"], p["dw21h_b"], 21, 1)
    attn = act(attn + u4)
    u5 = attn
    attn = pw(attn, p["conv31_pw_w"], p["conv31_pw_b"])
    attn = dw(attn, p["dw31w_w"], p["dw31w_b"], 1, 31)
    attn = dw(attn, p["dw31h_w"], p["dw31h_b"], 31, 1)
    attn = act(attn + u5)
    attn = pw(attn, p["conv1_5_w"], p["conv1_5_b"])
    out1 = u * attn
    return pw(out1, p["proj_1_w"], p["proj_1_b"])


# ----------------------------------- main -------------------------------------

if __name__ == "__main__":
    N, dim, H, W = 2, 4, 16, 16            # hidden = 2*dim = 8, H*W = 256
    key = jax.random.PRNGKey(0)
    kx, kp = jax.random.split(key)
    x_nchw = jax.random.normal(kx, (N, dim, H, W), jnp.float32)
    params = init_params(kp, dim)
    packed = pack_params(params, dim)

    out = jax.block_until_ready(jax.jit(lka_forward)(x_nchw, packed))
    ref = jax.block_until_ready(jax.jit(ref_forward)(x_nchw, params))

    assert out.shape == (N, dim, H, W)
    if not jnp.allclose(out, ref, rtol=1e-3, atol=1e-3):
        raise AssertionError("Pallas kernel does not match JAX reference")
    print("KERNEL_OK")
</pallas_src>

<mosaic_0001>
module attributes {stable_mosaic.version = 11 : i64} {
  func.func @kernel(%arg0: i32, %arg1: memref<1x4x256xf32, #tpu.memory_space<vmem>>, %arg2: memref<16x4xf32, #tpu.memory_space<vmem>>, %arg3: memref<16x1xf32, #tpu.memory_space<vmem>>, %arg4: memref<7x8x8xf32, #tpu.memory_space<vmem>>, %arg5: memref<7x8x1xf32, #tpu.memory_space<vmem>>, %arg6: memref<8x209xf32, #tpu.memory_space<vmem>>, %arg7: memref<8x9xf32, #tpu.memory_space<vmem>>, %arg8: memref<31x256xf32, #tpu.memory_space<vmem>>, %arg9: memref<31x256xf32, #tpu.memory_space<vmem>>, %arg10: memref<1x4x256xf32, #tpu.memory_space<vmem>>) attributes {dimension_semantics = [#tpu.dimension_semantics<parallel>], iteration_bounds = array<i64: 2>, scalar_prefetch = 0 : i64, scratch_operands = 0 : i64, tpu.core_type = #tpu.core_type<tc>, window_params = [{transform_indices = @transform_0, window_bounds = array<i64: 1, 4, 256>}, {pipeline_mode = #tpu.pipeline_mode<synchronous>, transform_indices = @transform_1, window_bounds = array<i64: 16, 4>}, {pipeline_mode = #tpu.pipeline_mode<synchronous>, transform_indices = @transform_2, window_bounds = array<i64: 16, 1>}, {pipeline_mode = #tpu.pipeline_mode<synchronous>, transform_indices = @transform_3, window_bounds = array<i64: 7, 8, 8>}, {pipeline_mode = #tpu.pipeline_mode<synchronous>, transform_indices = @transform_4, window_bounds = array<i64: 7, 8, 1>}, {pipeline_mode = #tpu.pipeline_mode<synchronous>, transform_indices = @transform_5, window_bounds = array<i64: 8, 209>}, {pipeline_mode = #tpu.pipeline_mode<synchronous>, transform_indices = @transform_6, window_bounds = array<i64: 8, 9>}, {pipeline_mode = #tpu.pipeline_mode<synchronous>, transform_indices = @transform_7, window_bounds = array<i64: 31, 256>}, {pipeline_mode = #tpu.pipeline_mode<synchronous>, transform_indices = @transform_8, window_bounds = array<i64: 31, 256>}, {transform_indices = @transform_9, window_bounds = array<i64: 1, 4, 256>}]} {
    %c0 = arith.constant 0 : index
    %c0_0 = arith.constant 0 : index
    %c0_1 = arith.constant 0 : index
    %0 = vector.load %arg1[%c0, %c0_0, %c0_1] : memref<1x4x256xf32, #tpu.memory_space<vmem>>, vector<1x4x256xf32>
    %1 = vector.shape_cast %0 : vector<1x4x256xf32> to vector<4x256xf32>
    %c0_2 = arith.constant 0 : index
    %c0_3 = arith.constant 0 : index
    %2 = vector.load %arg2[%c0_2, %c0_3] : memref<16x4xf32, #tpu.memory_space<vmem>>, vector<16x4xf32>
    %cst = arith.constant dense<0.000000e+00> : vector<16x256xf32>
    %3 = tpu.matmul %2, %1, %cst {dimension_numbers = #tpu.dot_dimension_numbers<[1], [0], [0], [1], [0, 0, 1, 1], [], []>} : vector<16x4xf32>, vector<4x256xf32>, vector<16x256xf32> -> vector<16x256xf32>
    %c0_4 = arith.constant 0 : index
    %c0_5 = arith.constant 0 : index
    %4 = vector.load %arg3[%c0_4, %c0_5] : memref<16x1xf32, #tpu.memory_space<vmem>>, vector<16x1xf32>
    %5 = vector.broadcast %4 : vector<16x1xf32> to vector<16x256xf32>
    %6 = arith.addf %3, %5 : vector<16x256xf32>
    %7 = vector.extract_strided_slice %6 {offsets = [0, 0], sizes = [8, 256], strides = [1, 1]} : vector<16x256xf32> to vector<8x256xf32>
    %8 = vector.extract_strided_slice %6 {offsets = [8, 0], sizes = [8, 256], strides = [1, 1]} : vector<16x256xf32> to vector<8x256xf32>
    %cst_6 = arith.constant 0.000000e+00 : f32
    %9 = vector.broadcast %cst_6 : f32 to vector<8x256xf32>
    %10 = arith.subf %9, %8 : vector<8x256xf32>
    %11 = math.exp %10 : vector<8x256xf32>
    %cst_7 = arith.constant 1.000000e+00 : f32
    %12 = vector.broadcast %cst_7 : f32 to vector<8x256xf32>
    %13 = arith.addf %12, %11 : vector<8x256xf32>
    %cst_8 = arith.constant 1.000000e+00 : f32
    %14 = vector.broadcast %cst_8 : f32 to vector<8x256xf32>
    %15 = arith.divf %14, %13 : vector<8x256xf32>
    %16 = arith.mulf %8, %15 : vector<8x256xf32>
    %c0_9 = arith.constant 0 : index
    %c0_10 = arith.constant 0 : index
    %17 = vector.load %arg6[%c0_9, %c0_10] : memref<8x209xf32, #tpu.memory_space<vmem>>, vector<8x9xf32>
    %c16_i32 = arith.constant 16 : i32
    %18 = tpu.dynamic_rotate %16 by %c16_i32 dim 1 : vector<8x256xf32>, i32 -> vector<8x256xf32>
    %c14 = arith.constant 14 : index
    %c0_11 = arith.constant 0 : index
    %19 = vector.load %arg8[%c14, %c0_11] : memref<31x256xf32, #tpu.memory_space<vmem>>, vector<1x256xf32>
    %20 = vector.broadcast %19 : vector<1x256xf32> to vector<8x256xf32>
    %21 = arith.mulf %18, %20 : vector<8x256xf32>
    %c1_i32 = arith.constant 1 : i32
    %22 = tpu.dynamic_rotate %21 by %c1_i32 dim 1 : vector<8x256xf32>, i32 -> vector<8x256xf32>
    %c14_12 = arith.constant 14 : index
    %c0_13 = arith.constant 0 : index
    %23 = vector.load %arg9[%c14_12, %c0_13] : memref<31x256xf32, #tpu.memory_space<vmem>>, vector<1x256xf32>
    %24 = vector.broadcast %23 : vector<1x256xf32> to vector<8x256xf32>
    %25 = arith.mulf %22, %24 : vector<8x256xf32>
    %26 = vector.extract_strided_slice %17 {offsets = [0, 0], sizes = [8, 1], strides = [1, 1]} : vector<8x9xf32> to vector<8x1xf32>
    %27 = vector.broadcast %26 : vector<8x1xf32> to vector<8x256xf32>
    %28 = arith.mulf %25, %27 : vector<8x256xf32>
    %29 = vector.extract_strided_slice %17 {offsets = [0, 1], sizes = [8, 1], strides = [1, 1]} : vector<8x9xf32> to vector<8x1xf32>
    %30 = vector.broadcast %29 : vector<8x1xf32> to vector<8x256xf32>
    %31 = arith.mulf %21, %30 : vector<8x256xf32>
    %32 = arith.addf %28, %31 : vector<8x256xf32>
    %c255_i32 = arith.constant 255 : i32
    %33 = tpu.dynamic_rotate %21 by %c255_i32 dim 1 : vector<8x256xf32>, i32 -> vector<8x256xf32>
    %c16 = arith.constant 16 : index
    %c0_14 = arith.constant 0 : index
    %34 = vector.load %arg9[%c16, %c0_14] : memref<31x256xf32, #tpu.memory_space<vmem>>, vector<1x256xf32>
    %35 = vector.broadcast %34 : vector<1x256xf32> to vector<8x256xf32>
    %36 = arith.mulf %33, %35 : vector<8x256xf32>
    %37 = vector.extract_strided_slice %17 {offsets = [0, 2], sizes = [8, 1], strides = [1, 1]} : vector<8x9xf32> to vector<8x1xf32>
    %38 = vector.broadcast %37 : vector<8x1xf32> to vector<8x256xf32>
    %39 = arith.mulf %36, %38 : vector<8x256xf32>
    %40 = arith.addf %32, %39 : vector<8x256xf32>
    %c1_i32_15 = arith.constant 1 : i32
    %41 = tpu.dynamic_rotate %16 by %c1_i32_15 dim 1 : vector<8x256xf32>, i32 -> vector<8x256xf32>
    %42 = vector.broadcast %23 : vector<1x256xf32> to vector<8x256xf32>
    %43 = arith.mulf %41, %42 : vector<8x256xf32>
    %44 = vector.extract_strided_slice %17 {offsets = [0, 3], sizes = [8, 1], strides = [1, 1]} : vector<8x9xf32> to vector<8x1xf32>
    %45 = vector.broadcast %44 : vector<8x1xf32> to vector<8x256xf32>
    %46 = arith.mulf %43, %45 : vector<8x256xf32>
    %47 = arith.addf %40, %46 : vector<8x256xf32>
    %48 = vector.extract_strided_slice %17 {offsets = [0, 4], sizes = [8, 1], strides = [1, 1]} : vector<8x9xf32> to vector<8x1xf32>
    %49 = vector.broadcast %48 : vector<8x1xf32> to vector<8x256xf32>
    %50 = arith.mulf %16, %49 : vector<8x256xf32>
    %51 = arith.addf %47, %50 : vector<8x256xf32>
    %c255_i32_16 = arith.constant 255 : i32
    %52 = tpu.dynamic_rotate %16 by %c255_i32_16 dim 1 : vector<8x256xf32>, i32 -> vector<8x256xf32>
    %53 = vector.broadcast %34 : vector<1x256xf32> to vector<8x256xf32>
    %54 = arith.mulf %52, %53 : vector<8x256xf32>
    %55 = vector.extract_strided_slice %17 {offsets = [0, 5], sizes = [8, 1], strides = [1, 1]} : vector<8x9xf32> to vector<8x1xf32>
    %56 = vector.broadcast %55 : vector<8x1xf32> to vector<8x256xf32>
    %57 = arith.mulf %54, %56 : vector<8x256xf32>
    %58 = arith.addf %51, %57 : vector<8x256xf32>
    %c240_i32 = arith.constant 240 : i32
    %59 = tpu.dynamic_rotate %16 by %c240_i32 dim 1 : vector<8x256xf32>, i32 -> vector<8x256xf32>
    %c16_17 = arith.constant 16 : index
    %c0_18 = arith.constant 0 : index
    %60 = vector.load %arg8[%c16_17, %c0_18] : memref<31x256xf32, #tpu.memory_space<vmem>>, vector<1x256xf32>
    %61 = vector.broadcast %60 : vector<1x256xf32> to vector<8x256xf32>
    %62 = arith.mulf %59, %61 : vector<8x256xf32>
    %c1_i32_19 = arith.constant 1 : i32
    %63 = tpu.dynamic_rotate %62 by %c1_i32_19 dim 1 : vector<8x256xf32>, i32 -> vector<8x256xf32>
    %64 = vector.broadcast %23 : vector<1x256xf32> to vector<8x256xf32>
    %65 = arith.mulf %63, %64 : vector<8x256xf32>
    %66 = vector.extract_strided_slice %17 {offsets = [0, 6], sizes = [8, 1], strides = [1, 1]} : vector<8x9xf32> to vector<8x1xf32>
    %67 = vector.broadcast %66 : vector<8x1xf32> to vector<8x256xf32>
    %68 = arith.mulf %65, %67 : vector<8x256xf32>
    %69 = arith.addf %58, %68 : vector<8x256xf32>
    %70 = vector.extract_strided_slice %17 {offsets = [0, 7], sizes = [8, 1], strides = [1, 1]} : vector<8x9xf32> to vector<8x1xf32>
    %71 = vector.broadcast %70 : vector<8x1xf32> to vector<8x256xf32>
    %72 = arith.mulf %62, %71 : vector<8x256xf32>
    %73 = arith.addf %69, %72 : vector<8x256xf32>
    %c255_i32_20 = arith.constant 255 : i32
    %74 = tpu.dynamic_rotate %62 by %c255_i32_20 dim 1 : vector<8x256xf32>, i32 -> vector<8x256xf32>
    %75 = vector.broadcast %34 : vector<1x256xf32> to vector<8x256xf32>
    %76 = arith.mulf %74, %75 : vector<8x256xf32>
    %77 = vector.extract_strided_slice %17 {offsets = [0, 8], sizes = [8, 1], strides = [1, 1]} : vector<8x9xf32> to vector<8x1xf32>
    %78 = vector.broadcast %77 : vector<8x1xf32> to vector<8x256xf32>
    %79 = arith.mulf %76, %78 : vector<8x256xf32>
    %80 = arith.addf %73, %79 : vector<8x256xf32>
    %c0_21 = arith.constant 0 : index
    %c0_22 = arith.constant 0 : index
    %81 = vector.load %arg7[%c0_21, %c0_22] : memref<8x9xf32, #tpu.memory_space<vmem>>, vector<8x1xf32>
    %82 = vector.broadcast %81 : vector<8x1xf32> to vector<8x256xf32>
    %83 = arith.addf %80, %82 : vector<8x256xf32>
    %c0_23 = arith.constant 0 : index
    %c0_24 = arith.constant 0 : index
    %c0_25 = arith.constant 0 : index
    %84 = vector.load %arg4[%c0_23, %c0_24, %c0_25] : memref<7x8x8xf32, #tpu.memory_space<vmem>>, vector<1x8x8xf32>
    %85 = vector.shape_cast %84 : vector<1x8x8xf32> to vector<8x8xf32>
    %cst_26 = arith.constant dense<0.000000e+00> : vector<8x256xf32>
    %86 = tpu.matmul %85, %83, %cst_26 {dimension_numbers = #tpu.dot_dimension_numbers<[1], [0], [0], [1], [0, 0, 1, 1], [], []>} : vector<8x8xf32>, vector<8x256xf32>, vector<8x256xf32> -> vector<8x256xf32>
    %c0_27 = arith.constant 0 : index
    %c0_28 = arith.constant 0 : index
    %c0_29 = arith.constant 0 : index
    %87 = vector.load %arg5[%c0_27, %c0_28, %c0_29] : memref<7x8x1xf32, #tpu.memory_space<vmem>>, vector<1x8x1xf32>
    %88 = vector.shape_cast %87 : vector<1x8x1xf32> to vector<8x1xf32>
    %89 = vector.broadcast %88 : vector<8x1xf32> to vector<8x256xf32>
    %90 = arith.addf %86, %89 : vector<8x256xf32>
    %c0_30 = arith.constant 0 : index
    %c9 = arith.constant 9 : index
    %91 = vector.load %arg6[%c0_30, %c9] : memref<8x209xf32, #tpu.memory_space<vmem>>, vector<8x25xf32>
    %c32_i32 = arith.constant 32 : i32
    %92 = tpu.dynamic_rotate %90 by %c32_i32 dim 1 : vector<8x256xf32>, i32 -> vector<8x256xf32>
    %c13 = arith.constant 13 : index
    %c0_31 = arith.constant 0 : index
    %93 = vector.load %arg8[%c13, %c0_31] : memref<31x256xf32, #tpu.memory_space<vmem>>, vector<1x256xf32>
    %94 = vector.broadcast %93 : vector<1x256xf32> to vector<8x256xf32>
    %95 = arith.mulf %92, %94 : vector<8x256xf32>
    %c2_i32 = arith.constant 2 : i32
    %96 = tpu.dynamic_rotate %95 by %c2_i32 dim 1 : vector<8x256xf32>, i32 -> vector<8x256xf32>
    %c13_32 = arith.constant 13 : index
    %c0_33 = arith.constant 0 : index
    %97 = vector.load %arg9[%c13_32, %c0_33] : memref<31x256xf32, #tpu.memory_space<vmem>>, vector<1x256xf32>
    %98 = vector.broadcast %97 : vector<1x256xf32> to vector<8x256xf32>
    %99 = arith.mulf %96, %98 : vector<8x256xf32>
    %100 = vector.extract_strided_slice %91 {offsets = [0, 0], sizes = [8, 1], strides = [1, 1]} : vector<8x25xf32> to vector<8x1xf32>
    %101 = vector.broadcast %100 : vector<8x1xf32> to vector<8x256xf32>
    %102 = arith.mulf %99, %101 : vector<8x256xf32>
    %c1_i32_34 = arith.constant 1 : i32
    %103 = tpu.dynamic_rotate %95 by %c1_i32_34 dim 1 : vector<8x256xf32>, i32 -> vector<8x256xf32>
    %104 = vector.broadcast %23 : vector<1x256xf32> to vector<8x256xf32>
    %105 = arith.mulf %103, %104 : vector<8x256xf32>
    %106 = vector.extract_strided_slice %91 {offsets = [0, 1], sizes = [8, 1], strides = [1, 1]} : vector<8x25xf32> to vector<8x1xf32>
    %107 = vector.broadcast %106 : vector<8x1xf32> to vector<8x256xf32>
    %108 = arith.mulf %105, %107 : vector<8x256xf32>
    %109 = arith.addf %102, %108 : vector<8x256xf32>
    %110 = vector.extract_strided_slice %91 {offsets = [0, 2], sizes = [8, 1], strides = [1, 1]} : vector<8x25xf32> to vector<8x1xf32>
    %111 = vector.broadcast %110 : vector<8x1xf32> to vector<8x256xf32>
    %112 = arith.mulf %95, %111 : vector<8x256xf32>
    %113 = arith.addf %109, %112 : vector<8x256xf32>
    %c255_i32_35 = arith.constant 255 : i32
    %114 = tpu.dynamic_rotate %95 by %c255_i32_35 dim 1 : vector<8x256xf32>, i32 -> vector<8x256xf32>
    %115 = vector.broadcast %34 : vector<1x256xf32> to vector<8x256xf32>
    %116 = arith.mulf %114, %115 : vector<8x256xf32>
    %117 = vector.extract_strided_slice %91 {offsets = [0, 3], sizes = [8, 1], strides = [1, 1]} : vector<8x25xf32> to vector<8x1xf32>
    %118 = vector.broadcast %117 : vector<8x1xf32> to vector<8x256xf32>
    %119 = arith.mulf %116, %118 : vector<8x256xf32>
    %120 = arith.addf %113, %119 : vector<8x256xf32>
    %c254_i32 = arith.constant 254 : i32
    %121 = tpu.dynamic_rotate %95 by %c254_i32 dim 1 : vector<8x256xf32>, i32 -> vector<8x256xf32>
    %c17 = arith.constant 17 : index
    %c0_36 = arith.constant 0 : index
    %122 = vector.load %arg9[%c17, %c0_36] : memref<31x256xf32, #tpu.memory_space<vmem>>, vector<1x256xf32>
    %123 = vector.broadcast %122 : vector<1x256xf32> to vector<8x256xf32>
    %124 = arith.mulf %121, %123 : vector<8x256xf32>
    %125 = vector.extract_strided_slice %91 {offsets = [0, 4], sizes = [8, 1], strides = [1, 1]} : vector<8x25xf32> to vector<8x1xf32>
    %126 = vector.broadcast %125 : vector<8x1xf32> to vector<8x256xf32>
    %127 = arith.mulf %124, %126 : vector<8x256xf32>
    %128 = arith.addf %120, %127 : vector<8x256xf32>
    %c16_i32_37 = arith.constant 16 : i32
    %129 = tpu.dynamic_rotate %90 by %c16_i32_37 dim 1 : vector<8x256xf32>, i32 -> vector<8x256xf32>
    %130 = vector.broadcast %19 : vector<1x256xf32> to vector<8x256xf32>
    %131 = arith.mulf %129, %130 : vector<8x256xf32>
    %c2_i32_38 = arith.constant 2 : i32
    %132 = tpu.dynamic_rotate %131 by %c2_i32_38 dim 1 : vector<8x256xf32>, i32 -> vector<8x256xf32>
    %133 = vector.broadcast %97 : vector<1x256xf32> to vector<8x256xf32>
    %134 = arith.mulf %132, %133 : vector<8x256xf32>
    %135 = vector.extract_strided_slice %91 {offsets = [0, 5], sizes = [8, 1], strides = [1, 1]} : vector<8x25xf32> to vector<8x1xf32>
    %136 = vector.broadcast %135 : vector<8x1xf32> to vector<8x256xf32>
    %137 = arith.mulf %134, %136 : vector<8x256xf32>
    %138 = arith.addf %128, %137 : vector<8x256xf32>
    %c1_i32_39 = arith.constant 1 : i32
    %139 = tpu.dynamic_rotate %131 by %c1_i32_39 dim 1 : vector<8x256xf32>, i32 -> vector<8x256xf32>
    %140 = vector.broadcast %23 : vector<1x256xf32> to vector<8x256xf32>
    %141 = arith.mulf %139, %140 : vector<8x256xf32>
    %142 = vector.extract_strided_slice %91 {offsets = [0, 6], sizes = [8, 1], strides = [1, 1]} : vector<8x25xf32> to vector<8x1xf32>
    %143 = vector.broadcast %142 : vector<8x1xf32> to vector<8x256xf32>
    %144 = arith.mulf %141, %143 : vector<8x256xf32>
    %145 = arith.addf %138, %144 : vector<8x256xf32>
    %146 = vector.extract_strided_slice %91 {offsets = [0, 7], sizes = [8, 1], strides = [1, 1]} : vector<8x25xf32> to vector<8x1xf32>
    %147 = vector.broadcast %146 : vector<8x1xf32> to vector<8x256xf32>
    %148 = arith.mulf %131, %147 : vector<8x256xf32>
    %149 = arith.addf %145, %148 : vector<8x256xf32>
    %c255_i32_40 = arith.constant 255 : i32
    %150 = tpu.dynamic_rotate %131 by %c255_i32_40 dim 1 : vector<8x256xf32>, i32 -> vector<8x256xf32>
    %151 = vector.broadcast %34 : vector<1x256xf32> to vector<8x256xf32>
    %152 = arith.mulf %150, %151 : vector<8x256xf32>
    %153 = vector.extract_strided_slice %91 {offsets = [0, 8], sizes = [8, 1], strides = [1, 1]} : vector<8x25xf32> to vector<8x1xf32>
    %154 = vector.broadcast %153 : vector<8x1xf32> to vector<8x256xf32>
    %155 = arith.mulf %152, %154 : vector<8x256xf32>
    %156 = arith.addf %149, %155 : vector<8x256xf32>
    %c254_i32_41 = arith.constant 254 : i32
    %157 = tpu.dynamic_rotate %131 by %c254_i32_41 dim 1 : vector<8x256xf32>, i32 -> vector<8x256xf32>
    %158 = vector.broadcast %122 : vector<1x256xf32> to vector<8x256xf32>
    %159 = arith.mulf %157, %158 : vector<8x256xf32>
    %160 = vector.extract_strided_slice %91 {offsets = [0, 9], sizes = [8, 1], strides = [1, 1]} : vector<8x25xf32> to vector<8x1xf32>
    %161 = vector.broadcast %160 : vector<8x1xf32> to vector<8x256xf32>
    %162 = arith.mulf %159, %161 : vector<8x256xf32>
    %163 = arith.addf %156, %162 : vector<8x256xf32>
    %c2_i32_42 = arith.constant 2 : i32
    %164 = tpu.dynamic_rotate %90 by %c2_i32_42 dim 1 : vector<8x256xf32>, i32 -> vector<8x256xf32>
    %165 = vector.broadcast %97 : vector<1x256xf32> to vector<8x256xf32>
    %166 = arith.mulf %164, %165 : vector<8x256xf32>
    %167 = vector.extract_strided_slice %91 {offsets = [0, 10], sizes = [8, 1], strides = [1, 1]} : vector<8x25xf32> to vector<8x1xf32>
    %168 = vector.broadcast %167 : vector<8x1xf32> to vector<8x256xf32>
    %169 = arith.mulf %166, %168 : vector<8x256xf32>
    %170 = arith.addf %163, %169 : vector<8x256xf32>
    %c1_i32_43 = arith.constant 1 : i32
    %171 = tpu.dynamic_rotate %90 by %c1_i32_43 dim 1 : vector<8x256xf32>, i32 -> vector<8x256xf32>
    %172 = vector.broadcast %23 : vector<1x256xf32> to vector<8x256xf32>
    %173 = arith.mulf %171, %172 : vector<8x256xf32>
    %174 = vector.extract_strided_slice %91 {offsets = [0, 11], sizes = [8, 1], strides = [1, 1]} : vector<8x25xf32> to vector<8x1xf32>
    %175 = vector.broadcast %174 : vector<8x1xf32> to vector<8x256xf32>
    %176 = arith.mulf %173, %175 : vector<8x256xf32>
    %177 = arith.addf %170, %176 : vector<8x256xf32>
    %178 = vector.extract_strided_slice %91 {offsets = [0, 12], sizes = [8, 1], strides = [1, 1]} : vector<8x25xf32> to vector<8x1xf32>
    %179 = vector.broadcast %178 : vector<8x1xf32> to vector<8x256xf32>
    %180 = arith.mulf %90, %179 : vector<8x256xf32>
    %181 = arith.addf %177, %180 : vector<8x256xf32>
    %c255_i32_44 = arith.constant 255 : i32
    %182 = tpu.dynamic_rotate %90 by %c255_i32_44 dim 1 : vector<8x256xf32>, i32 -> vector<8x256xf32>
    %183 = vector.broadcast %34 : vector<1x256xf32> to vector<8x256xf32>
    %184 = arith.mulf %182, %183 : vector<8x256xf32>
    %185 = vector.extract_strided_slice %91 {offsets = [0, 13], sizes = [8, 1], strides = [1, 1]} : vector<8x25xf32> to vector<8x1xf32>
    %186 = vector.broadcast %185 : vector<8x1xf32> to vector<8x256xf32>
    %187 = arith.mulf %184, %186 : vector<8x256xf32>
    %188 = arith.addf %181, %187 : vector<8x256xf32>
    %c254_i32_45 = arith.constant 254 : i32
    %189 = tpu.dynamic_rotate %90 by %c254_i32_45 dim 1 : vector<8x256xf32>, i32 -> vector<8x256xf32>
    %190 = vector.broadcast %122 : vector<1x256xf32> to vector<8x256xf32>
    %191 = arith.mulf %189, %190 : vector<8x256xf32>
    %192 = vector.extract_strided_slice %91 {offsets = [0, 14], sizes = [8, 1], strides = [1, 1]} : vector<8x25xf32> to vector<8x1xf32>
    %193 = vector.broadcast %192 : vector<8x1xf32> to vector<8x256xf32>
    %194 = arith.mulf %191, %193 : vector<8x256xf32>
    %195 = arith.addf %188, %194 : vector<8x256xf32>
    %c240_i32_46 = arith.constant 240 : i32
    %196 = tpu.dynamic_rotate %90 by %c240_i32_46 dim 1 : vector<8x256xf32>, i32 -> vector<8x256xf32>
    %197 = vector.broadcast %60 : vector<1x256xf32> to vector<8x256xf32>
    %198 = arith.mulf %196, %197 : vector<8x256xf32>
    %c2_i32_47 = arith.constant 2 : i32
    %199 = tpu.dynamic_rotate %198 by %c2_i32_47 dim 1 : vector<8x256xf32>, i32 -> vector<8x256xf32>
    %200 = vector.broadcast %97 : vector<1x256xf32> to vector<8x256xf32>
    %201 = arith.mulf %199, %200 : vector<8x256xf32>
    %202 = vector.extract_strided_slice %91 {offsets = [0, 15], sizes = [8, 1], strides = [1, 1]} : vector<8x25xf32> to vector<8x1xf32>
    %203 = vector.broadcast %202 : vector<8x1xf32> to vector<8x256xf32>
    %204 = arith.mulf %201, %203 : vector<8x256xf32>
    %205 = arith.addf %195, %204 : vector<8x256xf32>
    %c1_i32_48 = arith.constant 1 : i32
    %206 = tpu.dynamic_rotate %198 by %c1_i32_48 dim 1 : vector<8x256xf32>, i32 -> vector<8x256xf32>
    %207 = vector.broadcast %23 : vector<1x256xf32> to vector<8x256xf32>
    %208 = arith.mulf %206, %207 : vector<8x256xf32>
    %209 = vector.extract_strided_slice %91 {offsets = [0, 16], sizes = [8, 1], strides = [1, 1]} : vector<8x25xf32> to vector<8x1xf32>
    %210 = vector.broadcast %209 : vector<8x1xf32> to vector<8x256xf32>
    %211 = arith.mulf %208, %210 : vector<8x256xf32>
    %212 = arith.addf %205, %211 : vector<8x256xf32>
    %213 = vector.extract_strided_slice %91 {offsets = [0, 17], sizes = [8, 1], strides = [1, 1]} : vector<8x25xf32> to vector<8x1xf32>
    %214 = vector.broadcast %213 : vector<8x1xf32> to vector<8x256xf32>
    %215 = arith.mulf %198, %214 : vector<8x256xf32>
    %216 = arith.addf %212, %215 : vector<8x256xf32>
    %c255_i32_49 = arith.constant 255 : i32
    %217 = tpu.dynamic_rotate %198 by %c255_i32_49 dim 1 : vector<8x256xf32>, i32 -> vector<8x256xf32>
    %218 = vector.broadcast %34 : vector<1x256xf32> to vector<8x256xf32>
    %219 = arith.mulf %217, %218 : vector<8x256xf32>
    %220 = vector.extract_strided_slice %91 {offsets = [0, 18], sizes = [8, 1], strides = [1, 1]} : vector<8x25xf32> to vector<8x1xf32>
    %221 = vector.broadcast %220 : vector<8x1xf32> to vector<8x256xf32>
    %222 = arith.mulf %219, %221 : vector<8x256xf32>
    %223 = arith.addf %216, %222 : vector<8x256xf32>
    %c254_i32_50 = arith.constant 254 : i32
    %224 = tpu.dynamic_rotate %198 by %c254_i32_50 dim 1 : vector<8x256xf32>, i32 -> vector<8x256xf32>
    %225 = vector.broadcast %122 : vector<1x256xf32> to vector<8x256xf32>
    %226 = arith.mulf %224, %225 : vector<8x256xf32>
    %227 = vector.extract_strided_slice %91 {offsets = [0, 19], sizes = [8, 1], strides = [1, 1]} : vector<8x25xf32> to vector<8x1xf32>
    %228 = vector.broadcast %227 : vector<8x1xf32> to vector<8x256xf32>
    %229 = arith.mulf %226, %228 : vector<8x256xf32>
    %230 = arith.addf %223, %229 : vector<8x256xf32>
    %c224_i32 = arith.constant 224 : i32
    %231 = tpu.dynamic_rotate %90 by %c224_i32 dim 1 : vector<8x256xf32>, i32 -> vector<8x256xf32>
    %c17_51 = arith.constant 17 : index
    %c0_52 = arith.constant 0 : index
    %232 = vector.load %arg8[%c17_51, %c0_52] : memref<31x256xf32, #tpu.memory_space<vmem>>, vector<1x256xf32>
    %233 = vector.broadcast %232 : vector<1x256xf32> to vector<8x256xf32>
    %234 = arith.mulf %231, %233 : vector<8x256xf32>
    %c2_i32_53 = arith.constant 2 : i32
    %235 = tpu.dynamic_rotate %234 by %c2_i32_53 dim 1 : vector<8x256xf32>, i32 -> vector<8x256xf32>
    %236 = vector.broadcast %97 : vector<1x256xf32> to vector<8x256xf32>
    %237 = arith.mulf %235, %236 : vector<8x256xf32>
    %238 = vector.extract_strided_slice %91 {offsets = [0, 20], sizes = [8, 1], strides = [1, 1]} : vector<8x25xf32> to vector<8x1xf32>
    %239 = vector.broadcast %238 : vector<8x1xf32> to vector<8x256xf32>
    %240 = arith.mulf %237, %239 : vector<8x256xf32>
    %241 = arith.addf %230, %240 : vector<8x256xf32>
    %c1_i32_54 = arith.constant 1 : i32
    %242 = tpu.dynamic_rotate %234 by %c1_i32_54 dim 1 : vector<8x256xf32>, i32 -> vector<8x256xf32>
    %243 = vector.broadcast %23 : vector<1x256xf32> to vector<8x256xf32>
    %244 = arith.mulf %242, %243 : vector<8x256xf32>
    %245 = vector.extract_strided_slice %91 {offsets = [0, 21], sizes = [8, 1], strides = [1, 1]} : vector<8x25xf32> to vector<8x1xf32>
    %246 = vector.broadcast %245 : vector<8x1xf32> to vector<8x256xf32>
    %247 = arith.mulf %244, %246 : vector<8x256xf32>
    %248 = arith.addf %241, %247 : vector<8x256xf32>
    %249 = vector.extract_strided_slice %91 {offsets = [0, 22], sizes = [8, 1], strides = [1, 1]} : vector<8x25xf32> to vector<8x1xf32>
    %250 = vector.broadcast %249 : vector<8x1xf32> to vector<8x256xf32>
    %251 = arith.mulf %234, %250 : vector<8x256xf32>
    %252 = arith.addf %248, %251 : vector<8x256xf32>
    %c255_i32_55 = arith.constant 255 : i32
    %253 = tpu.dynamic_rotate %234 by %c255_i32_55 dim 1 : vector<8x256xf32>, i32 -> vector<8x256xf32>
    %254 = vector.broadcast %34 : vector<1x256xf32> to vector<8x256xf32>
    %255 = arith.mulf %253, %254 : vector<8x256xf32>
    %256 = vector.extract_strided_slice %91 {offsets = [0, 23], sizes = [8, 1], strides = [1, 1]} : vector<8x25xf32> to vector<8x1xf32>
    %257 = vector.broadcast %256 : vector<8x1xf32> to vector<8x256xf32>
    %258 = arith.mulf %255, %257 : vector<8x256xf32>
    %259 = arith.addf %252, %258 : vector<8x256xf32>
    %c254_i32_56 = arith.constant 254 : i32
    %260 = tpu.dynamic_rotate %234 by %c254_i32_56 dim 1 : vector<8x256xf32>, i32 -> vector<8x256xf32>
    %261 = vector.broadcast %122 : vector<1x256xf32> to vector<8x256xf32>
    %262 = arith.mulf %260, %261 : vector<8x256xf32>
    %263 = vector.extract_strided_slice %91 {offsets = [0, 24], sizes = [8, 1], strides = [1, 1]} : vector<8x25xf32> to vector<8x1xf32>
    %264 = vector.broadcast %263 : vector<8x1xf32> to vector<8x256xf32>
    %265 = arith.mulf %262, %264 : vector<8x256xf32>
    %266 = arith.addf %259, %265 : vector<8x256xf32>
    %c0_57 = arith.constant 0 : index
    %c1 = arith.constant 1 : index
    %267 = vector.load %arg7[%c0_57, %c1] : memref<8x9xf32, #tpu.memory_space<vmem>>, vector<8x1xf32>
    %268 = vector.broadcast %267 : vector<8x1xf32> to vector<8x256xf32>
    %269 = arith.addf %266, %268 : vector<8x256xf32>
    %270 = arith.addf %269, %83 : vector<8x256xf32>
    %cst_58 = arith.constant 0.000000e+00 : f32
    %271 = vector.broadcast %cst_58 : f32 to vector<8x256xf32>
    %272 = arith.subf %271, %270 : vector<8x256xf32>
    %273 = math.exp %272 : vector<8x256xf32>
    %cst_59 = arith.constant 1.000000e+00 : f32
    %274 = vector.broadcast %cst_59 : f32 to vector<8x256xf32>
    %275 = arith.addf %274, %273 : vector<8x256xf32>
    %cst_60 = arith.constant 1.000000e+00 : f32
    %276 = vector.broadcast %cst_60 : f32 to vector<8x256xf32>
    %277 = arith.divf %276, %275 : vector<8x256xf32>
    %278 = arith.mulf %270, %277 : vector<8x256xf32>
    %c1_61 = arith.constant 1 : index
    %c0_62 = arith.constant 0 : index
    %c0_63 = arith.constant 0 : index
    %279 = vector.load %arg4[%c1_61, %c0_62, %c0_63] : memref<7x8x8xf32, #tpu.memory_space<vmem>>, vector<1x8x8xf32>
    %280 = vector.shape_cast %279 : vector<1x8x8xf32> to vector<8x8xf32>
    %cst_64 = arith.constant dense<0.000000e+00> : vector<8x256xf32>
    %281 = tpu.matmul %280, %278, %cst_64 {dimension_numbers = #tpu.dot_dimension_numbers<[1], [0], [0], [1], [0, 0, 1, 1], [], []>} : vector<8x8xf32>, vector<8x256xf32>, vector<8x256xf32> -> vector<8x256xf32>
    %c1_65 = arith.constant 1 : index
    %c0_66 = arith.constant 0 : index
    %c0_67 = arith.constant 0 : index
    %282 = vector.load %arg5[%c1_65, %c0_66, %c0_67] : memref<7x8x1xf32, #tpu.memory_space<vmem>>, vector<1x8x1xf32>
    %283 = vector.shape_cast %282 : vector<1x8x1xf32> to vector<8x1xf32>
    %284 = vector.broadcast %283 : vector<8x1xf32> to vector<8x256xf32>
    %285 = arith.addf %281, %284 : vector<8x256xf32>
    %c0_68 = arith.constant 0 : index
    %c34 = arith.constant 34 : index
    %286 = vector.load %arg6[%c0_68, %c34] : memref<8x209xf32, #tpu.memory_space<vmem>>, vector<8x49xf32>
    %c48_i32 = arith.constant 48 : i32
    %287 = tpu.dynamic_rotate %285 by %c48_i32 dim 1 : vector<8x256xf32>, i32 -> vector<8x256xf32>
    %c12 = arith.constant 12 : index
    %c0_69 = arith.constant 0 : index
    %288 = vector.load %arg8[%c12, %c0_69] : memref<31x256xf32, #tpu.memory_space<vmem>>, vector<1x256xf32>
    %289 = vector.broadcast %288 : vector<1x256xf32> to vector<8x256xf32>
    %290 = arith.mulf %287, %289 : vector<8x256xf32>
    %c3_i32 = arith.constant 3 : i32
    %291 = tpu.dynamic_rotate %290 by %c3_i32 dim 1 : vector<8x256xf32>, i32 -> vector<8x256xf32>
    %c12_70 = arith.constant 12 : index
    %c0_71 = arith.constant 0 : index
    %292 = vector.load %arg9[%c12_70, %c0_71] : memref<31x256xf32, #tpu.memory_space<vmem>>, vector<1x256xf32>
    %293 = vector.broadcast %292 : vector<1x256xf32> to vector<8x256xf32>
    %294 = arith.mulf %291, %293 : vector<8x256xf32>
    %295 = vector.extract_strided_slice %286 {offsets = [0, 0], sizes = [8, 1], strides = [1, 1]} : vector<8x49xf32> to vector<8x1xf32>
    %296 = vector.broadcast %295 : vector<8x1xf32> to vector<8x256xf32>
    %297 = arith.mulf %294, %296 : vector<8x256xf32>
    %c2_i32_72 = arith.constant 2 : i32
    %298 = tpu.dynamic_rotate %290 by %c2_i32_72 dim 1 : vector<8x256xf32>, i32 -> vector<8x256xf32>
    %299 = vector.broadcast %97 : vector<1x256xf32> to vector<8x256xf32>
    %300 = arith.mulf %298, %299 : vector<8x256xf32>
    %301 = vector.extract_strided_slice %286 {offsets = [0, 1], sizes = [8, 1], strides = [1, 1]} : vector<8x49xf32> to vector<8x1xf32>
    %302 = vector.broadcast %301 : vector<8x1xf32> to vector<8x256xf32>
    %303 = arith.mulf %300, %302 : vector<8x256xf32>
    %304 = arith.addf %297, %303 : vector<8x256xf32>
    %c1_i32_73 = arith.constant 1 : i32
    %305 = tpu.dynamic_rotate %290 by %c1_i32_73 dim 1 : vector<8x256xf32>, i32 -> vector<8x256xf32>
    %306 = vector.broadcast %23 : vector<1x256xf32> to vector<8x256xf32>
    %307 = arith.mulf %305, %306 : vector<8x256xf32>
    %308 = vector.extract_strided_slice %286 {offsets = [0, 2], sizes = [8, 1], strides = [1, 1]} : vector<8x49xf32> to vector<8x1xf32>
    %309 = vector.broadcast %308 : vector<8x1xf32> to vector<8x256xf32>
    %310 = arith.mulf %307, %309 : vector<8x256xf32>
    %311 = arith.addf %304, %310 : vector<8x256xf32>
    %312 = vector.extract_strided_slice %286 {offsets = [0, 3], sizes = [8, 1], strides = [1, 1]} : vector<8x49xf32> to vector<8x1xf32>
    %313 = vector.broadcast %312 : vector<8x1xf32> to vector<8x256xf32>
    %314 = arith.mulf %290, %313 : vector<8x256xf32>
    %315 = arith.addf %311, %314 : vector<8x256xf32>
    %c255_i32_74 = arith.constant 255 : i32
    %316 = tpu.dynamic_rotate %290 by %c255_i32_74 dim 1 : vector<8x256xf32>, i32 -> vector<8x256xf32>
    %317 = vector.broadcast %34 : vector<1x256xf32> to vector<8x256xf32>
    %318 = arith.mulf %316, %317 : vector<8x256xf32>
    %319 = vector.extract_strided_slice %286 {offsets = [0, 4], sizes = [8, 1], strides = [1, 1]} : vector<8x49xf32> to vector<8x1xf32>
    %320 = vector.broadcast %319 : vector<8x1xf32> to vector<8x256xf32>
    %321 = arith.mulf %318, %320 : vector<8x256xf32>
    %322 = arith.addf %315, %321 : vector<8x256xf32>
    %c254_i32_75 = arith.constant 254 : i32
    %323 = tpu.dynamic_rotate %290 by %c254_i32_75 dim 1 : vector<8x256xf32>, i32 -> vector<8x256xf32>
    %324 = vector.broadcast %122 : vector<1x256xf32> to vector<8x256xf32>
    %325 = arith.mulf %323, %324 : vector<8x256xf32>
    %326 = vector.extract_strided_slice %286 {offsets = [0, 5], sizes = [8, 1], strides = [1, 1]} : vector<8x49xf32> to vector<8x1xf32>
    %327 = vector.broadcast %326 : vector<8x1xf32> to vector<8x256xf32>
    %328 = arith.mulf %325, %327 : vector<8x256xf32>
    %329 = arith.addf %322, %328 : vector<8x256xf32>
    %c253_i32 = arith.constant 253 : i32
    %330 = tpu.dynamic_rotate %290 by %c253_i32 dim 1 : vector<8x256xf32>, i32 -> vector<8x256xf32>
    %c18 = arith.constant 18 : index
    %c0_76 = arith.constant 0 : index
    %331 = vector.load %arg9[%c18, %c0_76] : memref<31x256xf32, #tpu.memory_space<vmem>>, vector<1x256xf32>
    %332 = vector.broadcast %331 : vector<1x256xf32> to vector<8x256xf32>
    %333 = arith.mulf %330, %332 : vector<8x256xf32>
    %334 = vector.extract_strided_slice %286 {offsets = [0, 6], sizes = [8, 1], strides = [1, 1]} : vector<8x49xf32> to vector<8x1xf32>
    %335 = vector.broadcast %334 : vector<8x1xf32> to vector<8x256xf32>
    %336 = arith.mulf %333, %335 : vector<8x256xf32>
    %337 = arith.addf %329, %336 : vector<8x256xf32>
    %c32_i32_77 = arith.constant 32 : i32
    %338 = tpu.dynamic_rotate %285 by %c32_i32_77 dim 1 : vector<8x256xf32>, i32 -> vector<8x256xf32>
    %339 = vector.broadcast %93 : vector<1x256xf32> to vector<8x256xf32>
    %340 = arith.mulf %338, %339 : vector<8x256xf32>
    %c3_i32_78 = arith.constant 3 : i32
    %341 = tpu.dynamic_rotate %340 by %c3_i32_78 dim 1 : vector<8x256xf32>, i32 -> vector<8x256xf32>
    %342 = vector.broadcast %292 : vector<1x256xf32> to vector<8x256xf32>
    %343 = arith.mulf %341, %342 : vector<8x256xf32>
    %344 = vector.extract_strided_slice %286 {offsets = [0, 7], sizes = [8, 1], strides = [1, 1]} : vector<8x49xf32> to vector<8x1xf32>
    %345 = vector.broadcast %344 : vector<8x1xf32> to vector<8x256xf32>
    %346 = arith.mulf %343, %345 : vector<8x256xf32>
    %347 = arith.addf %337, %346 : vector<8x256xf32>
    %c2_i32_79 = arith.constant 2 : i32
    %348 = tpu.dynamic_rotate %340 by %c2_i32_79 dim 1 : vector<8x256xf32>, i32 -> vector<8x256xf32>
    %349 = vector.broadcast %97 : vector<1x256xf32> to vector<8x256xf32>
    %350 = arith.mulf %348, %349 : vector<8x256xf32>
    %351 = vector.extract_strided_slice %286 {offsets = [0, 8], sizes = [8, 1], strides = [1, 1]} : vector<8x49xf32> to vector<8x1xf32>
    %352 = vector.broadcast %351 : vector<8x1xf32> to vector<8x256xf32>
    %353 = arith.mulf %350, %352 : vector<8x256xf32>
    %354 = arith.addf %347, %353 : vector<8x256xf32>
    %c1_i32_80 = arith.constant 1 : i32
    %355 = tpu.dynamic_rotate %340 by %c1_i32_80 dim 1 : vector<8x256xf32>, i32 -> vector<8x256xf32>
    %356 = vector.broadcast %23 : vector<1x256xf32> to vector<8x256xf32>
    %357 = arith.mulf %355, %356 : vector<8x256xf32>
    %358 = vector.extract_strided_slice %286 {offsets = [0, 9], sizes = [8, 1], strides = [1, 1]} : vector<8x49xf32> to vector<8x1xf32>
    %359 = vector.broadcast %358 : vector<8x1xf32> to vector<8x256xf32>
    %360 = arith.mulf %357, %359 : vector<8x256xf32>
    %361 = arith.addf %354, %360 : vector<8x256xf32>
    %362 = vector.extract_strided_slice %286 {offsets = [0, 10], sizes = [8, 1], strides = [1, 1]} : vector<8x49xf32> to vector<8x1xf32>
    %363 = vector.broadcast %362 : vector<8x1xf32> to vector<8x256xf32>
    %364 = arith.mulf %340, %363 : vector<8x256xf32>
    %365 = arith.addf %361, %364 : vector<8x256xf32>
    %c255_i32_81 = arith.constant 255 : i32
    %366 = tpu.dynamic_rotate %340 by %c255_i32_81 dim 1 : vector<8x256xf32>, i32 -> vector<8x256xf32>
    %367 = vector.broadcast %34 : vector<1x256xf32> to vector<8x256xf32>
    %368 = arith.mulf %366, %367 : vector<8x256xf32>
    %369 = vector.extract_strided_slice %286 {offsets = [0, 11], sizes = [8, 1], strides = [1, 1]} : vector<8x49xf32> to vector<8x1xf32>
    %370 = vector.broadcast %369 : vector<8x1xf32> to vector<8x256xf32>
    %371 = arith.mulf %368, %370 : vector<8x256xf32>
    %372 = arith.addf %365, %371 : vector<8x256xf32>
    %c254_i32_82 = arith.constant 254 : i32
    %373 = tpu.dynamic_rotate %340 by %c254_i32_82 dim 1 : vector<8x256xf32>, i32 -> vector<8x256xf32>
    %374 = vector.broadcast %122 : vector<1x256xf32> to vector<8x256xf32>
    %375 = arith.mulf %373, %374 : vector<8x256xf32>
    %376 = vector.extract_strided_slice %286 {offsets = [0, 12], sizes = [8, 1], strides = [1, 1]} : vector<8x49xf32> to vector<8x1xf32>
    %377 = vector.broadcast %376 : vector<8x1xf32> to vector<8x256xf32>
    %378 = arith.mulf %375, %377 : vector<8x256xf32>
    %379 = arith.addf %372, %378 : vector<8x256xf32>
    %c253_i32_83 = arith.constant 253 : i32
    %380 = tpu.dynamic_rotate %340 by %c253_i32_83 dim 1 : vector<8x256xf32>, i32 -> vector<8x256xf32>
    %381 = vector.broadcast %331 : vector<1x256xf32> to vector<8x256xf32>
    %382 = arith.mulf %380, %381 : vector<8x256xf32>
    %383 = vector.extract_strided_slice %286 {offsets = [0, 13], sizes = [8, 1], strides = [1, 1]} : vector<8x49xf32> to vector<8x1xf32>
    %384 = vector.broadcast %383 : vector<8x1xf32> to vector<8x256xf32>
    %385 = arith.mulf %382, %384 : vector<8x256xf32>
    %386 = arith.addf %379, %385 : vector<8x256xf32>
    %c16_i32_84 = arith.constant 16 : i32
    %387 = tpu.dynamic_rotate %285 by %c16_i32_84 dim 1 : vector<8x256xf32>, i32 -> vector<8x256xf32>
    %388 = vector.broadcast %19 : vector<1x256xf32> to vector<8x256xf32>
    %389 = arith.mulf %387, %388 : vector<8x256xf32>
    %c3_i32_85 = arith.constant 3 : i32
    %390 = tpu.dynamic_rotate %389 by %c3_i32_85 dim 1 : vector<8x256xf32>, i32 -> vector<8x256xf32>
    %391 = vector.broadcast %292 : vector<1x256xf32> to vector<8x256xf32>
    %392 = arith.mulf %390, %391 : vector<8x256xf32>
    %393 = vector.extract_strided_slice %286 {offsets = [0, 14], sizes = [8, 1], strides = [1, 1]} : vector<8x49xf32> to vector<8x1xf32>
    %394 = vector.broadcast %393 : vector<8x1xf32> to vector<8x256xf32>
    %395 = arith.mulf %392, %394 : vector<8x256xf32>
    %396 = arith.addf %386, %395 : vector<8x256xf32>
    %c2_i32_86 = arith.constant 2 : i32
    %397 = tpu.dynamic_rotate %389 by %c2_i32_86 dim 1 : vector<8x256xf32>, i32 -> vector<8x256xf32>
    %398 = vector.broadcast %97 : vector<1x256xf32> to vector<8x256xf32>
    %399 = arith.mulf %397, %398 : vector<8x256xf32>
    %400 = vector.extract_strided_slice %286 {offsets = [0, 15], sizes = [8, 1], strides = [1, 1]} : vector<8x49xf32> to vector<8x1xf32>
    %401 = vector.broadcast %400 : vector<8x1xf32> to vector<8x256xf32>
    %402 = arith.mulf %399, %401 : vector<8x256xf32>
    %403 = arith.addf %396, %402 : vector<8x256xf32>
    %c1_i32_87 = arith.constant 1 : i32
    %404 = tpu.dynamic_rotate %389 by %c1_i32_87 dim 1 : vector<8x256xf32>, i32 -> vector<8x256xf32>
    %405 = vector.broadcast %23 : vector<1x256xf32> to vector<8x256xf32>
    %406 = arith.mulf %404, %405 : vector<8x256xf32>
    %407 = vector.extract_strided_slice %286 {offsets = [0, 16], sizes = [8, 1], strides = [1, 1]} : vector<8x49xf32> to vector<8x1xf32>
    %408 = vector.broadcast %407 : vector<8x1xf32> to vector<8x256xf32>
    %409 = arith.mulf %406, %408 : vector<8x256xf32>
    %410 = arith.addf %403, %409 : vector<8x256xf32>
    %411 = vector.extract_strided_slice %286 {offsets = [0, 17], sizes = [8, 1], strides = [1, 1]} : vector<8x49xf32> to vector<8x1xf32>
    %412 = vector.broadcast %411 : vector<8x1xf32> to vector<8x256xf32>
    %413 = arith.mulf %389, %412 : vector<8x256xf32>
    %414 = arith.addf %410, %413 : vector<8x256xf32>
    %c255_i32_88 = arith.constant 255 : i32
    %415 = tpu.dynamic_rotate %389 by %c255_i32_88 dim 1 : vector<8x256xf32>, i32 -> vector<8x256xf32>
    %416 = vector.broadcast %34 : vector<1x256xf32> to vector<8x256xf32>
    %417 = arith.mulf %415, %416 : vector<8x256xf32>
    %418 = vector.extract_strided_slice %286 {offsets = [0, 18], sizes = [8, 1], strides = [1, 1]} : vector<8x49xf32> to vector<8x1xf32>
    %419 = vector.broadcast %418 : vector<8x1xf32> to vector<8x256xf32>
    %420 = arith.mulf %417, %419 : vector<8x256xf32>
    %421 = arith.addf %414, %420 : vector<8x256xf32>
    %c254_i32_89 = arith.constant 254 : i32
    %422 = tpu.dynamic_rotate %389 by %c254_i32_89 dim 1 : vector<8x256xf32>, i32 -> vector<8x256xf32>
    %423 = vector.broadcast %122 : vector<1x256xf32> to vector<8x256xf32>
    %424 = arith.mulf %422, %423 : vector<8x256xf32>
    %425 = vector.extract_strided_slice %286 {offsets = [0, 19], sizes = [8, 1], strides = [1, 1]} : vector<8x49xf32> to vector<8x1xf32>
    %426 = vector.broadcast %425 : vector<8x1xf32> to vector<8x256xf32>
    %427 = arith.mulf %424, %426 : vector<8x256xf32>
    %428 = arith.addf %421, %427 : vector<8x256xf32>
    %c253_i32_90 = arith.constant 253 : i32
    %429 = tpu.dynamic_rotate %389 by %c253_i32_90 dim 1 : vector<8x256xf32>, i32 -> vector<8x256xf32>
    %430 = vector.broadcast %331 : vector<1x256xf32> to vector<8x256xf32>
    %431 = arith.mulf %429, %430 : vector<8x256xf32>
    %432 = vector.extract_strided_slice %286 {offsets = [0, 20], sizes = [8, 1], strides = [1, 1]} : vector<8x49xf32> to vector<8x1xf32>
    %433 = vector.broadcast %432 : vector<8x1xf32> to vector<8x256xf32>
    %434 = arith.mulf %431, %433 : vector<8x256xf32>
    %435 = arith.addf %428, %434 : vector<8x256xf32>
    %c3_i32_91 = arith.constant 3 : i32
    %436 = tpu.dynamic_rotate %285 by %c3_i32_91 dim 1 : vector<8x256xf32>, i32 -> vector<8x256xf32>
    %437 = vector.broadcast %292 : vector<1x256xf32> to vector<8x256xf32>
    %438 = arith.mulf %436, %437 : vector<8x256xf32>
    %439 = vector.extract_strided_slice %286 {offsets = [0, 21], sizes = [8, 1], strides = [1, 1]} : vector<8x49xf32> to vector<8x1xf32>
    %440 = vector.broadcast %439 : vector<8x1xf32> to vector<8x256xf32>
    %441 = arith.mulf %438, %440 : vector<8x256xf32>
    %442 = arith.addf %435, %441 : vector<8x256xf32>
    %c2_i32_92 = arith.constant 2 : i32
    %443 = tpu.dynamic_rotate %285 by %c2_i32_92 dim 1 : vector<8x256xf32>, i32 -> vector<8x256xf32>
    %444 = vector.broadcast %97 : vector<1x256xf32> to vector<8x256xf32>
    %445 = arith.mulf %443, %444 : vector<8x256xf32>
    %446 = vector.extract_strided_slice %286 {offsets = [0, 22], sizes = [8, 1], strides = [1, 1]} : vector<8x49xf32> to vector<8x1xf32>
    %447 = vector.broadcast %446 : vector<8x1xf32> to vector<8x256xf32>
    %448 = arith.mulf %445, %447 : vector<8x256xf32>
    %449 = arith.addf %442, %448 : vector<8x256xf32>
    %c1_i32_93 = arith.constant 1 : i32
    %450 = tpu.dynamic_rotate %285 by %c1_i32_93 dim 1 : vector<8x256xf32>, i32 -> vector<8x256xf32>
    %451 = vector.broadcast %23 : vector<1x256xf32> to vector<8x256xf32>
    %452 = arith.mulf %450, %451 : vector<8x256xf32>
    %453 = vector.extract_strided_slice %286 {offsets = [0, 23], sizes = [8, 1], strides = [1, 1]} : vector<8x49xf32> to vector<8x1xf32>
    %454 = vector.broadcast %453 : vector<8x1xf32> to vector<8x256xf32>
    %455 = arith.mulf %452, %454 : vector<8x256xf32>
    %456 = arith.addf %449, %455 : vector<8x256xf32>
    %457 = vector.extract_strided_slice %286 {offsets = [0, 24], sizes = [8, 1], strides = [1, 1]} : vector<8x49xf32> to vector<8x1xf32>
    %458 = vector.broadcast %457 : vector<8x1xf32> to vector<8x256xf32>
    %459 = arith.mulf %285, %458 : vector<8x256xf32>
    %460 = arith.addf %456, %459 : vector<8x256xf32>
    %c255_i32_94 = arith.constant 255 : i32
    %461 = tpu.dynamic_rotate %285 by %c255_i32_94 dim 1 : vector<8x256xf32>, i32 -> vector<8x256xf32>
    %462 = vector.broadcast %34 : vector<1x256xf32> to vector<8x256xf32>
    %463 = arith.mulf %461, %462 : vector<8x256xf32>
    %464 = vector.extract_strided_slice %286 {offsets = [0, 25], sizes = [8, 1], strides = [1, 1]} : vector<8x49xf32> to vector<8x1xf32>
    %465 = vector.broadcast %464 : vector<8x1xf32> to vector<8x256xf32>
    %466 = arith.mulf %463, %465 : vector<8x256xf32>
    %467 = arith.addf %460, %466 : vector<8x256xf32>
    %c254_i32_95 = arith.constant 254 : i32
    %468 = tpu.dynamic_rotate %285 by %c254_i32_95 dim 1 : vector<8x256xf32>, i32 -> vector<8x256xf32>
    %469 = vector.broadcast %122 : vector<1x256xf32> to vector<8x256xf32>
    %470 = arith.mulf %468, %469 : vector<8x256xf32>
    %471 = vector.extract_strided_slice %286 {offsets = [0, 26], sizes = [8, 1], strides = [1, 1]} : vector<8x49xf32> to vector<8x1xf32>
    %472 = vector.broadcast %471 : vector<8x1xf32> to vector<8x256xf32>
    %473 = arith.mulf %470, %472 : vector<8x256xf32>
    %474 = arith.addf %467, %473 : vector<8x256xf32>
    %c253_i32_96 = arith.constant 253 : i32
    %475 = tpu.dynamic_rotate %285 by %c253_i32_96 dim 1 : vector<8x256xf32>, i32 -> vector<8x256xf32>
    %476 = vector.broadcast %331 : vector<1x256xf32> to vector<8x256xf32>
    %477 = arith.mulf %475, %476 : vector<8x256xf32>
    %478 = vector.extract_strided_slice %286 {offsets = [0, 27], sizes = [8, 1], strides = [1, 1]} : vector<8x49xf32> to vector<8x1xf32>
    %479 = vector.broadcast %478 : vector<8x1xf32> to vector<8x256xf32>
    %480 = arith.mulf %477, %479 : vector<8x256xf32>
    %481 = arith.addf %474, %480 : vector<8x256xf32>
    %c240_i32_97 = arith.constant 240 : i32
    %482 = tpu.dynamic_rotate %285 by %c240_i32_97 dim 1 : vector<8x256xf32>, i32 -> vector<8x256xf32>
    %483 = vector.broadcast %60 : vector<1x256xf32> to vector<8x256xf32>
    %484 = arith.mulf %482, %483 : vector<8x256xf32>
    %c3_i32_98 = arith.constant 3 : i32
    %485 = tpu.dynamic_rotate %484 by %c3_i32_98 dim 1 : vector<8x256xf32>, i32 -> vector<8x256xf32>
    %486 = vector.broadcast %292 : vector<1x256xf32> to vector<8x256xf32>
    %487 = arith.mulf %485, %486 : vector<8x256xf32>
    %488 = vector.extract_strided_slice %286 {offsets = [0, 28], sizes = [8, 1], strides = [1, 1]} : vector<8x49xf32> to vector<8x1xf32>
    %489 = vector.broadcast %488 : vector<8x1xf32> to vector<8x256xf32>
    %490 = arith.mulf %487, %489 : vector<8x256xf32>
    %491 = arith.addf %481, %490 : vector<8x256xf32>
    %c2_i32_99 = arith.constant 2 : i32
    %492 = tpu.dynamic_rotate %484 by %c2_i32_99 dim 1 : vector<8x256xf32>, i32 -> vector<8x256xf32>
    %493 = vector.broadcast %97 : vector<1x256xf32> to vector<8x256xf32>
    %494 = arith.mulf %492, %493 : vector<8x256xf32>
    %495 = vector.extract_strided_slice %286 {offsets = [0, 29], sizes = [8, 1], strides = [1, 1]} : vector<8x49xf32> to vector<8x1xf32>
    %496 = vector.broadcast %495 : vector<8x1xf32> to vector<8x256xf32>
    %497 = arith.mulf %494, %496 : vector<8x256xf32>
    %498 = arith.addf %491, %497 : vector<8x256xf32>
    %c1_i32_100 = arith.constant 1 : i32
    %499 = tpu.dynamic_rotate %484 by %c1_i32_100 dim 1 : vector<8x256xf32>, i32 -> vector<8x256xf32>
    %500 = vector.broadcast %23 : vector<1x256xf32> to vector<8x256xf32>
    %501 = arith.mulf %499, %500 : vector<8x256xf32>
    %502 = vector.extract_strided_slice %286 {offsets = [0, 30], sizes = [8, 1], strides = [1, 1]} : vector<8x49xf32> to vector<8x1xf32>
    %503 = vector.broadcast %502 : vector<8x1xf32> to vector<8x256xf32>
    %504 = arith.mulf %501, %503 : vector<8x256xf32>
    %505 = arith.addf %498, %504 : vector<8x256xf32>
    %506 = vector.extract_strided_slice %286 {offsets = [0, 31], sizes = [8, 1], strides = [1, 1]} : vector<8x49xf32> to vector<8x1xf32>
    %507 = vector.broadcast %506 : vector<8x1xf32> to vector<8x256xf32>
    %508 = arith.mulf %484, %507 : vector<8x256xf32>
    %509 = arith.addf %505, %508 : vector<8x256xf32>
    %c255_i32_101 = arith.constant 255 : i32
    %510 = tpu.dynamic_rotate %484 by %c255_i32_101 dim 1 : vector<8x256xf32>, i32 -> vector<8x256xf32>
    %511 = vector.broadcast %34 : vector<1x256xf32> to vector<8x256xf32>
    %512 = arith.mulf %510, %511 : vector<8x256xf32>
    %513 = vector.extract_strided_slice %286 {offsets = [0, 32], sizes = [8, 1], strides = [1, 1]} : vector<8x49xf32> to vector<8x1xf32>
    %514 = vector.broadcast %513 : vector<8x1xf32> to vector<8x256xf32>
    %515 = arith.mulf %512, %514 : vector<8x256xf32>
    %516 = arith.addf %509, %515 : vector<8x256xf32>
    %c254_i32_102 = arith.constant 254 : i32
    %517 = tpu.dynamic_rotate %484 by %c254_i32_102 dim 1 : vector<8x256xf32>, i32 -> vector<8x256xf32>
    %518 = vector.broadcast %122 : vector<1x256xf32> to vector<8x256xf32>
    %519 = arith.mulf %517, %518 : vector<8x256xf32>
    %520 = vector.extract_strided_slice %286 {offsets = [0, 33], sizes = [8, 1], strides = [1, 1]} : vector<8x49xf32> to vector<8x1xf32>
    %521 = vector.broadcast %520 : vector<8x1xf32> to vector<8x256xf32>
    %522 = arith.mulf %519, %521 : vector<8x256xf32>
    %523 = arith.addf %516, %522 : vector<8x256xf32>
    %c253_i32_103 = arith.constant 253 : i32
    %524 = tpu.dynamic_rotate %484 by %c253_i32_103 dim 1 : vector<8x256xf32>, i32 -> vector<8x256xf32>
    %525 = vector.broadcast %331 : vector<1x256xf32> to vector<8x256xf32>
    %526 = arith.mulf %524, %525 : vector<8x256xf32>
    %527 = vector.extract_strided_slice %286 {offsets = [0, 34], sizes = [8, 1], strides = [1, 1]} : vector<8x49xf32> to vector<8x1xf32>
    %528 = vector.broadcast %527 : vector<8x1xf32> to vector<8x256xf32>
    %529 = arith.mulf %526, %528 : vector<8x256xf32>
    %530 = arith.addf %523, %529 : vector<8x256xf32>
    %c224_i32_104 = arith.constant 224 : i32
    %531 = tpu.dynamic_rotate %285 by %c224_i32_104 dim 1 : vector<8x256xf32>, i32 -> vector<8x256xf32>
    %532 = vector.broadcast %232 : vector<1x256xf32> to vector<8x256xf32>
    %533 = arith.mulf %531, %532 : vector<8x256xf32>
    %c3_i32_105 = arith.constant 3 : i32
    %534 = tpu.dynamic_rotate %533 by %c3_i32_105 dim 1 : vector<8x256xf32>, i32 -> vector<8x256xf32>
    %535 = vector.broadcast %292 : vector<1x256xf32> to vector<8x256xf32>
    %536 = arith.mulf %534, %535 : vector<8x256xf32>
    %537 = vector.extract_strided_slice %286 {offsets = [0, 35], sizes = [8, 1], strides = [1, 1]} : vector<8x49xf32> to vector<8x1xf32>
    %538 = vector.broadcast %537 : vector<8x1xf32> to vector<8x256xf32>
    %539 = arith.mulf %536, %538 : vector<8x256xf32>
    %540 = arith.addf %530, %539 : vector<8x256xf32>
    %c2_i32_106 = arith.constant 2 : i32
    %541 = tpu.dynamic_rotate %533 by %c2_i32_106 dim 1 : vector<8x256xf32>, i32 -> vector<8x256xf32>
    %542 = vector.broadcast %97 : vector<1x256xf32> to vector<8x256xf32>
    %543 = arith.mulf %541, %542 : vector<8x256xf32>
    %544 = vector.extract_strided_slice %286 {offsets = [0, 36], sizes = [8, 1], strides = [1, 1]} : vector<8x49xf32> to vector<8x1xf32>
    %545 = vector.broadcast %544 : vector<8x1xf32> to vector<8x256xf32>
    %546 = arith.mulf %543, %545 : vector<8x256xf32>
    %547 = arith.addf %540, %546 : vector<8x256xf32>
    %c1_i32_107 = arith.constant 1 : i32
    %548 = tpu.dynamic_rotate %533 by %c1_i32_107 dim 1 : vector<8x256xf32>, i32 -> vector<8x256xf32>
    %549 = vector.broadcast %23 : vector<1x256xf32> to vector<8x256xf32>
    %550 = arith.mulf %548, %549 : vector<8x256xf32>
    %551 = vector.extract_strided_slice %286 {offsets = [0, 37], sizes = [8, 1], strides = [1, 1]} : vector<8x49xf32> to vector<8x1xf32>
    %552 = vector.broadcast %551 : vector<8x1xf32> to vector<8x256xf32>
    %553 = arith.mulf %550, %552 : vector<8x256xf32>
    %554 = arith.addf %547, %553 : vector<8x256xf32>
    %555 = vector.extract_strided_slice %286 {offsets = [0, 38], sizes = [8, 1], strides = [1, 1]} : vector<8x49xf32> to vector<8x1xf32>
    %556 = vector.broadcast %555 : vector<8x1xf32> to vector<8x256xf32>
    %557 = arith.mulf %533, %556 : vector<8x256xf32>
    %558 = arith.addf %554, %557 : vector<8x256xf32>
    %c255_i32_108 = arith.constant 255 : i32
    %559 = tpu.dynamic_rotate %533 by %c255_i32_108 dim 1 : vector<8x256xf32>, i32 -> vector<8x256xf32>
    %560 = vector.broadcast %34 : vector<1x256xf32> to vector<8x256xf32>
    %561 = arith.mulf %559, %560 : vector<8x256xf32>
    %562 = vector.extract_strided_slice %286 {offsets = [0, 39], sizes = [8, 1], strides = [1, 1]} : vector<8x49xf32> to vector<8x1xf32>
    %563 = vector.broadcast %562 : vector<8x1xf32> to vector<8x256xf32>
    %564 = arith.mulf %561, %563 : vector<8x256xf32>
    %565 = arith.addf %558, %564 : vector<8x256xf32>
    %c254_i32_109 = arith.constant 254 : i32
    %566 = tpu.dynamic_rotate %533 by %c254_i32_109 dim 1 : vector<8x256xf32>, i32 -> vector<8x256xf32>
    %567 = vector.broadcast %122 : vector<1x256xf32> to vector<8x256xf32>
    %568 = arith.mulf %566, %567 : vector<8x256xf32>
    %569 = vector.extract_strided_slice %286 {offsets = [0, 40], sizes = [8, 1], strides = [1, 1]} : vector<8x49xf32> to vector<8x1xf32>
    %570 = vector.broadcast %569 : vector<8x1xf32> to vector<8x256xf32>
    %571 = arith.mulf %568, %570 : vector<8x256xf32>
    %572 = arith.addf %565, %571 : vector<8x256xf32>
    %c253_i32_110 = arith.constant 253 : i32
    %573 = tpu.dynamic_rotate %533 by %c253_i32_110 dim 1 : vector<8x256xf32>, i32 -> vector<8x256xf32>
    %574 = vector.broadcast %331 : vector<1x256xf32> to vector<8x256xf32>
    %575 = arith.mulf %573, %574 : vector<8x256xf32>
    %576 = vector.extract_strided_slice %286 {offsets = [0, 41], sizes = [8, 1], strides = [1, 1]} : vector<8x49xf32> to vector<8x1xf32>
    %577 = vector.broadcast %576 : vector<8x1xf32> to vector<8x256xf32>
    %578 = arith.mulf %575, %577 : vector<8x256xf32>
    %579 = arith.addf %572, %578 : vector<8x256xf32>
    %c208_i32 = arith.constant 208 : i32
    %580 = tpu.dynamic_rotate %285 by %c208_i32 dim 1 : vector<8x256xf32>, i32 -> vector<8x256xf32>
    %c18_111 = arith.constant 18 : index
    %c0_112 = arith.constant 0 : index
    %581 = vector.load %arg8[%c18_111, %c0_112] : memref<31x256xf32, #tpu.memory_space<vmem>>, vector<1x256xf32>
    %582 = vector.broadcast %581 : vector<1x256xf32> to vector<8x256xf32>
    %583 = arith.mulf %580, %582 : vector<8x256xf32>
    %c3_i32_113 = arith.constant 3 : i32
    %584 = tpu.dynamic_rotate %583 by %c3_i32_113 dim 1 : vector<8x256xf32>, i32 -> vector<8x256xf32>
    %585 = vector.broadcast %292 : vector<1x256xf32> to vector<8x256xf32>
    %586 = arith.mulf %584, %585 : vector<8x256xf32>
    %587 = vector.extract_strided_slice %286 {offsets = [0, 42], sizes = [8, 1], strides = [1, 1]} : vector<8x49xf32> to vector<8x1xf32>
    %588 = vector.broadcast %587 : vector<8x1xf32> to vector<8x256xf32>
    %589 = arith.mulf %586, %588 : vector<8x256xf32>
    %590 = arith.addf %579, %589 : vector<8x256xf32>
    %c2_i32_114 = arith.constant 2 : i32
    %591 = tpu.dynamic_rotate %583 by %c2_i32_114 dim 1 : vector<8x256xf32>, i32 -> vector<8x256xf32>
    %592 = vector.broadcast %97 : vector<1x256xf32> to vector<8x256xf32>
    %593 = arith.mulf %591, %592 : vector<8x256xf32>
    %594 = vector.extract_strided_slice %286 {offsets = [0, 43], sizes = [8, 1], strides = [1, 1]} : vector<8x49xf32> to vector<8x1xf32>
    %595 = vector.broadcast %594 : vector<8x1xf32> to vector<8x256xf32>
    %596 = arith.mulf %593, %595 : vector<8x256xf32>
    %597 = arith.addf %590, %596 : vector<8x256xf32>
    %c1_i32_115 = arith.constant 1 : i32
    %598 = tpu.dynamic_rotate %583 by %c1_i32_115 dim 1 : vector<8x256xf32>, i32 -> vector<8x256xf32>
    %599 = vector.broadcast %23 : vector<1x256xf32> to vector<8x256xf32>
    %600 = arith.mulf %598, %599 : vector<8x256xf32>
    %601 = vector.extract_strided_slice %286 {offsets = [0, 44], sizes = [8, 1], strides = [1, 1]} : vector<8x49xf32> to vector<8x1xf32>
    %602 = vector.broadcast %601 : vector<8x1xf32> to vector<8x256xf32>
    %603 = arith.mulf %600, %602 : vector<8x256xf32>
    %604 = arith.addf %597, %603 : vector<8x256xf32>
    %605 = vector.extract_strided_slice %286 {offsets = [0, 45], sizes = [8, 1], strides = [1, 1]} : vector<8x49xf32> to vector<8x1xf32>
    %606 = vector.broadcast %605 : vector<8x1xf32> to vector<8x256xf32>
    %607 = arith.mulf %583, %606 : vector<8x256xf32>
    %608 = arith.addf %604, %607 : vector<8x256xf32>
    %c255_i32_116 = arith.constant 255 : i32
    %609 = tpu.dynamic_rotate %583 by %c255_i32_116 dim 1 : vector<8x256xf32>, i32 -> vector<8x256xf32>
    %610 = vector.broadcast %34 : vector<1x256xf32> to vector<8x256xf32>
    %611 = arith.mulf %609, %610 : vector<8x256xf32>
    %612 = vector.extract_strided_slice %286 {offsets = [0, 46], sizes = [8, 1], strides = [1, 1]} : vector<8x49xf32> to vector<8x1xf32>
    %613 = vector.broadcast %612 : vector<8x1xf32> to vector<8x256xf32>
    %614 = arith.mulf %611, %613 : vector<8x256xf32>
    %615 = arith.addf %608, %614 : vector<8x256xf32>
    %c254_i32_117 = arith.constant 254 : i32
    %616 = tpu.dynamic_rotate %583 by %c254_i32_117 dim 1 : vector<8x256xf32>, i32 -> vector<8x256xf32>
    %617 = vector.broadcast %122 : vector<1x256xf32> to vector<8x256xf32>
    %618 = arith.mulf %616, %617 : vector<8x256xf32>
    %619 = vector.extract_strided_slice %286 {offsets = [0, 47], sizes = [8, 1], strides = [1, 1]} : vector<8x49xf32> to vector<8x1xf32>
    %620 = vector.broadcast %619 : vector<8x1xf32> to vector<8x256xf32>
    %621 = arith.mulf %618, %620 : vector<8x256xf32>
    %622 = arith.addf %615, %621 : vector<8x256xf32>
    %c253_i32_118 = arith.constant 253 : i32
    %623 = tpu.dynamic_rotate %583 by %c253_i32_118 dim 1 : vector<8x256xf32>, i32 -> vector<8x256xf32>
    %624 = vector.broadcast %331 : vector<1x256xf32> to vector<8x256xf32>
    %625 = arith.mulf %623, %624 : vector<8x256xf32>
    %626 = vector.extract_strided_slice %286 {offsets = [0, 48], sizes = [8, 1], strides = [1, 1]} : vector<8x49xf32> to vector<8x1xf32>
    %627 = vector.broadcast %626 : vector<8x1xf32> to vector<8x256xf32>
    %628 = arith.mulf %625, %627 : vector<8x256xf32>
    %629 = arith.addf %622, %628 : vector<8x256xf32>
    %c0_119 = arith.constant 0 : index
    %c2 = arith.constant 2 : index
    %630 = vector.load %arg7[%c0_119, %c2] : memref<8x9xf32, #tpu.memory_space<vmem>>, vector<8x1xf32>
    %631 = vector.broadcast %630 : vector<8x1xf32> to vector<8x256xf32>
    %632 = arith.addf %629, %631 : vector<8x256xf32>
    %633 = arith.addf %632, %278 : vector<8x256xf32>
    %cst_120 = arith.constant 0.000000e+00 : f32
    %634 = vector.broadcast %cst_120 : f32 to vector<8x256xf32>
    %635 = arith.subf %634, %633 : vector<8x256xf32>
    %636 = math.exp %635 : vector<8x256xf32>
    %cst_121 = arith.constant 1.000000e+00 : f32
    %637 = vector.broadcast %cst_121 : f32 to vector<8x256xf32>
    %638 = arith.addf %637, %636 : vector<8x256xf32>
    %cst_122 = arith.constant 1.000000e+00 : f32
    %639 = vector.broadcast %cst_122 : f32 to vector<8x256xf32>
    %640 = arith.divf %639, %638 : vector<8x256xf32>
    %641 = arith.mulf %633, %640 : vector<8x256xf32>
    %c2_123 = arith.constant 2 : index
    %c0_124 = arith.constant 0 : index
    %c0_125 = arith.constant 0 : index
    %642 = vector.load %arg4[%c2_123, %c0_124, %c0_125] : memref<7x8x8xf32, #tpu.memory_space<vmem>>, vector<1x8x8xf32>
    %643 = vector.shape_cast %642 : vector<1x8x8xf32> to vector<8x8xf32>
    %cst_126 = arith.constant dense<0.000000e+00> : vector<8x256xf32>
    %644 = tpu.matmul %643, %641, %cst_126 {dimension_numbers = #tpu.dot_dimension_numbers<[1], [0], [0], [1], [0, 0, 1, 1], [], []>} : vector<8x8xf32>, vector<8x256xf32>, vector<8x256xf32> -> vector<8x256xf32>
    %c2_127 = arith.constant 2 : index
    %c0_128 = arith.constant 0 : index
    %c0_129 = arith.constant 0 : index
    %645 = vector.load %arg5[%c2_127, %c0_128, %c0_129] : memref<7x8x1xf32, #tpu.memory_space<vmem>>, vector<1x8x1xf32>
    %646 = vector.shape_cast %645 : vector<1x8x1xf32> to vector<8x1xf32>
    %647 = vector.broadcast %646 : vector<8x1xf32> to vector<8x256xf32>
    %648 = arith.addf %644, %647 : vector<8x256xf32>
    %c0_130 = arith.constant 0 : index
    %c83 = arith.constant 83 : index
    %649 = vector.load %arg6[%c0_130, %c83] : memref<8x209xf32, #tpu.memory_space<vmem>>, vector<8x11xf32>
    %c5_i32 = arith.constant 5 : i32
    %650 = tpu.dynamic_rotate %648 by %c5_i32 dim 1 : vector<8x256xf32>, i32 -> vector<8x256xf32>
    %c10 = arith.constant 10 : index
    %c0_131 = arith.constant 0 : index
    %651 = vector.load %arg9[%c10, %c0_131] : memref<31x256xf32, #tpu.memory_space<vmem>>, vector<1x256xf32>
    %652 = vector.broadcast %651 : vector<1x256xf32> to vector<8x256xf32>
    %653 = arith.mulf %650, %652 : vector<8x256xf32>
    %654 = vector.extract_strided_slice %649 {offsets = [0, 0], sizes = [8, 1], strides = [1, 1]} : vector<8x11xf32> to vector<8x1xf32>
    %655 = vector.broadcast %654 : vector<8x1xf32> to vector<8x256xf32>
    %656 = arith.mulf %653, %655 : vector<8x256xf32>
    %c4_i32 = arith.constant 4 : i32
    %657 = tpu.dynamic_rotate %648 by %c4_i32 dim 1 : vector<8x256xf32>, i32 -> vector<8x256xf32>
    %c11 = arith.constant 11 : index
    %c0_132 = arith.constant 0 : index
    %658 = vector.load %arg9[%c11, %c0_132] : memref<31x256xf32, #tpu.memory_space<vmem>>, vector<1x256xf32>
    %659 = vector.broadcast %658 : vector<1x256xf32> to vector<8x256xf32>
    %660 = arith.mulf %657, %659 : vector<8x256xf32>
    %661 = vector.extract_strided_slice %649 {offsets = [0, 1], sizes = [8, 1], strides = [1, 1]} : vector<8x11xf32> to vector<8x1xf32>
    %662 = vector.broadcast %661 : vector<8x1xf32> to vector<8x256xf32>
    %663 = arith.mulf %660, %662 : vector<8x256xf32>
    %664 = arith.addf %656, %663 : vector<8x256xf32>
    %c3_i32_133 = arith.constant 3 : i32
    %665 = tpu.dynamic_rotate %648 by %c3_i32_133 dim 1 : vector<8x256xf32>, i32 -> vector<8x256xf32>
    %666 = vector.broadcast %292 : vector<1x256xf32> to vector<8x256xf32>
    %667 = arith.mulf %665, %666 : vector<8x256xf32>
    %668 = vector.extract_strided_slice %649 {offsets = [0, 2], sizes = [8, 1], strides = [1, 1]} : vector<8x11xf32> to vector<8x1xf32>
    %669 = vector.broadcast %668 : vector<8x1xf32> to vector<8x256xf32>
    %670 = arith.mulf %667, %669 : vector<8x256xf32>
    %671 = arith.addf %664, %670 : vector<8x256xf32>
    %c2_i32_134 = arith.constant 2 : i32
    %672 = tpu.dynamic_rotate %648 by %c2_i32_134 dim 1 : vector<8x256xf32>, i32 -> vector<8x256xf32>
    %673 = vector.broadcast %97 : vector<1x256xf32> to vector<8x256xf32>
    %674 = arith.mulf %672, %673 : vector<8x256xf32>
    %675 = vector.extract_strided_slice %649 {offsets = [0, 3], sizes = [8, 1], strides = [1, 1]} : vector<8x11xf32> to vector<8x1xf32>
    %676 = vector.broadcast %675 : vector<8x1xf32> to vector<8x256xf32>
    %677 = arith.mulf %674, %676 : vector<8x256xf32>
    %678 = arith.addf %671, %677 : vector<8x256xf32>
    %c1_i32_135 = arith.constant 1 : i32
    %679 = tpu.dynamic_rotate %648 by %c1_i32_135 dim 1 : vector<8x256xf32>, i32 -> vector<8x256xf32>
    %680 = vector.broadcast %23 : vector<1x256xf32> to vector<8x256xf32>
    %681 = arith.mulf %679, %680 : vector<8x256xf32>
    %682 = vector.extract_strided_slice %649 {offsets = [0, 4], sizes = [8, 1], strides = [1, 1]} : vector<8x11xf32> to vector<8x1xf32>
    %683 = vector.broadcast %682 : vector<8x1xf32> to vector<8x256xf32>
    %684 = arith.mulf %681, %683 : vector<8x256xf32>
    %685 = arith.addf %678, %684 : vector<8x256xf32>
    %686 = vector.extract_strided_slice %649 {offsets = [0, 5], sizes = [8, 1], strides = [1, 1]} : vector<8x11xf32> to vector<8x1xf32>
    %687 = vector.broadcast %686 : vector<8x1xf32> to vector<8x256xf32>
    %688 = arith.mulf %648, %687 : vector<8x256xf32>
    %689 = arith.addf %685, %688 : vector<8x256xf32>
    %c255_i32_136 = arith.constant 255 : i32
    %690 = tpu.dynamic_rotate %648 by %c255_i32_136 dim 1 : vector<8x256xf32>, i32 -> vector<8x256xf32>
    %691 = vector.broadcast %34 : vector<1x256xf32> to vector<8x256xf32>
    %692 = arith.mulf %690, %691 : vector<8x256xf32>
    %693 = vector.extract_strided_slice %649 {offsets = [0, 6], sizes = [8, 1], strides = [1, 1]} : vector<8x11xf32> to vector<8x1xf32>
    %694 = vector.broadcast %693 : vector<8x1xf32> to vector<8x256xf32>
    %695 = arith.mulf %692, %694 : vector<8x256xf32>
    %696 = arith.addf %689, %695 : vector<8x256xf32>
    %c254_i32_137 = arith.constant 254 : i32
    %697 = tpu.dynamic_rotate %648 by %c254_i32_137 dim 1 : vector<8x256xf32>, i32 -> vector<8x256xf32>
    %698 = vector.broadcast %122 : vector<1x256xf32> to vector<8x256xf32>
    %699 = arith.mulf %697, %698 : vector<8x256xf32>
    %700 = vector.extract_strided_slice %649 {offsets = [0, 7], sizes = [8, 1], strides = [1, 1]} : vector<8x11xf32> to vector<8x1xf32>
    %701 = vector.broadcast %700 : vector<8x1xf32> to vector<8x256xf32>
    %702 = arith.mulf %699, %701 : vector<8x256xf32>
    %703 = arith.addf %696, %702 : vector<8x256xf32>
    %c253_i32_138 = arith.constant 253 : i32
    %704 = tpu.dynamic_rotate %648 by %c253_i32_138 dim 1 : vector<8x256xf32>, i32 -> vector<8x256xf32>
    %705 = vector.broadcast %331 : vector<1x256xf32> to vector<8x256xf32>
    %706 = arith.mulf %704, %705 : vector<8x256xf32>
    %707 = vector.extract_strided_slice %649 {offsets = [0, 8], sizes = [8, 1], strides = [1, 1]} : vector<8x11xf32> to vector<8x1xf32>
    %708 = vector.broadcast %707 : vector<8x1xf32> to vector<8x256xf32>
    %709 = arith.mulf %706, %708 : vector<8x256xf32>
    %710 = arith.addf %703, %709 : vector<8x256xf32>
    %c252_i32 = arith.constant 252 : i32
    %711 = tpu.dynamic_rotate %648 by %c252_i32 dim 1 : vector<8x256xf32>, i32 -> vector<8x256xf32>
    %c19 = arith.constant 19 : index
    %c0_139 = arith.constant 0 : index
    %712 = vector.load %arg9[%c19, %c0_139] : memref<31x256xf32, #tpu.memory_space<vmem>>, vector<1x256xf32>
    %713 = vector.broadcast %712 : vector<1x256xf32> to vector<8x256xf32>
    %714 = arith.mulf %711, %713 : vector<8x256xf32>
    %715 = vector.extract_strided_slice %649 {offsets = [0, 9], sizes = [8, 1], strides = [1, 1]} : vector<8x11xf32> to vector<8x1xf32>
    %716 = vector.broadcast %715 : vector<8x1xf32> to vector<8x256xf32>
    %717 = arith.mulf %714, %716 : vector<8x256xf32>
    %718 = arith.addf %710, %717 : vector<8x256xf32>
    %c251_i32 = arith.constant 251 : i32
    %719 = tpu.dynamic_rotate %648 by %c251_i32 dim 1 : vector<8x256xf32>, i32 -> vector<8x256xf32>
    %c20 = arith.constant 20 : index
    %c0_140 = arith.constant 0 : index
    %720 = vector.load %arg9[%c20, %c0_140] : memref<31x256xf32, #tpu.memory_space<vmem>>, vector<1x256xf32>
    %721 = vector.broadcast %720 : vector<1x256xf32> to vector<8x256xf32>
    %722 = arith.mulf %719, %721 : vector<8x256xf32>
    %723 = vector.extract_strided_slice %649 {offsets = [0, 10], sizes = [8, 1], strides = [1, 1]} : vector<8x11xf32> to vector<8x1xf32>
    %724 = vector.broadcast %723 : vector<8x1xf32> to vector<8x256xf32>
    %725 = arith.mulf %722, %724 : vector<8x256xf32>
    %726 = arith.addf %718, %725 : vector<8x256xf32>
    %c0_141 = arith.constant 0 : index
    %c3 = arith.constant 3 : index
    %727 = vector.load %arg7[%c0_141, %c3] : memref<8x9xf32, #tpu.memory_space<vmem>>, vector<8x1xf32>
    %728 = vector.broadcast %727 : vector<8x1xf32> to vector<8x256xf32>
    %729 = arith.addf %726, %728 : vector<8x256xf32>
    %c0_142 = arith.constant 0 : index
    %c94 = arith.constant 94 : index
    %730 = vector.load %arg6[%c0_142, %c94] : memref<8x209xf32, #tpu.memory_space<vmem>>, vector<8x11xf32>
    %c80_i32 = arith.constant 80 : i32
    %731 = tpu.dynamic_rotate %729 by %c80_i32 dim 1 : vector<8x256xf32>, i32 -> vector<8x256xf32>
    %c10_143 = arith.constant 10 : index
    %c0_144 = arith.constant 0 : index
    %732 = vector.load %arg8[%c10_143, %c0_144] : memref<31x256xf32, #tpu.memory_space<vmem>>, vector<1x256xf32>
    %733 = vector.broadcast %732 : vector<1x256xf32> to vector<8x256xf32>
    %734 = arith.mulf %731, %733 : vector<8x256xf32>
    %735 = vector.extract_strided_slice %730 {offsets = [0, 0], sizes = [8, 1], strides = [1, 1]} : vector<8x11xf32> to vector<8x1xf32>
    %736 = vector.broadcast %735 : vector<8x1xf32> to vector<8x256xf32>
    %737 = arith.mulf %734, %736 : vector<8x256xf32>
    %c64_i32 = arith.constant 64 : i32
    %738 = tpu.dynamic_rotate %729 by %c64_i32 dim 1 : vector<8x256xf32>, i32 -> vector<8x256xf32>
    %c11_145 = arith.constant 11 : index
    %c0_146 = arith.constant 0 : index
    %739 = vector.load %arg8[%c11_145, %c0_146] : memref<31x256xf32, #tpu.memory_space<vmem>>, vector<1x256xf32>
    %740 = vector.broadcast %739 : vector<1x256xf32> to vector<8x256xf32>
    %741 = arith.mulf %738, %740 : vector<8x256xf32>
    %742 = vector.extract_strided_slice %730 {offsets = [0, 1], sizes = [8, 1], strides = [1, 1]} : vector<8x11xf32> to vector<8x1xf32>
    %743 = vector.broadcast %742 : vector<8x1xf32> to vector<8x256xf32>
    %744 = arith.mulf %741, %743 : vector<8x256xf32>
    %745 = arith.addf %737, %744 : vector<8x256xf32>
    %c48_i32_147 = arith.constant 48 : i32
    %746 = tpu.dynamic_rotate %729 by %c48_i32_147 dim 1 : vector<8x256xf32>, i32 -> vector<8x256xf32>
    %747 = vector.broadcast %288 : vector<1x256xf32> to vector<8x256xf32>
    %748 = arith.mulf %746, %747 : vector<8x256xf32>
    %749 = vector.extract_strided_slice %730 {offsets = [0, 2], sizes = [8, 1], strides = [1, 1]} : vector<8x11xf32> to vector<8x1xf32>
    %750 = vector.broadcast %749 : vector<8x1xf32> to vector<8x256xf32>
    %751 = arith.mulf %748, %750 : vector<8x256xf32>
    %752 = arith.addf %745, %751 : vector<8x256xf32>
    %c32_i32_148 = arith.constant 32 : i32
    %753 = tpu.dynamic_rotate %729 by %c32_i32_148 dim 1 : vector<8x256xf32>, i32 -> vector<8x256xf32>
    %754 = vector.broadcast %93 : vector<1x256xf32> to vector<8x256xf32>
    %755 = arith.mulf %753, %754 : vector<8x256xf32>
    %756 = vector.extract_strided_slice %730 {offsets = [0, 3], sizes = [8, 1], strides = [1, 1]} : vector<8x11xf32> to vector<8x1xf32>
    %757 = vector.broadcast %756 : vector<8x1xf32> to vector<8x256xf32>
    %758 = arith.mulf %755, %757 : vector<8x256xf32>
    %759 = arith.addf %752, %758 : vector<8x256xf32>
    %c16_i32_149 = arith.constant 16 : i32
    %760 = tpu.dynamic_rotate %729 by %c16_i32_149 dim 1 : vector<8x256xf32>, i32 -> vector<8x256xf32>
    %761 = vector.broadcast %19 : vector<1x256xf32> to vector<8x256xf32>
    %762 = arith.mulf %760, %761 : vector<8x256xf32>
    %763 = vector.extract_strided_slice %730 {offsets = [0, 4], sizes = [8, 1], strides = [1, 1]} : vector<8x11xf32> to vector<8x1xf32>
    %764 = vector.broadcast %763 : vector<8x1xf32> to vector<8x256xf32>
    %765 = arith.mulf %762, %764 : vector<8x256xf32>
    %766 = arith.addf %759, %765 : vector<8x256xf32>
    %767 = vector.extract_strided_slice %730 {offsets = [0, 5], sizes = [8, 1], strides = [1, 1]} : vector<8x11xf32> to vector<8x1xf32>
    %768 = vector.broadcast %767 : vector<8x1xf32> to vector<8x256xf32>
    %769 = arith.mulf %729, %768 : vector<8x256xf32>
    %770 = arith.addf %766, %769 : vector<8x256xf32>
    %c240_i32_150 = arith.constant 240 : i32
    %771 = tpu.dynamic_rotate %729 by %c240_i32_150 dim 1 : vector<8x256xf32>, i32 -> vector<8x256xf32>
    %772 = vector.broadcast %60 : vector<1x256xf32> to vector<8x256xf32>
    %773 = arith.mulf %771, %772 : vector<8x256xf32>
    %774 = vector.extract_strided_slice %730 {offsets = [0, 6], sizes = [8, 1], strides = [1, 1]} : vector<8x11xf32> to vector<8x1xf32>
    %775 = vector.broadcast %774 : vector<8x1xf32> to vector<8x256xf32>
    %776 = arith.mulf %773, %775 : vector<8x256xf32>
    %777 = arith.addf %770, %776 : vector<8x256xf32>
    %c224_i32_151 = arith.constant 224 : i32
    %778 = tpu.dynamic_rotate %729 by %c224_i32_151 dim 1 : vector<8x256xf32>, i32 -> vector<8x256xf32>
    %779 = vector.broadcast %232 : vector<1x256xf32> to vector<8x256xf32>
    %780 = arith.mulf %778, %779 : vector<8x256xf32>
    %781 = vector.extract_strided_slice %730 {offsets = [0, 7], sizes = [8, 1], strides = [1, 1]} : vector<8x11xf32> to vector<8x1xf32>
    %782 = vector.broadcast %781 : vector<8x1xf32> to vector<8x256xf32>
    %783 = arith.mulf %780, %782 : vector<8x256xf32>
    %784 = arith.addf %777, %783 : vector<8x256xf32>
    %c208_i32_152 = arith.constant 208 : i32
    %785 = tpu.dynamic_rotate %729 by %c208_i32_152 dim 1 : vector<8x256xf32>, i32 -> vector<8x256xf32>
    %786 = vector.broadcast %581 : vector<1x256xf32> to vector<8x256xf32>
    %787 = arith.mulf %785, %786 : vector<8x256xf32>
    %788 = vector.extract_strided_slice %730 {offsets = [0, 8], sizes = [8, 1], strides = [1, 1]} : vector<8x11xf32> to vector<8x1xf32>
    %789 = vector.broadcast %788 : vector<8x1xf32> to vector<8x256xf32>
    %790 = arith.mulf %787, %789 : vector<8x256xf32>
    %791 = arith.addf %784, %790 : vector<8x256xf32>
    %c192_i32 = arith.constant 192 : i32
    %792 = tpu.dynamic_rotate %729 by %c192_i32 dim 1 : vector<8x256xf32>, i32 -> vector<8x256xf32>
    %c19_153 = arith.constant 19 : index
    %c0_154 = arith.constant 0 : index
    %793 = vector.load %arg8[%c19_153, %c0_154] : memref<31x256xf32, #tpu.memory_space<vmem>>, vector<1x256xf32>
    %794 = vector.broadcast %793 : vector<1x256xf32> to vector<8x256xf32>
    %795 = arith.mulf %792, %794 : vector<8x256xf32>
    %796 = vector.extract_strided_slice %730 {offsets = [0, 9], sizes = [8, 1], strides = [1, 1]} : vector<8x11xf32> to vector<8x1xf32>
    %797 = vector.broadcast %796 : vector<8x1xf32> to vector<8x256xf32>
    %798 = arith.mulf %795, %797 : vector<8x256xf32>
    %799 = arith.addf %791, %798 : vector<8x256xf32>
    %c176_i32 = arith.constant 176 : i32
    %800 = tpu.dynamic_rotate %729 by %c176_i32 dim 1 : vector<8x256xf32>, i32 -> vector<8x256xf32>
    %c20_155 = arith.constant 20 : index
    %c0_156 = arith.constant 0 : index
    %801 = vector.load %arg8[%c20_155, %c0_156] : memref<31x256xf32, #tpu.memory_space<vmem>>, vector<1x256xf32>
    %802 = vector.broadcast %801 : vector<1x256xf32> to vector<8x256xf32>
    %803 = arith.mulf %800, %802 : vector<8x256xf32>
    %804 = vector.extract_strided_slice %730 {offsets = [0, 10], sizes = [8, 1], strides = [1, 1]} : vector<8x11xf32> to vector<8x1xf32>
    %805 = vector.broadcast %804 : vector<8x1xf32> to vector<8x256xf32>
    %806 = arith.mulf %803, %805 : vector<8x256xf32>
    %807 = arith.addf %799, %806 : vector<8x256xf32>
    %c0_157 = arith.constant 0 : index
    %c4 = arith.constant 4 : index
    %808 = vector.load %arg7[%c0_157, %c4] : memref<8x9xf32, #tpu.memory_space<vmem>>, vector<8x1xf32>
    %809 = vector.broadcast %808 : vector<8x1xf32> to vector<8x256xf32>
    %810 = arith.addf %807, %809 : vector<8x256xf32>
    %811 = arith.addf %810, %641 : vector<8x256xf32>
    %cst_158 = arith.constant 0.000000e+00 : f32
    %812 = vector.broadcast %cst_158 : f32 to vector<8x256xf32>
    %813 = arith.subf %812, %811 : vector<8x256xf32>
    %814 = math.exp %813 : vector<8x256xf32>
    %cst_159 = arith.constant 1.000000e+00 : f32
    %815 = vector.broadcast %cst_159 : f32 to vector<8x256xf32>
    %816 = arith.addf %815, %814 : vector<8x256xf32>
    %cst_160 = arith.constant 1.000000e+00 : f32
    %817 = vector.broadcast %cst_160 : f32 to vector<8x256xf32>
    %818 = arith.divf %817, %816 : vector<8x256xf32>
    %819 = arith.mulf %811, %818 : vector<8x256xf32>
    %c3_161 = arith.constant 3 : index
    %c0_162 = arith.constant 0 : index
    %c0_163 = arith.constant 0 : index
    %820 = vector.load %arg4[%c3_161, %c0_162, %c0_163] : memref<7x8x8xf32, #tpu.memory_space<vmem>>, vector<1x8x8xf32>
    %821 = vector.shape_cast %820 : vector<1x8x8xf32> to vector<8x8xf32>
    %cst_164 = arith.constant dense<0.000000e+00> : vector<8x256xf32>
    %822 = tpu.matmul %821, %819, %cst_164 {dimension_numbers = #tpu.dot_dimension_numbers<[1], [0], [0], [1], [0, 0, 1, 1], [], []>} : vector<8x8xf32>, vector<8x256xf32>, vector<8x256xf32> -> vector<8x256xf32>
    %c3_165 = arith.constant 3 : index
    %c0_166 = arith.constant 0 : index
    %c0_167 = arith.constant 0 : index
    %823 = vector.load %arg5[%c3_165, %c0_166, %c0_167] : memref<7x8x1xf32, #tpu.memory_space<vmem>>, vector<1x8x1xf32>
    %824 = vector.shape_cast %823 : vector<1x8x1xf32> to vector<8x1xf32>
    %825 = vector.broadcast %824 : vector<8x1xf32> to vector<8x256xf32>
    %826 = arith.addf %822, %825 : vector<8x256xf32>
    %c0_168 = arith.constant 0 : index
    %c105 = arith.constant 105 : index
    %827 = vector.load %arg6[%c0_168, %c105] : memref<8x209xf32, #tpu.memory_space<vmem>>, vector<8x21xf32>
    %c10_i32 = arith.constant 10 : i32
    %828 = tpu.dynamic_rotate %826 by %c10_i32 dim 1 : vector<8x256xf32>, i32 -> vector<8x256xf32>
    %c5 = arith.constant 5 : index
    %c0_169 = arith.constant 0 : index
    %829 = vector.load %arg9[%c5, %c0_169] : memref<31x256xf32, #tpu.memory_space<vmem>>, vector<1x256xf32>
    %830 = vector.broadcast %829 : vector<1x256xf32> to vector<8x256xf32>
    %831 = arith.mulf %828, %830 : vector<8x256xf32>
    %832 = vector.extract_strided_slice %827 {offsets = [0, 0], sizes = [8, 1], strides = [1, 1]} : vector<8x21xf32> to vector<8x1xf32>
    %833 = vector.broadcast %832 : vector<8x1xf32> to vector<8x256xf32>
    %834 = arith.mulf %831, %833 : vector<8x256xf32>
    %c9_i32 = arith.constant 9 : i32
    %835 = tpu.dynamic_rotate %826 by %c9_i32 dim 1 : vector<8x256xf32>, i32 -> vector<8x256xf32>
    %c6 = arith.constant 6 : index
    %c0_170 = arith.constant 0 : index
    %836 = vector.load %arg9[%c6, %c0_170] : memref<31x256xf32, #tpu.memory_space<vmem>>, vector<1x256xf32>
    %837 = vector.broadcast %836 : vector<1x256xf32> to vector<8x256xf32>
    %838 = arith.mulf %835, %837 : vector<8x256xf32>
    %839 = vector.extract_strided_slice %827 {offsets = [0, 1], sizes = [8, 1], strides = [1, 1]} : vector<8x21xf32> to vector<8x1xf32>
    %840 = vector.broadcast %839 : vector<8x1xf32> to vector<8x256xf32>
    %841 = arith.mulf %838, %840 : vector<8x256xf32>
    %842 = arith.addf %834, %841 : vector<8x256xf32>
    %c8_i32 = arith.constant 8 : i32
    %843 = tpu.dynamic_rotate %826 by %c8_i32 dim 1 : vector<8x256xf32>, i32 -> vector<8x256xf32>
    %c7 = arith.constant 7 : index
    %c0_171 = arith.constant 0 : index
    %844 = vector.load %arg9[%c7, %c0_171] : memref<31x256xf32, #tpu.memory_space<vmem>>, vector<1x256xf32>
    %845 = vector.broadcast %844 : vector<1x256xf32> to vector<8x256xf32>
    %846 = arith.mulf %843, %845 : vector<8x256xf32>
    %847 = vector.extract_strided_slice %827 {offsets = [0, 2], sizes = [8, 1], strides = [1, 1]} : vector<8x21xf32> to vector<8x1xf32>
    %848 = vector.broadcast %847 : vector<8x1xf32> to vector<8x256xf32>
    %849 = arith.mulf %846, %848 : vector<8x256xf32>
    %850 = arith.addf %842, %849 : vector<8x256xf32>
    %c7_i32 = arith.constant 7 : i32
    %851 = tpu.dynamic_rotate %826 by %c7_i32 dim 1 : vector<8x256xf32>, i32 -> vector<8x256xf32>
    %c8 = arith.constant 8 : index
    %c0_172 = arith.constant 0 : index
    %852 = vector.load %arg9[%c8, %c0_172] : memref<31x256xf32, #tpu.memory_space<vmem>>, vector<1x256xf32>
    %853 = vector.broadcast %852 : vector<1x256xf32> to vector<8x256xf32>
    %854 = arith.mulf %851, %853 : vector<8x256xf32>
    %855 = vector.extract_strided_slice %827 {offsets = [0, 3], sizes = [8, 1], strides = [1, 1]} : vector<8x21xf32> to vector<8x1xf32>
    %856 = vector.broadcast %855 : vector<8x1xf32> to vector<8x256xf32>
    %857 = arith.mulf %854, %856 : vector<8x256xf32>
    %858 = arith.addf %850, %857 : vector<8x256xf32>
    %c6_i32 = arith.constant 6 : i32
    %859 = tpu.dynamic_rotate %826 by %c6_i32 dim 1 : vector<8x256xf32>, i32 -> vector<8x256xf32>
    %c9_173 = arith.constant 9 : index
    %c0_174 = arith.constant 0 : index
    %860 = vector.load %arg9[%c9_173, %c0_174] : memref<31x256xf32, #tpu.memory_space<vmem>>, vector<1x256xf32>
    %861 = vector.broadcast %860 : vector<1x256xf32> to vector<8x256xf32>
    %862 = arith.mulf %859, %861 : vector<8x256xf32>
    %863 = vector.extract_strided_slice %827 {offsets = [0, 4], sizes = [8, 1], strides = [1, 1]} : vector<8x21xf32> to vector<8x1xf32>
    %864 = vector.broadcast %863 : vector<8x1xf32> to vector<8x256xf32>
    %865 = arith.mulf %862, %864 : vector<8x256xf32>
    %866 = arith.addf %858, %865 : vector<8x256xf32>
    %c5_i32_175 = arith.constant 5 : i32
    %867 = tpu.dynamic_rotate %826 by %c5_i32_175 dim 1 : vector<8x256xf32>, i32 -> vector<8x256xf32>
    %868 = vector.broadcast %651 : vector<1x256xf32> to vector<8x256xf32>
    %869 = arith.mulf %867, %868 : vector<8x256xf32>
    %870 = vector.extract_strided_slice %827 {offsets = [0, 5], sizes = [8, 1], strides = [1, 1]} : vector<8x21xf32> to vector<8x1xf32>
    %871 = vector.broadcast %870 : vector<8x1xf32> to vector<8x256xf32>
    %872 = arith.mulf %869, %871 : vector<8x256xf32>
    %873 = arith.addf %866, %872 : vector<8x256xf32>
    %c4_i32_176 = arith.constant 4 : i32
    %874 = tpu.dynamic_rotate %826 by %c4_i32_176 dim 1 : vector<8x256xf32>, i32 -> vector<8x256xf32>
    %875 = vector.broadcast %658 : vector<1x256xf32> to vector<8x256xf32>
    %876 = arith.mulf %874, %875 : vector<8x256xf32>
    %877 = vector.extract_strided_slice %827 {offsets = [0, 6], sizes = [8, 1], strides = [1, 1]} : vector<8x21xf32> to vector<8x1xf32>
    %878 = vector.broadcast %877 : vector<8x1xf32> to vector<8x256xf32>
    %879 = arith.mulf %876, %878 : vector<8x256xf32>
    %880 = arith.addf %873, %879 : vector<8x256xf32>
    %c3_i32_177 = arith.constant 3 : i32
    %881 = tpu.dynamic_rotate %826 by %c3_i32_177 dim 1 : vector<8x256xf32>, i32 -> vector<8x256xf32>
    %882 = vector.broadcast %292 : vector<1x256xf32> to vector<8x256xf32>
    %883 = arith.mulf %881, %882 : vector<8x256xf32>
    %884 = vector.extract_strided_slice %827 {offsets = [0, 7], sizes = [8, 1], strides = [1, 1]} : vector<8x21xf32> to vector<8x1xf32>
    %885 = vector.broadcast %884 : vector<8x1xf32> to vector<8x256xf32>
    %886 = arith.mulf %883, %885 : vector<8x256xf32>
    %887 = arith.addf %880, %886 : vector<8x256xf32>
    %c2_i32_178 = arith.constant 2 : i32
    %888 = tpu.dynamic_rotate %826 by %c2_i32_178 dim 1 : vector<8x256xf32>, i32 -> vector<8x256xf32>
    %889 = vector.broadcast %97 : vector<1x256xf32> to vector<8x256xf32>
    %890 = arith.mulf %888, %889 : vector<8x256xf32>
    %891 = vector.extract_strided_slice %827 {offsets = [0, 8], sizes = [8, 1], strides = [1, 1]} : vector<8x21xf32> to vector<8x1xf32>
    %892 = vector.broadcast %891 : vector<8x1xf32> to vector<8x256xf32>
    %893 = arith.mulf %890, %892 : vector<8x256xf32>
    %894 = arith.addf %887, %893 : vector<8x256xf32>
    %c1_i32_179 = arith.constant 1 : i32
    %895 = tpu.dynamic_rotate %826 by %c1_i32_179 dim 1 : vector<8x256xf32>, i32 -> vector<8x256xf32>
    %896 = vector.broadcast %23 : vector<1x256xf32> to vector<8x256xf32>
    %897 = arith.mulf %895, %896 : vector<8x256xf32>
    %898 = vector.extract_strided_slice %827 {offsets = [0, 9], sizes = [8, 1], strides = [1, 1]} : vector<8x21xf32> to vector<8x1xf32>
    %899 = vector.broadcast %898 : vector<8x1xf32> to vector<8x256xf32>
    %900 = arith.mulf %897, %899 : vector<8x256xf32>
    %901 = arith.addf %894, %900 : vector<8x256xf32>
    %902 = vector.extract_strided_slice %827 {offsets = [0, 10], sizes = [8, 1], strides = [1, 1]} : vector<8x21xf32> to vector<8x1xf32>
    %903 = vector.broadcast %902 : vector<8x1xf32> to vector<8x256xf32>
    %904 = arith.mulf %826, %903 : vector<8x256xf32>
    %905 = arith.addf %901, %904 : vector<8x256xf32>
    %c255_i32_180 = arith.constant 255 : i32
    %906 = tpu.dynamic_rotate %826 by %c255_i32_180 dim 1 : vector<8x256xf32>, i32 -> vector<8x256xf32>
    %907 = vector.broadcast %34 : vector<1x256xf32> to vector<8x256xf32>
    %908 = arith.mulf %906, %907 : vector<8x256xf32>
    %909 = vector.extract_strided_slice %827 {offsets = [0, 11], sizes = [8, 1], strides = [1, 1]} : vector<8x21xf32> to vector<8x1xf32>
    %910 = vector.broadcast %909 : vector<8x1xf32> to vector<8x256xf32>
    %911 = arith.mulf %908, %910 : vector<8x256xf32>
    %912 = arith.addf %905, %911 : vector<8x256xf32>
    %c254_i32_181 = arith.constant 254 : i32
    %913 = tpu.dynamic_rotate %826 by %c254_i32_181 dim 1 : vector<8x256xf32>, i32 -> vector<8x256xf32>
    %914 = vector.broadcast %122 : vector<1x256xf32> to vector<8x256xf32>
    %915 = arith.mulf %913, %914 : vector<8x256xf32>
    %916 = vector.extract_strided_slice %827 {offsets = [0, 12], sizes = [8, 1], strides = [1, 1]} : vector<8x21xf32> to vector<8x1xf32>
    %917 = vector.broadcast %916 : vector<8x1xf32> to vector<8x256xf32>
    %918 = arith.mulf %915, %917 : vector<8x256xf32>
    %919 = arith.addf %912, %918 : vector<8x256xf32>
    %c253_i32_182 = arith.constant 253 : i32
    %920 = tpu.dynamic_rotate %826 by %c253_i32_182 dim 1 : vector<8x256xf32>, i32 -> vector<8x256xf32>
    %921 = vector.broadcast %331 : vector<1x256xf32> to vector<8x256xf32>
    %922 = arith.mulf %920, %921 : vector<8x256xf32>
    %923 = vector.extract_strided_slice %827 {offsets = [0, 13], sizes = [8, 1], strides = [1, 1]} : vector<8x21xf32> to vector<8x1xf32>
    %924 = vector.broadcast %923 : vector<8x1xf32> to vector<8x256xf32>
    %925 = arith.mulf %922, %924 : vector<8x256xf32>
    %926 = arith.addf %919, %925 : vector<8x256xf32>
    %c252_i32_183 = arith.constant 252 : i32
    %927 = tpu.dynamic_rotate %826 by %c252_i32_183 dim 1 : vector<8x256xf32>, i32 -> vector<8x256xf32>
    %928 = vector.broadcast %712 : vector<1x256xf32> to vector<8x256xf32>
    %929 = arith.mulf %927, %928 : vector<8x256xf32>
    %930 = vector.extract_strided_slice %827 {offsets = [0, 14], sizes = [8, 1], strides = [1, 1]} : vector<8x21xf32> to vector<8x1xf32>
    %931 = vector.broadcast %930 : vector<8x1xf32> to vector<8x256xf32>
    %932 = arith.mulf %929, %931 : vector<8x256xf32>
    %933 = arith.addf %926, %932 : vector<8x256xf32>
    %c251_i32_184 = arith.constant 251 : i32
    %934 = tpu.dynamic_rotate %826 by %c251_i32_184 dim 1 : vector<8x256xf32>, i32 -> vector<8x256xf32>
    %935 = vector.broadcast %720 : vector<1x256xf32> to vector<8x256xf32>
    %936 = arith.mulf %934, %935 : vector<8x256xf32>
    %937 = vector.extract_strided_slice %827 {offsets = [0, 15], sizes = [8, 1], strides = [1, 1]} : vector<8x21xf32> to vector<8x1xf32>
    %938 = vector.broadcast %937 : vector<8x1xf32> to vector<8x256xf32>
    %939 = arith.mulf %936, %938 : vector<8x256xf32>
    %940 = arith.addf %933, %939 : vector<8x256xf32>
    %c250_i32 = arith.constant 250 : i32
    %941 = tpu.dynamic_rotate %826 by %c250_i32 dim 1 : vector<8x256xf32>, i32 -> vector<8x256xf32>
    %c21 = arith.constant 21 : index
    %c0_185 = arith.constant 0 : index
    %942 = vector.load %arg9[%c21, %c0_185] : memref<31x256xf32, #tpu.memory_space<vmem>>, vector<1x256xf32>
    %943 = vector.broadcast %942 : vector<1x256xf32> to vector<8x256xf32>
    %944 = arith.mulf %941, %943 : vector<8x256xf32>
    %945 = vector.extract_strided_slice %827 {offsets = [0, 16], sizes = [8, 1], strides = [1, 1]} : vector<8x21xf32> to vector<8x1xf32>
    %946 = vector.broadcast %945 : vector<8x1xf32> to vector<8x256xf32>
    %947 = arith.mulf %944, %946 : vector<8x256xf32>
    %948 = arith.addf %940, %947 : vector<8x256xf32>
    %c249_i32 = arith.constant 249 : i32
    %949 = tpu.dynamic_rotate %826 by %c249_i32 dim 1 : vector<8x256xf32>, i32 -> vector<8x256xf32>
    %c22 = arith.constant 22 : index
    %c0_186 = arith.constant 0 : index
    %950 = vector.load %arg9[%c22, %c0_186] : memref<31x256xf32, #tpu.memory_space<vmem>>, vector<1x256xf32>
    %951 = vector.broadcast %950 : vector<1x256xf32> to vector<8x256xf32>
    %952 = arith.mulf %949, %951 : vector<8x256xf32>
    %953 = vector.extract_strided_slice %827 {offsets = [0, 17], sizes = [8, 1], strides = [1, 1]} : vector<8x21xf32> to vector<8x1xf32>
    %954 = vector.broadcast %953 : vector<8x1xf32> to vector<8x256xf32>
    %955 = arith.mulf %952, %954 : vector<8x256xf32>
    %956 = arith.addf %948, %955 : vector<8x256xf32>
    %c248_i32 = arith.constant 248 : i32
    %957 = tpu.dynamic_rotate %826 by %c248_i32 dim 1 : vector<8x256xf32>, i32 -> vector<8x256xf32>
    %c23 = arith.constant 23 : index
    %c0_187 = arith.constant 0 : index
    %958 = vector.load %arg9[%c23, %c0_187] : memref<31x256xf32, #tpu.memory_space<vmem>>, vector<1x256xf32>
    %959 = vector.broadcast %958 : vector<1x256xf32> to vector<8x256xf32>
    %960 = arith.mulf %957, %959 : vector<8x256xf32>
    %961 = vector.extract_strided_slice %827 {offsets = [0, 18], sizes = [8, 1], strides = [1, 1]} : vector<8x21xf32> to vector<8x1xf32>
    %962 = vector.broadcast %961 : vector<8x1xf32> to vector<8x256xf32>
    %963 = arith.mulf %960, %962 : vector<8x256xf32>
    %964 = arith.addf %956, %963 : vector<8x256xf32>
    %c247_i32 = arith.constant 247 : i32
    %965 = tpu.dynamic_rotate %826 by %c247_i32 dim 1 : vector<8x256xf32>, i32 -> vector<8x256xf32>
    %c24 = arith.constant 24 : index
    %c0_188 = arith.constant 0 : index
    %966 = vector.load %arg9[%c24, %c0_188] : memref<31x256xf32, #tpu.memory_space<vmem>>, vector<1x256xf32>
    %967 = vector.broadcast %966 : vector<1x256xf32> to vector<8x256xf32>
    %968 = arith.mulf %965, %967 : vector<8x256xf32>
    %969 = vector.extract_strided_slice %827 {offsets = [0, 19], sizes = [8, 1], strides = [1, 1]} : vector<8x21xf32> to vector<8x1xf32>
    %970 = vector.broadcast %969 : vector<8x1xf32> to vector<8x256xf32>
    %971 = arith.mulf %968, %970 : vector<8x256xf32>
    %972 = arith.addf %964, %971 : vector<8x256xf32>
    %c246_i32 = arith.constant 246 : i32
    %973 = tpu.dynamic_rotate %826 by %c246_i32 dim 1 : vector<8x256xf32>, i32 -> vector<8x256xf32>
    %c25 = arith.constant 25 : index
    %c0_189 = arith.constant 0 : index
    %974 = vector.load %arg9[%c25, %c0_189] : memref<31x256xf32, #tpu.memory_space<vmem>>, vector<1x256xf32>
    %975 = vector.broadcast %974 : vector<1x256xf32> to vector<8x256xf32>
    %976 = arith.mulf %973, %975 : vector<8x256xf32>
    %977 = vector.extract_strided_slice %827 {offsets = [0, 20], sizes = [8, 1], strides = [1, 1]} : vector<8x21xf32> to vector<8x1xf32>
    %978 = vector.broadcast %977 : vector<8x1xf32> to vector<8x256xf32>
    %979 = arith.mulf %976, %978 : vector<8x256xf32>
    %980 = arith.addf %972, %979 : vector<8x256xf32>
    %c0_190 = arith.constant 0 : index
    %c5_191 = arith.constant 5 : index
    %981 = vector.load %arg7[%c0_190, %c5_191] : memref<8x9xf32, #tpu.memory_space<vmem>>, vector<8x1xf32>
    %982 = vector.broadcast %981 : vector<8x1xf32> to vector<8x256xf32>
    %983 = arith.addf %980, %982 : vector<8x256xf32>
    %c0_192 = arith.constant 0 : index
    %c126 = arith.constant 126 : index
    %984 = vector.load %arg6[%c0_192, %c126] : memref<8x209xf32, #tpu.memory_space<vmem>>, vector<8x21xf32>
    %c160_i32 = arith.constant 160 : i32
    %985 = tpu.dynamic_rotate %983 by %c160_i32 dim 1 : vector<8x256xf32>, i32 -> vector<8x256xf32>
    %c5_193 = arith.constant 5 : index
    %c0_194 = arith.constant 0 : index
    %986 = vector.load %arg8[%c5_193, %c0_194] : memref<31x256xf32, #tpu.memory_space<vmem>>, vector<1x256xf32>
    %987 = vector.broadcast %986 : vector<1x256xf32> to vector<8x256xf32>
    %988 = arith.mulf %985, %987 : vector<8x256xf32>
    %989 = vector.extract_strided_slice %984 {offsets = [0, 0], sizes = [8, 1], strides = [1, 1]} : vector<8x21xf32> to vector<8x1xf32>
    %990 = vector.broadcast %989 : vector<8x1xf32> to vector<8x256xf32>
    %991 = arith.mulf %988, %990 : vector<8x256xf32>
    %c144_i32 = arith.constant 144 : i32
    %992 = tpu.dynamic_rotate %983 by %c144_i32 dim 1 : vector<8x256xf32>, i32 -> vector<8x256xf32>
    %c6_195 = arith.constant 6 : index
    %c0_196 = arith.constant 0 : index
    %993 = vector.load %arg8[%c6_195, %c0_196] : memref<31x256xf32, #tpu.memory_space<vmem>>, vector<1x256xf32>
    %994 = vector.broadcast %993 : vector<1x256xf32> to vector<8x256xf32>
    %995 = arith.mulf %992, %994 : vector<8x256xf32>
    %996 = vector.extract_strided_slice %984 {offsets = [0, 1], sizes = [8, 1], strides = [1, 1]} : vector<8x21xf32> to vector<8x1xf32>
    %997 = vector.broadcast %996 : vector<8x1xf32> to vector<8x256xf32>
    %998 = arith.mulf %995, %997 : vector<8x256xf32>
    %999 = arith.addf %991, %998 : vector<8x256xf32>
    %c128_i32 = arith.constant 128 : i32
    %1000 = tpu.dynamic_rotate %983 by %c128_i32 dim 1 : vector<8x256xf32>, i32 -> vector<8x256xf32>
    %c7_197 = arith.constant 7 : index
    %c0_198 = arith.constant 0 : index
    %1001 = vector.load %arg8[%c7_197, %c0_198] : memref<31x256xf32, #tpu.memory_space<vmem>>, vector<1x256xf32>
    %1002 = vector.broadcast %1001 : vector<1x256xf32> to vector<8x256xf32>
    %1003 = arith.mulf %1000, %1002 : vector<8x256xf32>
    %1004 = vector.extract_strided_slice %984 {offsets = [0, 2], sizes = [8, 1], strides = [1, 1]} : vector<8x21xf32> to vector<8x1xf32>
    %1005 = vector.broadcast %1004 : vector<8x1xf32> to vector<8x256xf32>
    %1006 = arith.mulf %1003, %1005 : vector<8x256xf32>
    %1007 = arith.addf %999, %1006 : vector<8x256xf32>
    %c112_i32 = arith.constant 112 : i32
    %1008 = tpu.dynamic_rotate %983 by %c112_i32 dim 1 : vector<8x256xf32>, i32 -> vector<8x256xf32>
    %c8_199 = arith.constant 8 : index
    %c0_200 = arith.constant 0 : index
    %1009 = vector.load %arg8[%c8_199, %c0_200] : memref<31x256xf32, #tpu.memory_space<vmem>>, vector<1x256xf32>
    %1010 = vector.broadcast %1009 : vector<1x256xf32> to vector<8x256xf32>
    %1011 = arith.mulf %1008, %1010 : vector<8x256xf32>
    %1012 = vector.extract_strided_slice %984 {offsets = [0, 3], sizes = [8, 1], strides = [1, 1]} : vector<8x21xf32> to vector<8x1xf32>
    %1013 = vector.broadcast %1012 : vector<8x1xf32> to vector<8x256xf32>
    %1014 = arith.mulf %1011, %1013 : vector<8x256xf32>
    %1015 = arith.addf %1007, %1014 : vector<8x256xf32>
    %c96_i32 = arith.constant 96 : i32
    %1016 = tpu.dynamic_rotate %983 by %c96_i32 dim 1 : vector<8x256xf32>, i32 -> vector<8x256xf32>
    %c9_201 = arith.constant 9 : index
    %c0_202 = arith.constant 0 : index
    %1017 = vector.load %arg8[%c9_201, %c0_202] : memref<31x256xf32, #tpu.memory_space<vmem>>, vector<1x256xf32>
    %1018 = vector.broadcast %1017 : vector<1x256xf32> to vector<8x256xf32>
    %1019 = arith.mulf %1016, %1018 : vector<8x256xf32>
    %1020 = vector.extract_strided_slice %984 {offsets = [0, 4], sizes = [8, 1], strides = [1, 1]} : vector<8x21xf32> to vector<8x1xf32>
    %1021 = vector.broadcast %1020 : vector<8x1xf32> to vector<8x256xf32>
    %1022 = arith.mulf %1019, %1021 : vector<8x256xf32>
    %1023 = arith.addf %1015, %1022 : vector<8x256xf32>
    %c80_i32_203 = arith.constant 80 : i32
    %1024 = tpu.dynamic_rotate %983 by %c80_i32_203 dim 1 : vector<8x256xf32>, i32 -> vector<8x256xf32>
    %1025 = vector.broadcast %732 : vector<1x256xf32> to vector<8x256xf32>
    %1026 = arith.mulf %1024, %1025 : vector<8x256xf32>
    %1027 = vector.extract_strided_slice %984 {offsets = [0, 5], sizes = [8, 1], strides = [1, 1]} : vector<8x21xf32> to vector<8x1xf32>
    %1028 = vector.broadcast %1027 : vector<8x1xf32> to vector<8x256xf32>
    %1029 = arith.mulf %1026, %1028 : vector<8x256xf32>
    %1030 = arith.addf %1023, %1029 : vector<8x256xf32>
    %c64_i32_204 = arith.constant 64 : i32
    %1031 = tpu.dynamic_rotate %983 by %c64_i32_204 dim 1 : vector<8x256xf32>, i32 -> vector<8x256xf32>
    %1032 = vector.broadcast %739 : vector<1x256xf32> to vector<8x256xf32>
    %1033 = arith.mulf %1031, %1032 : vector<8x256xf32>
    %1034 = vector.extract_strided_slice %984 {offsets = [0, 6], sizes = [8, 1], strides = [1, 1]} : vector<8x21xf32> to vector<8x1xf32>
    %1035 = vector.broadcast %1034 : vector<8x1xf32> to vector<8x256xf32>
    %1036 = arith.mulf %1033, %1035 : vector<8x256xf32>
    %1037 = arith.addf %1030, %1036 : vector<8x256xf32>
    %c48_i32_205 = arith.constant 48 : i32
    %1038 = tpu.dynamic_rotate %983 by %c48_i32_205 dim 1 : vector<8x256xf32>, i32 -> vector<8x256xf32>
    %1039 = vector.broadcast %288 : vector<1x256xf32> to vector<8x256xf32>
    %1040 = arith.mulf %1038, %1039 : vector<8x256xf32>
    %1041 = vector.extract_strided_slice %984 {offsets = [0, 7], sizes = [8, 1], strides = [1, 1]} : vector<8x21xf32> to vector<8x1xf32>
    %1042 = vector.broadcast %1041 : vector<8x1xf32> to vector<8x256xf32>
    %1043 = arith.mulf %1040, %1042 : vector<8x256xf32>
    %1044 = arith.addf %1037, %1043 : vector<8x256xf32>
    %c32_i32_206 = arith.constant 32 : i32
    %1045 = tpu.dynamic_rotate %983 by %c32_i32_206 dim 1 : vector<8x256xf32>, i32 -> vector<8x256xf32>
    %1046 = vector.broadcast %93 : vector<1x256xf32> to vector<8x256xf32>
    %1047 = arith.mulf %1045, %1046 : vector<8x256xf32>
    %1048 = vector.extract_strided_slice %984 {offsets = [0, 8], sizes = [8, 1], strides = [1, 1]} : vector<8x21xf32> to vector<8x1xf32>
    %1049 = vector.broadcast %1048 : vector<8x1xf32> to vector<8x256xf32>
    %1050 = arith.mulf %1047, %1049 : vector<8x256xf32>
    %1051 = arith.addf %1044, %1050 : vector<8x256xf32>
    %c16_i32_207 = arith.constant 16 : i32
    %1052 = tpu.dynamic_rotate %983 by %c16_i32_207 dim 1 : vector<8x256xf32>, i32 -> vector<8x256xf32>
    %1053 = vector.broadcast %19 : vector<1x256xf32> to vector<8x256xf32>
    %1054 = arith.mulf %1052, %1053 : vector<8x256xf32>
    %1055 = vector.extract_strided_slice %984 {offsets = [0, 9], sizes = [8, 1], strides = [1, 1]} : vector<8x21xf32> to vector<8x1xf32>
    %1056 = vector.broadcast %1055 : vector<8x1xf32> to vector<8x256xf32>
    %1057 = arith.mulf %1054, %1056 : vector<8x256xf32>
    %1058 = arith.addf %1051, %1057 : vector<8x256xf32>
    %1059 = vector.extract_strided_slice %984 {offsets = [0, 10], sizes = [8, 1], strides = [1, 1]} : vector<8x21xf32> to vector<8x1xf32>
    %1060 = vector.broadcast %1059 : vector<8x1xf32> to vector<8x256xf32>
    %1061 = arith.mulf %983, %1060 : vector<8x256xf32>
    %1062 = arith.addf %1058, %1061 : vector<8x256xf32>
    %c240_i32_208 = arith.constant 240 : i32
    %1063 = tpu.dynamic_rotate %983 by %c240_i32_208 dim 1 : vector<8x256xf32>, i32 -> vector<8x256xf32>
    %1064 = vector.broadcast %60 : vector<1x256xf32> to vector<8x256xf32>
    %1065 = arith.mulf %1063, %1064 : vector<8x256xf32>
    %1066 = vector.extract_strided_slice %984 {offsets = [0, 11], sizes = [8, 1], strides = [1, 1]} : vector<8x21xf32> to vector<8x1xf32>
    %1067 = vector.broadcast %1066 : vector<8x1xf32> to vector<8x256xf32>
    %1068 = arith.mulf %1065, %1067 : vector<8x256xf32>
    %1069 = arith.addf %1062, %1068 : vector<8x256xf32>
    %c224_i32_209 = arith.constant 224 : i32
    %1070 = tpu.dynamic_rotate %983 by %c224_i32_209 dim 1 : vector<8x256xf32>, i32 -> vector<8x256xf32>
    %1071 = vector.broadcast %232 : vector<1x256xf32> to vector<8x256xf32>
    %1072 = arith.mulf %1070, %1071 : vector<8x256xf32>
    %1073 = vector.extract_strided_slice %984 {offsets = [0, 12], sizes = [8, 1], strides = [1, 1]} : vector<8x21xf32> to vector<8x1xf32>
    %1074 = vector.broadcast %1073 : vector<8x1xf32> to vector<8x256xf32>
    %1075 = arith.mulf %1072, %1074 : vector<8x256xf32>
    %1076 = arith.addf %1069, %1075 : vector<8x256xf32>
    %c208_i32_210 = arith.constant 208 : i32
    %1077 = tpu.dynamic_rotate %983 by %c208_i32_210 dim 1 : vector<8x256xf32>, i32 -> vector<8x256xf32>
    %1078 = vector.broadcast %581 : vector<1x256xf32> to vector<8x256xf32>
    %1079 = arith.mulf %1077, %1078 : vector<8x256xf32>
    %1080 = vector.extract_strided_slice %984 {offsets = [0, 13], sizes = [8, 1], strides = [1, 1]} : vector<8x21xf32> to vector<8x1xf32>
    %1081 = vector.broadcast %1080 : vector<8x1xf32> to vector<8x256xf32>
    %1082 = arith.mulf %1079, %1081 : vector<8x256xf32>
    %1083 = arith.addf %1076, %1082 : vector<8x256xf32>
    %c192_i32_211 = arith.constant 192 : i32
    %1084 = tpu.dynamic_rotate %983 by %c192_i32_211 dim 1 : vector<8x256xf32>, i32 -> vector<8x256xf32>
    %1085 = vector.broadcast %793 : vector<1x256xf32> to vector<8x256xf32>
    %1086 = arith.mulf %1084, %1085 : vector<8x256xf32>
    %1087 = vector.extract_strided_slice %984 {offsets = [0, 14], sizes = [8, 1], strides = [1, 1]} : vector<8x21xf32> to vector<8x1xf32>
    %1088 = vector.broadcast %1087 : vector<8x1xf32> to vector<8x256xf32>
    %1089 = arith.mulf %1086, %1088 : vector<8x256xf32>
    %1090 = arith.addf %1083, %1089 : vector<8x256xf32>
    %c176_i32_212 = arith.constant 176 : i32
    %1091 = tpu.dynamic_rotate %983 by %c176_i32_212 dim 1 : vector<8x256xf32>, i32 -> vector<8x256xf32>
    %1092 = vector.broadcast %801 : vector<1x256xf32> to vector<8x256xf32>
    %1093 = arith.mulf %1091, %1092 : vector<8x256xf32>
    %1094 = vector.extract_strided_slice %984 {offsets = [0, 15], sizes = [8, 1], strides = [1, 1]} : vector<8x21xf32> to vector<8x1xf32>
    %1095 = vector.broadcast %1094 : vector<8x1xf32> to vector<8x256xf32>
    %1096 = arith.mulf %1093, %1095 : vector<8x256xf32>
    %1097 = arith.addf %1090, %1096 : vector<8x256xf32>
    %c160_i32_213 = arith.constant 160 : i32
    %1098 = tpu.dynamic_rotate %983 by %c160_i32_213 dim 1 : vector<8x256xf32>, i32 -> vector<8x256xf32>
    %c21_214 = arith.constant 21 : index
    %c0_215 = arith.constant 0 : index
    %1099 = vector.load %arg8[%c21_214, %c0_215] : memref<31x256xf32, #tpu.memory_space<vmem>>, vector<1x256xf32>
    %1100 = vector.broadcast %1099 : vector<1x256xf32> to vector<8x256xf32>
    %1101 = arith.mulf %1098, %1100 : vector<8x256xf32>
    %1102 = vector.extract_strided_slice %984 {offsets = [0, 16], sizes = [8, 1], strides = [1, 1]} : vector<8x21xf32> to vector<8x1xf32>
    %1103 = vector.broadcast %1102 : vector<8x1xf32> to vector<8x256xf32>
    %1104 = arith.mulf %1101, %1103 : vector<8x256xf32>
    %1105 = arith.addf %1097, %1104 : vector<8x256xf32>
    %c144_i32_216 = arith.constant 144 : i32
    %1106 = tpu.dynamic_rotate %983 by %c144_i32_216 dim 1 : vector<8x256xf32>, i32 -> vector<8x256xf32>
    %c22_217 = arith.constant 22 : index
    %c0_218 = arith.constant 0 : index
    %1107 = vector.load %arg8[%c22_217, %c0_218] : memref<31x256xf32, #tpu.memory_space<vmem>>, vector<1x256xf32>
    %1108 = vector.broadcast %1107 : vector<1x256xf32> to vector<8x256xf32>
    %1109 = arith.mulf %1106, %1108 : vector<8x256xf32>
    %1110 = vector.extract_strided_slice %984 {offsets = [0, 17], sizes = [8, 1], strides = [1, 1]} : vector<8x21xf32> to vector<8x1xf32>
    %1111 = vector.broadcast %1110 : vector<8x1xf32> to vector<8x256xf32>
    %1112 = arith.mulf %1109, %1111 : vector<8x256xf32>
    %1113 = arith.addf %1105, %1112 : vector<8x256xf32>
    %c128_i32_219 = arith.constant 128 : i32
    %1114 = tpu.dynamic_rotate %983 by %c128_i32_219 dim 1 : vector<8x256xf32>, i32 -> vector<8x256xf32>
    %c23_220 = arith.constant 23 : index
    %c0_221 = arith.constant 0 : index
    %1115 = vector.load %arg8[%c23_220, %c0_221] : memref<31x256xf32, #tpu.memory_space<vmem>>, vector<1x256xf32>
    %1116 = vector.broadcast %1115 : vector<1x256xf32> to vector<8x256xf32>
    %1117 = arith.mulf %1114, %1116 : vector<8x256xf32>
    %1118 = vector.extract_strided_slice %984 {offsets = [0, 18], sizes = [8, 1], strides = [1, 1]} : vector<8x21xf32> to vector<8x1xf32>
    %1119 = vector.broadcast %1118 : vector<8x1xf32> to vector<8x256xf32>
    %1120 = arith.mulf %1117, %1119 : vector<8x256xf32>
    %1121 = arith.addf %1113, %1120 : vector<8x256xf32>
    %c112_i32_222 = arith.constant 112 : i32
    %1122 = tpu.dynamic_rotate %983 by %c112_i32_222 dim 1 : vector<8x256xf32>, i32 -> vector<8x256xf32>
    %c24_223 = arith.constant 24 : index
    %c0_224 = arith.constant 0 : index
    %1123 = vector.load %arg8[%c24_223, %c0_224] : memref<31x256xf32, #tpu.memory_space<vmem>>, vector<1x256xf32>
    %1124 = vector.broadcast %1123 : vector<1x256xf32> to vector<8x256xf32>
    %1125 = arith.mulf %1122, %1124 : vector<8x256xf32>
    %1126 = vector.extract_strided_slice %984 {offsets = [0, 19], sizes = [8, 1], strides = [1, 1]} : vector<8x21xf32> to vector<8x1xf32>
    %1127 = vector.broadcast %1126 : vector<8x1xf32> to vector<8x256xf32>
    %1128 = arith.mulf %1125, %1127 : vector<8x256xf32>
    %1129 = arith.addf %1121, %1128 : vector<8x256xf32>
    %c96_i32_225 = arith.constant 96 : i32
    %1130 = tpu.dynamic_rotate %983 by %c96_i32_225 dim 1 : vector<8x256xf32>, i32 -> vector<8x256xf32>
    %c25_226 = arith.constant 25 : index
    %c0_227 = arith.constant 0 : index
    %1131 = vector.load %arg8[%c25_226, %c0_227] : memref<31x256xf32, #tpu.memory_space<vmem>>, vector<1x256xf32>
    %1132 = vector.broadcast %1131 : vector<1x256xf32> to vector<8x256xf32>
    %1133 = arith.mulf %1130, %1132 : vector<8x256xf32>
    %1134 = vector.extract_strided_slice %984 {offsets = [0, 20], sizes = [8, 1], strides = [1, 1]} : vector<8x21xf32> to vector<8x1xf32>
    %1135 = vector.broadcast %1134 : vector<8x1xf32> to vector<8x256xf32>
    %1136 = arith.mulf %1133, %1135 : vector<8x256xf32>
    %1137 = arith.addf %1129, %1136 : vector<8x256xf32>
    %c0_228 = arith.constant 0 : index
    %c6_229 = arith.constant 6 : index
    %1138 = vector.load %arg7[%c0_228, %c6_229] : memref<8x9xf32, #tpu.memory_space<vmem>>, vector<8x1xf32>
    %1139 = vector.broadcast %1138 : vector<8x1xf32> to vector<8x256xf32>
    %1140 = arith.addf %1137, %1139 : vector<8x256xf32>
    %1141 = arith.addf %1140, %819 : vector<8x256xf32>
    %cst_230 = arith.constant 0.000000e+00 : f32
    %1142 = vector.broadcast %cst_230 : f32 to vector<8x256xf32>
    %1143 = arith.subf %1142, %1141 : vector<8x256xf32>
    %1144 = math.exp %1143 : vector<8x256xf32>
    %cst_231 = arith.constant 1.000000e+00 : f32
    %1145 = vector.broadcast %cst_231 : f32 to vector<8x256xf32>
    %1146 = arith.addf %1145, %1144 : vector<8x256xf32>
    %cst_232 = arith.constant 1.000000e+00 : f32
    %1147 = vector.broadcast %cst_232 : f32 to vector<8x256xf32>
    %1148 = arith.divf %1147, %1146 : vector<8x256xf32>
    %1149 = arith.mulf %1141, %1148 : vector<8x256xf32>
    %c4_233 = arith.constant 4 : index
    %c0_234 = arith.constant 0 : index
    %c0_235 = arith.constant 0 : index
    %1150 = vector.load %arg4[%c4_233, %c0_234, %c0_235] : memref<7x8x8xf32, #tpu.memory_space<vmem>>, vector<1x8x8xf32>
    %1151 = vector.shape_cast %1150 : vector<1x8x8xf32> to vector<8x8xf32>
    %cst_236 = arith.constant dense<0.000000e+00> : vector<8x256xf32>
    %1152 = tpu.matmul %1151, %1149, %cst_236 {dimension_numbers = #tpu.dot_dimension_numbers<[1], [0], [0], [1], [0, 0, 1, 1], [], []>} : vector<8x8xf32>, vector<8x256xf32>, vector<8x256xf32> -> vector<8x256xf32>
    %c4_237 = arith.constant 4 : index
    %c0_238 = arith.constant 0 : index
    %c0_239 = arith.constant 0 : index
    %1153 = vector.load %arg5[%c4_237, %c0_238, %c0_239] : memref<7x8x1xf32, #tpu.memory_space<vmem>>, vector<1x8x1xf32>
    %1154 = vector.shape_cast %1153 : vector<1x8x1xf32> to vector<8x1xf32>
    %1155 = vector.broadcast %1154 : vector<8x1xf32> to vector<8x256xf32>
    %1156 = arith.addf %1152, %1155 : vector<8x256xf32>
    %c0_240 = arith.constant 0 : index
    %c147 = arith.constant 147 : index
    %1157 = vector.load %arg6[%c0_240, %c147] : memref<8x209xf32, #tpu.memory_space<vmem>>, vector<8x31xf32>
    %c15_i32 = arith.constant 15 : i32
    %1158 = tpu.dynamic_rotate %1156 by %c15_i32 dim 1 : vector<8x256xf32>, i32 -> vector<8x256xf32>
    %c0_241 = arith.constant 0 : index
    %c0_242 = arith.constant 0 : index
    %1159 = vector.load %arg9[%c0_241, %c0_242] : memref<31x256xf32, #tpu.memory_space<vmem>>, vector<1x256xf32>
    %1160 = vector.broadcast %1159 : vector<1x256xf32> to vector<8x256xf32>
    %1161 = arith.mulf %1158, %1160 : vector<8x256xf32>
    %1162 = vector.extract_strided_slice %1157 {offsets = [0, 0], sizes = [8, 1], strides = [1, 1]} : vector<8x31xf32> to vector<8x1xf32>
    %1163 = vector.broadcast %1162 : vector<8x1xf32> to vector<8x256xf32>
    %1164 = arith.mulf %1161, %1163 : vector<8x256xf32>
    %c14_i32 = arith.constant 14 : i32
    %1165 = tpu.dynamic_rotate %1156 by %c14_i32 dim 1 : vector<8x256xf32>, i32 -> vector<8x256xf32>
    %c1_243 = arith.constant 1 : index
    %c0_244 = arith.constant 0 : index
    %1166 = vector.load %arg9[%c1_243, %c0_244] : memref<31x256xf32, #tpu.memory_space<vmem>>, vector<1x256xf32>
    %1167 = vector.broadcast %1166 : vector<1x256xf32> to vector<8x256xf32>
    %1168 = arith.mulf %1165, %1167 : vector<8x256xf32>
    %1169 = vector.extract_strided_slice %1157 {offsets = [0, 1], sizes = [8, 1], strides = [1, 1]} : vector<8x31xf32> to vector<8x1xf32>
    %1170 = vector.broadcast %1169 : vector<8x1xf32> to vector<8x256xf32>
    %1171 = arith.mulf %1168, %1170 : vector<8x256xf32>
    %1172 = arith.addf %1164, %1171 : vector<8x256xf32>
    %c13_i32 = arith.constant 13 : i32
    %1173 = tpu.dynamic_rotate %1156 by %c13_i32 dim 1 : vector<8x256xf32>, i32 -> vector<8x256xf32>
    %c2_245 = arith.constant 2 : index
    %c0_246 = arith.constant 0 : index
    %1174 = vector.load %arg9[%c2_245, %c0_246] : memref<31x256xf32, #tpu.memory_space<vmem>>, vector<1x256xf32>
    %1175 = vector.broadcast %1174 : vector<1x256xf32> to vector<8x256xf32>
    %1176 = arith.mulf %1173, %1175 : vector<8x256xf32>
    %1177 = vector.extract_strided_slice %1157 {offsets = [0, 2], sizes = [8, 1], strides = [1, 1]} : vector<8x31xf32> to vector<8x1xf32>
    %1178 = vector.broadcast %1177 : vector<8x1xf32> to vector<8x256xf32>
    %1179 = arith.mulf %1176, %1178 : vector<8x256xf32>
    %1180 = arith.addf %1172, %1179 : vector<8x256xf32>
    %c12_i32 = arith.constant 12 : i32
    %1181 = tpu.dynamic_rotate %1156 by %c12_i32 dim 1 : vector<8x256xf32>, i32 -> vector<8x256xf32>
    %c3_247 = arith.constant 3 : index
    %c0_248 = arith.constant 0 : index
    %1182 = vector.load %arg9[%c3_247, %c0_248] : memref<31x256xf32, #tpu.memory_space<vmem>>, vector<1x256xf32>
    %1183 = vector.broadcast %1182 : vector<1x256xf32> to vector<8x256xf32>
    %1184 = arith.mulf %1181, %1183 : vector<8x256xf32>
    %1185 = vector.extract_strided_slice %1157 {offsets = [0, 3], sizes = [8, 1], strides = [1, 1]} : vector<8x31xf32> to vector<8x1xf32>
    %1186 = vector.broadcast %1185 : vector<8x1xf32> to vector<8x256xf32>
    %1187 = arith.mulf %1184, %1186 : vector<8x256xf32>
    %1188 = arith.addf %1180, %1187 : vector<8x256xf32>
    %c11_i32 = arith.constant 11 : i32
    %1189 = tpu.dynamic_rotate %1156 by %c11_i32 dim 1 : vector<8x256xf32>, i32 -> vector<8x256xf32>
    %c4_249 = arith.constant 4 : index
    %c0_250 = arith.constant 0 : index
    %1190 = vector.load %arg9[%c4_249, %c0_250] : memref<31x256xf32, #tpu.memory_space<vmem>>, vector<1x256xf32>
    %1191 = vector.broadcast %1190 : vector<1x256xf32> to vector<8x256xf32>
    %1192 = arith.mulf %1189, %1191 : vector<8x256xf32>
    %1193 = vector.extract_strided_slice %1157 {offsets = [0, 4], sizes = [8, 1], strides = [1, 1]} : vector<8x31xf32> to vector<8x1xf32>
    %1194 = vector.broadcast %1193 : vector<8x1xf32> to vector<8x256xf32>
    %1195 = arith.mulf %1192, %1194 : vector<8x256xf32>
    %1196 = arith.addf %1188, %1195 : vector<8x256xf32>
    %c10_i32_251 = arith.constant 10 : i32
    %1197 = tpu.dynamic_rotate %1156 by %c10_i32_251 dim 1 : vector<8x256xf32>, i32 -> vector<8x256xf32>
    %1198 = vector.broadcast %829 : vector<1x256xf32> to vector<8x256xf32>
    %1199 = arith.mulf %1197, %1198 : vector<8x256xf32>
    %1200 = vector.extract_strided_slice %1157 {offsets = [0, 5], sizes = [8, 1], strides = [1, 1]} : vector<8x31xf32> to vector<8x1xf32>
    %1201 = vector.broadcast %1200 : vector<8x1xf32> to vector<8x256xf32>
    %1202 = arith.mulf %1199, %1201 : vector<8x256xf32>
    %1203 = arith.addf %1196, %1202 : vector<8x256xf32>
    %c9_i32_252 = arith.constant 9 : i32
    %1204 = tpu.dynamic_rotate %1156 by %c9_i32_252 dim 1 : vector<8x256xf32>, i32 -> vector<8x256xf32>
    %1205 = vector.broadcast %836 : vector<1x256xf32> to vector<8x256xf32>
    %1206 = arith.mulf %1204, %1205 : vector<8x256xf32>
    %1207 = vector.extract_strided_slice %1157 {offsets = [0, 6], sizes = [8, 1], strides = [1, 1]} : vector<8x31xf32> to vector<8x1xf32>
    %1208 = vector.broadcast %1207 : vector<8x1xf32> to vector<8x256xf32>
    %1209 = arith.mulf %1206, %1208 : vector<8x256xf32>
    %1210 = arith.addf %1203, %1209 : vector<8x256xf32>
    %c8_i32_253 = arith.constant 8 : i32
    %1211 = tpu.dynamic_rotate %1156 by %c8_i32_253 dim 1 : vector<8x256xf32>, i32 -> vector<8x256xf32>
    %1212 = vector.broadcast %844 : vector<1x256xf32> to vector<8x256xf32>
    %1213 = arith.mulf %1211, %1212 : vector<8x256xf32>
    %1214 = vector.extract_strided_slice %1157 {offsets = [0, 7], sizes = [8, 1], strides = [1, 1]} : vector<8x31xf32> to vector<8x1xf32>
    %1215 = vector.broadcast %1214 : vector<8x1xf32> to vector<8x256xf32>
    %1216 = arith.mulf %1213, %1215 : vector<8x256xf32>
    %1217 = arith.addf %1210, %1216 : vector<8x256xf32>
    %c7_i32_254 = arith.constant 7 : i32
    %1218 = tpu.dynamic_rotate %1156 by %c7_i32_254 dim 1 : vector<8x256xf32>, i32 -> vector<8x256xf32>
    %1219 = vector.broadcast %852 : vector<1x256xf32> to vector<8x256xf32>
    %1220 = arith.mulf %1218, %1219 : vector<8x256xf32>
    %1221 = vector.extract_strided_slice %1157 {offsets = [0, 8], sizes = [8, 1], strides = [1, 1]} : vector<8x31xf32> to vector<8x1xf32>
    %1222 = vector.broadcast %1221 : vector<8x1xf32> to vector<8x256xf32>
    %1223 = arith.mulf %1220, %1222 : vector<8x256xf32>
    %1224 = arith.addf %1217, %1223 : vector<8x256xf32>
    %c6_i32_255 = arith.constant 6 : i32
    %1225 = tpu.dynamic_rotate %1156 by %c6_i32_255 dim 1 : vector<8x256xf32>, i32 -> vector<8x256xf32>
    %1226 = vector.broadcast %860 : vector<1x256xf32> to vector<8x256xf32>
    %1227 = arith.mulf %1225, %1226 : vector<8x256xf32>
    %1228 = vector.extract_strided_slice %1157 {offsets = [0, 9], sizes = [8, 1], strides = [1, 1]} : vector<8x31xf32> to vector<8x1xf32>
    %1229 = vector.broadcast %1228 : vector<8x1xf32> to vector<8x256xf32>
    %1230 = arith.mulf %1227, %1229 : vector<8x256xf32>
    %1231 = arith.addf %1224, %1230 : vector<8x256xf32>
    %c5_i32_256 = arith.constant 5 : i32
    %1232 = tpu.dynamic_rotate %1156 by %c5_i32_256 dim 1 : vector<8x256xf32>, i32 -> vector<8x256xf32>
    %1233 = vector.broadcast %651 : vector<1x256xf32> to vector<8x256xf32>
    %1234 = arith.mulf %1232, %1233 : vector<8x256xf32>
    %1235 = vector.extract_strided_slice %1157 {offsets = [0, 10], sizes = [8, 1], strides = [1, 1]} : vector<8x31xf32> to vector<8x1xf32>
    %1236 = vector.broadcast %1235 : vector<8x1xf32> to vector<8x256xf32>
    %1237 = arith.mulf %1234, %1236 : vector<8x256xf32>
    %1238 = arith.addf %1231, %1237 : vector<8x256xf32>
    %c4_i32_257 = arith.constant 4 : i32
    %1239 = tpu.dynamic_rotate %1156 by %c4_i32_257 dim 1 : vector<8x256xf32>, i32 -> vector<8x256xf32>
    %1240 = vector.broadcast %658 : vector<1x256xf32> to vector<8x256xf32>
    %1241 = arith.mulf %1239, %1240 : vector<8x256xf32>
    %1242 = vector.extract_strided_slice %1157 {offsets = [0, 11], sizes = [8, 1], strides = [1, 1]} : vector<8x31xf32> to vector<8x1xf32>
    %1243 = vector.broadcast %1242 : vector<8x1xf32> to vector<8x256xf32>
    %1244 = arith.mulf %1241, %1243 : vector<8x256xf32>
    %1245 = arith.addf %1238, %1244 : vector<8x256xf32>
    %c3_i32_258 = arith.constant 3 : i32
    %1246 = tpu.dynamic_rotate %1156 by %c3_i32_258 dim 1 : vector<8x256xf32>, i32 -> vector<8x256xf32>
    %1247 = vector.broadcast %292 : vector<1x256xf32> to vector<8x256xf32>
    %1248 = arith.mulf %1246, %1247 : vector<8x256xf32>
    %1249 = vector.extract_strided_slice %1157 {offsets = [0, 12], sizes = [8, 1], strides = [1, 1]} : vector<8x31xf32> to vector<8x1xf32>
    %1250 = vector.broadcast %1249 : vector<8x1xf32> to vector<8x256xf32>
    %1251 = arith.mulf %1248, %1250 : vector<8x256xf32>
    %1252 = arith.addf %1245, %1251 : vector<8x256xf32>
    %c2_i32_259 = arith.constant 2 : i32
    %1253 = tpu.dynamic_rotate %1156 by %c2_i32_259 dim 1 : vector<8x256xf32>, i32 -> vector<8x256xf32>
    %1254 = vector.broadcast %97 : vector<1x256xf32> to vector<8x256xf32>
    %1255 = arith.mulf %1253, %1254 : vector<8x256xf32>
    %1256 = vector.extract_strided_slice %1157 {offsets = [0, 13], sizes = [8, 1], strides = [1, 1]} : vector<8x31xf32> to vector<8x1xf32>
    %1257 = vector.broadcast %1256 : vector<8x1xf32> to vector<8x256xf32>
    %1258 = arith.mulf %1255, %1257 : vector<8x256xf32>
    %1259 = arith.addf %1252, %1258 : vector<8x256xf32>
    %c1_i32_260 = arith.constant 1 : i32
    %1260 = tpu.dynamic_rotate %1156 by %c1_i32_260 dim 1 : vector<8x256xf32>, i32 -> vector<8x256xf32>
    %1261 = vector.broadcast %23 : vector<1x256xf32> to vector<8x256xf32>
    %1262 = arith.mulf %1260, %1261 : vector<8x256xf32>
    %1263 = vector.extract_strided_slice %1157 {offsets = [0, 14], sizes = [8, 1], strides = [1, 1]} : vector<8x31xf32> to vector<8x1xf32>
    %1264 = vector.broadcast %1263 : vector<8x1xf32> to vector<8x256xf32>
    %1265 = arith.mulf %1262, %1264 : vector<8x256xf32>
    %1266 = arith.addf %1259, %1265 : vector<8x256xf32>
    %1267 = vector.extract_strided_slice %1157 {offsets = [0, 15], sizes = [8, 1], strides = [1, 1]} : vector<8x31xf32> to vector<8x1xf32>
    %1268 = vector.broadcast %1267 : vector<8x1xf32> to vector<8x256xf32>
    %1269 = arith.mulf %1156, %1268 : vector<8x256xf32>
    %1270 = arith.addf %1266, %1269 : vector<8x256xf32>
    %c255_i32_261 = arith.constant 255 : i32
    %1271 = tpu.dynamic_rotate %1156 by %c255_i32_261 dim 1 : vector<8x256xf32>, i32 -> vector<8x256xf32>
    %1272 = vector.broadcast %34 : vector<1x256xf32> to vector<8x256xf32>
    %1273 = arith.mulf %1271, %1272 : vector<8x256xf32>
    %1274 = vector.extract_strided_slice %1157 {offsets = [0, 16], sizes = [8, 1], strides = [1, 1]} : vector<8x31xf32> to vector<8x1xf32>
    %1275 = vector.broadcast %1274 : vector<8x1xf32> to vector<8x256xf32>
    %1276 = arith.mulf %1273, %1275 : vector<8x256xf32>
    %1277 = arith.addf %1270, %1276 : vector<8x256xf32>
    %c254_i32_262 = arith.constant 254 : i32
    %1278 = tpu.dynamic_rotate %1156 by %c254_i32_262 dim 1 : vector<8x256xf32>, i32 -> vector<8x256xf32>
    %1279 = vector.broadcast %122 : vector<1x256xf32> to vector<8x256xf32>
    %1280 = arith.mulf %1278, %1279 : vector<8x256xf32>
    %1281 = vector.extract_strided_slice %1157 {offsets = [0, 17], sizes = [8, 1], strides = [1, 1]} : vector<8x31xf32> to vector<8x1xf32>
    %1282 = vector.broadcast %1281 : vector<8x1xf32> to vector<8x256xf32>
    %1283 = arith.mulf %1280, %1282 : vector<8x256xf32>
    %1284 = arith.addf %1277, %1283 : vector<8x256xf32>
    %c253_i32_263 = arith.constant 253 : i32
    %1285 = tpu.dynamic_rotate %1156 by %c253_i32_263 dim 1 : vector<8x256xf32>, i32 -> vector<8x256xf32>
    %1286 = vector.broadcast %331 : vector<1x256xf32> to vector<8x256xf32>
    %1287 = arith.mulf %1285, %1286 : vector<8x256xf32>
    %1288 = vector.extract_strided_slice %1157 {offsets = [0, 18], sizes = [8, 1], strides = [1, 1]} : vector<8x31xf32> to vector<8x1xf32>
    %1289 = vector.broadcast %1288 : vector<8x1xf32> to vector<8x256xf32>
    %1290 = arith.mulf %1287, %1289 : vector<8x256xf32>
    %1291 = arith.addf %1284, %1290 : vector<8x256xf32>
    %c252_i32_264 = arith.constant 252 : i32
    %1292 = tpu.dynamic_rotate %1156 by %c252_i32_264 dim 1 : vector<8x256xf32>, i32 -> vector<8x256xf32>
    %1293 = vector.broadcast %712 : vector<1x256xf32> to vector<8x256xf32>
    %1294 = arith.mulf %1292, %1293 : vector<8x256xf32>
    %1295 = vector.extract_strided_slice %1157 {offsets = [0, 19], sizes = [8, 1], strides = [1, 1]} : vector<8x31xf32> to vector<8x1xf32>
    %1296 = vector.broadcast %1295 : vector<8x1xf32> to vector<8x256xf32>
    %1297 = arith.mulf %1294, %1296 : vector<8x256xf32>
    %1298 = arith.addf %1291, %1297 : vector<8x256xf32>
    %c251_i32_265 = arith.constant 251 : i32
    %1299 = tpu.dynamic_rotate %1156 by %c251_i32_265 dim 1 : vector<8x256xf32>, i32 -> vector<8x256xf32>
    %1300 = vector.broadcast %720 : vector<1x256xf32> to vector<8x256xf32>
    %1301 = arith.mulf %1299, %1300 : vector<8x256xf32>
    %1302 = vector.extract_strided_slice %1157 {offsets = [0, 20], sizes = [8, 1], strides = [1, 1]} : vector<8x31xf32> to vector<8x1xf32>
    %1303 = vector.broadcast %1302 : vector<8x1xf32> to vector<8x256xf32>
    %1304 = arith.mulf %1301, %1303 : vector<8x256xf32>
    %1305 = arith.addf %1298, %1304 : vector<8x256xf32>
    %c250_i32_266 = arith.constant 250 : i32
    %1306 = tpu.dynamic_rotate %1156 by %c250_i32_266 dim 1 : vector<8x256xf32>, i32 -> vector<8x256xf32>
    %1307 = vector.broadcast %942 : vector<1x256xf32> to vector<8x256xf32>
    %1308 = arith.mulf %1306, %1307 : vector<8x256xf32>
    %1309 = vector.extract_strided_slice %1157 {offsets = [0, 21], sizes = [8, 1], strides = [1, 1]} : vector<8x31xf32> to vector<8x1xf32>
    %1310 = vector.broadcast %1309 : vector<8x1xf32> to vector<8x256xf32>
    %1311 = arith.mulf %1308, %1310 : vector<8x256xf32>
    %1312 = arith.addf %1305, %1311 : vector<8x256xf32>
    %c249_i32_267 = arith.constant 249 : i32
    %1313 = tpu.dynamic_rotate %1156 by %c249_i32_267 dim 1 : vector<8x256xf32>, i32 -> vector<8x256xf32>
    %1314 = vector.broadcast %950 : vector<1x256xf32> to vector<8x256xf32>
    %1315 = arith.mulf %1313, %1314 : vector<8x256xf32>
    %1316 = vector.extract_strided_slice %1157 {offsets = [0, 22], sizes = [8, 1], strides = [1, 1]} : vector<8x31xf32> to vector<8x1xf32>
    %1317 = vector.broadcast %1316 : vector<8x1xf32> to vector<8x256xf32>
    %1318 = arith.mulf %1315, %1317 : vector<8x256xf32>
    %1319 = arith.addf %1312, %1318 : vector<8x256xf32>
    %c248_i32_268 = arith.constant 248 : i32
    %1320 = tpu.dynamic_rotate %1156 by %c248_i32_268 dim 1 : vector<8x256xf32>, i32 -> vector<8x256xf32>
    %1321 = vector.broadcast %958 : vector<1x256xf32> to vector<8x256xf32>
    %1322 = arith.mulf %1320, %1321 : vector<8x256xf32>
    %1323 = vector.extract_strided_slice %1157 {offsets = [0, 23], sizes = [8, 1], strides = [1, 1]} : vector<8x31xf32> to vector<8x1xf32>
    %1324 = vector.broadcast %1323 : vector<8x1xf32> to vector<8x256xf32>
    %1325 = arith.mulf %1322, %1324 : vector<8x256xf32>
    %1326 = arith.addf %1319, %1325 : vector<8x256xf32>
    %c247_i32_269 = arith.constant 247 : i32
    %1327 = tpu.dynamic_rotate %1156 by %c247_i32_269 dim 1 : vector<8x256xf32>, i32 -> vector<8x256xf32>
    %1328 = vector.broadcast %966 : vector<1x256xf32> to vector<8x256xf32>
    %1329 = arith.mulf %1327, %1328 : vector<8x256xf32>
    %1330 = vector.extract_strided_slice %1157 {offsets = [0, 24], sizes = [8, 1], strides = [1, 1]} : vector<8x31xf32> to vector<8x1xf32>
    %1331 = vector.broadcast %1330 : vector<8x1xf32> to vector<8x256xf32>
    %1332 = arith.mulf %1329, %1331 : vector<8x256xf32>
    %1333 = arith.addf %1326, %1332 : vector<8x256xf32>
    %c246_i32_270 = arith.constant 246 : i32
    %1334 = tpu.dynamic_rotate %1156 by %c246_i32_270 dim 1 : vector<8x256xf32>, i32 -> vector<8x256xf32>
    %1335 = vector.broadcast %974 : vector<1x256xf32> to vector<8x256xf32>
    %1336 = arith.mulf %1334, %1335 : vector<8x256xf32>
    %1337 = vector.extract_strided_slice %1157 {offsets = [0, 25], sizes = [8, 1], strides = [1, 1]} : vector<8x31xf32> to vector<8x1xf32>
    %1338 = vector.broadcast %1337 : vector<8x1xf32> to vector<8x256xf32>
    %1339 = arith.mulf %1336, %1338 : vector<8x256xf32>
    %1340 = arith.addf %1333, %1339 : vector<8x256xf32>
    %c245_i32 = arith.constant 245 : i32
    %1341 = tpu.dynamic_rotate %1156 by %c245_i32 dim 1 : vector<8x256xf32>, i32 -> vector<8x256xf32>
    %c26 = arith.constant 26 : index
    %c0_271 = arith.constant 0 : index
    %1342 = vector.load %arg9[%c26, %c0_271] : memref<31x256xf32, #tpu.memory_space<vmem>>, vector<1x256xf32>
    %1343 = vector.broadcast %1342 : vector<1x256xf32> to vector<8x256xf32>
    %1344 = arith.mulf %1341, %1343 : vector<8x256xf32>
    %1345 = vector.extract_strided_slice %1157 {offsets = [0, 26], sizes = [8, 1], strides = [1, 1]} : vector<8x31xf32> to vector<8x1xf32>
    %1346 = vector.broadcast %1345 : vector<8x1xf32> to vector<8x256xf32>
    %1347 = arith.mulf %1344, %1346 : vector<8x256xf32>
    %1348 = arith.addf %1340, %1347 : vector<8x256xf32>
    %c244_i32 = arith.constant 244 : i32
    %1349 = tpu.dynamic_rotate %1156 by %c244_i32 dim 1 : vector<8x256xf32>, i32 -> vector<8x256xf32>
    %c27 = arith.constant 27 : index
    %c0_272 = arith.constant 0 : index
    %1350 = vector.load %arg9[%c27, %c0_272] : memref<31x256xf32, #tpu.memory_space<vmem>>, vector<1x256xf32>
    %1351 = vector.broadcast %1350 : vector<1x256xf32> to vector<8x256xf32>
    %1352 = arith.mulf %1349, %1351 : vector<8x256xf32>
    %1353 = vector.extract_strided_slice %1157 {offsets = [0, 27], sizes = [8, 1], strides = [1, 1]} : vector<8x31xf32> to vector<8x1xf32>
    %1354 = vector.broadcast %1353 : vector<8x1xf32> to vector<8x256xf32>
    %1355 = arith.mulf %1352, %1354 : vector<8x256xf32>
    %1356 = arith.addf %1348, %1355 : vector<8x256xf32>
    %c243_i32 = arith.constant 243 : i32
    %1357 = tpu.dynamic_rotate %1156 by %c243_i32 dim 1 : vector<8x256xf32>, i32 -> vector<8x256xf32>
    %c28 = arith.constant 28 : index
    %c0_273 = arith.constant 0 : index
    %1358 = vector.load %arg9[%c28, %c0_273] : memref<31x256xf32, #tpu.memory_space<vmem>>, vector<1x256xf32>
    %1359 = vector.broadcast %1358 : vector<1x256xf32> to vector<8x256xf32>
    %1360 = arith.mulf %1357, %1359 : vector<8x256xf32>
    %1361 = vector.extract_strided_slice %1157 {offsets = [0, 28], sizes = [8, 1], strides = [1, 1]} : vector<8x31xf32> to vector<8x1xf32>
    %1362 = vector.broadcast %1361 : vector<8x1xf32> to vector<8x256xf32>
    %1363 = arith.mulf %1360, %1362 : vector<8x256xf32>
    %1364 = arith.addf %1356, %1363 : vector<8x256xf32>
    %c242_i32 = arith.constant 242 : i32
    %1365 = tpu.dynamic_rotate %1156 by %c242_i32 dim 1 : vector<8x256xf32>, i32 -> vector<8x256xf32>
    %c29 = arith.constant 29 : index
    %c0_274 = arith.constant 0 : index
    %1366 = vector.load %arg9[%c29, %c0_274] : memref<31x256xf32, #tpu.memory_space<vmem>>, vector<1x256xf32>
    %1367 = vector.broadcast %1366 : vector<1x256xf32> to vector<8x256xf32>
    %1368 = arith.mulf %1365, %1367 : vector<8x256xf32>
    %1369 = vector.extract_strided_slice %1157 {offsets = [0, 29], sizes = [8, 1], strides = [1, 1]} : vector<8x31xf32> to vector<8x1xf32>
    %1370 = vector.broadcast %1369 : vector<8x1xf32> to vector<8x256xf32>
    %1371 = arith.mulf %1368, %1370 : vector<8x256xf32>
    %1372 = arith.addf %1364, %1371 : vector<8x256xf32>
    %c241_i32 = arith.constant 241 : i32
    %1373 = tpu.dynamic_rotate %1156 by %c241_i32 dim 1 : vector<8x256xf32>, i32 -> vector<8x256xf32>
    %c30 = arith.constant 30 : index
    %c0_275 = arith.constant 0 : index
    %1374 = vector.load %arg9[%c30, %c0_275] : memref<31x256xf32, #tpu.memory_space<vmem>>, vector<1x256xf32>
    %1375 = vector.broadcast %1374 : vector<1x256xf32> to vector<8x256xf32>
    %1376 = arith.mulf %1373, %1375 : vector<8x256xf32>
    %1377 = vector.extract_strided_slice %1157 {offsets = [0, 30], sizes = [8, 1], strides = [1, 1]} : vector<8x31xf32> to vector<8x1xf32>
    %1378 = vector.broadcast %1377 : vector<8x1xf32> to vector<8x256xf32>
    %1379 = arith.mulf %1376, %1378 : vector<8x256xf32>
    %1380 = arith.addf %1372, %1379 : vector<8x256xf32>
    %c0_276 = arith.constant 0 : index
    %c7_277 = arith.constant 7 : index
    %1381 = vector.load %arg7[%c0_276, %c7_277] : memref<8x9xf32, #tpu.memory_space<vmem>>, vector<8x1xf32>
    %1382 = vector.broadcast %1381 : vector<8x1xf32> to vector<8x256xf32>
    %1383 = arith.addf %1380, %1382 : vector<8x256xf32>
    %c0_278 = arith.constant 0 : index
    %c178 = arith.constant 178 : index
    %1384 = vector.load %arg6[%c0_278, %c178] : memref<8x209xf32, #tpu.memory_space<vmem>>, vector<8x31xf32>
    %c240_i32_279 = arith.constant 240 : i32
    %1385 = tpu.dynamic_rotate %1383 by %c240_i32_279 dim 1 : vector<8x256xf32>, i32 -> vector<8x256xf32>
    %c0_280 = arith.constant 0 : index
    %c0_281 = arith.constant 0 : index
    %1386 = vector.load %arg8[%c0_280, %c0_281] : memref<31x256xf32, #tpu.memory_space<vmem>>, vector<1x256xf32>
    %1387 = vector.broadcast %1386 : vector<1x256xf32> to vector<8x256xf32>
    %1388 = arith.mulf %1385, %1387 : vector<8x256xf32>
    %1389 = vector.extract_strided_slice %1384 {offsets = [0, 0], sizes = [8, 1], strides = [1, 1]} : vector<8x31xf32> to vector<8x1xf32>
    %1390 = vector.broadcast %1389 : vector<8x1xf32> to vector<8x256xf32>
    %1391 = arith.mulf %1388, %1390 : vector<8x256xf32>
    %c224_i32_282 = arith.constant 224 : i32
    %1392 = tpu.dynamic_rotate %1383 by %c224_i32_282 dim 1 : vector<8x256xf32>, i32 -> vector<8x256xf32>
    %c1_283 = arith.constant 1 : index
    %c0_284 = arith.constant 0 : index
    %1393 = vector.load %arg8[%c1_283, %c0_284] : memref<31x256xf32, #tpu.memory_space<vmem>>, vector<1x256xf32>
    %1394 = vector.broadcast %1393 : vector<1x256xf32> to vector<8x256xf32>
    %1395 = arith.mulf %1392, %1394 : vector<8x256xf32>
    %1396 = vector.extract_strided_slice %1384 {offsets = [0, 1], sizes = [8, 1], strides = [1, 1]} : vector<8x31xf32> to vector<8x1xf32>
    %1397 = vector.broadcast %1396 : vector<8x1xf32> to vector<8x256xf32>
    %1398 = arith.mulf %1395, %1397 : vector<8x256xf32>
    %1399 = arith.addf %1391, %1398 : vector<8x256xf32>
    %c208_i32_285 = arith.constant 208 : i32
    %1400 = tpu.dynamic_rotate %1383 by %c208_i32_285 dim 1 : vector<8x256xf32>, i32 -> vector<8x256xf32>
    %c2_286 = arith.constant 2 : index
    %c0_287 = arith.constant 0 : index
    %1401 = vector.load %arg8[%c2_286, %c0_287] : memref<31x256xf32, #tpu.memory_space<vmem>>, vector<1x256xf32>
    %1402 = vector.broadcast %1401 : vector<1x256xf32> to vector<8x256xf32>
    %1403 = arith.mulf %1400, %1402 : vector<8x256xf32>
    %1404 = vector.extract_strided_slice %1384 {offsets = [0, 2], sizes = [8, 1], strides = [1, 1]} : vector<8x31xf32> to vector<8x1xf32>
    %1405 = vector.broadcast %1404 : vector<8x1xf32> to vector<8x256xf32>
    %1406 = arith.mulf %1403, %1405 : vector<8x256xf32>
    %1407 = arith.addf %1399, %1406 : vector<8x256xf32>
    %c192_i32_288 = arith.constant 192 : i32
    %1408 = tpu.dynamic_rotate %1383 by %c192_i32_288 dim 1 : vector<8x256xf32>, i32 -> vector<8x256xf32>
    %c3_289 = arith.constant 3 : index
    %c0_290 = arith.constant 0 : index
    %1409 = vector.load %arg8[%c3_289, %c0_290] : memref<31x256xf32, #tpu.memory_space<vmem>>, vector<1x256xf32>
    %1410 = vector.broadcast %1409 : vector<1x256xf32> to vector<8x256xf32>
    %1411 = arith.mulf %1408, %1410 : vector<8x256xf32>
    %1412 = vector.extract_strided_slice %1384 {offsets = [0, 3], sizes = [8, 1], strides = [1, 1]} : vector<8x31xf32> to vector<8x1xf32>
    %1413 = vector.broadcast %1412 : vector<8x1xf32> to vector<8x256xf32>
    %1414 = arith.mulf %1411, %1413 : vector<8x256xf32>
    %1415 = arith.addf %1407, %1414 : vector<8x256xf32>
    %c176_i32_291 = arith.constant 176 : i32
    %1416 = tpu.dynamic_rotate %1383 by %c176_i32_291 dim 1 : vector<8x256xf32>, i32 -> vector<8x256xf32>
    %c4_292 = arith.constant 4 : index
    %c0_293 = arith.constant 0 : index
    %1417 = vector.load %arg8[%c4_292, %c0_293] : memref<31x256xf32, #tpu.memory_space<vmem>>, vector<1x256xf32>
    %1418 = vector.broadcast %1417 : vector<1x256xf32> to vector<8x256xf32>
    %1419 = arith.mulf %1416, %1418 : vector<8x256xf32>
    %1420 = vector.extract_strided_slice %1384 {offsets = [0, 4], sizes = [8, 1], strides = [1, 1]} : vector<8x31xf32> to vector<8x1xf32>
    %1421 = vector.broadcast %1420 : vector<8x1xf32> to vector<8x256xf32>
    %1422 = arith.mulf %1419, %1421 : vector<8x256xf32>
    %1423 = arith.addf %1415, %1422 : vector<8x256xf32>
    %c160_i32_294 = arith.constant 160 : i32
    %1424 = tpu.dynamic_rotate %1383 by %c160_i32_294 dim 1 : vector<8x256xf32>, i32 -> vector<8x256xf32>
    %1425 = vector.broadcast %986 : vector<1x256xf32> to vector<8x256xf32>
    %1426 = arith.mulf %1424, %1425 : vector<8x256xf32>
    %1427 = vector.extract_strided_slice %1384 {offsets = [0, 5], sizes = [8, 1], strides = [1, 1]} : vector<8x31xf32> to vector<8x1xf32>
    %1428 = vector.broadcast %1427 : vector<8x1xf32> to vector<8x256xf32>
    %1429 = arith.mulf %1426, %1428 : vector<8x256xf32>
    %1430 = arith.addf %1423, %1429 : vector<8x256xf32>
    %c144_i32_295 = arith.constant 144 : i32
    %1431 = tpu.dynamic_rotate %1383 by %c144_i32_295 dim 1 : vector<8x256xf32>, i32 -> vector<8x256xf32>
    %1432 = vector.broadcast %993 : vector<1x256xf32> to vector<8x256xf32>
    %1433 = arith.mulf %1431, %1432 : vector<8x256xf32>
    %1434 = vector.extract_strided_slice %1384 {offsets = [0, 6], sizes = [8, 1], strides = [1, 1]} : vector<8x31xf32> to vector<8x1xf32>
    %1435 = vector.broadcast %1434 : vector<8x1xf32> to vector<8x256xf32>
    %1436 = arith.mulf %1433, %1435 : vector<8x256xf32>
    %1437 = arith.addf %1430, %1436 : vector<8x256xf32>
    %c128_i32_296 = arith.constant 128 : i32
    %1438 = tpu.dynamic_rotate %1383 by %c128_i32_296 dim 1 : vector<8x256xf32>, i32 -> vector<8x256xf32>
    %1439 = vector.broadcast %1001 : vector<1x256xf32> to vector<8x256xf32>
    %1440 = arith.mulf %1438, %1439 : vector<8x256xf32>
    %1441 = vector.extract_strided_slice %1384 {offsets = [0, 7], sizes = [8, 1], strides = [1, 1]} : vector<8x31xf32> to vector<8x1xf32>
    %1442 = vector.broadcast %1441 : vector<8x1xf32> to vector<8x256xf32>
    %1443 = arith.mulf %1440, %1442 : vector<8x256xf32>
    %1444 = arith.addf %1437, %1443 : vector<8x256xf32>
    %c112_i32_297 = arith.constant 112 : i32
    %1445 = tpu.dynamic_rotate %1383 by %c112_i32_297 dim 1 : vector<8x256xf32>, i32 -> vector<8x256xf32>
    %1446 = vector.broadcast %1009 : vector<1x256xf32> to vector<8x256xf32>
    %1447 = arith.mulf %1445, %1446 : vector<8x256xf32>
    %1448 = vector.extract_strided_slice %1384 {offsets = [0, 8], sizes = [8, 1], strides = [1, 1]} : vector<8x31xf32> to vector<8x1xf32>
    %1449 = vector.broadcast %1448 : vector<8x1xf32> to vector<8x256xf32>
    %1450 = arith.mulf %1447, %1449 : vector<8x256xf32>
    %1451 = arith.addf %1444, %1450 : vector<8x256xf32>
    %c96_i32_298 = arith.constant 96 : i32
    %1452 = tpu.dynamic_rotate %1383 by %c96_i32_298 dim 1 : vector<8x256xf32>, i32 -> vector<8x256xf32>
    %1453 = vector.broadcast %1017 : vector<1x256xf32> to vector<8x256xf32>
    %1454 = arith.mulf %1452, %1453 : vector<8x256xf32>
    %1455 = vector.extract_strided_slice %1384 {offsets = [0, 9], sizes = [8, 1], strides = [1, 1]} : vector<8x31xf32> to vector<8x1xf32>
    %1456 = vector.broadcast %1455 : vector<8x1xf32> to vector<8x256xf32>
    %1457 = arith.mulf %1454, %1456 : vector<8x256xf32>
    %1458 = arith.addf %1451, %1457 : vector<8x256xf32>
    %c80_i32_299 = arith.constant 80 : i32
    %1459 = tpu.dynamic_rotate %1383 by %c80_i32_299 dim 1 : vector<8x256xf32>, i32 -> vector<8x256xf32>
    %1460 = vector.broadcast %732 : vector<1x256xf32> to vector<8x256xf32>
    %1461 = arith.mulf %1459, %1460 : vector<8x256xf32>
    %1462 = vector.extract_strided_slice %1384 {offsets = [0, 10], sizes = [8, 1], strides = [1, 1]} : vector<8x31xf32> to vector<8x1xf32>
    %1463 = vector.broadcast %1462 : vector<8x1xf32> to vector<8x256xf32>
    %1464 = arith.mulf %1461, %1463 : vector<8x256xf32>
    %1465 = arith.addf %1458, %1464 : vector<8x256xf32>
    %c64_i32_300 = arith.constant 64 : i32
    %1466 = tpu.dynamic_rotate %1383 by %c64_i32_300 dim 1 : vector<8x256xf32>, i32 -> vector<8x256xf32>
    %1467 = vector.broadcast %739 : vector<1x256xf32> to vector<8x256xf32>
    %1468 = arith.mulf %1466, %1467 : vector<8x256xf32>
    %1469 = vector.extract_strided_slice %1384 {offsets = [0, 11], sizes = [8, 1], strides = [1, 1]} : vector<8x31xf32> to vector<8x1xf32>
    %1470 = vector.broadcast %1469 : vector<8x1xf32> to vector<8x256xf32>
    %1471 = arith.mulf %1468, %1470 : vector<8x256xf32>
    %1472 = arith.addf %1465, %1471 : vector<8x256xf32>
    %c48_i32_301 = arith.constant 48 : i32
    %1473 = tpu.dynamic_rotate %1383 by %c48_i32_301 dim 1 : vector<8x256xf32>, i32 -> vector<8x256xf32>
    %1474 = vector.broadcast %288 : vector<1x256xf32> to vector<8x256xf32>
    %1475 = arith.mulf %1473, %1474 : vector<8x256xf32>
    %1476 = vector.extract_strided_slice %1384 {offsets = [0, 12], sizes = [8, 1], strides = [1, 1]} : vector<8x31xf32> to vector<8x1xf32>
    %1477 = vector.broadcast %1476 : vector<8x1xf32> to vector<8x256xf32>
    %1478 = arith.mulf %1475, %1477 : vector<8x256xf32>
    %1479 = arith.addf %1472, %1478 : vector<8x256xf32>
    %c32_i32_302 = arith.constant 32 : i32
    %1480 = tpu.dynamic_rotate %1383 by %c32_i32_302 dim 1 : vector<8x256xf32>, i32 -> vector<8x256xf32>
    %1481 = vector.broadcast %93 : vector<1x256xf32> to vector<8x256xf32>
    %1482 = arith.mulf %1480, %1481 : vector<8x256xf32>
    %1483 = vector.extract_strided_slice %1384 {offsets = [0, 13], sizes = [8, 1], strides = [1, 1]} : vector<8x31xf32> to vector<8x1xf32>
    %1484 = vector.broadcast %1483 : vector<8x1xf32> to vector<8x256xf32>
    %1485 = arith.mulf %1482, %1484 : vector<8x256xf32>
    %1486 = arith.addf %1479, %1485 : vector<8x256xf32>
    %c16_i32_303 = arith.constant 16 : i32
    %1487 = tpu.dynamic_rotate %1383 by %c16_i32_303 dim 1 : vector<8x256xf32>, i32 -> vector<8x256xf32>
    %1488 = vector.broadcast %19 : vector<1x256xf32> to vector<8x256xf32>
    %1489 = arith.mulf %1487, %1488 : vector<8x256xf32>
    %1490 = vector.extract_strided_slice %1384 {offsets = [0, 14], sizes = [8, 1], strides = [1, 1]} : vector<8x31xf32> to vector<8x1xf32>
    %1491 = vector.broadcast %1490 : vector<8x1xf32> to vector<8x256xf32>
    %1492 = arith.mulf %1489, %1491 : vector<8x256xf32>
    %1493 = arith.addf %1486, %1492 : vector<8x256xf32>
    %1494 = vector.extract_strided_slice %1384 {offsets = [0, 15], sizes = [8, 1], strides = [1, 1]} : vector<8x31xf32> to vector<8x1xf32>
    %1495 = vector.broadcast %1494 : vector<8x1xf32> to vector<8x256xf32>
    %1496 = arith.mulf %1383, %1495 : vector<8x256xf32>
    %1497 = arith.addf %1493, %1496 : vector<8x256xf32>
    %c240_i32_304 = arith.constant 240 : i32
    %1498 = tpu.dynamic_rotate %1383 by %c240_i32_304 dim 1 : vector<8x256xf32>, i32 -> vector<8x256xf32>
    %1499 = vector.broadcast %60 : vector<1x256xf32> to vector<8x256xf32>
    %1500 = arith.mulf %1498, %1499 : vector<8x256xf32>
    %1501 = vector.extract_strided_slice %1384 {offsets = [0, 16], sizes = [8, 1], strides = [1, 1]} : vector<8x31xf32> to vector<8x1xf32>
    %1502 = vector.broadcast %1501 : vector<8x1xf32> to vector<8x256xf32>
    %1503 = arith.mulf %1500, %1502 : vector<8x256xf32>
    %1504 = arith.addf %1497, %1503 : vector<8x256xf32>
    %c224_i32_305 = arith.constant 224 : i32
    %1505 = tpu.dynamic_rotate %1383 by %c224_i32_305 dim 1 : vector<8x256xf32>, i32 -> vector<8x256xf32>
    %1506 = vector.broadcast %232 : vector<1x256xf32> to vector<8x256xf32>
    %1507 = arith.mulf %1505, %1506 : vector<8x256xf32>
    %1508 = vector.extract_strided_slice %1384 {offsets = [0, 17], sizes = [8, 1], strides = [1, 1]} : vector<8x31xf32> to vector<8x1xf32>
    %1509 = vector.broadcast %1508 : vector<8x1xf32> to vector<8x256xf32>
    %1510 = arith.mulf %1507, %1509 : vector<8x256xf32>
    %1511 = arith.addf %1504, %1510 : vector<8x256xf32>
    %c208_i32_306 = arith.constant 208 : i32
    %1512 = tpu.dynamic_rotate %1383 by %c208_i32_306 dim 1 : vector<8x256xf32>, i32 -> vector<8x256xf32>
    %1513 = vector.broadcast %581 : vector<1x256xf32> to vector<8x256xf32>
    %1514 = arith.mulf %1512, %1513 : vector<8x256xf32>
    %1515 = vector.extract_strided_slice %1384 {offsets = [0, 18], sizes = [8, 1], strides = [1, 1]} : vector<8x31xf32> to vector<8x1xf32>
    %1516 = vector.broadcast %1515 : vector<8x1xf32> to vector<8x256xf32>
    %1517 = arith.mulf %1514, %1516 : vector<8x256xf32>
    %1518 = arith.addf %1511, %1517 : vector<8x256xf32>
    %c192_i32_307 = arith.constant 192 : i32
    %1519 = tpu.dynamic_rotate %1383 by %c192_i32_307 dim 1 : vector<8x256xf32>, i32 -> vector<8x256xf32>
    %1520 = vector.broadcast %793 : vector<1x256xf32> to vector<8x256xf32>
    %1521 = arith.mulf %1519, %1520 : vector<8x256xf32>
    %1522 = vector.extract_strided_slice %1384 {offsets = [0, 19], sizes = [8, 1], strides = [1, 1]} : vector<8x31xf32> to vector<8x1xf32>
    %1523 = vector.broadcast %1522 : vector<8x1xf32> to vector<8x256xf32>
    %1524 = arith.mulf %1521, %1523 : vector<8x256xf32>
    %1525 = arith.addf %1518, %1524 : vector<8x256xf32>
    %c176_i32_308 = arith.constant 176 : i32
    %1526 = tpu.dynamic_rotate %1383 by %c176_i32_308 dim 1 : vector<8x256xf32>, i32 -> vector<8x256xf32>
    %1527 = vector.broadcast %801 : vector<1x256xf32> to vector<8x256xf32>
    %1528 = arith.mulf %1526, %1527 : vector<8x256xf32>
    %1529 = vector.extract_strided_slice %1384 {offsets = [0, 20], sizes = [8, 1], strides = [1, 1]} : vector<8x31xf32> to vector<8x1xf32>
    %1530 = vector.broadcast %1529 : vector<8x1xf32> to vector<8x256xf32>
    %1531 = arith.mulf %1528, %1530 : vector<8x256xf32>
    %1532 = arith.addf %1525, %1531 : vector<8x256xf32>
    %c160_i32_309 = arith.constant 160 : i32
    %1533 = tpu.dynamic_rotate %1383 by %c160_i32_309 dim 1 : vector<8x256xf32>, i32 -> vector<8x256xf32>
    %1534 = vector.broadcast %1099 : vector<1x256xf32> to vector<8x256xf32>
    %1535 = arith.mulf %1533, %1534 : vector<8x256xf32>
    %1536 = vector.extract_strided_slice %1384 {offsets = [0, 21], sizes = [8, 1], strides = [1, 1]} : vector<8x31xf32> to vector<8x1xf32>
    %1537 = vector.broadcast %1536 : vector<8x1xf32> to vector<8x256xf32>
    %1538 = arith.mulf %1535, %1537 : vector<8x256xf32>
    %1539 = arith.addf %1532, %1538 : vector<8x256xf32>
    %c144_i32_310 = arith.constant 144 : i32
    %1540 = tpu.dynamic_rotate %1383 by %c144_i32_310 dim 1 : vector<8x256xf32>, i32 -> vector<8x256xf32>
    %1541 = vector.broadcast %1107 : vector<1x256xf32> to vector<8x256xf32>
    %1542 = arith.mulf %1540, %1541 : vector<8x256xf32>
    %1543 = vector.extract_strided_slice %1384 {offsets = [0, 22], sizes = [8, 1], strides = [1, 1]} : vector<8x31xf32> to vector<8x1xf32>
    %1544 = vector.broadcast %1543 : vector<8x1xf32> to vector<8x256xf32>
    %1545 = arith.mulf %1542, %1544 : vector<8x256xf32>
    %1546 = arith.addf %1539, %1545 : vector<8x256xf32>
    %c128_i32_311 = arith.constant 128 : i32
    %1547 = tpu.dynamic_rotate %1383 by %c128_i32_311 dim 1 : vector<8x256xf32>, i32 -> vector<8x256xf32>
    %1548 = vector.broadcast %1115 : vector<1x256xf32> to vector<8x256xf32>
    %1549 = arith.mulf %1547, %1548 : vector<8x256xf32>
    %1550 = vector.extract_strided_slice %1384 {offsets = [0, 23], sizes = [8, 1], strides = [1, 1]} : vector<8x31xf32> to vector<8x1xf32>
    %1551 = vector.broadcast %1550 : vector<8x1xf32> to vector<8x256xf32>
    %1552 = arith.mulf %1549, %1551 : vector<8x256xf32>
    %1553 = arith.addf %1546, %1552 : vector<8x256xf32>
    %c112_i32_312 = arith.constant 112 : i32
    %1554 = tpu.dynamic_rotate %1383 by %c112_i32_312 dim 1 : vector<8x256xf32>, i32 -> vector<8x256xf32>
    %1555 = vector.broadcast %1123 : vector<1x256xf32> to vector<8x256xf32>
    %1556 = arith.mulf %1554, %1555 : vector<8x256xf32>
    %1557 = vector.extract_strided_slice %1384 {offsets = [0, 24], sizes = [8, 1], strides = [1, 1]} : vector<8x31xf32> to vector<8x1xf32>
    %1558 = vector.broadcast %1557 : vector<8x1xf32> to vector<8x256xf32>
    %1559 = arith.mulf %1556, %1558 : vector<8x256xf32>
    %1560 = arith.addf %1553, %1559 : vector<8x256xf32>
    %c96_i32_313 = arith.constant 96 : i32
    %1561 = tpu.dynamic_rotate %1383 by %c96_i32_313 dim 1 : vector<8x256xf32>, i32 -> vector<8x256xf32>
    %1562 = vector.broadcast %1131 : vector<1x256xf32> to vector<8x256xf32>
    %1563 = arith.mulf %1561, %1562 : vector<8x256xf32>
    %1564 = vector.extract_strided_slice %1384 {offsets = [0, 25], sizes = [8, 1], strides = [1, 1]} : vector<8x31xf32> to vector<8x1xf32>
    %1565 = vector.broadcast %1564 : vector<8x1xf32> to vector<8x256xf32>
    %1566 = arith.mulf %1563, %1565 : vector<8x256xf32>
    %1567 = arith.addf %1560, %1566 : vector<8x256xf32>
    %c80_i32_314 = arith.constant 80 : i32
    %1568 = tpu.dynamic_rotate %1383 by %c80_i32_314 dim 1 : vector<8x256xf32>, i32 -> vector<8x256xf32>
    %c26_315 = arith.constant 26 : index
    %c0_316 = arith.constant 0 : index
    %1569 = vector.load %arg8[%c26_315, %c0_316] : memref<31x256xf32, #tpu.memory_space<vmem>>, vector<1x256xf32>
    %1570 = vector.broadcast %1569 : vector<1x256xf32> to vector<8x256xf32>
    %1571 = arith.mulf %1568, %1570 : vector<8x256xf32>
    %1572 = vector.extract_strided_slice %1384 {offsets = [0, 26], sizes = [8, 1], strides = [1, 1]} : vector<8x31xf32> to vector<8x1xf32>
    %1573 = vector.broadcast %1572 : vector<8x1xf32> to vector<8x256xf32>
    %1574 = arith.mulf %1571, %1573 : vector<8x256xf32>
    %1575 = arith.addf %1567, %1574 : vector<8x256xf32>
    %c64_i32_317 = arith.constant 64 : i32
    %1576 = tpu.dynamic_rotate %1383 by %c64_i32_317 dim 1 : vector<8x256xf32>, i32 -> vector<8x256xf32>
    %c27_318 = arith.constant 27 : index
    %c0_319 = arith.constant 0 : index
    %1577 = vector.load %arg8[%c27_318, %c0_319] : memref<31x256xf32, #tpu.memory_space<vmem>>, vector<1x256xf32>
    %1578 = vector.broadcast %1577 : vector<1x256xf32> to vector<8x256xf32>
    %1579 = arith.mulf %1576, %1578 : vector<8x256xf32>
    %1580 = vector.extract_strided_slice %1384 {offsets = [0, 27], sizes = [8, 1], strides = [1, 1]} : vector<8x31xf32> to vector<8x1xf32>
    %1581 = vector.broadcast %1580 : vector<8x1xf32> to vector<8x256xf32>
    %1582 = arith.mulf %1579, %1581 : vector<8x256xf32>
    %1583 = arith.addf %1575, %1582 : vector<8x256xf32>
    %c48_i32_320 = arith.constant 48 : i32
    %1584 = tpu.dynamic_rotate %1383 by %c48_i32_320 dim 1 : vector<8x256xf32>, i32 -> vector<8x256xf32>
    %c28_321 = arith.constant 28 : index
    %c0_322 = arith.constant 0 : index
    %1585 = vector.load %arg8[%c28_321, %c0_322] : memref<31x256xf32, #tpu.memory_space<vmem>>, vector<1x256xf32>
    %1586 = vector.broadcast %1585 : vector<1x256xf32> to vector<8x256xf32>
    %1587 = arith.mulf %1584, %1586 : vector<8x256xf32>
    %1588 = vector.extract_strided_slice %1384 {offsets = [0, 28], sizes = [8, 1], strides = [1, 1]} : vector<8x31xf32> to vector<8x1xf32>
    %1589 = vector.broadcast %1588 : vector<8x1xf32> to vector<8x256xf32>
    %1590 = arith.mulf %1587, %1589 : vector<8x256xf32>
    %1591 = arith.addf %1583, %1590 : vector<8x256xf32>
    %c32_i32_323 = arith.constant 32 : i32
    %1592 = tpu.dynamic_rotate %1383 by %c32_i32_323 dim 1 : vector<8x256xf32>, i32 -> vector<8x256xf32>
    %c29_324 = arith.constant 29 : index
    %c0_325 = arith.constant 0 : index
    %1593 = vector.load %arg8[%c29_324, %c0_325] : memref<31x256xf32, #tpu.memory_space<vmem>>, vector<1x256xf32>
    %1594 = vector.broadcast %1593 : vector<1x256xf32> to vector<8x256xf32>
    %1595 = arith.mulf %1592, %1594 : vector<8x256xf32>
    %1596 = vector.extract_strided_slice %1384 {offsets = [0, 29], sizes = [8, 1], strides = [1, 1]} : vector<8x31xf32> to vector<8x1xf32>
    %1597 = vector.broadcast %1596 : vector<8x1xf32> to vector<8x256xf32>
    %1598 = arith.mulf %1595, %1597 : vector<8x256xf32>
    %1599 = arith.addf %1591, %1598 : vector<8x256xf32>
    %c16_i32_326 = arith.constant 16 : i32
    %1600 = tpu.dynamic_rotate %1383 by %c16_i32_326 dim 1 : vector<8x256xf32>, i32 -> vector<8x256xf32>
    %c30_327 = arith.constant 30 : index
    %c0_328 = arith.constant 0 : index
    %1601 = vector.load %arg8[%c30_327, %c0_328] : memref<31x256xf32, #tpu.memory_space<vmem>>, vector<1x256xf32>
    %1602 = vector.broadcast %1601 : vector<1x256xf32> to vector<8x256xf32>
    %1603 = arith.mulf %1600, %1602 : vector<8x256xf32>
    %1604 = vector.extract_strided_slice %1384 {offsets = [0, 30], sizes = [8, 1], strides = [1, 1]} : vector<8x31xf32> to vector<8x1xf32>
    %1605 = vector.broadcast %1604 : vector<8x1xf32> to vector<8x256xf32>
    %1606 = arith.mulf %1603, %1605 : vector<8x256xf32>
    %1607 = arith.addf %1599, %1606 : vector<8x256xf32>
    %c0_329 = arith.constant 0 : index
    %c8_330 = arith.constant 8 : index
    %1608 = vector.load %arg7[%c0_329, %c8_330] : memref<8x9xf32, #tpu.memory_space<vmem>>, vector<8x1xf32>
    %1609 = vector.broadcast %1608 : vector<8x1xf32> to vector<8x256xf32>
    %1610 = arith.addf %1607, %1609 : vector<8x256xf32>
    %1611 = arith.addf %1610, %1149 : vector<8x256xf32>
    %cst_331 = arith.constant 0.000000e+00 : f32
    %1612 = vector.broadcast %cst_331 : f32 to vector<8x256xf32>
    %1613 = arith.subf %1612, %1611 : vector<8x256xf32>
    %1614 = math.exp %1613 : vector<8x256xf32>
    %cst_332 = arith.constant 1.000000e+00 : f32
    %1615 = vector.broadcast %cst_332 : f32 to vector<8x256xf32>
    %1616 = arith.addf %1615, %1614 : vector<8x256xf32>
    %cst_333 = arith.constant 1.000000e+00 : f32
    %1617 = vector.broadcast %cst_333 : f32 to vector<8x256xf32>
    %1618 = arith.divf %1617, %1616 : vector<8x256xf32>
    %1619 = arith.mulf %1611, %1618 : vector<8x256xf32>
    %c5_334 = arith.constant 5 : index
    %c0_335 = arith.constant 0 : index
    %c0_336 = arith.constant 0 : index
    %1620 = vector.load %arg4[%c5_334, %c0_335, %c0_336] : memref<7x8x8xf32, #tpu.memory_space<vmem>>, vector<1x8x8xf32>
    %1621 = vector.shape_cast %1620 : vector<1x8x8xf32> to vector<8x8xf32>
    %cst_337 = arith.constant dense<0.000000e+00> : vector<8x256xf32>
    %1622 = tpu.matmul %1621, %1619, %cst_337 {dimension_numbers = #tpu.dot_dimension_numbers<[1], [0], [0], [1], [0, 0, 1, 1], [], []>} : vector<8x8xf32>, vector<8x256xf32>, vector<8x256xf32> -> vector<8x256xf32>
    %c5_338 = arith.constant 5 : index
    %c0_339 = arith.constant 0 : index
    %c0_340 = arith.constant 0 : index
    %1623 = vector.load %arg5[%c5_338, %c0_339, %c0_340] : memref<7x8x1xf32, #tpu.memory_space<vmem>>, vector<1x8x1xf32>
    %1624 = vector.shape_cast %1623 : vector<1x8x1xf32> to vector<8x1xf32>
    %1625 = vector.broadcast %1624 : vector<8x1xf32> to vector<8x256xf32>
    %1626 = arith.addf %1622, %1625 : vector<8x256xf32>
    %1627 = arith.mulf %7, %1626 : vector<8x256xf32>
    %c6_341 = arith.constant 6 : index
    %c0_342 = arith.constant 0 : index
    %c0_343 = arith.constant 0 : index
    %1628 = vector.load %arg4[%c6_341, %c0_342, %c0_343] : memref<7x8x8xf32, #tpu.memory_space<vmem>>, vector<1x8x8xf32>
    %1629 = vector.shape_cast %1628 : vector<1x8x8xf32> to vector<8x8xf32>
    %cst_344 = arith.constant dense<0.000000e+00> : vector<8x256xf32>
    %1630 = tpu.matmul %1629, %1627, %cst_344 {dimension_numbers = #tpu.dot_dimension_numbers<[1], [0], [0], [1], [0, 0, 1, 1], [], []>} : vector<8x8xf32>, vector<8x256xf32>, vector<8x256xf32> -> vector<8x256xf32>
    %c6_345 = arith.constant 6 : index
    %c0_346 = arith.constant 0 : index
    %c0_347 = arith.constant 0 : index
    %1631 = vector.load %arg5[%c6_345, %c0_346, %c0_347] : memref<7x8x1xf32, #tpu.memory_space<vmem>>, vector<1x8x1xf32>
    %1632 = vector.shape_cast %1631 : vector<1x8x1xf32> to vector<8x1xf32>
    %1633 = vector.broadcast %1632 : vector<8x1xf32> to vector<8x256xf32>
    %1634 = arith.addf %1630, %1633 : vector<8x256xf32>
    %1635 = vector.extract_strided_slice %1634 {offsets = [0, 0], sizes = [4, 256], strides = [1, 1]} : vector<8x256xf32> to vector<4x256xf32>
    %c0_348 = arith.constant 0 : index
    %c0_349 = arith.constant 0 : index
    %c0_350 = arith.constant 0 : index
    %1636 = vector.load %arg10[%c0_348, %c0_349, %c0_350] : memref<1x4x256xf32, #tpu.memory_space<vmem>>, vector<1x4x256xf32>
    %1637 = vector.shape_cast %1636 : vector<1x4x256xf32> to vector<4x256xf32>
    %1638 = vector.shape_cast %1635 : vector<4x256xf32> to vector<1x4x256xf32>
    tpu.vector_store %arg10[%c0_348, %c0_349, %c0_350], %1638 {strides = array<i32>} : memref<1x4x256xf32, #tpu.memory_space<vmem>>, vector<1x4x256xf32>,
    return
  }
  func.func @transform_0(%arg0: i32) -> (i32, i32, i32) {
    %c0_i32 = arith.constant 0 : i32
    %c0_i32_0 = arith.constant 0 : i32
    %c0_i32_1 = arith.constant 0 : i32
    return %arg0, %c0_i32, %c0_i32_0 : i32, i32, i32
  }
  func.func @transform_1(%arg0: i32) -> (i32, i32) {
    %c0_i32 = arith.constant 0 : i32
    %c0_i32_0 = arith.constant 0 : i32
    %c0_i32_1 = arith.constant 0 : i32
    return %c0_i32, %c0_i32_0 : i32, i32
  }
  func.func @transform_2(%arg0: i32) -> (i32, i32) {
    %c0_i32 = arith.constant 0 : i32
    %c0_i32_0 = arith.constant 0 : i32
    %c0_i32_1 = arith.constant 0 : i32
    return %c0_i32, %c0_i32_0 : i32, i32
  }
  func.func @transform_3(%arg0: i32) -> (i32, i32, i32) {
    %c0_i32 = arith.constant 0 : i32
    %c0_i32_0 = arith.constant 0 : i32
    %c0_i32_1 = arith.constant 0 : i32
    %c0_i32_2 = arith.constant 0 : i32
    return %c0_i32, %c0_i32_0, %c0_i32_1 : i32, i32, i32
  }
  func.func @transform_4(%arg0: i32) -> (i32, i32, i32) {
    %c0_i32 = arith.constant 0 : i32
    %c0_i32_0 = arith.constant 0 : i32
    %c0_i32_1 = arith.constant 0 : i32
    %c0_i32_2 = arith.constant 0 : i32
    return %c0_i32, %c0_i32_0, %c0_i32_1 : i32, i32, i32
  }
  func.func @transform_5(%arg0: i32) -> (i32, i32) {
    %c0_i32 = arith.constant 0 : i32
    %c0_i32_0 = arith.constant 0 : i32
    %c0_i32_1 = arith.constant 0 : i32
    return %c0_i32, %c0_i32_0 : i32, i32
  }
  func.func @transform_6(%arg0: i32) -> (i32, i32) {
    %c0_i32 = arith.constant 0 : i32
    %c0_i32_0 = arith.constant 0 : i32
    %c0_i32_1 = arith.constant 0 : i32
    return %c0_i32, %c0_i32_0 : i32, i32
  }
  func.func @transform_7(%arg0: i32) -> (i32, i32) {
    %c0_i32 = arith.constant 0 : i32
    %c0_i32_0 = arith.constant 0 : i32
    %c0_i32_1 = arith.constant 0 : i32
    return %c0_i32, %c0_i32_0 : i32, i32
  }
  func.func @transform_8(%arg0: i32) -> (i32, i32) {
    %c0_i32 = arith.constant 0 : i32
    %c0_i32_0 = arith.constant 0 : i32
    %c0_i32_1 = arith.constant 0 : i32
    return %c0_i32, %c0_i32_0 : i32, i32
  }
  func.func @transform_9(%arg0: i32) -> (i32, i32, i32) {
    %c0_i32 = arith.constant 0 : i32
    %c0_i32_0 = arith.constant 0 : i32
    %c0_i32_1 = arith.constant 0 : i32
    return %arg0, %c0_i32, %c0_i32_0 : i32, i32, i32
  }
}

</mosaic_0001>

<llo_original>
// kernel: lka_forward.1
$region0: #{lka_forward.1}
  #allocation0 [shape = 'u32[]', space=smem, size = 0x4, offset = 0x4, fixed_abs, tag = 'smem constant byte address 0x4 - core index']
  #allocation1 [shape = 'u32[144,128]{1,0:T(1,128)}', space=vmem, size = 0x12000, scoped, tag = 'internal scratch']
  %s0 = inlined_call_operand.vmem [shape: f32[2,4,256], index: 0, kind: input, shape index: {}]
  %s1 = inlined_call_operand.vmem [shape: f32[16,4], index: 1, kind: input, shape index: {}]
  %s2 = inlined_call_operand.vmem [shape: f32[16,1], index: 2, kind: input, shape index: {}]
  %s3 = inlined_call_operand.vmem [shape: f32[7,8,8], index: 3, kind: input, shape index: {}]
  %s4 = inlined_call_operand.vmem [shape: f32[7,8,1], index: 4, kind: input, shape index: {}]
  %s5 = inlined_call_operand.vmem [shape: f32[8,209], index: 5, kind: input, shape index: {}]
  %s6 = inlined_call_operand.vmem [shape: f32[8,9], index: 6, kind: input, shape index: {}]
  %s7 = inlined_call_operand.vmem [shape: f32[31,256], index: 7, kind: input, shape index: {}]
  %s8 = inlined_call_operand.vmem [shape: f32[31,256], index: 8, kind: input, shape index: {}]
  %s9 = inlined_call_operand.vmem [shape: f32[2,4,256], index: 9, kind: output, shape index: {}]
  %s10 = sld [smem:[#allocation0]]
  $region69: #{lka_forward.1} parent=0
    _
  %s12 = ssub.s32 1, %s10
  %s13 = scalar_select 0, %s12, %s10
  loop: start=0, step=1, limit=4
  $region2: #{lka_forward.1} parent=0 // loop_pre_header
    _
  $region3: #{lka_forward.1} parent=0 // loop_header
    %s15 = sphi 0, %s19
    %p16 = scmp.ge.s32.totalorder %s15, 4
    %s25 = sphi 0, %s27
    %s28 = sphi 0, %s25
    %s29 = sphi 0, %s28
    %s45 = sphi 0, %s29
    %s49 = sphi 0, %s49
    %s51 = sphi 0, %s49
    %s52 = sphi 0, %s51
    %s66 = sphi 0, %s52
    %s70 = sphi 0, %s70
    %s72 = sphi 0, %s70
    %s73 = sphi 0, %s72
    %s87 = sphi 0, %s73
    %s91 = sphi 0, %s91
    %s93 = sphi 0, %s91
    %s94 = sphi 0, %s93
    %s108 = sphi 0, %s94
    %s112 = sphi 0, %s112
    %s114 = sphi 0, %s112
    %s115 = sphi 0, %s114
    %s129 = sphi 0, %s115
    %s133 = sphi 0, %s133
    %s135 = sphi 0, %s133
    %s136 = sphi 0, %s135
    %s150 = sphi 0, %s136
    %s154 = sphi 0, %s154
    %s156 = sphi 0, %s154
    %s157 = sphi 0, %s156
    %s171 = sphi 0, %s157
    %s175 = sphi 0, %s175
    %s177 = sphi 0, %s175
    %s178 = sphi 0, %s177
    %s192 = sphi 0, %s178
    %s196 = sphi 0, %s196
    %s198 = sphi 0, %s196
    %s199 = sphi 0, %s198
    %s213 = sphi 0, %s199
    %s219 = sphi 0, %s221
    %s222 = sphi 0, %s219
    %s223 = sphi 0, %s222
    %s239 = sphi 0, %s223
  $region4: #{lka_forward.1} parent=0 // loop_header_branch
    %18 = sbr.rel (%p16) target = $region8
  $region5: #{lka_forward.1} parent=0 // loop_body
    %s20 = ssub.s32 %s15, 1
    %s21 = ssub.s32 %s15, 2
    %s22 = sadd.s32 %s15, 1
    %s23 = ssub.s32 %s15, %s22
    %p24 = scmp.eq.s32.totalorder %s23, 0
    %s26 = sadd.s32 %s25, 1
    %s27 = scalar_select %p24, %s25, %s26
    %p30 = pneg %p24
    %p31 = scmp.eq.s32.totalorder %s15, 1
    %p32 = por %p30, %p31
    %p33 = scmp.ne.s32.totalorder %s25, %s28
    %p34 = scmp.eq.s32.totalorder %s15, 0
    %p35 = por %p33, %p34
    %p36 = scmp.ne.s32.totalorder %s25, %s28
    %p37 = scmp.eq.s32.totalorder %s20, 1
    %p38 = por %p36, %p37
    %p39 = scmp.ne.s32.totalorder %s28, %s29
    %p40 = scmp.eq.s32.totalorder %s20, 0
    %p41 = por %p39, %p40
    %p42 = scmp.ne.s32.totalorder %s28, %s29
    %p43 = scmp.eq.s32.totalorder %s21, 1
    %p44 = por %p42, %p43
    %p46 = scmp.ne.s32.totalorder %s29, %s45
    %p47 = scmp.eq.s32.totalorder %s21, 0
    %p48 = por %p46, %p47
    %s50 = sadd.s32 %s49, 1
    %p53 = scmp.eq.s32.totalorder %s15, 1
    %p54 = scmp.ne.s32.totalorder %s49, %s51
    %p55 = scmp.eq.s32.totalorder %s15, 0
    %p56 = por %p54, %p55
    %p57 = scmp.ne.s32.totalorder %s49, %s51
    %p58 = scmp.eq.s32.totalorder %s20, 1
    %p59 = por %p57, %p58
    %p60 = scmp.ne.s32.totalorder %s51, %s52
    %p61 = scmp.eq.s32.totalorder %s20, 0
    %p62 = por %p60, %p61
    %p63 = scmp.ne.s32.totalorder %s51, %s52
    %p64 = scmp.eq.s32.totalorder %s21, 1
    %p65 = por %p63, %p64
    %p67 = scmp.ne.s32.totalorder %s52, %s66
    %p68 = scmp.eq.s32.totalorder %s21, 0
    %p69 = por %p67, %p68
    %s71 = sadd.s32 %s70, 1
    %p74 = scmp.eq.s32.totalorder %s15, 1
    %p75 = scmp.ne.s32.totalorder %s70, %s72
    %p76 = scmp.eq.s32.totalorder %s15, 0
    %p77 = por %p75, %p76
    %p78 = scmp.ne.s32.totalorder %s70, %s72
    %p79 = scmp.eq.s32.totalorder %s20, 1
    %p80 = por %p78, %p79
    %p81 = scmp.ne.s32.totalorder %s72, %s73
    %p82 = scmp.eq.s32.totalorder %s20, 0
    %p83 = por %p81, %p82
    %p84 = scmp.ne.s32.totalorder %s72, %s73
    %p85 = scmp.eq.s32.totalorder %s21, 1
    %p86 = por %p84, %p85
    %p88 = scmp.ne.s32.totalorder %s73, %s87
    %p89 = scmp.eq.s32.totalorder %s21, 0
    %p90 = por %p88, %p89
    %s92 = sadd.s32 %s91, 1
    %p95 = scmp.eq.s32.totalorder %s15, 1
    %p96 = scmp.ne.s32.totalorder %s91, %s93
    %p97 = scmp.eq.s32.totalorder %s15, 0
    %p98 = por %p96, %p97
    %p99 = scmp.ne.s32.totalorder %s91, %s93
    %p100 = scmp.eq.s32.totalorder %s20, 1
    %p101 = por %p99, %p100
    %p102 = scmp.ne.s32.totalorder %s93, %s94
    %p103 = scmp.eq.s32.totalorder %s20, 0
    %p104 = por %p102, %p103
    %p105 = scmp.ne.s32.totalorder %s93, %s94
    %p106 = scmp.eq.s32.totalorder %s21, 1
    %p107 = por %p105, %p106
    %p109 = scmp.ne.s32.totalorder %s94, %s108
    %p110 = scmp.eq.s32.totalorder %s21, 0
    %p111 = por %p109, %p110
    %s113 = sadd.s32 %s112, 1
    %p116 = scmp.eq.s32.totalorder %s15, 1
    %p117 = scmp.ne.s32.totalorder %s112, %s114
    %p118 = scmp.eq.s32.totalorder %s15, 0
    %p119 = por %p117, %p118
    %p120 = scmp.ne.s32.totalorder %s112, %s114
    %p121 = scmp.eq.s32.totalorder %s20, 1
    %p122 = por %p120, %p121
    %p123 = scmp.ne.s32.totalorder %s114, %s115
    %p124 = scmp.eq.s32.totalorder %s20, 0
    %p125 = por %p123, %p124
    %p126 = scmp.ne.s32.totalorder %s114, %s115
    %p127 = scmp.eq.s32.totalorder %s21, 1
    %p128 = por %p126, %p127
    %p130 = scmp.ne.s32.totalorder %s115, %s129
    %p131 = scmp.eq.s32.totalorder %s21, 0
    %p132 = por %p130, %p131
    %s134 = sadd.s32 %s133, 1
    %p137 = scmp.eq.s32.totalorder %s15, 1
    %p138 = scmp.ne.s32.totalorder %s133, %s135
    %p139 = scmp.eq.s32.totalorder %s15, 0
    %p140 = por %p138, %p139
    %p141 = scmp.ne.s32.totalorder %s133, %s135
    %p142 = scmp.eq.s32.totalorder %s20, 1
    %p143 = por %p141, %p142
    %p144 = scmp.ne.s32.totalorder %s135, %s136
    %p145 = scmp.eq.s32.totalorder %s20, 0
    %p146 = por %p144, %p145
    %p147 = scmp.ne.s32.totalorder %s135, %s136
    %p148 = scmp.eq.s32.totalorder %s21, 1
    %p149 = por %p147, %p148
    %p151 = scmp.ne.s32.totalorder %s136, %s150
    %p152 = scmp.eq.s32.totalorder %s21, 0
    %p153 = por %p151, %p152
    %s155 = sadd.s32 %s154, 1
    %p158 = scmp.eq.s32.totalorder %s15, 1
    %p159 = scmp.ne.s32.totalorder %s154, %s156
    %p160 = scmp.eq.s32.totalorder %s15, 0
    %p161 = por %p159, %p160
    %p162 = scmp.ne.s32.totalorder %s154, %s156
    %p163 = scmp.eq.s32.totalorder %s20, 1
    %p164 = por %p162, %p163
    %p165 = scmp.ne.s32.totalorder %s156, %s157
    %p166 = scmp.eq.s32.totalorder %s20, 0
    %p167 = por %p165, %p166
    %p168 = scmp.ne.s32.totalorder %s156, %s157
    %p169 = scmp.eq.s32.totalorder %s21, 1
    %p170 = por %p168, %p169
    %p172 = scmp.ne.s32.totalorder %s157, %s171
    %p173 = scmp.eq.s32.totalorder %s21, 0
    %p174 = por %p172, %p173
    %s176 = sadd.s32 %s175, 1
    %p179 = scmp.eq.s32.totalorder %s15, 1
    %p180 = scmp.ne.s32.totalorder %s175, %s177
    %p181 = scmp.eq.s32.totalorder %s15, 0
    %p182 = por %p180, %p181
    %p183 = scmp.ne.s32.totalorder %s175, %s177
    %p184 = scmp.eq.s32.totalorder %s20, 1
    %p185 = por %p183, %p184
    %p186 = scmp.ne.s32.totalorder %s177, %s178
    %p187 = scmp.eq.s32.totalorder %s20, 0
    %p188 = por %p186, %p187
    %p189 = scmp.ne.s32.totalorder %s177, %s178
    %p190 = scmp.eq.s32.totalorder %s21, 1
    %p191 = por %p189, %p190
    %p193 = scmp.ne.s32.totalorder %s178, %s192
    %p194 = scmp.eq.s32.totalorder %s21, 0
    %p195 = por %p193, %p194
    %s197 = sadd.s32 %s196, 1
    %p200 = scmp.eq.s32.totalorder %s15, 1
    %p201 = scmp.ne.s32.totalorder %s196, %s198
    %p202 = scmp.eq.s32.totalorder %s15, 0
    %p203 = por %p201, %p202
    %p204 = scmp.ne.s32.totalorder %s196, %s198
    %p205 = scmp.eq.s32.totalorder %s20, 1
    %p206 = por %p204, %p205
    %p207 = scmp.ne.s32.totalorder %s198, %s199
    %p208 = scmp.eq.s32.totalorder %s20, 0
    %p209 = por %p207, %p208
    %p210 = scmp.ne.s32.totalorder %s198, %s199
    %p211 = scmp.eq.s32.totalorder %s21, 1
    %p212 = por %p210, %p211
    %p214 = scmp.ne.s32.totalorder %s199, %s213
    %p215 = scmp.eq.s32.totalorder %s21, 0
    %p216 = por %p214, %p215
    %s217 = ssub.s32 %s15, %s22
    %p218 = scmp.eq.s32.totalorder %s217, 0
    %s220 = sadd.s32 %s219, 1
    %s221 = scalar_select %p218, %s219, %s220
    %p224 = pneg %p218
    %p225 = scmp.eq.s32.totalorder %s15, 1
    %p226 = por %p224, %p225
    %p227 = scmp.ne.s32.totalorder %s219, %s222
    %p228 = scmp.eq.s32.totalorder %s15, 0
    %p229 = por %p227, %p228
    %p230 = scmp.ne.s32.totalorder %s219, %s222
    %p231 = scmp.eq.s32.totalorder %s20, 1
    %p232 = por %p230, %p231
    %p233 = scmp.ne.s32.totalorder %s222, %s223
    %p234 = scmp.eq.s32.totalorder %s20, 0
    %p235 = por %p233, %p234
    %p236 = scmp.ne.s32.totalorder %s222, %s223
    %p237 = scmp.eq.s32.totalorder %s21, 1
    %p238 = por %p236, %p237
    %p240 = scmp.ne.s32.totalorder %s223, %s239
    %p241 = scmp.eq.s32.totalorder %s21, 0
    %p242 = por %p240, %p241
    %p243 = scmp.le.s32.totalorder 1, %s15
    %p244 = scmp.lt.s32.totalorder %s15, 3
    %p245 = pnand %p243, %p244
    %p246 = pneg %p245
    // Predicated region
    $region9: #{lka_forward.1} parent=5 // pred_check
      _
    $region10: #{lka_forward.1} parent=5 // pred_check_branch
      %248 = sbr.rel (%p245) target = $region12
    $region11: #{lka_forward.1} parent=5 // pred_region
      %s249 = ssub.s32 %s15, 1
      // Predicated region
      $region13: #{lka_forward.1} parent=11 // pred_check
        %p250 = pneg %p62
      $region14: #{lka_forward.1} parent=11 // pred_check_branch
        %252 = sbr.rel (%p250) target = $region16
      $region15: #{lka_forward.1} parent=11 // pred_region
        _
      $region16: #{lka_forward.1} parent=11 // pred_fallthru
        _
      // Predicated region
      $region17: #{lka_forward.1} parent=11 // pred_check
        %p253 = pneg %p83
      $region18: #{lka_forward.1} parent=11 // pred_check_branch
        %255 = sbr.rel (%p253) target = $region20
      $region19: #{lka_forward.1} parent=11 // pred_region
        _
      $region20: #{lka_forward.1} parent=11 // pred_fallthru
        _
      // Predicated region
      $region21: #{lka_forward.1} parent=11 // pred_check
        %p256 = pneg %p104
      $region22: #{lka_forward.1} parent=11 // pred_check_branch
        %258 = sbr.rel (%p256) target = $region24
      $region23: #{lka_forward.1} parent=11 // pred_region
        _
      $region24: #{lka_forward.1} parent=11 // pred_fallthru
        _
      // Predicated region
      $region25: #{lka_forward.1} parent=11 // pred_check
        %p259 = pneg %p125
      $region26: #{lka_forward.1} parent=11 // pred_check_branch
        %261 = sbr.rel (%p259) target = $region28
      $region27: #{lka_forward.1} parent=11 // pred_region
        _
      $region28: #{lka_forward.1} parent=11 // pred_fallthru
        _
      // Predicated region
      $region29: #{lka_forward.1} parent=11 // pred_check
        %p262 = pneg %p146
      $region30: #{lka_forward.1} parent=11 // pred_check_branch
        %264 = sbr.rel (%p262) target = $region32
      $region31: #{lka_forward.1} parent=11 // pred_region
        _
      $region32: #{lka_forward.1} parent=11 // pred_fallthru
        _
      // Predicated region
      $region33: #{lka_forward.1} parent=11 // pred_check
        %p265 = pneg %p167
      $region34: #{lka_forward.1} parent=11 // pred_check_branch
        %267 = sbr.rel (%p265) target = $region36
      $region35: #{lka_forward.1} parent=11 // pred_region
        _
      $region36: #{lka_forward.1} parent=11 // pred_fallthru
        _
      // Predicated region
      $region37: #{lka_forward.1} parent=11 // pred_check
        %p268 = pneg %p188
      $region38: #{lka_forward.1} parent=11 // pred_check_branch
        %270 = sbr.rel (%p268) target = $region40
      $region39: #{lka_forward.1} parent=11 // pred_region
        _
      $region40: #{lka_forward.1} parent=11 // pred_fallthru
        _
      // Predicated region
      $region41: #{lka_forward.1} parent=11 // pred_check
        %p271 = pneg %p209
      $region42: #{lka_forward.1} parent=11 // pred_check_branch
        %273 = sbr.rel (%p271) target = $region44
      $region43: #{lka_forward.1} parent=11 // pred_region
        _
      $region44: #{lka_forward.1} parent=11 // pred_fallthru
        _
    $region12: #{lka_forward.1} parent=5 // pred_fallthru
      _
    %p274 = scmp.lt.s32.totalorder %s15, 2
    // Predicated region
    $region45: #{lka_forward.1} parent=5 // pred_check
      %p275 = pneg %p274
    $region46: #{lka_forward.1} parent=5 // pred_check_branch
      %277 = sbr.rel (%p275) target = $region48
    $region47: #{lka_forward.1} parent=5 // pred_region
      // Predicated region
      $region49: #{lka_forward.1} parent=47 // pred_check
        %p278 = pneg %p35
      $region50: #{lka_forward.1} parent=47 // pred_check_branch
        %280 = sbr.rel (%p278) target = $region52
      $region51: #{lka_forward.1} parent=47 // pred_region
        %p281 = scmp.lt.s32.totalorder %s15, 1
        %s282 = scalar_select %p281, %s15, 1
        %s283 = smul.addr %s282, 2
        %s284 = smul.addr %s283, 4
        %s285 = scalar_lea.vmem %s0, %s284
      $region52: #{lka_forward.1} parent=47 // pred_fallthru
        _
    $region48: #{lka_forward.1} parent=5 // pred_fallthru
      _
    %p286 = scmp.le.s32.totalorder 1, %s15
    %p287 = scmp.lt.s32.totalorder %s15, 3
    %p288 = pnand %p286, %p287
    %p289 = pneg %p288
    // Predicated region
    $region53: #{lka_forward.1} parent=5 // pred_check
      _
    $region54: #{lka_forward.1} parent=5 // pred_check_branch
      %291 = sbr.rel (%p288) target = $region56
    $region55: #{lka_forward.1} parent=5 // pred_region
      %s292 = ssub.s32 %s15, 1
      %p293 = scmp.lt.s32.totalorder %s20, 1
      %s294 = scalar_select %p293, %s20, 1
      %s295 = smul.addr %s294, 2
      %s296 = smul.addr %s295, 4
      %s297 = scalar_lea.vmem %s0, %s296
      %p298 = pneg %p41
      %p299 = pneg %p38
      %p300 = pneg %p62
      %p301 = pneg %p59
      %p302 = pneg %p83
      %p303 = pneg %p80
      %p304 = pneg %p104
      %p305 = pneg %p101
      %p306 = pneg %p125
      %p307 = pneg %p122
      %p308 = pneg %p146
      %p309 = pneg %p143
      %p310 = pneg %p167
      %p311 = pneg %p164
      %p312 = pneg %p188
      %p313 = pneg %p185
      %p314 = pneg %p209
      %p315 = pneg %p206
      %p316 = pneg %p235
      %p317 = pneg %p232
      %p318 = scmp.lt.s32.totalorder %s20, 1
      %s319 = scalar_select %p318, %s20, 1
      %s320 = smul.addr %s319, 2
      %s321 = smul.addr %s320, 4
      %s322 = scalar_lea.vmem %s9, %s321
      %p323 = scmp.lt.s32.totalorder %s20, 1
      %s324 = scalar_select %p323, %s20, 1
      %s325 = smul.addr %s324, 2
      %s326 = smul.addr %s325, 4
      %s327 = scalar_lea.vmem %s0, %s326
      %p328 = scmp.lt.s32.totalorder %s20, 1
      %s329 = scalar_select %p328, %s20, 1
      %s330 = smul.addr %s329, 2
      %s331 = smul.addr %s330, 4
      %s332 = scalar_lea.vmem %s9, %s331
      %v333 = vld [vmem:[%s327] sm:$0xff]
      %v334 = vld [vmem:[%s1] sm:$0xff]
      %v335 = vld [vmem:[%s1 + $0x8] sm:$0xff]
      %v336 = vld [vmem:[%s2] sm:$0xff]
      %v337 = vld [vmem:[%s2 + $0x8] sm:$0xff]
      %339 = vset.pattern.permute.xlu0 0
      %340 = vperm.xlu0 %339, %v336
      %v341 = vpop.permute.xlu0 %340
      %344 = vset.pattern.permute.xlu0 0
      %345 = vperm.xlu0 %344, %v337
      %v346 = vpop.permute.xlu0 %345
      %v349 = vcombine.high %v333, %v333
      %vm350 = vcmask 31744
      %v352 = vsel %vm350, %v334, 0
      %v355 = vsel %vm350, %v335, 0
      %vm357 = vcmask 1043456
      %v358 = vsel %vm357, %v333, 0
      %v360 = vsel %vm357, %v349, 0
      %362 = vmatprep.subr.mxu0 %v360
      %363 = vmatpush1.msra.mxu0 %v358
      %364 = vmatprep.subr.mxu0 0.0
      %365 = vmatpush1.msra.mxu0 0.0
      %366 = vmatprep.subr.mxu0 0.0
      %367 = vmatpush1.msra.mxu0 0.0
      %368 = vmatprep.subr.mxu0 0.0
      %369 = vmatpush1.msra.mxu0 0.0
      %370 = vmatprep.subr.mxu0 0.0
      %371 = vmatpush1.msra.mxu0 0.0
      %372 = vmatprep.subr.mxu0 0.0
      %373 = vmatpush1.msra.mxu0 0.0
      %374 = vmatprep.subr.mxu0 0.0
      %375 = vmatpush1.msra.mxu0 0.0
      %376 = vmatprep.subr.mxu0 0.0
      %377 = vmatpush1.msra.mxu0 0.0
      %378 = vmatprep.subr.mxu0 0.0
      %379 = vmatpush1.msra.mxu0 0.0
      %380 = vmatprep.subr.mxu0 0.0
      %381 = vmatpush1.msra.mxu0 0.0
      %382 = vmatprep.subr.mxu0 0.0
      %383 = vmatpush1.msra.mxu0 0.0
      %384 = vmatprep.subr.mxu0 0.0
      %385 = vmatpush1.msra.mxu0 0.0
      %386 = vmatprep.subr.mxu0 0.0
      %387 = vmatpush1.msra.mxu0 0.0
      %388 = vmatprep.subr.mxu0 0.0
      %389 = vmatpush1.msra.mxu0 0.0
      %390 = vmatprep.subr.mxu0 0.0
      %391 = vmatpush1.msra.mxu0 0.0
      %392 = vmatprep.subr.mxu0 0.0
      %393 = vmatpush1.msra.mxu0 0.0
      %394 = vmatprep.subr.mxu0 0.0
      %395 = vmatpush1.msra.mxu0 0.0
      %396 = vmatprep.subr.mxu0 0.0
      %397 = vmatpush1.msra.mxu0 0.0
      %398 = vmatprep.subr.mxu0 0.0
      %399 = vmatpush1.msra.mxu0 0.0
      %400 = vmatprep.subr.mxu0 0.0
      %401 = vmatpush1.msra.mxu0 0.0
      %402 = vmatprep.subr.mxu0 0.0
      %403 = vmatpush1.msra.mxu0 0.0
      %404 = vmatprep.subr.mxu0 0.0
      %405 = vmatpush1.msra.mxu0 0.0
      %406 = vmatprep.subr.mxu0 0.0
      %407 = vmatpush1.msra.mxu0 0.0
      %408 = vmatprep.subr.mxu0 0.0
      %409 = vmatpush1.msra.mxu0 0.0
      %410 = vmatprep.subr.mxu0 0.0
      %411 = vmatpush1.msra.mxu0 0.0
      %412 = vmatprep.subr.mxu0 0.0
      %413 = vmatpush1.msra.mxu0 0.0
      %414 = vmatprep.subr.mxu0 0.0
      %415 = vmatpush1.msra.mxu0 0.0
      %416 = vmatprep.subr.mxu0 0.0
      %417 = vmatpush1.msra.mxu0 0.0
      %418 = vmatprep.subr.mxu0 0.0
      %419 = vmatpush1.msra.mxu0 0.0
      %420 = vmatprep.subr.mxu0 0.0
      %421 = vmatpush1.msra.mxu0 0.0
      %422 = vmatprep.subr.mxu0 0.0
      %423 = vmatpush1.msra.mxu0 0.0
      %424 = vmatprep.subr.mxu0 0.0
      %425 = vmatpush1.msra.mxu0 0.0
      %426 = vmatprep.mubr.f32.mxu0 0.0
      %427 = vmatmul.mubr.f32.gmra.mrb[0].mxu0 %v352
      %v428 = vpop.f32.mrb[0].mxu0
      %v429 = vadd.f32 %v341, %v428
      %v430 = vpop.f32.mrb[0].mxu0
      %v431 = vadd.f32 %v341, %v430
      %432 = vmatprep.mubr.f32.mxu0 0.0
      %433 = vmatmul.mubr.f32.gmra.mrb[0].mxu0 %v355
      %v434 = vpop.f32.mrb[0].mxu0
      %v435 = vadd.f32 %v346, %v434
      %v436 = vpop.f32.mrb[0].mxu0
      %v437 = vadd.f32 %v346, %v436
      %438 = vdwg.mxu0
      %v439 = vsub.f32 0.0, %v435
      %v440 = vsub.f32 0.0, %v437
      %v441 = vmul.f32 %v439, 1.442695
      %v442 = vpow.pop %v441
      %v443 = vmul.f32 %v440, 1.442695
      %v444 = vpow.pop %v443
      %v445 = vadd.f32 %v442, 1.0
      %v446 = vadd.f32 %v444, 1.0
      %v447 = vrcp.pop %v445
      %v448 = vmul.f32 1.0, %v447
      %v449 = vrcp.pop %v446
      %v450 = vmul.f32 1.0, %v449
      %v451 = vmul.f32 %v435, %v448
      %v452 = vmul.f32 %v437, %v450
      %v453 = vld [vmem:[%s5] sm:$0xff]
      %454 = vrot.lane.b32.xlu0 %v451, 16
      %v455 = vpop.permute.xlu0 %454
      %456 = vrot.lane.b32.xlu0 %v452, 16
      %v457 = vpop.permute.xlu0 %456
      %v458 = vlaneseq
      %v459 = vand.u32 %v458, 127
      %vm460 = vcmp.lt.s32.totalorder %v459, 16
      %v461 = vsel %vm460, %v455, %v457
      %v462 = vsel %vm460, %v457, %v455
      %s463 = scalar_lea.vmem %s7, 22
      %v464 = vld [vmem:[%s463] ss:$8 sm:$0x3]
      %v466 = vlaneseq
      %v467 = vshrl.u32 %v466, 7
      %v468 = vsub.s32 0, %v467
      %v469 = vrot.slane %v464, %v468
      %v470 = vlaneseq
      %v471 = vshrl.u32 %v470, 7
      %v472 = vsub.s32 1, %v471
      %v473 = vrot.slane %v464, %v472
      %v476 = vmul.f32 %v462, %v469
      %v477 = vmul.f32 %v461, %v473
      %478 = vrot.lane.b32.xlu0 %v476, 1
      %v479 = vpop.permute.xlu0 %478
      %480 = vrot.lane.b32.xlu0 %v477, 1
      %v481 = vpop.permute.xlu0 %480
      %vm482 = vcmp.lt.s32.totalorder %v459, 1
      %v483 = vsel %vm482, %v479, %v481
      %v484 = vsel %vm482, %v481, %v479
      %s485 = scalar_lea.vmem %s8, 22
      %v486 = vld [vmem:[%s485] ss:$8 sm:$0x3]
      %v488 = vlaneseq
      %v489 = vshrl.u32 %v488, 7
      %v490 = vsub.s32 0, %v489
      %v491 = vrot.slane %v486, %v490
      %v492 = vlaneseq
      %v493 = vshrl.u32 %v492, 7
      %v494 = vsub.s32 1, %v493
      %v495 = vrot.slane %v486, %v494
      %v498 = vmul.f32 %v484, %v491
      %v499 = vmul.f32 %v483, %v495
      %501 = vset.pattern.permute.xlu0 0
      %502 = vperm.xlu0 %501, %v453
      %v503 = vpop.permute.xlu0 %502
      %v505 = vmul.f32 %v498, %v503
      %v506 = vmul.f32 %v499, %v503
      %507 = vset.pattern.permute.xlu0 1
      %508 = vperm.xlu0 %507, %v453
      %v509 = vpop.permute.xlu0 %508
      %v511 = vmul.f32 %v476, %v509
      %v512 = vmul.f32 %v477, %v509
      %v513 = vadd.f32 %v505, %v511
      %v514 = vadd.f32 %v506, %v512
      %515 = vrot.lane.b32.xlu0 %v476, 127
      %v516 = vpop.permute.xlu0 %515
      %517 = vrot.lane.b32.xlu0 %v477, 127
      %v518 = vpop.permute.xlu0 %517
      %vm519 = vcmp.lt.s32.totalorder %v459, 127
      %v520 = vsel %vm519, %v516, %v518
      %v521 = vsel %vm519, %v518, %v516
      %s522 = scalar_lea.vmem %s8, 32
      %v523 = vld [vmem:[%s522] ss:$8 sm:$0x3]
      %v525 = vlaneseq
      %v526 = vshrl.u32 %v525, 7
      %v527 = vsub.s32 0, %v526
      %v528 = vrot.slane %v523, %v527
      %v529 = vlaneseq
      %v530 = vshrl.u32 %v529, 7
      %v531 = vsub.s32 1, %v530
      %v532 = vrot.slane %v523, %v531
      %v535 = vmul.f32 %v520, %v528
      %v536 = vmul.f32 %v521, %v532
      %537 = vset.pattern.permute.xlu0 2
      %538 = vperm.xlu0 %537, %v453
      %v539 = vpop.permute.xlu0 %538
      %v541 = vmul.f32 %v535, %v539
      %v542 = vmul.f32 %v536, %v539
      %v543 = vadd.f32 %v513, %v541
      %v544 = vadd.f32 %v514, %v542
      %545 = vrot.lane.b32.xlu0 %v451, 1
      %v546 = vpop.permute.xlu0 %545
      %547 = vrot.lane.b32.xlu0 %v452, 1
      %v548 = vpop.permute.xlu0 %547
      %v549 = vsel %vm482, %v546, %v548
      %v550 = vsel %vm482, %v548, %v546
      %v551 = vmul.f32 %v550, %v491
      %v552 = vmul.f32 %v549, %v495
      %553 = vset.pattern.permute.xlu0 3
      %554 = vperm.xlu0 %553, %v453
      %v555 = vpop.permute.xlu0 %554
      %v557 = vmul.f32 %v551, %v555
      %v558 = vmul.f32 %v552, %v555
      %v559 = vadd.f32 %v543, %v557
      %v560 = vadd.f32 %v544, %v558
      %561 = vset.pattern.permute.xlu0 4
      %562 = vperm.xlu0 %561, %v453
      %v563 = vpop.permute.xlu0 %562
      %v565 = vmul.f32 %v451, %v563
      %v566 = vmul.f32 %v452, %v563
      %v567 = vadd.f32 %v559, %v565
      %v568 = vadd.f32 %v560, %v566
      %569 = vrot.lane.b32.xlu0 %v451, 127
      %v570 = vpop.permute.xlu0 %569
      %571 = vrot.lane.b32.xlu0 %v452, 127
      %v572 = vpop.permute.xlu0 %571
      %v573 = vsel %vm519, %v570, %v572
      %v574 = vsel %vm519, %v572, %v570
      %v575 = vmul.f32 %v573, %v528
      %v576 = vmul.f32 %v574, %v532
      %577 = vset.pattern.permute.xlu0 5
      %578 = vperm.xlu0 %577, %v453
      %v579 = vpop.permute.xlu0 %578
      %v581 = vmul.f32 %v575, %v579
      %v582 = vmul.f32 %v576, %v579
      %v583 = vadd.f32 %v567, %v581
      %v584 = vadd.f32 %v568, %v582
      %585 = vrot.lane.b32.xlu0 %v451, 112
      %v586 = vpop.permute.xlu0 %585
      %587 = vrot.lane.b32.xlu0 %v452, 112
      %v588 = vpop.permute.xlu0 %587
      %vm589 = vcmp.lt.s32.totalorder %v459, 112
      %v590 = vsel %vm589, %v586, %v588
      %v591 = vsel %vm589, %v588, %v586
      %s592 = scalar_lea.vmem %s7, 32
      %v593 = vld [vmem:[%s592] ss:$8 sm:$0x3]
      %v595 = vlaneseq
      %v596 = vshrl.u32 %v595, 7
      %v597 = vsub.s32 0, %v596
      %v598 = vrot.slane %v593, %v597
      %v599 = vlaneseq
      %v600 = vshrl.u32 %v599, 7
      %v601 = vsub.s32 1, %v600
      %v602 = vrot.slane %v593, %v601
      %v605 = vmul.f32 %v590, %v598
      %v606 = vmul.f32 %v591, %v602
      %607 = vrot.lane.b32.xlu0 %v605, 1
      %v608 = vpop.permute.xlu0 %607
      %609 = vrot.lane.b32.xlu0 %v606, 1
      %v610 = vpop.permute.xlu0 %609
      %v611 = vsel %vm482, %v608, %v610
      %v612 = vsel %vm482, %v610, %v608
      %v613 = vmul.f32 %v612, %v491
      %v614 = vmul.f32 %v611, %v495
      %615 = vset.pattern.permute.xlu0 6
      %616 = vperm.xlu0 %615, %v453
      %v617 = vpop.permute.xlu0 %616
      %v619 = vmul.f32 %v613, %v617
      %v620 = vmul.f32 %v614, %v617
      %v621 = vadd.f32 %v583, %v619
      %v622 = vadd.f32 %v584, %v620
      %623 = vset.pattern.permute.xlu0 7
      %624 = vperm.xlu0 %623, %v453
      %v625 = vpop.permute.xlu0 %624
      %v627 = vmul.f32 %v605, %v625
      %v628 = vmul.f32 %v606, %v625
      %v629 = vadd.f32 %v621, %v627
      %v630 = vadd.f32 %v622, %v628
      %631 = vrot.lane.b32.xlu0 %v605, 127
      %v632 = vpop.permute.xlu0 %631
      %633 = vrot.lane.b32.xlu0 %v606, 127
      %v634 = vpop.permute.xlu0 %633
      %v635 = vsel %vm519, %v632, %v634
      %v636 = vsel %vm519, %v634, %v632
      %v637 = vmul.f32 %v635, %v528
      %v638 = vmul.f32 %v636, %v532
      %639 = vset.pattern.permute.xlu0 8
      %640 = vperm.xlu0 %639, %v453
      %v641 = vpop.permute.xlu0 %640
      %v643 = vmul.f32 %v637, %v641
      %v644 = vmul.f32 %v638, %v641
      %v645 = vadd.f32 %v629, %v643
      %v646 = vadd.f32 %v630, %v644
      %v647 = vld [vmem:[%s6] sm:$0xff]
      %649 = vset.pattern.permute.xlu0 0
      %650 = vperm.xlu0 %649, %v647
      %v651 = vpop.permute.xlu0 %650
      %v653 = vadd.f32 %v645, %v651
      %v654 = vadd.f32 %v646, %v651
      %v655 = vld [vmem:[%s3] sm:$0xff]
      %v656 = vld [vmem:[%s4] sm:$0xff]
      %658 = vset.pattern.permute.xlu0 0
      %659 = vperm.xlu0 %658, %v656
      %v660 = vpop.permute.xlu0 %659
      %vm662 = vcmask 64512
      %v664 = vsel %vm662, %v655, 0
      %666 = vmatprep.subr.mxu0 %v654
      %667 = vmatpush1.msra.mxu0 %v653
      %668 = vmatprep.subr.mxu0 0.0
      %669 = vmatpush1.msra.mxu0 0.0
      %670 = vmatprep.subr.mxu0 0.0
      %671 = vmatpush1.msra.mxu0 0.0
      %672 = vmatprep.subr.mxu0 0.0
      %673 = vmatpush1.msra.mxu0 0.0
      %674 = vmatprep.subr.mxu0 0.0
      %675 = vmatpush1.msra.mxu0 0.0
      %676 = vmatprep.subr.mxu0 0.0
      %677 = vmatpush1.msra.mxu0 0.0
      %678 = vmatprep.subr.mxu0 0.0
      %679 = vmatpush1.msra.mxu0 0.0
      %680 = vmatprep.subr.mxu0 0.0
      %681 = vmatpush1.msra.mxu0 0.0
      %682 = vmatprep.subr.mxu0 0.0
      %683 = vmatpush1.msra.mxu0 0.0
      %684 = vmatprep.subr.mxu0 0.0
      %685 = vmatpush1.msra.mxu0 0.0
      %686 = vmatprep.subr.mxu0 0.0
      %687 = vmatpush1.msra.mxu0 0.0
      %688 = vmatprep.subr.mxu0 0.0
      %689 = vmatpush1.msra.mxu0 0.0
      %690 = vmatprep.subr.mxu0 0.0
      %691 = vmatpush1.msra.mxu0 0.0
      %692 = vmatprep.subr.mxu0 0.0
      %693 = vmatpush1.msra.mxu0 0.0
      %694 = vmatprep.subr.mxu0 0.0
      %695 = vmatpush1.msra.mxu0 0.0
      %696 = vmatprep.subr.mxu0 0.0
      %697 = vmatpush1.msra.mxu0 0.0
      %698 = vmatprep.subr.mxu0 0.0
      %699 = vmatpush1.msra.mxu0 0.0
      %700 = vmatprep.subr.mxu0 0.0
      %701 = vmatpush1.msra.mxu0 0.0
      %702 = vmatprep.subr.mxu0 0.0
      %703 = vmatpush1.msra.mxu0 0.0
      %704 = vmatprep.subr.mxu0 0.0
      %705 = vmatpush1.msra.mxu0 0.0
      %706 = vmatprep.subr.mxu0 0.0
      %707 = vmatpush1.msra.mxu0 0.0
      %708 = vmatprep.subr.mxu0 0.0
      %709 = vmatpush1.msra.mxu0 0.0
      %710 = vmatprep.subr.mxu0 0.0
      %711 = vmatpush1.msra.mxu0 0.0
      %712 = vmatprep.subr.mxu0 0.0
      %713 = vmatpush1.msra.mxu0 0.0
      %714 = vmatprep.subr.mxu0 0.0
      %715 = vmatpush1.msra.mxu0 0.0
      %716 = vmatprep.subr.mxu0 0.0
      %717 = vmatpush1.msra.mxu0 0.0
      %718 = vmatprep.subr.mxu0 0.0
      %719 = vmatpush1.msra.mxu0 0.0
      %720 = vmatprep.subr.mxu0 0.0
      %721 = vmatpush1.msra.mxu0 0.0
      %722 = vmatprep.subr.mxu0 0.0
      %723 = vmatpush1.msra.mxu0 0.0
      %724 = vmatprep.subr.mxu0 0.0
      %725 = vmatpush1.msra.mxu0 0.0
      %726 = vmatprep.subr.mxu0 0.0
      %727 = vmatpush1.msra.mxu0 0.0
      %728 = vmatprep.subr.mxu0 0.0
      %729 = vmatpush1.msra.mxu0 0.0
      %730 = vmatprep.mubr.f32.mxu0 0.0
      %731 = vmatmul.mubr.f32.gmra.mrb[0].mxu0 %v664
      %v732 = vpop.f32.mrb[0].mxu0
      %v733 = vadd.f32 %v660, %v732
      %v734 = vpop.f32.mrb[0].mxu0
      %v735 = vadd.f32 %v660, %v734
      %736 = vdwg.mxu0
      %737 = vrot.lane.b32.xlu0 %v733, 32
      %v738 = vpop.permute.xlu0 %737
      %739 = vrot.lane.b32.xlu0 %v735, 32
      %v740 = vpop.permute.xlu0 %739
      %vm741 = vcmp.lt.s32.totalorder %v459, 32
      %v742 = vsel %vm741, %v738, %v740
      %v743 = vsel %vm741, %v740, %v738
      %s744 = scalar_lea.vmem %s7, 21
      %v745 = vld [vmem:[%s744] ss:$8 sm:$0x3]
      %v747 = vlaneseq
      %v748 = vshrl.u32 %v747, 7
      %v749 = vsub.s32 0, %v748
      %v750 = vrot.slane %v745, %v749
      %v751 = vlaneseq
      %v752 = vshrl.u32 %v751, 7
      %v753 = vsub.s32 1, %v752
      %v754 = vrot.slane %v745, %v753
      %v757 = vmul.f32 %v743, %v750
      %v758 = vmul.f32 %v742, %v754
      %759 = vrot.lane.b32.xlu0 %v757, 2
      %v760 = vpop.permute.xlu0 %759
      %761 = vrot.lane.b32.xlu0 %v758, 2
      %v762 = vpop.permute.xlu0 %761
      %vm763 = vcmp.lt.s32.totalorder %v459, 2
      %v764 = vsel %vm763, %v760, %v762
      %v765 = vsel %vm763, %v762, %v760
      %s766 = scalar_lea.vmem %s8, 21
      %v767 = vld [vmem:[%s766] ss:$8 sm:$0x3]
      %v769 = vlaneseq
      %v770 = vshrl.u32 %v769, 7
      %v771 = vsub.s32 0, %v770
      %v772 = vrot.slane %v767, %v771
      %v773 = vlaneseq
      %v774 = vshrl.u32 %v773, 7
      %v775 = vsub.s32 1, %v774
      %v776 = vrot.slane %v767, %v775
      %v779 = vmul.f32 %v765, %v772
      %v780 = vmul.f32 %v764, %v776
      %781 = vset.pattern.permute.xlu0 9
      %782 = vperm.xlu0 %781, %v453
      %v783 = vpop.permute.xlu0 %782
      %v785 = vmul.f32 %v779, %v783
      %v786 = vmul.f32 %v780, %v783
      %787 = vrot.lane.b32.xlu0 %v757, 1
      %v788 = vpop.permute.xlu0 %787
      %789 = vrot.lane.b32.xlu0 %v758, 1
      %v790 = vpop.permute.xlu0 %789
      %v791 = vsel %vm482, %v788, %v790
      %v792 = vsel %vm482, %v790, %v788
      %v793 = vmul.f32 %v792, %v491
      %v794 = vmul.f32 %v791, %v495
      %795 = vset.pattern.permute.xlu0 10
      %796 = vperm.xlu0 %795, %v453
      %v797 = vpop.permute.xlu0 %796
      %v799 = vmul.f32 %v793, %v797
      %v800 = vmul.f32 %v794, %v797
      %v801 = vadd.f32 %v785, %v799
      %v802 = vadd.f32 %v786, %v800
      %803 = vset.pattern.permute.xlu0 11
      %804 = vperm.xlu0 %803, %v453
      %v805 = vpop.permute.xlu0 %804
      %v807 = vmul.f32 %v757, %v805
      %v808 = vmul.f32 %v758, %v805
      %v809 = vadd.f32 %v801, %v807
      %v810 = vadd.f32 %v802, %v808
      %811 = vrot.lane.b32.xlu0 %v757, 127
      %v812 = vpop.permute.xlu0 %811
      %813 = vrot.lane.b32.xlu0 %v758, 127
      %v814 = vpop.permute.xlu0 %813
      %v815 = vsel %vm519, %v812, %v814
      %v816 = vsel %vm519, %v814, %v812
      %v817 = vmul.f32 %v815, %v528
      %v818 = vmul.f32 %v816, %v532
      %819 = vset.pattern.permute.xlu0 12
      %820 = vperm.xlu0 %819, %v453
      %v821 = vpop.permute.xlu0 %820
      %v823 = vmul.f32 %v817, %v821
      %v824 = vmul.f32 %v818, %v821
      %v825 = vadd.f32 %v809, %v823
      %v826 = vadd.f32 %v810, %v824
      %827 = vrot.lane.b32.xlu0 %v757, 126
      %v828 = vpop.permute.xlu0 %827
      %829 = vrot.lane.b32.xlu0 %v758, 126
      %v830 = vpop.permute.xlu0 %829
      %vm831 = vcmp.lt.s32.totalorder %v459, 126
      %v832 = vsel %vm831, %v828, %v830
      %v833 = vsel %vm831, %v830, %v828
      %s834 = scalar_lea.vmem %s8, 33
      %v835 = vld [vmem:[%s834] ss:$8 sm:$0x3]
      %v837 = vlaneseq
      %v838 = vshrl.u32 %v837, 7
      %v839 = vsub.s32 0, %v838
      %v840 = vrot.slane %v835, %v839
      %v841 = vlaneseq
      %v842 = vshrl.u32 %v841, 7
      %v843 = vsub.s32 1, %v842
      %v844 = vrot.slane %v835, %v843
      %v847 = vmul.f32 %v832, %v840
      %v848 = vmul.f32 %v833, %v844
      %849 = vset.pattern.permute.xlu0 13
      %850 = vperm.xlu0 %849, %v453
      %v851 = vpop.permute.xlu0 %850
      %v853 = vmul.f32 %v847, %v851
      %v854 = vmul.f32 %v848, %v851
      %v855 = vadd.f32 %v825, %v853
      %v856 = vadd.f32 %v826, %v854
      %857 = vrot.lane.b32.xlu0 %v733, 16
      %v858 = vpop.permute.xlu0 %857
      %859 = vrot.lane.b32.xlu0 %v735, 16
      %v860 = vpop.permute.xlu0 %859
      %v861 = vsel %vm460, %v858, %v860
      %v862 = vsel %vm460, %v860, %v858
      %v863 = vmul.f32 %v862, %v469
      %v864 = vmul.f32 %v861, %v473
      %865 = vrot.lane.b32.xlu0 %v863, 2
      %v866 = vpop.permute.xlu0 %865
      %867 = vrot.lane.b32.xlu0 %v864, 2
      %v868 = vpop.permute.xlu0 %867
      %v869 = vsel %vm763, %v866, %v868
      %v870 = vsel %vm763, %v868, %v866
      %v871 = vmul.f32 %v870, %v772
      %v872 = vmul.f32 %v869, %v776
      %873 = vset.pattern.permute.xlu0 14
      %874 = vperm.xlu0 %873, %v453
      %v875 = vpop.permute.xlu0 %874
      %v877 = vmul.f32 %v871, %v875
      %v878 = vmul.f32 %v872, %v875
      %v879 = vadd.f32 %v855, %v877
      %v880 = vadd.f32 %v856, %v878
      %881 = vrot.lane.b32.xlu0 %v863, 1
      %v882 = vpop.permute.xlu0 %881
      %883 = vrot.lane.b32.xlu0 %v864, 1
      %v884 = vpop.permute.xlu0 %883
      %v885 = vsel %vm482, %v882, %v884
      %v886 = vsel %vm482, %v884, %v882
      %v887 = vmul.f32 %v886, %v491
      %v888 = vmul.f32 %v885, %v495
      %889 = vset.pattern.permute.xlu0 15
      %890 = vperm.xlu0 %889, %v453
      %v891 = vpop.permute.xlu0 %890
      %v893 = vmul.f32 %v887, %v891
      %v894 = vmul.f32 %v888, %v891
      %v895 = vadd.f32 %v879, %v893
      %v896 = vadd.f32 %v880, %v894
      %897 = vset.pattern.permute.xlu0 16
      %898 = vperm.xlu0 %897, %v453
      %v899 = vpop.permute.xlu0 %898
      %v901 = vmul.f32 %v863, %v899
      %v902 = vmul.f32 %v864, %v899
      %v903 = vadd.f32 %v895, %v901
      %v904 = vadd.f32 %v896, %v902
      %905 = vrot.lane.b32.xlu0 %v863, 127
      %v906 = vpop.permute.xlu0 %905
      %907 = vrot.lane.b32.xlu0 %v864, 127
      %v908 = vpop.permute.xlu0 %907
      %v909 = vsel %vm519, %v906, %v908
      %v910 = vsel %vm519, %v908, %v906
      %v911 = vmul.f32 %v909, %v528
      %v912 = vmul.f32 %v910, %v532
      %913 = vset.pattern.permute.xlu0 17
      %914 = vperm.xlu0 %913, %v453
      %v915 = vpop.permute.xlu0 %914
      %v917 = vmul.f32 %v911, %v915
      %v918 = vmul.f32 %v912, %v915
      %v919 = vadd.f32 %v903, %v917
      %v920 = vadd.f32 %v904, %v918
      %921 = vrot.lane.b32.xlu0 %v863, 126
      %v922 = vpop.permute.xlu0 %921
      %923 = vrot.lane.b32.xlu0 %v864, 126
      %v924 = vpop.permute.xlu0 %923
      %v925 = vsel %vm831, %v922, %v924
      %v926 = vsel %vm831, %v924, %v922
      %v927 = vmul.f32 %v925, %v840
      %v928 = vmul.f32 %v926, %v844
      %929 = vset.pattern.permute.xlu0 18
      %930 = vperm.xlu0 %929, %v453
      %v931 = vpop.permute.xlu0 %930
      %v933 = vmul.f32 %v927, %v931
      %v934 = vmul.f32 %v928, %v931
      %v935 = vadd.f32 %v919, %v933
      %v936 = vadd.f32 %v920, %v934
      %937 = vrot.lane.b32.xlu0 %v733, 2
      %v938 = vpop.permute.xlu0 %937
      %939 = vrot.lane.b32.xlu0 %v735, 2
      %v940 = vpop.permute.xlu0 %939
      %v941 = vsel %vm763, %v938, %v940
      %v942 = vsel %vm763, %v940, %v938
      %v943 = vmul.f32 %v942, %v772
      %v944 = vmul.f32 %v941, %v776
      %945 = vset.pattern.permute.xlu0 19
      %946 = vperm.xlu0 %945, %v453
      %v947 = vpop.permute.xlu0 %946
      %v949 = vmul.f32 %v943, %v947
      %v950 = vmul.f32 %v944, %v947
      %v951 = vadd.f32 %v935, %v949
      %v952 = vadd.f32 %v936, %v950
      %953 = vrot.lane.b32.xlu0 %v733, 1
      %v954 = vpop.permute.xlu0 %953
      %955 = vrot.lane.b32.xlu0 %v735, 1
      %v956 = vpop.permute.xlu0 %955
      %v957 = vsel %vm482, %v954, %v956
      %v958 = vsel %vm482, %v956, %v954
      %v959 = vmul.f32 %v958, %v491
      %v960 = vmul.f32 %v957, %v495
      %961 = vset.pattern.permute.xlu0 20
      %962 = vperm.xlu0 %961, %v453
      %v963 = vpop.permute.xlu0 %962
      %v965 = vmul.f32 %v959, %v963
      %v966 = vmul.f32 %v960, %v963
      %v967 = vadd.f32 %v951, %v965
      %v968 = vadd.f32 %v952, %v966
      %969 = vset.pattern.permute.xlu0 21
      %970 = vperm.xlu0 %969, %v453
      %v971 = vpop.permute.xlu0 %970
      %v973 = vmul.f32 %v733, %v971
      %v974 = vmul.f32 %v735, %v971
      %v975 = vadd.f32 %v967, %v973
      %v976 = vadd.f32 %v968, %v974
      %977 = vrot.lane.b32.xlu0 %v733, 127
      %v978 = vpop.permute.xlu0 %977
      %979 = vrot.lane.b32.xlu0 %v735, 127
      %v980 = vpop.permute.xlu0 %979
      %v981 = vsel %vm519, %v978, %v980
      %v982 = vsel %vm519, %v980, %v978
      %v983 = vmul.f32 %v981, %v528
      %v984 = vmul.f32 %v982, %v532
      %985 = vset.pattern.permute.xlu0 22
      %986 = vperm.xlu0 %985, %v453
      %v987 = vpop.permute.xlu0 %986
      %v989 = vmul.f32 %v983, %v987
      %v990 = vmul.f32 %v984, %v987
      %v991 = vadd.f32 %v975, %v989
      %v992 = vadd.f32 %v976, %v990
      %993 = vrot.lane.b32.xlu0 %v733, 126
      %v994 = vpop.permute.xlu0 %993
      %995 = vrot.lane.b32.xlu0 %v735, 126
      %v996 = vpop.permute.xlu0 %995
      %v997 = vsel %vm831, %v994, %v996
      %v998 = vsel %vm831, %v996, %v994
      %v999 = vmul.f32 %v997, %v840
      %v1000 = vmul.f32 %v998, %v844
      %1001 = vset.pattern.permute.xlu0 23
      %1002 = vperm.xlu0 %1001, %v453
      %v1003 = vpop.permute.xlu0 %1002
      %v1005 = vmul.f32 %v999, %v1003
      %v1006 = vmul.f32 %v1000, %v1003
      %v1007 = vadd.f32 %v991, %v1005
      %v1008 = vadd.f32 %v992, %v1006
      %1009 = vrot.lane.b32.xlu0 %v733, 112
      %v1010 = vpop.permute.xlu0 %1009
      %1011 = vrot.lane.b32.xlu0 %v735, 112
      %v1012 = vpop.permute.xlu0 %1011
      %v1013 = vsel %vm589, %v1010, %v1012
      %v1014 = vsel %vm589, %v1012, %v1010
      %v1015 = vmul.f32 %v1013, %v598
      %v1016 = vmul.f32 %v1014, %v602
      %1017 = vrot.lane.b32.xlu0 %v1015, 2
      %v1018 = vpop.permute.xlu0 %1017
      %1019 = vrot.lane.b32.xlu0 %v1016, 2
      %v1020 = vpop.permute.xlu0 %1019
      %v1021 = vsel %vm763, %v1018, %v1020
      %v1022 = vsel %vm763, %v1020, %v1018
      %v1023 = vmul.f32 %v1022, %v772
      %v1024 = vmul.f32 %v1021, %v776
      %1025 = vset.pattern.permute.xlu0 24
      %1026 = vperm.xlu0 %1025, %v453
      %v1027 = vpop.permute.xlu0 %1026
      %v1029 = vmul.f32 %v1023, %v1027
      %v1030 = vmul.f32 %v1024, %v1027
      %v1031 = vadd.f32 %v1007, %v1029
      %v1032 = vadd.f32 %v1008, %v1030
      %1033 = vrot.lane.b32.xlu0 %v1015, 1
      %v1034 = vpop.permute.xlu0 %1033
      %1035 = vrot.lane.b32.xlu0 %v1016, 1
      %v1036 = vpop.permute.xlu0 %1035
      %v1037 = vsel %vm482, %v1034, %v1036
      %v1038 = vsel %vm482, %v1036, %v1034
      %v1039 = vmul.f32 %v1038, %v491
      %v1040 = vmul.f32 %v1037, %v495
      %1041 = vset.pattern.permute.xlu0 25
      %1042 = vperm.xlu0 %1041, %v453
      %v1043 = vpop.permute.xlu0 %1042
      %v1045 = vmul.f32 %v1039, %v1043
      %v1046 = vmul.f32 %v1040, %v1043
      %v1047 = vadd.f32 %v1031, %v1045
      %v1048 = vadd.f32 %v1032, %v1046
      %1049 = vset.pattern.permute.xlu0 26
      %1050 = vperm.xlu0 %1049, %v453
      %v1051 = vpop.permute.xlu0 %1050
      %v1053 = vmul.f32 %v1015, %v1051
      %v1054 = vmul.f32 %v1016, %v1051
      %v1055 = vadd.f32 %v1047, %v1053
      %v1056 = vadd.f32 %v1048, %v1054
      %1057 = vrot.lane.b32.xlu0 %v1015, 127
      %v1058 = vpop.permute.xlu0 %1057
      %1059 = vrot.lane.b32.xlu0 %v1016, 127
      %v1060 = vpop.permute.xlu0 %1059
      %v1061 = vsel %vm519, %v1058, %v1060
      %v1062 = vsel %vm519, %v1060, %v1058
      %v1063 = vmul.f32 %v1061, %v528
      %v1064 = vmul.f32 %v1062, %v532
      %1065 = vset.pattern.permute.xlu0 27
      %1066 = vperm.xlu0 %1065, %v453
      %v1067 = vpop.permute.xlu0 %1066
      %v1069 = vmul.f32 %v1063, %v1067
      %v1070 = vmul.f32 %v1064, %v1067
      %v1071 = vadd.f32 %v1055, %v1069
      %v1072 = vadd.f32 %v1056, %v1070
      %1073 = vrot.lane.b32.xlu0 %v1015, 126
      %v1074 = vpop.permute.xlu0 %1073
      %1075 = vrot.lane.b32.xlu0 %v1016, 126
      %v1076 = vpop.permute.xlu0 %1075
      %v1077 = vsel %vm831, %v1074, %v1076
      %v1078 = vsel %vm831, %v1076, %v1074
      %v1079 = vmul.f32 %v1077, %v840
      %v1080 = vmul.f32 %v1078, %v844
      %1081 = vset.pattern.permute.xlu0 28
      %1082 = vperm.xlu0 %1081, %v453
      %v1083 = vpop.permute.xlu0 %1082
      %v1085 = vmul.f32 %v1079, %v1083
      %v1086 = vmul.f32 %v1080, %v1083
      %v1087 = vadd.f32 %v1071, %v1085
      %v1088 = vadd.f32 %v1072, %v1086
      %1089 = vrot.lane.b32.xlu0 %v733, 96
      %v1090 = vpop.permute.xlu0 %1089
      %1091 = vrot.lane.b32.xlu0 %v735, 96
      %v1092 = vpop.permute.xlu0 %1091
      %vm1093 = vcmp.lt.s32.totalorder %v459, 96
      %v1094 = vsel %vm1093, %v1090, %v1092
      %v1095 = vsel %vm1093, %v1092, %v1090
      %s1096 = scalar_lea.vmem %s7, 33
      %v1097 = vld [vmem:[%s1096] ss:$8 sm:$0x3]
      %v1099 = vlaneseq
      %v1100 = vshrl.u32 %v1099, 7
      %v1101 = vsub.s32 0, %v1100
      %v1102 = vrot.slane %v1097, %v1101
      %v1103 = vlaneseq
      %v1104 = vshrl.u32 %v1103, 7
      %v1105 = vsub.s32 1, %v1104
      %v1106 = vrot.slane %v1097, %v1105
      %v1109 = vmul.f32 %v1094, %v1102
      %v1110 = vmul.f32 %v1095, %v1106
      %1111 = vrot.lane.b32.xlu0 %v1109, 2
      %v1112 = vpop.permute.xlu0 %1111
      %1113 = vrot.lane.b32.xlu0 %v1110, 2
      %v1114 = vpop.permute.xlu0 %1113
      %v1115 = vsel %vm763, %v1112, %v1114
      %v1116 = vsel %vm763, %v1114, %v1112
      %v1117 = vmul.f32 %v1116, %v772
      %v1118 = vmul.f32 %v1115, %v776
      %1119 = vset.pattern.permute.xlu0 29
      %1120 = vperm.xlu0 %1119, %v453
      %v1121 = vpop.permute.xlu0 %1120
      %v1123 = vmul.f32 %v1117, %v1121
      %v1124 = vmul.f32 %v1118, %v1121
      %v1125 = vadd.f32 %v1087, %v1123
      %v1126 = vadd.f32 %v1088, %v1124
      %1127 = vrot.lane.b32.xlu0 %v1109, 1
      %v1128 = vpop.permute.xlu0 %1127
      %1129 = vrot.lane.b32.xlu0 %v1110, 1
      %v1130 = vpop.permute.xlu0 %1129
      %v1131 = vsel %vm482, %v1128, %v1130
      %v1132 = vsel %vm482, %v1130, %v1128
      %v1133 = vmul.f32 %v1132, %v491
      %v1134 = vmul.f32 %v1131, %v495
      %1135 = vset.pattern.permute.xlu0 30
      %1136 = vperm.xlu0 %1135, %v453
      %v1137 = vpop.permute.xlu0 %1136
      %v1139 = vmul.f32 %v1133, %v1137
      %v1140 = vmul.f32 %v1134, %v1137
      %v1141 = vadd.f32 %v1125, %v1139
      %v1142 = vadd.f32 %v1126, %v1140
      %1143 = vset.pattern.permute.xlu0 31
      %1144 = vperm.xlu0 %1143, %v453
      %v1145 = vpop.permute.xlu0 %1144
      %v1147 = vmul.f32 %v1109, %v1145
      %v1148 = vmul.f32 %v1110, %v1145
      %v1149 = vadd.f32 %v1141, %v1147
      %v1150 = vadd.f32 %v1142, %v1148
      %1151 = vrot.lane.b32.xlu0 %v1109, 127
      %v1152 = vpop.permute.xlu0 %1151
      %1153 = vrot.lane.b32.xlu0 %v1110, 127
      %v1154 = vpop.permute.xlu0 %1153
      %v1155 = vsel %vm519, %v1152, %v1154
      %v1156 = vsel %vm519, %v1154, %v1152
      %v1157 = vmul.f32 %v1155, %v528
      %v1158 = vmul.f32 %v1156, %v532
      %1159 = vset.pattern.permute.xlu0 32
      %1160 = vperm.xlu0 %1159, %v453
      %v1161 = vpop.permute.xlu0 %1160
      %v1163 = vmul.f32 %v1157, %v1161
      %v1164 = vmul.f32 %v1158, %v1161
      %v1165 = vadd.f32 %v1149, %v1163
      %v1166 = vadd.f32 %v1150, %v1164
      %1167 = vrot.lane.b32.xlu0 %v1109, 126
      %v1168 = vpop.permute.xlu0 %1167
      %1169 = vrot.lane.b32.xlu0 %v1110, 126
      %v1170 = vpop.permute.xlu0 %1169
      %v1171 = vsel %vm831, %v1168, %v1170
      %v1172 = vsel %vm831, %v1170, %v1168
      %v1173 = vmul.f32 %v1171, %v840
      %v1174 = vmul.f32 %v1172, %v844
      %1175 = vset.pattern.permute.xlu0 33
      %1176 = vperm.xlu0 %1175, %v453
      %v1177 = vpop.permute.xlu0 %1176
      %v1179 = vmul.f32 %v1173, %v1177
      %v1180 = vmul.f32 %v1174, %v1177
      %v1181 = vadd.f32 %v1165, %v1179
      %v1182 = vadd.f32 %v1166, %v1180
      %1183 = vset.pattern.permute.xlu0 1
      %1184 = vperm.xlu0 %1183, %v647
      %v1185 = vpop.permute.xlu0 %1184
      %v1187 = vadd.f32 %v1181, %v1185
      %v1188 = vadd.f32 %v1182, %v1185
      %v1189 = vadd.f32 %v1187, %v653
      %v1190 = vadd.f32 %v1188, %v654
      %v1191 = vsub.f32 0.0, %v1189
      %v1192 = vsub.f32 0.0, %v1190
      %v1193 = vmul.f32 %v1191, 1.442695
      %v1194 = vpow.pop %v1193
      %v1195 = vmul.f32 %v1192, 1.442695
      %v1196 = vpow.pop %v1195
      %v1197 = vadd.f32 %v1194, 1.0
      %v1198 = vadd.f32 %v1196, 1.0
      %v1199 = vrcp.pop %v1197
      %v1200 = vmul.f32 1.0, %v1199
      %v1201 = vrcp.pop %v1198
      %v1202 = vmul.f32 1.0, %v1201
      %v1203 = vmul.f32 %v1189, %v1200
      %v1204 = vmul.f32 %v1190, %v1202
      %s1205 = scalar_lea.vmem %s3, 8
      %v1206 = vld [vmem:[%s1205] sm:$0xff]
      %s1207 = scalar_lea.vmem %s4, 8
      %v1208 = vld [vmem:[%s1207] sm:$0xff]
      %1210 = vset.pattern.permute.xlu0 0
      %1211 = vperm.xlu0 %1210, %v1208
      %v1212 = vpop.permute.xlu0 %1211
      %v1215 = vsel %vm662, %v1206, 0
      %1217 = vmatprep.subr.mxu0 %v1204
      %1218 = vmatpush1.msra.mxu0 %v1203
      %1219 = vmatprep.subr.mxu0 0.0
      %1220 = vmatpush1.msra.mxu0 0.0
      %1221 = vmatprep.subr.mxu0 0.0
      %1222 = vmatpush1.msra.mxu0 0.0
      %1223 = vmatprep.subr.mxu0 0.0
      %1224 = vmatpush1.msra.mxu0 0.0
      %1225 = vmatprep.subr.mxu0 0.0
      %1226 = vmatpush1.msra.mxu0 0.0
      %1227 = vmatprep.subr.mxu0 0.0
      %1228 = vmatpush1.msra.mxu0 0.0
      %1229 = vmatprep.subr.mxu0 0.0
      %1230 = vmatpush1.msra.mxu0 0.0
      %1231 = vmatprep.subr.mxu0 0.0
      %1232 = vmatpush1.msra.mxu0 0.0
      %1233 = vmatprep.subr.mxu0 0.0
      %1234 = vmatpush1.msra.mxu0 0.0
      %1235 = vmatprep.subr.mxu0 0.0
      %1236 = vmatpush1.msra.mxu0 0.0
      %1237 = vmatprep.subr.mxu0 0.0
      %1238 = vmatpush1.msra.mxu0 0.0
      %1239 = vmatprep.subr.mxu0 0.0
      %1240 = vmatpush1.msra.mxu0 0.0
      %1241 = vmatprep.subr.mxu0 0.0
      %1242 = vmatpush1.msra.mxu0 0.0
      %1243 = vmatprep.subr.mxu0 0.0
      %1244 = vmatpush1.msra.mxu0 0.0
      %1245 = vmatprep.subr.mxu0 0.0
      %1246 = vmatpush1.msra.mxu0 0.0
      %1247 = vmatprep.subr.mxu0 0.0
      %1248 = vmatpush1.msra.mxu0 0.0
      %1249 = vmatprep.subr.mxu0 0.0
      %1250 = vmatpush1.msra.mxu0 0.0
      %1251 = vmatprep.subr.mxu0 0.0
      %1252 = vmatpush1.msra.mxu0 0.0
      %1253 = vmatprep.subr.mxu0 0.0
      %1254 = vmatpush1.msra.mxu0 0.0
      %1255 = vmatprep.subr.mxu0 0.0
      %1256 = vmatpush1.msra.mxu0 0.0
      %1257 = vmatprep.subr.mxu0 0.0
      %1258 = vmatpush1.msra.mxu0 0.0
      %1259 = vmatprep.subr.mxu0 0.0
      %1260 = vmatpush1.msra.mxu0 0.0
      %1261 = vmatprep.subr.mxu0 0.0
      %1262 = vmatpush1.msra.mxu0 0.0
      %1263 = vmatprep.subr.mxu0 0.0
      %1264 = vmatpush1.msra.mxu0 0.0
      %1265 = vmatprep.subr.mxu0 0.0
      %1266 = vmatpush1.msra.mxu0 0.0
      %1267 = vmatprep.subr.mxu0 0.0
      %1268 = vmatpush1.msra.mxu0 0.0
      %1269 = vmatprep.subr.mxu0 0.0
      %1270 = vmatpush1.msra.mxu0 0.0
      %1271 = vmatprep.subr.mxu0 0.0
      %1272 = vmatpush1.msra.mxu0 0.0
      %1273 = vmatprep.subr.mxu0 0.0
      %1274 = vmatpush1.msra.mxu0 0.0
      %1275 = vmatprep.subr.mxu0 0.0
      %1276 = vmatpush1.msra.mxu0 0.0
      %1277 = vmatprep.subr.mxu0 0.0
      %1278 = vmatpush1.msra.mxu0 0.0
      %1279 = vmatprep.subr.mxu0 0.0
      %1280 = vmatpush1.msra.mxu0 0.0
      %1281 = vmatprep.mubr.f32.mxu0 0.0
      %1282 = vmatmul.mubr.f32.gmra.mrb[0].mxu0 %v1215
      %v1283 = vpop.f32.mrb[0].mxu0
      %v1284 = vadd.f32 %v1212, %v1283
      %v1285 = vpop.f32.mrb[0].mxu0
      %v1286 = vadd.f32 %v1212, %v1285
      %1287 = vdwg.mxu0
      %1288 = vrot.lane.b32.xlu0 %v1284, 48
      %v1289 = vpop.permute.xlu0 %1288
      %1290 = vrot.lane.b32.xlu0 %v1286, 48
      %v1291 = vpop.permute.xlu0 %1290
      %vm1292 = vcmp.lt.s32.totalorder %v459, 48
      %v1293 = vsel %vm1292, %v1289, %v1291
      %v1294 = vsel %vm1292, %v1291, %v1289
      %s1295 = scalar_lea.vmem %s7, 20
      %v1296 = vld [vmem:[%s1295] ss:$8 sm:$0x3]
      %v1298 = vlaneseq
      %v1299 = vshrl.u32 %v1298, 7
      %v1300 = vsub.s32 0, %v1299
      %v1301 = vrot.slane %v1296, %v1300
      %v1302 = vlaneseq
      %v1303 = vshrl.u32 %v1302, 7
      %v1304 = vsub.s32 1, %v1303
      %v1305 = vrot.slane %v1296, %v1304
      %v1308 = vmul.f32 %v1294, %v1301
      %v1309 = vmul.f32 %v1293, %v1305
      %1310 = vrot.lane.b32.xlu0 %v1308, 3
      %v1311 = vpop.permute.xlu0 %1310
      %1312 = vrot.lane.b32.xlu0 %v1309, 3
      %v1313 = vpop.permute.xlu0 %1312
      %vm1314 = vcmp.lt.s32.totalorder %v459, 3
      %v1315 = vsel %vm1314, %v1311, %v1313
      %v1316 = vsel %vm1314, %v1313, %v1311
      %s1317 = scalar_lea.vmem %s8, 20
      %v1318 = vld [vmem:[%s1317] ss:$8 sm:$0x3]
      %v1320 = vlaneseq
      %v1321 = vshrl.u32 %v1320, 7
      %v1322 = vsub.s32 0, %v1321
      %v1323 = vrot.slane %v1318, %v1322
      %v1324 = vlaneseq
      %v1325 = vshrl.u32 %v1324, 7
      %v1326 = vsub.s32 1, %v1325
      %v1327 = vrot.slane %v1318, %v1326
      %v1330 = vmul.f32 %v1316, %v1323
      %v1331 = vmul.f32 %v1315, %v1327
      %1332 = vset.pattern.permute.xlu0 34
      %1333 = vperm.xlu0 %1332, %v453
      %v1334 = vpop.permute.xlu0 %1333
      %v1336 = vmul.f32 %v1330, %v1334
      %v1337 = vmul.f32 %v1331, %v1334
      %1338 = vrot.lane.b32.xlu0 %v1308, 2
      %v1339 = vpop.permute.xlu0 %1338
      %1340 = vrot.lane.b32.xlu0 %v1309, 2
      %v1341 = vpop.permute.xlu0 %1340
      %v1342 = vsel %vm763, %v1339, %v1341
      %v1343 = vsel %vm763, %v1341, %v1339
      %v1344 = vmul.f32 %v1343, %v772
      %v1345 = vmul.f32 %v1342, %v776
      %1346 = vset.pattern.permute.xlu0 35
      %1347 = vperm.xlu0 %1346, %v453
      %v1348 = vpop.permute.xlu0 %1347
      %v1350 = vmul.f32 %v1344, %v1348
      %v1351 = vmul.f32 %v1345, %v1348
      %v1352 = vadd.f32 %v1336, %v1350
      %v1353 = vadd.f32 %v1337, %v1351
      %1354 = vrot.lane.b32.xlu0 %v1308, 1
      %v1355 = vpop.permute.xlu0 %1354
      %1356 = vrot.lane.b32.xlu0 %v1309, 1
      %v1357 = vpop.permute.xlu0 %1356
      %v1358 = vsel %vm482, %v1355, %v1357
      %v1359 = vsel %vm482, %v1357, %v1355
      %v1360 = vmul.f32 %v1359, %v491
      %v1361 = vmul.f32 %v1358, %v495
      %1362 = vset.pattern.permute.xlu0 36
      %1363 = vperm.xlu0 %1362, %v453
      %v1364 = vpop.permute.xlu0 %1363
      %v1366 = vmul.f32 %v1360, %v1364
      %v1367 = vmul.f32 %v1361, %v1364
      %v1368 = vadd.f32 %v1352, %v1366
      %v1369 = vadd.f32 %v1353, %v1367
      %1370 = vset.pattern.permute.xlu0 37
      %1371 = vperm.xlu0 %1370, %v453
      %v1372 = vpop.permute.xlu0 %1371
      %v1374 = vmul.f32 %v1308, %v1372
      %v1375 = vmul.f32 %v1309, %v1372
      %v1376 = vadd.f32 %v1368, %v1374
      %v1377 = vadd.f32 %v1369, %v1375
      %1378 = vrot.lane.b32.xlu0 %v1308, 127
      %v1379 = vpop.permute.xlu0 %1378
      %1380 = vrot.lane.b32.xlu0 %v1309, 127
      %v1381 = vpop.permute.xlu0 %1380
      %v1382 = vsel %vm519, %v1379, %v1381
      %v1383 = vsel %vm519, %v1381, %v1379
      %v1384 = vmul.f32 %v1382, %v528
      %v1385 = vmul.f32 %v1383, %v532
      %1386 = vset.pattern.permute.xlu0 38
      %1387 = vperm.xlu0 %1386, %v453
      %v1388 = vpop.permute.xlu0 %1387
      %v1390 = vmul.f32 %v1384, %v1388
      %v1391 = vmul.f32 %v1385, %v1388
      %v1392 = vadd.f32 %v1376, %v1390
      %v1393 = vadd.f32 %v1377, %v1391
      %1394 = vrot.lane.b32.xlu0 %v1308, 126
      %v1395 = vpop.permute.xlu0 %1394
      %1396 = vrot.lane.b32.xlu0 %v1309, 126
      %v1397 = vpop.permute.xlu0 %1396
      %v1398 = vsel %vm831, %v1395, %v1397
      %v1399 = vsel %vm831, %v1397, %v1395
      %v1400 = vmul.f32 %v1398, %v840
      %v1401 = vmul.f32 %v1399, %v844
      %1402 = vset.pattern.permute.xlu0 39
      %1403 = vperm.xlu0 %1402, %v453
      %v1404 = vpop.permute.xlu0 %1403
      %v1406 = vmul.f32 %v1400, %v1404
      %v1407 = vmul.f32 %v1401, %v1404
      %v1408 = vadd.f32 %v1392, %v1406
      %v1409 = vadd.f32 %v1393, %v1407
      %1410 = vrot.lane.b32.xlu0 %v1308, 125
      %v1411 = vpop.permute.xlu0 %1410
      %1412 = vrot.lane.b32.xlu0 %v1309, 125
      %v1413 = vpop.permute.xlu0 %1412
      %vm1414 = vcmp.lt.s32.totalorder %v459, 125
      %v1415 = vsel %vm1414, %v1411, %v1413
      %v1416 = vsel %vm1414, %v1413, %v1411
      %s1417 = scalar_lea.vmem %s8, 34
      %v1418 = vld [vmem:[%s1417] ss:$8 sm:$0x3]
      %v1420 = vlaneseq
      %v1421 = vshrl.u32 %v1420, 7
      %v1422 = vsub.s32 0, %v1421
      %v1423 = vrot.slane %v1418, %v1422
      %v1424 = vlaneseq
      %v1425 = vshrl.u32 %v1424, 7
      %v1426 = vsub.s32 1, %v1425
      %v1427 = vrot.slane %v1418, %v1426
      %v1430 = vmul.f32 %v1415, %v1423
      %v1431 = vmul.f32 %v1416, %v1427
      %1432 = vset.pattern.permute.xlu0 40
      %1433 = vperm.xlu0 %1432, %v453
      %v1434 = vpop.permute.xlu0 %1433
      %v1436 = vmul.f32 %v1430, %v1434
      %v1437 = vmul.f32 %v1431, %v1434
      %v1438 = vadd.f32 %v1408, %v1436
      %v1439 = vadd.f32 %v1409, %v1437
      %1440 = vrot.lane.b32.xlu0 %v1284, 32
      %v1441 = vpop.permute.xlu0 %1440
      %1442 = vrot.lane.b32.xlu0 %v1286, 32
      %v1443 = vpop.permute.xlu0 %1442
      %v1444 = vsel %vm741, %v1441, %v1443
      %v1445 = vsel %vm741, %v1443, %v1441
      %v1446 = vmul.f32 %v1445, %v750
      %v1447 = vmul.f32 %v1444, %v754
      %1448 = vrot.lane.b32.xlu0 %v1446, 3
      %v1449 = vpop.permute.xlu0 %1448
      %1450 = vrot.lane.b32.xlu0 %v1447, 3
      %v1451 = vpop.permute.xlu0 %1450
      %v1452 = vsel %vm1314, %v1449, %v1451
      %v1453 = vsel %vm1314, %v1451, %v1449
      %v1454 = vmul.f32 %v1453, %v1323
      %v1455 = vmul.f32 %v1452, %v1327
      %1456 = vset.pattern.permute.xlu0 41
      %1457 = vperm.xlu0 %1456, %v453
      %v1458 = vpop.permute.xlu0 %1457
      %v1460 = vmul.f32 %v1454, %v1458
      %v1461 = vmul.f32 %v1455, %v1458
      %v1462 = vadd.f32 %v1438, %v1460
      %v1463 = vadd.f32 %v1439, %v1461
      %1464 = vrot.lane.b32.xlu0 %v1446, 2
      %v1465 = vpop.permute.xlu0 %1464
      %1466 = vrot.lane.b32.xlu0 %v1447, 2
      %v1467 = vpop.permute.xlu0 %1466
      %v1468 = vsel %vm763, %v1465, %v1467
      %v1469 = vsel %vm763, %v1467, %v1465
      %v1470 = vmul.f32 %v1469, %v772
      %v1471 = vmul.f32 %v1468, %v776
      %1472 = vset.pattern.permute.xlu0 42
      %1473 = vperm.xlu0 %1472, %v453
      %v1474 = vpop.permute.xlu0 %1473
      %v1476 = vmul.f32 %v1470, %v1474
      %v1477 = vmul.f32 %v1471, %v1474
      %v1478 = vadd.f32 %v1462, %v1476
      %v1479 = vadd.f32 %v1463, %v1477
      %1480 = vrot.lane.b32.xlu0 %v1446, 1
      %v1481 = vpop.permute.xlu0 %1480
      %1482 = vrot.lane.b32.xlu0 %v1447, 1
      %v1483 = vpop.permute.xlu0 %1482
      %v1484 = vsel %vm482, %v1481, %v1483
      %v1485 = vsel %vm482, %v1483, %v1481
      %v1486 = vmul.f32 %v1485, %v491
      %v1487 = vmul.f32 %v1484, %v495
      %1488 = vset.pattern.permute.xlu0 43
      %1489 = vperm.xlu0 %1488, %v453
      %v1490 = vpop.permute.xlu0 %1489
      %v1492 = vmul.f32 %v1486, %v1490
      %v1493 = vmul.f32 %v1487, %v1490
      %v1494 = vadd.f32 %v1478, %v1492
      %v1495 = vadd.f32 %v1479, %v1493
      %1496 = vset.pattern.permute.xlu0 44
      %1497 = vperm.xlu0 %1496, %v453
      %v1498 = vpop.permute.xlu0 %1497
      %v1500 = vmul.f32 %v1446, %v1498
      %v1501 = vmul.f32 %v1447, %v1498
      %v1502 = vadd.f32 %v1494, %v1500
      %v1503 = vadd.f32 %v1495, %v1501
      %1504 = vrot.lane.b32.xlu0 %v1446, 127
      %v1505 = vpop.permute.xlu0 %1504
      %1506 = vrot.lane.b32.xlu0 %v1447, 127
      %v1507 = vpop.permute.xlu0 %1506
      %v1508 = vsel %vm519, %v1505, %v1507
      %v1509 = vsel %vm519, %v1507, %v1505
      %v1510 = vmul.f32 %v1508, %v528
      %v1511 = vmul.f32 %v1509, %v532
      %1512 = vset.pattern.permute.xlu0 45
      %1513 = vperm.xlu0 %1512, %v453
      %v1514 = vpop.permute.xlu0 %1513
      %v1516 = vmul.f32 %v1510, %v1514
      %v1517 = vmul.f32 %v1511, %v1514
      %v1518 = vadd.f32 %v1502, %v1516
      %v1519 = vadd.f32 %v1503, %v1517
      %1520 = vrot.lane.b32.xlu0 %v1446, 126
      %v1521 = vpop.permute.xlu0 %1520
      %1522 = vrot.lane.b32.xlu0 %v1447, 126
      %v1523 = vpop.permute.xlu0 %1522
      %v1524 = vsel %vm831, %v1521, %v1523
      %v1525 = vsel %vm831, %v1523, %v1521
      %v1526 = vmul.f32 %v1524, %v840
      %v1527 = vmul.f32 %v1525, %v844
      %1528 = vset.pattern.permute.xlu0 46
      %1529 = vperm.xlu0 %1528, %v453
      %v1530 = vpop.permute.xlu0 %1529
      %v1532 = vmul.f32 %v1526, %v1530
      %v1533 = vmul.f32 %v1527, %v1530
      %v1534 = vadd.f32 %v1518, %v1532
      %v1535 = vadd.f32 %v1519, %v1533
      %1536 = vrot.lane.b32.xlu0 %v1446, 125
      %v1537 = vpop.permute.xlu0 %1536
      %1538 = vrot.lane.b32.xlu0 %v1447, 125
      %v1539 = vpop.permute.xlu0 %1538
      %v1540 = vsel %vm1414, %v1537, %v1539
      %v1541 = vsel %vm1414, %v1539, %v1537
      %v1542 = vmul.f32 %v1540, %v1423
      %v1543 = vmul.f32 %v1541, %v1427
      %1544 = vset.pattern.permute.xlu0 47
      %1545 = vperm.xlu0 %1544, %v453
      %v1546 = vpop.permute.xlu0 %1545
      %v1548 = vmul.f32 %v1542, %v1546
      %v1549 = vmul.f32 %v1543, %v1546
      %v1550 = vadd.f32 %v1534, %v1548
      %v1551 = vadd.f32 %v1535, %v1549
      %1552 = vrot.lane.b32.xlu0 %v1284, 16
      %v1553 = vpop.permute.xlu0 %1552
      %1554 = vrot.lane.b32.xlu0 %v1286, 16
      %v1555 = vpop.permute.xlu0 %1554
      %v1556 = vsel %vm460, %v1553, %v1555
      %v1557 = vsel %vm460, %v1555, %v1553
      %v1558 = vmul.f32 %v1557, %v469
      %v1559 = vmul.f32 %v1556, %v473
      %1560 = vrot.lane.b32.xlu0 %v1558, 3
      %v1561 = vpop.permute.xlu0 %1560
      %1562 = vrot.lane.b32.xlu0 %v1559, 3
      %v1563 = vpop.permute.xlu0 %1562
      %v1564 = vsel %vm1314, %v1561, %v1563
      %v1565 = vsel %vm1314, %v1563, %v1561
      %v1566 = vmul.f32 %v1565, %v1323
      %v1567 = vmul.f32 %v1564, %v1327
      %1568 = vset.pattern.permute.xlu0 48
      %1569 = vperm.xlu0 %1568, %v453
      %v1570 = vpop.permute.xlu0 %1569
      %v1572 = vmul.f32 %v1566, %v1570
      %v1573 = vmul.f32 %v1567, %v1570
      %v1574 = vadd.f32 %v1550, %v1572
      %v1575 = vadd.f32 %v1551, %v1573
      %1576 = vrot.lane.b32.xlu0 %v1558, 2
      %v1577 = vpop.permute.xlu0 %1576
      %1578 = vrot.lane.b32.xlu0 %v1559, 2
      %v1579 = vpop.permute.xlu0 %1578
      %v1580 = vsel %vm763, %v1577, %v1579
      %v1581 = vsel %vm763, %v1579, %v1577
      %v1582 = vmul.f32 %v1581, %v772
      %v1583 = vmul.f32 %v1580, %v776
      %1584 = vset.pattern.permute.xlu0 49
      %1585 = vperm.xlu0 %1584, %v453
      %v1586 = vpop.permute.xlu0 %1585
      %v1588 = vmul.f32 %v1582, %v1586
      %v1589 = vmul.f32 %v1583, %v1586
      %v1590 = vadd.f32 %v1574, %v1588
      %v1591 = vadd.f32 %v1575, %v1589
      %1592 = vrot.lane.b32.xlu0 %v1558, 1
      %v1593 = vpop.permute.xlu0 %1592
      %1594 = vrot.lane.b32.xlu0 %v1559, 1
      %v1595 = vpop.permute.xlu0 %1594
      %v1596 = vsel %vm482, %v1593, %v1595
      %v1597 = vsel %vm482, %v1595, %v1593
      %v1598 = vmul.f32 %v1597, %v491
      %v1599 = vmul.f32 %v1596, %v495
      %1600 = vset.pattern.permute.xlu0 50
      %1601 = vperm.xlu0 %1600, %v453
      %v1602 = vpop.permute.xlu0 %1601
      %v1604 = vmul.f32 %v1598, %v1602
      %v1605 = vmul.f32 %v1599, %v1602
      %v1606 = vadd.f32 %v1590, %v1604
      %v1607 = vadd.f32 %v1591, %v1605
      %1608 = vset.pattern.permute.xlu0 51
      %1609 = vperm.xlu0 %1608, %v453
      %v1610 = vpop.permute.xlu0 %1609
      %v1612 = vmul.f32 %v1558, %v1610
      %v1613 = vmul.f32 %v1559, %v1610
      %v1614 = vadd.f32 %v1606, %v1612
      %v1615 = vadd.f32 %v1607, %v1613
      %1616 = vrot.lane.b32.xlu0 %v1558, 127
      %v1617 = vpop.permute.xlu0 %1616
      %1618 = vrot.lane.b32.xlu0 %v1559, 127
      %v1619 = vpop.permute.xlu0 %1618
      %v1620 = vsel %vm519, %v1617, %v1619
      %v1621 = vsel %vm519, %v1619, %v1617
      %v1622 = vmul.f32 %v1620, %v528
      %v1623 = vmul.f32 %v1621, %v532
      %1624 = vset.pattern.permute.xlu0 52
      %1625 = vperm.xlu0 %1624, %v453
      %v1626 = vpop.permute.xlu0 %1625
      %v1628 = vmul.f32 %v1622, %v1626
      %v1629 = vmul.f32 %v1623, %v1626
      %v1630 = vadd.f32 %v1614, %v1628
      %v1631 = vadd.f32 %v1615, %v1629
      %1632 = vrot.lane.b32.xlu0 %v1558, 126
      %v1633 = vpop.permute.xlu0 %1632
      %1634 = vrot.lane.b32.xlu0 %v1559, 126
      %v1635 = vpop.permute.xlu0 %1634
      %v1636 = vsel %vm831, %v1633, %v1635
      %v1637 = vsel %vm831, %v1635, %v1633
      %v1638 = vmul.f32 %v1636, %v840
      %v1639 = vmul.f32 %v1637, %v844
      %1640 = vset.pattern.permute.xlu0 53
      %1641 = vperm.xlu0 %1640, %v453
      %v1642 = vpop.permute.xlu0 %1641
      %v1644 = vmul.f32 %v1638, %v1642
      %v1645 = vmul.f32 %v1639, %v1642
      %v1646 = vadd.f32 %v1630, %v1644
      %v1647 = vadd.f32 %v1631, %v1645
      %1648 = vrot.lane.b32.xlu0 %v1558, 125
      %v1649 = vpop.permute.xlu0 %1648
      %1650 = vrot.lane.b32.xlu0 %v1559, 125
      %v1651 = vpop.permute.xlu0 %1650
      %v1652 = vsel %vm1414, %v1649, %v1651
      %v1653 = vsel %vm1414, %v1651, %v1649
      %v1654 = vmul.f32 %v1652, %v1423
      %v1655 = vmul.f32 %v1653, %v1427
      %1656 = vset.pattern.permute.xlu0 54
      %1657 = vperm.xlu0 %1656, %v453
      %v1658 = vpop.permute.xlu0 %1657
      %v1660 = vmul.f32 %v1654, %v1658
      %v1661 = vmul.f32 %v1655, %v1658
      %v1662 = vadd.f32 %v1646, %v1660
      %v1663 = vadd.f32 %v1647, %v1661
      %1664 = vrot.lane.b32.xlu0 %v1284, 3
      %v1665 = vpop.permute.xlu0 %1664
      %1666 = vrot.lane.b32.xlu0 %v1286, 3
      %v1667 = vpop.permute.xlu0 %1666
      %v1668 = vsel %vm1314, %v1665, %v1667
      %v1669 = vsel %vm1314, %v1667, %v1665
      %v1670 = vmul.f32 %v1669, %v1323
      %v1671 = vmul.f32 %v1668, %v1327
      %1672 = vset.pattern.permute.xlu0 55
      %1673 = vperm.xlu0 %1672, %v453
      %v1674 = vpop.permute.xlu0 %1673
      %v1676 = vmul.f32 %v1670, %v1674
      %v1677 = vmul.f32 %v1671, %v1674
      %v1678 = vadd.f32 %v1662, %v1676
      %v1679 = vadd.f32 %v1663, %v1677
      %1680 = vrot.lane.b32.xlu0 %v1284, 2
      %v1681 = vpop.permute.xlu0 %1680
      %1682 = vrot.lane.b32.xlu0 %v1286, 2
      %v1683 = vpop.permute.xlu0 %1682
      %v1684 = vsel %vm763, %v1681, %v1683
      %v1685 = vsel %vm763, %v1683, %v1681
      %v1686 = vmul.f32 %v1685, %v772
      %v1687 = vmul.f32 %v1684, %v776
      %1688 = vset.pattern.permute.xlu0 56
      %1689 = vperm.xlu0 %1688, %v453
      %v1690 = vpop.permute.xlu0 %1689
      %v1692 = vmul.f32 %v1686, %v1690
      %v1693 = vmul.f32 %v1687, %v1690
      %v1694 = vadd.f32 %v1678, %v1692
      %v1695 = vadd.f32 %v1679, %v1693
      %1696 = vrot.lane.b32.xlu0 %v1284, 1
      %v1697 = vpop.permute.xlu0 %1696
      %1698 = vrot.lane.b32.xlu0 %v1286, 1
      %v1699 = vpop.permute.xlu0 %1698
      %v1700 = vsel %vm482, %v1697, %v1699
      %v1701 = vsel %vm482, %v1699, %v1697
      %v1702 = vmul.f32 %v1701, %v491
      %v1703 = vmul.f32 %v1700, %v495
      %1704 = vset.pattern.permute.xlu0 57
      %1705 = vperm.xlu0 %1704, %v453
      %v1706 = vpop.permute.xlu0 %1705
      %v1708 = vmul.f32 %v1702, %v1706
      %v1709 = vmul.f32 %v1703, %v1706
      %v1710 = vadd.f32 %v1694, %v1708
      %v1711 = vadd.f32 %v1695, %v1709
      %1712 = vset.pattern.permute.xlu0 58
      %1713 = vperm.xlu0 %1712, %v453
      %v1714 = vpop.permute.xlu0 %1713
      %v1716 = vmul.f32 %v1284, %v1714
      %v1717 = vmul.f32 %v1286, %v1714
      %v1718 = vadd.f32 %v1710, %v1716
      %v1719 = vadd.f32 %v1711, %v1717
      %1720 = vrot.lane.b32.xlu0 %v1284, 127
      %v1721 = vpop.permute.xlu0 %1720
      %1722 = vrot.lane.b32.xlu0 %v1286, 127
      %v1723 = vpop.permute.xlu0 %1722
      %v1724 = vsel %vm519, %v1721, %v1723
      %v1725 = vsel %vm519, %v1723, %v1721
      %v1726 = vmul.f32 %v1724, %v528
      %v1727 = vmul.f32 %v1725, %v532
      %1728 = vset.pattern.permute.xlu0 59
      %1729 = vperm.xlu0 %1728, %v453
      %v1730 = vpop.permute.xlu0 %1729
      %v1732 = vmul.f32 %v1726, %v1730
      %v1733 = vmul.f32 %v1727, %v1730
      %v1734 = vadd.f32 %v1718, %v1732
      %v1735 = vadd.f32 %v1719, %v1733
      %1736 = vrot.lane.b32.xlu0 %v1284, 126
      %v1737 = vpop.permute.xlu0 %1736
      %1738 = vrot.lane.b32.xlu0 %v1286, 126
      %v1739 = vpop.permute.xlu0 %1738
      %v1740 = vsel %vm831, %v1737, %v1739
      %v1741 = vsel %vm831, %v1739, %v1737
      %v1742 = vmul.f32 %v1740, %v840
      %v1743 = vmul.f32 %v1741, %v844
      %1744 = vset.pattern.permute.xlu0 60
      %1745 = vperm.xlu0 %1744, %v453
      %v1746 = vpop.permute.xlu0 %1745
      %v1748 = vmul.f32 %v1742, %v1746
      %v1749 = vmul.f32 %v1743, %v1746
      %v1750 = vadd.f32 %v1734, %v1748
      %v1751 = vadd.f32 %v1735, %v1749
      %1752 = vrot.lane.b32.xlu0 %v1284, 125
      %v1753 = vpop.permute.xlu0 %1752
      %1754 = vrot.lane.b32.xlu0 %v1286, 125
      %v1755 = vpop.permute.xlu0 %1754
      %v1756 = vsel %vm1414, %v1753, %v1755
      %v1757 = vsel %vm1414, %v1755, %v1753
      %v1758 = vmul.f32 %v1756, %v1423
      %v1759 = vmul.f32 %v1757, %v1427
      %1760 = vset.pattern.permute.xlu0 61
      %1761 = vperm.xlu0 %1760, %v453
      %v1762 = vpop.permute.xlu0 %1761
      %v1764 = vmul.f32 %v1758, %v1762
      %v1765 = vmul.f32 %v1759, %v1762
      %v1766 = vadd.f32 %v1750, %v1764
      %v1767 = vadd.f32 %v1751, %v1765
      %1768 = vrot.lane.b32.xlu0 %v1284, 112
      %v1769 = vpop.permute.xlu0 %1768
      %1770 = vrot.lane.b32.xlu0 %v1286, 112
      %v1771 = vpop.permute.xlu0 %1770
      %v1772 = vsel %vm589, %v1769, %v1771
      %v1773 = vsel %vm589, %v1771, %v1769
      %v1774 = vmul.f32 %v1772, %v598
      %v1775 = vmul.f32 %v1773, %v602
      %1776 = vrot.lane.b32.xlu0 %v1774, 3
      %v1777 = vpop.permute.xlu0 %1776
      %1778 = vrot.lane.b32.xlu0 %v1775, 3
      %v1779 = vpop.permute.xlu0 %1778
      %v1780 = vsel %vm1314, %v1777, %v1779
      %v1781 = vsel %vm1314, %v1779, %v1777
      %v1782 = vmul.f32 %v1781, %v1323
      %v1783 = vmul.f32 %v1780, %v1327
      %1784 = vset.pattern.permute.xlu0 62
      %1785 = vperm.xlu0 %1784, %v453
      %v1786 = vpop.permute.xlu0 %1785
      %v1788 = vmul.f32 %v1782, %v1786
      %v1789 = vmul.f32 %v1783, %v1786
      %v1790 = vadd.f32 %v1766, %v1788
      %v1791 = vadd.f32 %v1767, %v1789
      %1792 = vrot.lane.b32.xlu0 %v1774, 2
      %v1793 = vpop.permute.xlu0 %1792
      %1794 = vrot.lane.b32.xlu0 %v1775, 2
      %v1795 = vpop.permute.xlu0 %1794
      %v1796 = vsel %vm763, %v1793, %v1795
      %v1797 = vsel %vm763, %v1795, %v1793
      %v1798 = vmul.f32 %v1797, %v772
      %v1799 = vmul.f32 %v1796, %v776
      %1800 = vset.pattern.permute.xlu0 63
      %1801 = vperm.xlu0 %1800, %v453
      %v1802 = vpop.permute.xlu0 %1801
      %v1804 = vmul.f32 %v1798, %v1802
      %v1805 = vmul.f32 %v1799, %v1802
      %v1806 = vadd.f32 %v1790, %v1804
      %v1807 = vadd.f32 %v1791, %v1805
      %1808 = vrot.lane.b32.xlu0 %v1774, 1
      %v1809 = vpop.permute.xlu0 %1808
      %1810 = vrot.lane.b32.xlu0 %v1775, 1
      %v1811 = vpop.permute.xlu0 %1810
      %v1812 = vsel %vm482, %v1809, %v1811
      %v1813 = vsel %vm482, %v1811, %v1809
      %v1814 = vmul.f32 %v1813, %v491
      %v1815 = vmul.f32 %v1812, %v495
      %1816 = vset.pattern.permute.xlu0 64
      %1817 = vperm.xlu0 %1816, %v453
      %v1818 = vpop.permute.xlu0 %1817
      %v1820 = vmul.f32 %v1814, %v1818
      %v1821 = vmul.f32 %v1815, %v1818
      %v1822 = vadd.f32 %v1806, %v1820
      %v1823 = vadd.f32 %v1807, %v1821
      %1824 = vset.pattern.permute.xlu0 65
      %1825 = vperm.xlu0 %1824, %v453
      %v1826 = vpop.permute.xlu0 %1825
      %v1828 = vmul.f32 %v1774, %v1826
      %v1829 = vmul.f32 %v1775, %v1826
      %v1830 = vadd.f32 %v1822, %v1828
      %v1831 = vadd.f32 %v1823, %v1829
      %1832 = vrot.lane.b32.xlu0 %v1774, 127
      %v1833 = vpop.permute.xlu0 %1832
      %1834 = vrot.lane.b32.xlu0 %v1775, 127
      %v1835 = vpop.permute.xlu0 %1834
      %v1836 = vsel %vm519, %v1833, %v1835
      %v1837 = vsel %vm519, %v1835, %v1833
      %v1838 = vmul.f32 %v1836, %v528
      %v1839 = vmul.f32 %v1837, %v532
      %1840 = vset.pattern.permute.xlu0 66
      %1841 = vperm.xlu0 %1840, %v453
      %v1842 = vpop.permute.xlu0 %1841
      %v1844 = vmul.f32 %v1838, %v1842
      %v1845 = vmul.f32 %v1839, %v1842
      %v1846 = vadd.f32 %v1830, %v1844
      %v1847 = vadd.f32 %v1831, %v1845
      %1848 = vrot.lane.b32.xlu0 %v1774, 126
      %v1849 = vpop.permute.xlu0 %1848
      %1850 = vrot.lane.b32.xlu0 %v1775, 126
      %v1851 = vpop.permute.xlu0 %1850
      %v1852 = vsel %vm831, %v1849, %v1851
      %v1853 = vsel %vm831, %v1851, %v1849
      %v1854 = vmul.f32 %v1852, %v840
      %v1855 = vmul.f32 %v1853, %v844
      %1856 = vset.pattern.permute.xlu0 67
      %1857 = vperm.xlu0 %1856, %v453
      %v1858 = vpop.permute.xlu0 %1857
      %v1860 = vmul.f32 %v1854, %v1858
      %v1861 = vmul.f32 %v1855, %v1858
      %v1862 = vadd.f32 %v1846, %v1860
      %v1863 = vadd.f32 %v1847, %v1861
      %1864 = vrot.lane.b32.xlu0 %v1774, 125
      %v1865 = vpop.permute.xlu0 %1864
      %1866 = vrot.lane.b32.xlu0 %v1775, 125
      %v1867 = vpop.permute.xlu0 %1866
      %v1868 = vsel %vm1414, %v1865, %v1867
      %v1869 = vsel %vm1414, %v1867, %v1865
      %v1870 = vmul.f32 %v1868, %v1423
      %v1871 = vmul.f32 %v1869, %v1427
      %1872 = vset.pattern.permute.xlu0 68
      %1873 = vperm.xlu0 %1872, %v453
      %v1874 = vpop.permute.xlu0 %1873
      %v1876 = vmul.f32 %v1870, %v1874
      %v1877 = vmul.f32 %v1871, %v1874
      %v1878 = vadd.f32 %v1862, %v1876
      %v1879 = vadd.f32 %v1863, %v1877
      %1880 = vrot.lane.b32.xlu0 %v1284, 96
      %v1881 = vpop.permute.xlu0 %1880
      %1882 = vrot.lane.b32.xlu0 %v1286, 96
      %v1883 = vpop.permute.xlu0 %1882
      %v1884 = vsel %vm1093, %v1881, %v1883
      %v1885 = vsel %vm1093, %v1883, %v1881
      %v1886 = vmul.f32 %v1884, %v1102
      %v1887 = vmul.f32 %v1885, %v1106
      %1888 = vrot.lane.b32.xlu0 %v1886, 3
      %v1889 = vpop.permute.xlu0 %1888
      %1890 = vrot.lane.b32.xlu0 %v1887, 3
      %v1891 = vpop.permute.xlu0 %1890
      %v1892 = vsel %vm1314, %v1889, %v1891
      %v1893 = vsel %vm1314, %v1891, %v1889
      %v1894 = vmul.f32 %v1893, %v1323
      %v1895 = vmul.f32 %v1892, %v1327
      %1896 = vset.pattern.permute.xlu0 69
      %1897 = vperm.xlu0 %1896, %v453
      %v1898 = vpop.permute.xlu0 %1897
      %v1900 = vmul.f32 %v1894, %v1898
      %v1901 = vmul.f32 %v1895, %v1898
      %v1902 = vadd.f32 %v1878, %v1900
      %v1903 = vadd.f32 %v1879, %v1901
      %1904 = vrot.lane.b32.xlu0 %v1886, 2
      %v1905 = vpop.permute.xlu0 %1904
      %1906 = vrot.lane.b32.xlu0 %v1887, 2
      %v1907 = vpop.permute.xlu0 %1906
      %v1908 = vsel %vm763, %v1905, %v1907
      %v1909 = vsel %vm763, %v1907, %v1905
      %v1910 = vmul.f32 %v1909, %v772
      %v1911 = vmul.f32 %v1908, %v776
      %1912 = vset.pattern.permute.xlu0 70
      %1913 = vperm.xlu0 %1912, %v453
      %v1914 = vpop.permute.xlu0 %1913
      %v1916 = vmul.f32 %v1910, %v1914
      %v1917 = vmul.f32 %v1911, %v1914
      %v1918 = vadd.f32 %v1902, %v1916
      %v1919 = vadd.f32 %v1903, %v1917
      %1920 = vrot.lane.b32.xlu0 %v1886, 1
      %v1921 = vpop.permute.xlu0 %1920
      %1922 = vrot.lane.b32.xlu0 %v1887, 1
      %v1923 = vpop.permute.xlu0 %1922
      %v1924 = vsel %vm482, %v1921, %v1923
      %v1925 = vsel %vm482, %v1923, %v1921
      %v1926 = vmul.f32 %v1925, %v491
      %v1927 = vmul.f32 %v1924, %v495
      %1928 = vset.pattern.permute.xlu0 71
      %1929 = vperm.xlu0 %1928, %v453
      %v1930 = vpop.permute.xlu0 %1929
      %v1932 = vmul.f32 %v1926, %v1930
      %v1933 = vmul.f32 %v1927, %v1930
      %v1934 = vadd.f32 %v1918, %v1932
      %v1935 = vadd.f32 %v1919, %v1933
      %1936 = vset.pattern.permute.xlu0 72
      %1937 = vperm.xlu0 %1936, %v453
      %v1938 = vpop.permute.xlu0 %1937
      %v1940 = vmul.f32 %v1886, %v1938
      %v1941 = vmul.f32 %v1887, %v1938
      %v1942 = vadd.f32 %v1934, %v1940
      %v1943 = vadd.f32 %v1935, %v1941
      %1944 = vrot.lane.b32.xlu0 %v1886, 127
      %v1945 = vpop.permute.xlu0 %1944
      %1946 = vrot.lane.b32.xlu0 %v1887, 127
      %v1947 = vpop.permute.xlu0 %1946
      %v1948 = vsel %vm519, %v1945, %v1947
      %v1949 = vsel %vm519, %v1947, %v1945
      %v1950 = vmul.f32 %v1948, %v528
      %v1951 = vmul.f32 %v1949, %v532
      %1952 = vset.pattern.permute.xlu0 73
      %1953 = vperm.xlu0 %1952, %v453
      %v1954 = vpop.permute.xlu0 %1953
      %v1956 = vmul.f32 %v1950, %v1954
      %v1957 = vmul.f32 %v1951, %v1954
      %v1958 = vadd.f32 %v1942, %v1956
      %v1959 = vadd.f32 %v1943, %v1957
      %1960 = vrot.lane.b32.xlu0 %v1886, 126
      %v1961 = vpop.permute.xlu0 %1960
      %1962 = vrot.lane.b32.xlu0 %v1887, 126
      %v1963 = vpop.permute.xlu0 %1962
      %v1964 = vsel %vm831, %v1961, %v1963
      %v1965 = vsel %vm831, %v1963, %v1961
      %v1966 = vmul.f32 %v1964, %v840
      %v1967 = vmul.f32 %v1965, %v844
      %1968 = vset.pattern.permute.xlu0 74
      %1969 = vperm.xlu0 %1968, %v453
      %v1970 = vpop.permute.xlu0 %1969
      %v1972 = vmul.f32 %v1966, %v1970
      %v1973 = vmul.f32 %v1967, %v1970
      %v1974 = vadd.f32 %v1958, %v1972
      %v1975 = vadd.f32 %v1959, %v1973
      %1976 = vrot.lane.b32.xlu0 %v1886, 125
      %v1977 = vpop.permute.xlu0 %1976
      %1978 = vrot.lane.b32.xlu0 %v1887, 125
      %v1979 = vpop.permute.xlu0 %1978
      %v1980 = vsel %vm1414, %v1977, %v1979
      %v1981 = vsel %vm1414, %v1979, %v1977
      %v1982 = vmul.f32 %v1980, %v1423
      %v1983 = vmul.f32 %v1981, %v1427
      %1984 = vset.pattern.permute.xlu0 75
      %1985 = vperm.xlu0 %1984, %v453
      %v1986 = vpop.permute.xlu0 %1985
      %v1988 = vmul.f32 %v1982, %v1986
      %v1989 = vmul.f32 %v1983, %v1986
      %v1990 = vadd.f32 %v1974, %v1988
      %v1991 = vadd.f32 %v1975, %v1989
      %1992 = vrot.lane.b32.xlu0 %v1284, 80
      %v1993 = vpop.permute.xlu0 %1992
      %1994 = vrot.lane.b32.xlu0 %v1286, 80
      %v1995 = vpop.permute.xlu0 %1994
      %vm1996 = vcmp.lt.s32.totalorder %v459, 80
      %v1997 = vsel %vm1996, %v1993, %v1995
      %v1998 = vsel %vm1996, %v1995, %v1993
      %s1999 = scalar_lea.vmem %s7, 34
      %v2000 = vld [vmem:[%s1999] ss:$8 sm:$0x3]
      %v2002 = vlaneseq
      %v2003 = vshrl.u32 %v2002, 7
      %v2004 = vsub.s32 0, %v2003
      %v2005 = vrot.slane %v2000, %v2004
      %v2006 = vlaneseq
      %v2007 = vshrl.u32 %v2006, 7
      %v2008 = vsub.s32 1, %v2007
      %v2009 = vrot.slane %v2000, %v2008
      %v2012 = vmul.f32 %v1997, %v2005
      %v2013 = vmul.f32 %v1998, %v2009
      %2014 = vrot.lane.b32.xlu0 %v2012, 3
      %v2015 = vpop.permute.xlu0 %2014
      %2016 = vrot.lane.b32.xlu0 %v2013, 3
      %v2017 = vpop.permute.xlu0 %2016
      %v2018 = vsel %vm1314, %v2015, %v2017
      %v2019 = vsel %vm1314, %v2017, %v2015
      %v2020 = vmul.f32 %v2019, %v1323
      %v2021 = vmul.f32 %v2018, %v1327
      %2022 = vset.pattern.permute.xlu0 76
      %2023 = vperm.xlu0 %2022, %v453
      %v2024 = vpop.permute.xlu0 %2023
      %v2026 = vmul.f32 %v2020, %v2024
      %v2027 = vmul.f32 %v2021, %v2024
      %v2028 = vadd.f32 %v1990, %v2026
      %v2029 = vadd.f32 %v1991, %v2027
      %2030 = vrot.lane.b32.xlu0 %v2012, 2
      %v2031 = vpop.permute.xlu0 %2030
      %2032 = vrot.lane.b32.xlu0 %v2013, 2
      %v2033 = vpop.permute.xlu0 %2032
      %v2034 = vsel %vm763, %v2031, %v2033
      %v2035 = vsel %vm763, %v2033, %v2031
      %v2036 = vmul.f32 %v2035, %v772
      %v2037 = vmul.f32 %v2034, %v776
      %2038 = vset.pattern.permute.xlu0 77
      %2039 = vperm.xlu0 %2038, %v453
      %v2040 = vpop.permute.xlu0 %2039
      %v2042 = vmul.f32 %v2036, %v2040
      %v2043 = vmul.f32 %v2037, %v2040
      %v2044 = vadd.f32 %v2028, %v2042
      %v2045 = vadd.f32 %v2029, %v2043
      %2046 = vrot.lane.b32.xlu0 %v2012, 1
      %v2047 = vpop.permute.xlu0 %2046
      %2048 = vrot.lane.b32.xlu0 %v2013, 1
      %v2049 = vpop.permute.xlu0 %2048
      %v2050 = vsel %vm482, %v2047, %v2049
      %v2051 = vsel %vm482, %v2049, %v2047
      %v2052 = vmul.f32 %v2051, %v491
      %v2053 = vmul.f32 %v2050, %v495
      %2054 = vset.pattern.permute.xlu0 78
      %2055 = vperm.xlu0 %2054, %v453
      %v2056 = vpop.permute.xlu0 %2055
      %v2058 = vmul.f32 %v2052, %v2056
      %v2059 = vmul.f32 %v2053, %v2056
      %v2060 = vadd.f32 %v2044, %v2058
      %v2061 = vadd.f32 %v2045, %v2059
      %2062 = vset.pattern.permute.xlu0 79
      %2063 = vperm.xlu0 %2062, %v453
      %v2064 = vpop.permute.xlu0 %2063
      %v2066 = vmul.f32 %v2012, %v2064
      %v2067 = vmul.f32 %v2013, %v2064
      %v2068 = vadd.f32 %v2060, %v2066
      %v2069 = vadd.f32 %v2061, %v2067
      %2070 = vrot.lane.b32.xlu0 %v2012, 127
      %v2071 = vpop.permute.xlu0 %2070
      %2072 = vrot.lane.b32.xlu0 %v2013, 127
      %v2073 = vpop.permute.xlu0 %2072
      %v2074 = vsel %vm519, %v2071, %v2073
      %v2075 = vsel %vm519, %v2073, %v2071
      %v2076 = vmul.f32 %v2074, %v528
      %v2077 = vmul.f32 %v2075, %v532
      %2078 = vset.pattern.permute.xlu0 80
      %2079 = vperm.xlu0 %2078, %v453
      %v2080 = vpop.permute.xlu0 %2079
      %v2082 = vmul.f32 %v2076, %v2080
      %v2083 = vmul.f32 %v2077, %v2080
      %v2084 = vadd.f32 %v2068, %v2082
      %v2085 = vadd.f32 %v2069, %v2083
      %2086 = vrot.lane.b32.xlu0 %v2012, 126
      %v2087 = vpop.permute.xlu0 %2086
      %2088 = vrot.lane.b32.xlu0 %v2013, 126
      %v2089 = vpop.permute.xlu0 %2088
      %v2090 = vsel %vm831, %v2087, %v2089
      %v2091 = vsel %vm831, %v2089, %v2087
      %v2092 = vmul.f32 %v2090, %v840
      %v2093 = vmul.f32 %v2091, %v844
      %2094 = vset.pattern.permute.xlu0 81
      %2095 = vperm.xlu0 %2094, %v453
      %v2096 = vpop.permute.xlu0 %2095
      %v2098 = vmul.f32 %v2092, %v2096
      %v2099 = vmul.f32 %v2093, %v2096
      %v2100 = vadd.f32 %v2084, %v2098
      %v2101 = vadd.f32 %v2085, %v2099
      %2102 = vrot.lane.b32.xlu0 %v2012, 125
      %v2103 = vpop.permute.xlu0 %2102
      %2104 = vrot.lane.b32.xlu0 %v2013, 125
      %v2105 = vpop.permute.xlu0 %2104
      %v2106 = vsel %vm1414, %v2103, %v2105
      %v2107 = vsel %vm1414, %v2105, %v2103
      %v2108 = vmul.f32 %v2106, %v1423
      %v2109 = vmul.f32 %v2107, %v1427
      %2110 = vset.pattern.permute.xlu0 82
      %2111 = vperm.xlu0 %2110, %v453
      %v2112 = vpop.permute.xlu0 %2111
      %v2114 = vmul.f32 %v2108, %v2112
      %v2115 = vmul.f32 %v2109, %v2112
      %v2116 = vadd.f32 %v2100, %v2114
      %v2117 = vadd.f32 %v2101, %v2115
      %2118 = vset.pattern.permute.xlu0 2
      %2119 = vperm.xlu0 %2118, %v647
      %v2120 = vpop.permute.xlu0 %2119
      %v2122 = vadd.f32 %v2116, %v2120
      %v2123 = vadd.f32 %v2117, %v2120
      %v2124 = vadd.f32 %v2122, %v1203
      %v2125 = vadd.f32 %v2123, %v1204
      %v2126 = vsub.f32 0.0, %v2124
      %v2127 = vsub.f32 0.0, %v2125
      %v2128 = vmul.f32 %v2126, 1.442695
      %v2129 = vpow.pop %v2128
      %v2130 = vmul.f32 %v2127, 1.442695
      %v2131 = vpow.pop %v2130
      %v2132 = vadd.f32 %v2129, 1.0
      %v2133 = vadd.f32 %v2131, 1.0
      %v2134 = vrcp.pop %v2132
      %v2135 = vmul.f32 1.0, %v2134
      %v2136 = vrcp.pop %v2133
      %v2137 = vmul.f32 1.0, %v2136
      %v2138 = vmul.f32 %v2124, %v2135
      %v2139 = vmul.f32 %v2125, %v2137
      %s2140 = scalar_lea.vmem %s3, 16
      %v2141 = vld [vmem:[%s2140] sm:$0xff]
      %s2142 = scalar_lea.vmem %s4, 16
      %v2143 = vld [vmem:[%s2142] sm:$0xff]
      %2145 = vset.pattern.permute.xlu0 0
      %2146 = vperm.xlu0 %2145, %v2143
      %v2147 = vpop.permute.xlu0 %2146
      %v2150 = vsel %vm662, %v2141, 0
      %2152 = vmatprep.subr.mxu0 %v2139
      %2153 = vmatpush1.msra.mxu0 %v2138
      %2154 = vmatprep.subr.mxu0 0.0
      %2155 = vmatpush1.msra.mxu0 0.0
      %2156 = vmatprep.subr.mxu0 0.0
      %2157 = vmatpush1.msra.mxu0 0.0
      %2158 = vmatprep.subr.mxu0 0.0
      %2159 = vmatpush1.msra.mxu0 0.0
      %2160 = vmatprep.subr.mxu0 0.0
      %2161 = vmatpush1.msra.mxu0 0.0
      %2162 = vmatprep.subr.mxu0 0.0
      %2163 = vmatpush1.msra.mxu0 0.0
      %2164 = vmatprep.subr.mxu0 0.0
      %2165 = vmatpush1.msra.mxu0 0.0
      %2166 = vmatprep.subr.mxu0 0.0
      %2167 = vmatpush1.msra.mxu0 0.0
      %2168 = vmatprep.subr.mxu0 0.0
      %2169 = vmatpush1.msra.mxu0 0.0
      %2170 = vmatprep.subr.mxu0 0.0
      %2171 = vmatpush1.msra.mxu0 0.0
      %2172 = vmatprep.subr.mxu0 0.0
      %2173 = vmatpush1.msra.mxu0 0.0
      %2174 = vmatprep.subr.mxu0 0.0
      %2175 = vmatpush1.msra.mxu0 0.0
      %2176 = vmatprep.subr.mxu0 0.0
      %2177 = vmatpush1.msra.mxu0 0.0
      %2178 = vmatprep.subr.mxu0 0.0
      %2179 = vmatpush1.msra.mxu0 0.0
      %2180 = vmatprep.subr.mxu0 0.0
      %2181 = vmatpush1.msra.mxu0 0.0
      %2182 = vmatprep.subr.mxu0 0.0
      %2183 = vmatpush1.msra.mxu0 0.0
      %2184 = vmatprep.subr.mxu0 0.0
      %2185 = vmatpush1.msra.mxu0 0.0
      %2186 = vmatprep.subr.mxu0 0.0
      %2187 = vmatpush1.msra.mxu0 0.0
      %2188 = vmatprep.subr.mxu0 0.0
      %2189 = vmatpush1.msra.mxu0 0.0
      %2190 = vmatprep.subr.mxu0 0.0
      %2191 = vmatpush1.msra.mxu0 0.0
      %2192 = vmatprep.subr.mxu0 0.0
      %2193 = vmatpush1.msra.mxu0 0.0
      %2194 = vmatprep.subr.mxu0 0.0
      %2195 = vmatpush1.msra.mxu0 0.0
      %2196 = vmatprep.subr.mxu0 0.0
      %2197 = vmatpush1.msra.mxu0 0.0
      %2198 = vmatprep.subr.mxu0 0.0
      %2199 = vmatpush1.msra.mxu0 0.0
      %2200 = vmatprep.subr.mxu0 0.0
      %2201 = vmatpush1.msra.mxu0 0.0
      %2202 = vmatprep.subr.mxu0 0.0
      %2203 = vmatpush1.msra.mxu0 0.0
      %2204 = vmatprep.subr.mxu0 0.0
      %2205 = vmatpush1.msra.mxu0 0.0
      %2206 = vmatprep.subr.mxu0 0.0
      %2207 = vmatpush1.msra.mxu0 0.0
      %2208 = vmatprep.subr.mxu0 0.0
      %2209 = vmatpush1.msra.mxu0 0.0
      %2210 = vmatprep.subr.mxu0 0.0
      %2211 = vmatpush1.msra.mxu0 0.0
      %2212 = vmatprep.subr.mxu0 0.0
      %2213 = vmatpush1.msra.mxu0 0.0
      %2214 = vmatprep.subr.mxu0 0.0
      %2215 = vmatpush1.msra.mxu0 0.0
      %2216 = vmatprep.mubr.f32.mxu0 0.0
      %2217 = vmatmul.mubr.f32.gmra.mrb[0].mxu0 %v2150
      %v2218 = vpop.f32.mrb[0].mxu0
      %v2219 = vadd.f32 %v2147, %v2218
      %v2220 = vpop.f32.mrb[0].mxu0
      %v2221 = vadd.f32 %v2147, %v2220
      %2222 = vdwg.mxu0
      %2223 = vrot.lane.b32.xlu0 %v2219, 5
      %v2224 = vpop.permute.xlu0 %2223
      %2225 = vrot.lane.b32.xlu0 %v2221, 5
      %v2226 = vpop.permute.xlu0 %2225
      %vm2227 = vcmp.lt.s32.totalorder %v459, 5
      %v2228 = vsel %vm2227, %v2224, %v2226
      %v2229 = vsel %vm2227, %v2226, %v2224
      %s2230 = scalar_lea.vmem %s8, 18
      %v2231 = vld [vmem:[%s2230] ss:$8 sm:$0x3]
      %v2233 = vlaneseq
      %v2234 = vshrl.u32 %v2233, 7
      %v2235 = vsub.s32 0, %v2234
      %v2236 = vrot.slane %v2231, %v2235
      %v2237 = vlaneseq
      %v2238 = vshrl.u32 %v2237, 7
      %v2239 = vsub.s32 1, %v2238
      %v2240 = vrot.slane %v2231, %v2239
      %v2243 = vmul.f32 %v2229, %v2236
      %v2244 = vmul.f32 %v2228, %v2240
      %2245 = vset.pattern.permute.xlu0 83
      %2246 = vperm.xlu0 %2245, %v453
      %v2247 = vpop.permute.xlu0 %2246
      %v2249 = vmul.f32 %v2243, %v2247
      %v2250 = vmul.f32 %v2244, %v2247
      %2251 = vrot.lane.b32.xlu0 %v2219, 4
      %v2252 = vpop.permute.xlu0 %2251
      %2253 = vrot.lane.b32.xlu0 %v2221, 4
      %v2254 = vpop.permute.xlu0 %2253
      %vm2255 = vcmp.lt.s32.totalorder %v459, 4
      %v2256 = vsel %vm2255, %v2252, %v2254
      %v2257 = vsel %vm2255, %v2254, %v2252
      %s2258 = scalar_lea.vmem %s8, 19
      %v2259 = vld [vmem:[%s2258] ss:$8 sm:$0x3]
      %v2261 = vlaneseq
      %v2262 = vshrl.u32 %v2261, 7
      %v2263 = vsub.s32 0, %v2262
      %v2264 = vrot.slane %v2259, %v2263
      %v2265 = vlaneseq
      %v2266 = vshrl.u32 %v2265, 7
      %v2267 = vsub.s32 1, %v2266
      %v2268 = vrot.slane %v2259, %v2267
      %v2271 = vmul.f32 %v2257, %v2264
      %v2272 = vmul.f32 %v2256, %v2268
      %2273 = vset.pattern.permute.xlu0 84
      %2274 = vperm.xlu0 %2273, %v453
      %v2275 = vpop.permute.xlu0 %2274
      %v2277 = vmul.f32 %v2271, %v2275
      %v2278 = vmul.f32 %v2272, %v2275
      %v2279 = vadd.f32 %v2249, %v2277
      %v2280 = vadd.f32 %v2250, %v2278
      %2281 = vrot.lane.b32.xlu0 %v2219, 3
      %v2282 = vpop.permute.xlu0 %2281
      %2283 = vrot.lane.b32.xlu0 %v2221, 3
      %v2284 = vpop.permute.xlu0 %2283
      %v2285 = vsel %vm1314, %v2282, %v2284
      %v2286 = vsel %vm1314, %v2284, %v2282
      %v2287 = vmul.f32 %v2286, %v1323
      %v2288 = vmul.f32 %v2285, %v1327
      %2289 = vset.pattern.permute.xlu0 85
      %2290 = vperm.xlu0 %2289, %v453
      %v2291 = vpop.permute.xlu0 %2290
      %v2293 = vmul.f32 %v2287, %v2291
      %v2294 = vmul.f32 %v2288, %v2291
      %v2295 = vadd.f32 %v2279, %v2293
      %v2296 = vadd.f32 %v2280, %v2294
      %2297 = vrot.lane.b32.xlu0 %v2219, 2
      %v2298 = vpop.permute.xlu0 %2297
      %2299 = vrot.lane.b32.xlu0 %v2221, 2
      %v2300 = vpop.permute.xlu0 %2299
      %v2301 = vsel %vm763, %v2298, %v2300
      %v2302 = vsel %vm763, %v2300, %v2298
      %v2303 = vmul.f32 %v2302, %v772
      %v2304 = vmul.f32 %v2301, %v776
      %2305 = vset.pattern.permute.xlu0 86
      %2306 = vperm.xlu0 %2305, %v453
      %v2307 = vpop.permute.xlu0 %2306
      %v2309 = vmul.f32 %v2303, %v2307
      %v2310 = vmul.f32 %v2304, %v2307
      %v2311 = vadd.f32 %v2295, %v2309
      %v2312 = vadd.f32 %v2296, %v2310
      %2313 = vrot.lane.b32.xlu0 %v2219, 1
      %v2314 = vpop.permute.xlu0 %2313
      %2315 = vrot.lane.b32.xlu0 %v2221, 1
      %v2316 = vpop.permute.xlu0 %2315
      %v2317 = vsel %vm482, %v2314, %v2316
      %v2318 = vsel %vm482, %v2316, %v2314
      %v2319 = vmul.f32 %v2318, %v491
      %v2320 = vmul.f32 %v2317, %v495
      %2321 = vset.pattern.permute.xlu0 87
      %2322 = vperm.xlu0 %2321, %v453
      %v2323 = vpop.permute.xlu0 %2322
      %v2325 = vmul.f32 %v2319, %v2323
      %v2326 = vmul.f32 %v2320, %v2323
      %v2327 = vadd.f32 %v2311, %v2325
      %v2328 = vadd.f32 %v2312, %v2326
      %2329 = vset.pattern.permute.xlu0 88
      %2330 = vperm.xlu0 %2329, %v453
      %v2331 = vpop.permute.xlu0 %2330
      %v2333 = vmul.f32 %v2219, %v2331
      %v2334 = vmul.f32 %v2221, %v2331
      %v2335 = vadd.f32 %v2327, %v2333
      %v2336 = vadd.f32 %v2328, %v2334
      %2337 = vrot.lane.b32.xlu0 %v2219, 127
      %v2338 = vpop.permute.xlu0 %2337
      %2339 = vrot.lane.b32.xlu0 %v2221, 127
      %v2340 = vpop.permute.xlu0 %2339
      %v2341 = vsel %vm519, %v2338, %v2340
      %v2342 = vsel %vm519, %v2340, %v2338
      %v2343 = vmul.f32 %v2341, %v528
      %v2344 = vmul.f32 %v2342, %v532
      %2345 = vset.pattern.permute.xlu0 89
      %2346 = vperm.xlu0 %2345, %v453
      %v2347 = vpop.permute.xlu0 %2346
      %v2349 = vmul.f32 %v2343, %v2347
      %v2350 = vmul.f32 %v2344, %v2347
      %v2351 = vadd.f32 %v2335, %v2349
      %v2352 = vadd.f32 %v2336, %v2350
      %2353 = vrot.lane.b32.xlu0 %v2219, 126
      %v2354 = vpop.permute.xlu0 %2353
      %2355 = vrot.lane.b32.xlu0 %v2221, 126
      %v2356 = vpop.permute.xlu0 %2355
      %v2357 = vsel %vm831, %v2354, %v2356
      %v2358 = vsel %vm831, %v2356, %v2354
      %v2359 = vmul.f32 %v2357, %v840
      %v2360 = vmul.f32 %v2358, %v844
      %2361 = vset.pattern.permute.xlu0 90
      %2362 = vperm.xlu0 %2361, %v453
      %v2363 = vpop.permute.xlu0 %2362
      %v2365 = vmul.f32 %v2359, %v2363
      %v2366 = vmul.f32 %v2360, %v2363
      %v2367 = vadd.f32 %v2351, %v2365
      %v2368 = vadd.f32 %v2352, %v2366
      %2369 = vrot.lane.b32.xlu0 %v2219, 125
      %v2370 = vpop.permute.xlu0 %2369
      %2371 = vrot.lane.b32.xlu0 %v2221, 125
      %v2372 = vpop.permute.xlu0 %2371
      %v2373 = vsel %vm1414, %v2370, %v2372
      %v2374 = vsel %vm1414, %v2372, %v2370
      %v2375 = vmul.f32 %v2373, %v1423
      %v2376 = vmul.f32 %v2374, %v1427
      %2377 = vset.pattern.permute.xlu0 91
      %2378 = vperm.xlu0 %2377, %v453
      %v2379 = vpop.permute.xlu0 %2378
      %v2381 = vmul.f32 %v2375, %v2379
      %v2382 = vmul.f32 %v2376, %v2379
      %v2383 = vadd.f32 %v2367, %v2381
      %v2384 = vadd.f32 %v2368, %v2382
      %2385 = vrot.lane.b32.xlu0 %v2219, 124
      %v2386 = vpop.permute.xlu0 %2385
      %2387 = vrot.lane.b32.xlu0 %v2221, 124
      %v2388 = vpop.permute.xlu0 %2387
      %vm2389 = vcmp.lt.s32.totalorder %v459, 124
      %v2390 = vsel %vm2389, %v2386, %v2388
      %v2391 = vsel %vm2389, %v2388, %v2386
      %s2392 = scalar_lea.vmem %s8, 35
      %v2393 = vld [vmem:[%s2392] ss:$8 sm:$0x3]
      %v2395 = vlaneseq
      %v2396 = vshrl.u32 %v2395, 7
      %v2397 = vsub.s32 0, %v2396
      %v2398 = vrot.slane %v2393, %v2397
      %v2399 = vlaneseq
      %v2400 = vshrl.u32 %v2399, 7
      %v2401 = vsub.s32 1, %v2400
      %v2402 = vrot.slane %v2393, %v2401
      %v2405 = vmul.f32 %v2390, %v2398
      %v2406 = vmul.f32 %v2391, %v2402
      %2407 = vset.pattern.permute.xlu0 92
      %2408 = vperm.xlu0 %2407, %v453
      %v2409 = vpop.permute.xlu0 %2408
      %v2411 = vmul.f32 %v2405, %v2409
      %v2412 = vmul.f32 %v2406, %v2409
      %v2413 = vadd.f32 %v2383, %v2411
      %v2414 = vadd.f32 %v2384, %v2412
      %2415 = vrot.lane.b32.xlu0 %v2219, 123
      %v2416 = vpop.permute.xlu0 %2415
      %2417 = vrot.lane.b32.xlu0 %v2221, 123
      %v2418 = vpop.permute.xlu0 %2417
      %vm2419 = vcmp.lt.s32.totalorder %v459, 123
      %v2420 = vsel %vm2419, %v2416, %v2418
      %v2421 = vsel %vm2419, %v2418, %v2416
      %s2422 = scalar_lea.vmem %s8, 36
      %v2423 = vld [vmem:[%s2422] ss:$8 sm:$0x3]
      %v2425 = vlaneseq
      %v2426 = vshrl.u32 %v2425, 7
      %v2427 = vsub.s32 0, %v2426
      %v2428 = vrot.slane %v2423, %v2427
      %v2429 = vlaneseq
      %v2430 = vshrl.u32 %v2429, 7
      %v2431 = vsub.s32 1, %v2430
      %v2432 = vrot.slane %v2423, %v2431
      %v2435 = vmul.f32 %v2420, %v2428
      %v2436 = vmul.f32 %v2421, %v2432
      %2437 = vset.pattern.permute.xlu0 93
      %2438 = vperm.xlu0 %2437, %v453
      %v2439 = vpop.permute.xlu0 %2438
      %v2441 = vmul.f32 %v2435, %v2439
      %v2442 = vmul.f32 %v2436, %v2439
      %v2443 = vadd.f32 %v2413, %v2441
      %v2444 = vadd.f32 %v2414, %v2442
      %2445 = vset.pattern.permute.xlu0 3
      %2446 = vperm.xlu0 %2445, %v647
      %v2447 = vpop.permute.xlu0 %2446
      %v2449 = vadd.f32 %v2443, %v2447
      %v2450 = vadd.f32 %v2444, %v2447
      %2451 = vrot.lane.b32.xlu0 %v2449, 80
      %v2452 = vpop.permute.xlu0 %2451
      %2453 = vrot.lane.b32.xlu0 %v2450, 80
      %v2454 = vpop.permute.xlu0 %2453
      %v2455 = vsel %vm1996, %v2452, %v2454
      %v2456 = vsel %vm1996, %v2454, %v2452
      %s2457 = scalar_lea.vmem %s7, 18
      %v2458 = vld [vmem:[%s2457] ss:$8 sm:$0x3]
      %v2460 = vlaneseq
      %v2461 = vshrl.u32 %v2460, 7
      %v2462 = vsub.s32 0, %v2461
      %v2463 = vrot.slane %v2458, %v2462
      %v2464 = vlaneseq
      %v2465 = vshrl.u32 %v2464, 7
      %v2466 = vsub.s32 1, %v2465
      %v2467 = vrot.slane %v2458, %v2466
      %v2470 = vmul.f32 %v2456, %v2463
      %v2471 = vmul.f32 %v2455, %v2467
      %2472 = vset.pattern.permute.xlu0 94
      %2473 = vperm.xlu0 %2472, %v453
      %v2474 = vpop.permute.xlu0 %2473
      %v2476 = vmul.f32 %v2470, %v2474
      %v2477 = vmul.f32 %v2471, %v2474
      %2478 = vrot.lane.b32.xlu0 %v2449, 64
      %v2479 = vpop.permute.xlu0 %2478
      %2480 = vrot.lane.b32.xlu0 %v2450, 64
      %v2481 = vpop.permute.xlu0 %2480
      %vm2482 = vcmp.lt.s32.totalorder %v459, 64
      %v2483 = vsel %vm2482, %v2479, %v2481
      %v2484 = vsel %vm2482, %v2481, %v2479
      %s2485 = scalar_lea.vmem %s7, 19
      %v2486 = vld [vmem:[%s2485] ss:$8 sm:$0x3]
      %v2488 = vlaneseq
      %v2489 = vshrl.u32 %v2488, 7
      %v2490 = vsub.s32 0, %v2489
      %v2491 = vrot.slane %v2486, %v2490
      %v2492 = vlaneseq
      %v2493 = vshrl.u32 %v2492, 7
      %v2494 = vsub.s32 1, %v2493
      %v2495 = vrot.slane %v2486, %v2494
      %v2498 = vmul.f32 %v2484, %v2491
      %v2499 = vmul.f32 %v2483, %v2495
      %2500 = vset.pattern.permute.xlu0 95
      %2501 = vperm.xlu0 %2500, %v453
      %v2502 = vpop.permute.xlu0 %2501
      %v2504 = vmul.f32 %v2498, %v2502
      %v2505 = vmul.f32 %v2499, %v2502
      %v2506 = vadd.f32 %v2476, %v2504
      %v2507 = vadd.f32 %v2477, %v2505
      %2508 = vrot.lane.b32.xlu0 %v2449, 48
      %v2509 = vpop.permute.xlu0 %2508
      %2510 = vrot.lane.b32.xlu0 %v2450, 48
      %v2511 = vpop.permute.xlu0 %2510
      %v2512 = vsel %vm1292, %v2509, %v2511
      %v2513 = vsel %vm1292, %v2511, %v2509
      %v2514 = vmul.f32 %v2513, %v1301
      %v2515 = vmul.f32 %v2512, %v1305
      %2516 = vset.pattern.permute.xlu0 96
      %2517 = vperm.xlu0 %2516, %v453
      %v2518 = vpop.permute.xlu0 %2517
      %v2520 = vmul.f32 %v2514, %v2518
      %v2521 = vmul.f32 %v2515, %v2518
      %v2522 = vadd.f32 %v2506, %v2520
      %v2523 = vadd.f32 %v2507, %v2521
      %2524 = vrot.lane.b32.xlu0 %v2449, 32
      %v2525 = vpop.permute.xlu0 %2524
      %2526 = vrot.lane.b32.xlu0 %v2450, 32
      %v2527 = vpop.permute.xlu0 %2526
      %v2528 = vsel %vm741, %v2525, %v2527
      %v2529 = vsel %vm741, %v2527, %v2525
      %v2530 = vmul.f32 %v2529, %v750
      %v2531 = vmul.f32 %v2528, %v754
      %2532 = vset.pattern.permute.xlu0 97
      %2533 = vperm.xlu0 %2532, %v453
      %v2534 = vpop.permute.xlu0 %2533
      %v2536 = vmul.f32 %v2530, %v2534
      %v2537 = vmul.f32 %v2531, %v2534
      %v2538 = vadd.f32 %v2522, %v2536
      %v2539 = vadd.f32 %v2523, %v2537
      %2540 = vrot.lane.b32.xlu0 %v2449, 16
      %v2541 = vpop.permute.xlu0 %2540
      %2542 = vrot.lane.b32.xlu0 %v2450, 16
      %v2543 = vpop.permute.xlu0 %2542
      %v2544 = vsel %vm460, %v2541, %v2543
      %v2545 = vsel %vm460, %v2543, %v2541
      %v2546 = vmul.f32 %v2545, %v469
      %v2547 = vmul.f32 %v2544, %v473
      %2548 = vset.pattern.permute.xlu0 98
      %2549 = vperm.xlu0 %2548, %v453
      %v2550 = vpop.permute.xlu0 %2549
      %v2552 = vmul.f32 %v2546, %v2550
      %v2553 = vmul.f32 %v2547, %v2550
      %v2554 = vadd.f32 %v2538, %v2552
      %v2555 = vadd.f32 %v2539, %v2553
      %2556 = vset.pattern.permute.xlu0 99
      %2557 = vperm.xlu0 %2556, %v453
      %v2558 = vpop.permute.xlu0 %2557
      %v2560 = vmul.f32 %v2449, %v2558
      %v2561 = vmul.f32 %v2450, %v2558
      %v2562 = vadd.f32 %v2554, %v2560
      %v2563 = vadd.f32 %v2555, %v2561
      %2564 = vrot.lane.b32.xlu0 %v2449, 112
      %v2565 = vpop.permute.xlu0 %2564
      %2566 = vrot.lane.b32.xlu0 %v2450, 112
      %v2567 = vpop.permute.xlu0 %2566
      %v2568 = vsel %vm589, %v2565, %v2567
      %v2569 = vsel %vm589, %v2567, %v2565
      %v2570 = vmul.f32 %v2568, %v598
      %v2571 = vmul.f32 %v2569, %v602
      %2572 = vset.pattern.permute.xlu0 100
      %2573 = vperm.xlu0 %2572, %v453
      %v2574 = vpop.permute.xlu0 %2573
      %v2576 = vmul.f32 %v2570, %v2574
      %v2577 = vmul.f32 %v2571, %v2574
      %v2578 = vadd.f32 %v2562, %v2576
      %v2579 = vadd.f32 %v2563, %v2577
      %2580 = vrot.lane.b32.xlu0 %v2449, 96
      %v2581 = vpop.permute.xlu0 %2580
      %2582 = vrot.lane.b32.xlu0 %v2450, 96
      %v2583 = vpop.permute.xlu0 %2582
      %v2584 = vsel %vm1093, %v2581, %v2583
      %v2585 = vsel %vm1093, %v2583, %v2581
      %v2586 = vmul.f32 %v2584, %v1102
      %v2587 = vmul.f32 %v2585, %v1106
      %2588 = vset.pattern.permute.xlu0 101
      %2589 = vperm.xlu0 %2588, %v453
      %v2590 = vpop.permute.xlu0 %2589
      %v2592 = vmul.f32 %v2586, %v2590
      %v2593 = vmul.f32 %v2587, %v2590
      %v2594 = vadd.f32 %v2578, %v2592
      %v2595 = vadd.f32 %v2579, %v2593
      %v2596 = vmul.f32 %v2455, %v2005
      %v2597 = vmul.f32 %v2456, %v2009
      %2598 = vset.pattern.permute.xlu0 102
      %2599 = vperm.xlu0 %2598, %v453
      %v2600 = vpop.permute.xlu0 %2599
      %v2602 = vmul.f32 %v2596, %v2600
      %v2603 = vmul.f32 %v2597, %v2600
      %v2604 = vadd.f32 %v2594, %v2602
      %v2605 = vadd.f32 %v2595, %v2603
      %s2606 = scalar_lea.vmem %s7, 35
      %v2607 = vld [vmem:[%s2606] ss:$8 sm:$0x3]
      %v2609 = vlaneseq
      %v2610 = vshrl.u32 %v2609, 7
      %v2611 = vsub.s32 0, %v2610
      %v2612 = vrot.slane %v2607, %v2611
      %v2613 = vlaneseq
      %v2614 = vshrl.u32 %v2613, 7
      %v2615 = vsub.s32 1, %v2614
      %v2616 = vrot.slane %v2607, %v2615
      %v2619 = vmul.f32 %v2483, %v2612
      %v2620 = vmul.f32 %v2484, %v2616
      %2621 = vset.pattern.permute.xlu0 103
      %2622 = vperm.xlu0 %2621, %v453
      %v2623 = vpop.permute.xlu0 %2622
      %v2625 = vmul.f32 %v2619, %v2623
      %v2626 = vmul.f32 %v2620, %v2623
      %v2627 = vadd.f32 %v2604, %v2625
      %v2628 = vadd.f32 %v2605, %v2626
      %s2629 = scalar_lea.vmem %s7, 36
      %v2630 = vld [vmem:[%s2629] ss:$8 sm:$0x3]
      %v2632 = vlaneseq
      %v2633 = vshrl.u32 %v2632, 7
      %v2634 = vsub.s32 0, %v2633
      %v2635 = vrot.slane %v2630, %v2634
      %v2636 = vlaneseq
      %v2637 = vshrl.u32 %v2636, 7
      %v2638 = vsub.s32 1, %v2637
      %v2639 = vrot.slane %v2630, %v2638
      %v2642 = vmul.f32 %v2512, %v2635
      %v2643 = vmul.f32 %v2513, %v2639
      %2644 = vset.pattern.permute.xlu0 104
      %2645 = vperm.xlu0 %2644, %v453
      %v2646 = vpop.permute.xlu0 %2645
      %v2648 = vmul.f32 %v2642, %v2646
      %v2649 = vmul.f32 %v2643, %v2646
      %v2650 = vadd.f32 %v2627, %v2648
      %v2651 = vadd.f32 %v2628, %v2649
      %2652 = vset.pattern.permute.xlu0 4
      %2653 = vperm.xlu0 %2652, %v647
      %v2654 = vpop.permute.xlu0 %2653
      %v2656 = vadd.f32 %v2650, %v2654
      %v2657 = vadd.f32 %v2651, %v2654
      %v2658 = vadd.f32 %v2656, %v2138
      %v2659 = vadd.f32 %v2657, %v2139
      %v2660 = vsub.f32 0.0, %v2658
      %v2661 = vsub.f32 0.0, %v2659
      %v2662 = vmul.f32 %v2660, 1.442695
      %v2663 = vpow.pop %v2662
      %v2664 = vmul.f32 %v2661, 1.442695
      %v2665 = vpow.pop %v2664
      %v2666 = vadd.f32 %v2663, 1.0
      %v2667 = vadd.f32 %v2665, 1.0
      %v2668 = vrcp.pop %v2666
      %v2669 = vmul.f32 1.0, %v2668
      %v2670 = vrcp.pop %v2667
      %v2671 = vmul.f32 1.0, %v2670
      %v2672 = vmul.f32 %v2658, %v2669
      %v2673 = vmul.f32 %v2659, %v2671
      %s2674 = scalar_lea.vmem %s3, 24
      %v2675 = vld [vmem:[%s2674] sm:$0xff]
      %s2676 = scalar_lea.vmem %s4, 24
      %v2677 = vld [vmem:[%s2676] sm:$0xff]
      %2679 = vset.pattern.permute.xlu0 0
      %2680 = vperm.xlu0 %2679, %v2677
      %v2681 = vpop.permute.xlu0 %2680
      %v2684 = vsel %vm662, %v2675, 0
      %2686 = vmatprep.subr.mxu0 %v2673
      %2687 = vmatpush1.msra.mxu0 %v2672
      %2688 = vmatprep.subr.mxu0 0.0
      %2689 = vmatpush1.msra.mxu0 0.0
      %2690 = vmatprep.subr.mxu0 0.0
      %2691 = vmatpush1.msra.mxu0 0.0
      %2692 = vmatprep.subr.mxu0 0.0
      %2693 = vmatpush1.msra.mxu0 0.0
      %2694 = vmatprep.subr.mxu0 0.0
      %2695 = vmatpush1.msra.mxu0 0.0
      %2696 = vmatprep.subr.mxu0 0.0
      %2697 = vmatpush1.msra.mxu0 0.0
      %2698 = vmatprep.subr.mxu0 0.0
      %2699 = vmatpush1.msra.mxu0 0.0
      %2700 = vmatprep.subr.mxu0 0.0
      %2701 = vmatpush1.msra.mxu0 0.0
      %2702 = vmatprep.subr.mxu0 0.0
      %2703 = vmatpush1.msra.mxu0 0.0
      %2704 = vmatprep.subr.mxu0 0.0
      %2705 = vmatpush1.msra.mxu0 0.0
      %2706 = vmatprep.subr.mxu0 0.0
      %2707 = vmatpush1.msra.mxu0 0.0
      %2708 = vmatprep.subr.mxu0 0.0
      %2709 = vmatpush1.msra.mxu0 0.0
      %2710 = vmatprep.subr.mxu0 0.0
      %2711 = vmatpush1.msra.mxu0 0.0
      %2712 = vmatprep.subr.mxu0 0.0
      %2713 = vmatpush1.msra.mxu0 0.0
      %2714 = vmatprep.subr.mxu0 0.0
      %2715 = vmatpush1.msra.mxu0 0.0
      %2716 = vmatprep.subr.mxu0 0.0
      %2717 = vmatpush1.msra.mxu0 0.0
      %2718 = vmatprep.subr.mxu0 0.0
      %2719 = vmatpush1.msra.mxu0 0.0
      %2720 = vmatprep.subr.mxu0 0.0
      %2721 = vmatpush1.msra.mxu0 0.0
      %2722 = vmatprep.subr.mxu0 0.0
      %2723 = vmatpush1.msra.mxu0 0.0
      %2724 = vmatprep.subr.mxu0 0.0
      %2725 = vmatpush1.msra.mxu0 0.0
      %2726 = vmatprep.subr.mxu0 0.0
      %2727 = vmatpush1.msra.mxu0 0.0
      %2728 = vmatprep.subr.mxu0 0.0
      %2729 = vmatpush1.msra.mxu0 0.0
      %2730 = vmatprep.subr.mxu0 0.0
      %2731 = vmatpush1.msra.mxu0 0.0
      %2732 = vmatprep.subr.mxu0 0.0
      %2733 = vmatpush1.msra.mxu0 0.0
      %2734 = vmatprep.subr.mxu0 0.0
      %2735 = vmatpush1.msra.mxu0 0.0
      %2736 = vmatprep.subr.mxu0 0.0
      %2737 = vmatpush1.msra.mxu0 0.0
      %2738 = vmatprep.subr.mxu0 0.0
      %2739 = vmatpush1.msra.mxu0 0.0
      %2740 = vmatprep.subr.mxu0 0.0
      %2741 = vmatpush1.msra.mxu0 0.0
      %2742 = vmatprep.subr.mxu0 0.0
      %2743 = vmatpush1.msra.mxu0 0.0
      %2744 = vmatprep.subr.mxu0 0.0
      %2745 = vmatpush1.msra.mxu0 0.0
      %2746 = vmatprep.subr.mxu0 0.0
      %2747 = vmatpush1.msra.mxu0 0.0
      %2748 = vmatprep.subr.mxu0 0.0
      %2749 = vmatpush1.msra.mxu0 0.0
      %2750 = vmatprep.mubr.f32.mxu0 0.0
      %2751 = vmatmul.mubr.f32.gmra.mrb[0].mxu0 %v2684
      %v2752 = vpop.f32.mrb[0].mxu0
      %v2753 = vadd.f32 %v2681, %v2752
      %v2754 = vpop.f32.mrb[0].mxu0
      %v2755 = vadd.f32 %v2681, %v2754
      %2756 = vdwg.mxu0
      %2757 = vrot.lane.b32.xlu0 %v2753, 10
      %v2758 = vpop.permute.xlu0 %2757
      %2759 = vrot.lane.b32.xlu0 %v2755, 10
      %v2760 = vpop.permute.xlu0 %2759
      %vm2761 = vcmp.lt.s32.totalorder %v459, 10
      %v2762 = vsel %vm2761, %v2758, %v2760
      %v2763 = vsel %vm2761, %v2760, %v2758
      %s2764 = scalar_lea.vmem %s8, 5
      %v2765 = vld [vmem:[%s2764] ss:$8 sm:$0x3]
      %v2767 = vlaneseq
      %v2768 = vshrl.u32 %v2767, 7
      %v2769 = vsub.s32 0, %v2768
      %v2770 = vrot.slane %v2765, %v2769
      %v2771 = vlaneseq
      %v2772 = vshrl.u32 %v2771, 7
      %v2773 = vsub.s32 1, %v2772
      %v2774 = vrot.slane %v2765, %v2773
      %v2777 = vmul.f32 %v2763, %v2770
      %v2778 = vmul.f32 %v2762, %v2774
      %2779 = vset.pattern.permute.xlu0 105
      %2780 = vperm.xlu0 %2779, %v453
      %v2781 = vpop.permute.xlu0 %2780
      %v2783 = vmul.f32 %v2777, %v2781
      %v2784 = vmul.f32 %v2778, %v2781
      %2785 = vrot.lane.b32.xlu0 %v2753, 9
      %v2786 = vpop.permute.xlu0 %2785
      %2787 = vrot.lane.b32.xlu0 %v2755, 9
      %v2788 = vpop.permute.xlu0 %2787
      %vm2789 = vcmp.lt.s32.totalorder %v459, 9
      %v2790 = vsel %vm2789, %v2786, %v2788
      %v2791 = vsel %vm2789, %v2788, %v2786
      %s2792 = scalar_lea.vmem %s8, 6
      %v2793 = vld [vmem:[%s2792] ss:$8 sm:$0x3]
      %v2795 = vlaneseq
      %v2796 = vshrl.u32 %v2795, 7
      %v2797 = vsub.s32 0, %v2796
      %v2798 = vrot.slane %v2793, %v2797
      %v2799 = vlaneseq
      %v2800 = vshrl.u32 %v2799, 7
      %v2801 = vsub.s32 1, %v2800
      %v2802 = vrot.slane %v2793, %v2801
      %v2805 = vmul.f32 %v2791, %v2798
      %v2806 = vmul.f32 %v2790, %v2802
      %2807 = vset.pattern.permute.xlu0 106
      %2808 = vperm.xlu0 %2807, %v453
      %v2809 = vpop.permute.xlu0 %2808
      %v2811 = vmul.f32 %v2805, %v2809
      %v2812 = vmul.f32 %v2806, %v2809
      %v2813 = vadd.f32 %v2783, %v2811
      %v2814 = vadd.f32 %v2784, %v2812
      %2815 = vrot.lane.b32.xlu0 %v2753, 8
      %v2816 = vpop.permute.xlu0 %2815
      %2817 = vrot.lane.b32.xlu0 %v2755, 8
      %v2818 = vpop.permute.xlu0 %2817
      %vm2819 = vcmp.lt.s32.totalorder %v459, 8
      %v2820 = vsel %vm2819, %v2816, %v2818
      %v2821 = vsel %vm2819, %v2818, %v2816
      %s2822 = scalar_lea.vmem %s8, 7
      %v2823 = vld [vmem:[%s2822] ss:$8 sm:$0x3]
      %v2825 = vlaneseq
      %v2826 = vshrl.u32 %v2825, 7
      %v2827 = vsub.s32 0, %v2826
      %v2828 = vrot.slane %v2823, %v2827
      %v2829 = vlaneseq
      %v2830 = vshrl.u32 %v2829, 7
      %v2831 = vsub.s32 1, %v2830
      %v2832 = vrot.slane %v2823, %v2831
      %v2835 = vmul.f32 %v2821, %v2828
      %v2836 = vmul.f32 %v2820, %v2832
      %2837 = vset.pattern.permute.xlu0 107
      %2838 = vperm.xlu0 %2837, %v453
      %v2839 = vpop.permute.xlu0 %2838
      %v2841 = vmul.f32 %v2835, %v2839
      %v2842 = vmul.f32 %v2836, %v2839
      %v2843 = vadd.f32 %v2813, %v2841
      %v2844 = vadd.f32 %v2814, %v2842
      %2845 = vrot.lane.b32.xlu0 %v2753, 7
      %v2846 = vpop.permute.xlu0 %2845
      %2847 = vrot.lane.b32.xlu0 %v2755, 7
      %v2848 = vpop.permute.xlu0 %2847
      %vm2849 = vcmp.lt.s32.totalorder %v459, 7
      %v2850 = vsel %vm2849, %v2846, %v2848
      %v2851 = vsel %vm2849, %v2848, %v2846
      %s2852 = scalar_lea.vmem %s8, 16
      %v2853 = vld [vmem:[%s2852] ss:$8 sm:$0x3]
      %v2855 = vlaneseq
      %v2856 = vshrl.u32 %v2855, 7
      %v2857 = vsub.s32 0, %v2856
      %v2858 = vrot.slane %v2853, %v2857
      %v2859 = vlaneseq
      %v2860 = vshrl.u32 %v2859, 7
      %v2861 = vsub.s32 1, %v2860
      %v2862 = vrot.slane %v2853, %v2861
      %v2865 = vmul.f32 %v2851, %v2858
      %v2866 = vmul.f32 %v2850, %v2862
      %2867 = vset.pattern.permute.xlu0 108
      %2868 = vperm.xlu0 %2867, %v453
      %v2869 = vpop.permute.xlu0 %2868
      %v2871 = vmul.f32 %v2865, %v2869
      %v2872 = vmul.f32 %v2866, %v2869
      %v2873 = vadd.f32 %v2843, %v2871
      %v2874 = vadd.f32 %v2844, %v2872
      %2875 = vrot.lane.b32.xlu0 %v2753, 6
      %v2876 = vpop.permute.xlu0 %2875
      %2877 = vrot.lane.b32.xlu0 %v2755, 6
      %v2878 = vpop.permute.xlu0 %2877
      %vm2879 = vcmp.lt.s32.totalorder %v459, 6
      %v2880 = vsel %vm2879, %v2876, %v2878
      %v2881 = vsel %vm2879, %v2878, %v2876
      %s2882 = scalar_lea.vmem %s8, 17
      %v2883 = vld [vmem:[%s2882] ss:$8 sm:$0x3]
      %v2885 = vlaneseq
      %v2886 = vshrl.u32 %v2885, 7
      %v2887 = vsub.s32 0, %v2886
      %v2888 = vrot.slane %v2883, %v2887
      %v2889 = vlaneseq
      %v2890 = vshrl.u32 %v2889, 7
      %v2891 = vsub.s32 1, %v2890
      %v2892 = vrot.slane %v2883, %v2891
      %v2895 = vmul.f32 %v2881, %v2888
      %v2896 = vmul.f32 %v2880, %v2892
      %2897 = vset.pattern.permute.xlu0 109
      %2898 = vperm.xlu0 %2897, %v453
      %v2899 = vpop.permute.xlu0 %2898
      %v2901 = vmul.f32 %v2895, %v2899
      %v2902 = vmul.f32 %v2896, %v2899
      %v2903 = vadd.f32 %v2873, %v2901
      %v2904 = vadd.f32 %v2874, %v2902
      %2905 = vrot.lane.b32.xlu0 %v2753, 5
      %v2906 = vpop.permute.xlu0 %2905
      %2907 = vrot.lane.b32.xlu0 %v2755, 5
      %v2908 = vpop.permute.xlu0 %2907
      %v2909 = vsel %vm2227, %v2906, %v2908
      %v2910 = vsel %vm2227, %v2908, %v2906
      %v2911 = vmul.f32 %v2910, %v2236
      %v2912 = vmul.f32 %v2909, %v2240
      %2913 = vset.pattern.permute.xlu0 110
      %2914 = vperm.xlu0 %2913, %v453
      %v2915 = vpop.permute.xlu0 %2914
      %v2917 = vmul.f32 %v2911, %v2915
      %v2918 = vmul.f32 %v2912, %v2915
      %v2919 = vadd.f32 %v2903, %v2917
      %v2920 = vadd.f32 %v2904, %v2918
      %2921 = vrot.lane.b32.xlu0 %v2753, 4
      %v2922 = vpop.permute.xlu0 %2921
      %2923 = vrot.lane.b32.xlu0 %v2755, 4
      %v2924 = vpop.permute.xlu0 %2923
      %v2925 = vsel %vm2255, %v2922, %v2924
      %v2926 = vsel %vm2255, %v2924, %v2922
      %v2927 = vmul.f32 %v2926, %v2264
      %v2928 = vmul.f32 %v2925, %v2268
      %2929 = vset.pattern.permute.xlu0 111
      %2930 = vperm.xlu0 %2929, %v453
      %v2931 = vpop.permute.xlu0 %2930
      %v2933 = vmul.f32 %v2927, %v2931
      %v2934 = vmul.f32 %v2928, %v2931
      %v2935 = vadd.f32 %v2919, %v2933
      %v2936 = vadd.f32 %v2920, %v2934
      %2937 = vrot.lane.b32.xlu0 %v2753, 3
      %v2938 = vpop.permute.xlu0 %2937
      %2939 = vrot.lane.b32.xlu0 %v2755, 3
      %v2940 = vpop.permute.xlu0 %2939
      %v2941 = vsel %vm1314, %v2938, %v2940
      %v2942 = vsel %vm1314, %v2940, %v2938
      %v2943 = vmul.f32 %v2942, %v1323
      %v2944 = vmul.f32 %v2941, %v1327
      %2945 = vset.pattern.permute.xlu0 112
      %2946 = vperm.xlu0 %2945, %v453
      %v2947 = vpop.permute.xlu0 %2946
      %v2949 = vmul.f32 %v2943, %v2947
      %v2950 = vmul.f32 %v2944, %v2947
      %v2951 = vadd.f32 %v2935, %v2949
      %v2952 = vadd.f32 %v2936, %v2950
      %2953 = vrot.lane.b32.xlu0 %v2753, 2
      %v2954 = vpop.permute.xlu0 %2953
      %2955 = vrot.lane.b32.xlu0 %v2755, 2
      %v2956 = vpop.permute.xlu0 %2955
      %v2957 = vsel %vm763, %v2954, %v2956
      %v2958 = vsel %vm763, %v2956, %v2954
      %v2959 = vmul.f32 %v2958, %v772
      %v2960 = vmul.f32 %v2957, %v776
      %2961 = vset.pattern.permute.xlu0 113
      %2962 = vperm.xlu0 %2961, %v453
      %v2963 = vpop.permute.xlu0 %2962
      %v2965 = vmul.f32 %v2959, %v2963
      %v2966 = vmul.f32 %v2960, %v2963
      %v2967 = vadd.f32 %v2951, %v2965
      %v2968 = vadd.f32 %v2952, %v2966
      %2969 = vrot.lane.b32.xlu0 %v2753, 1
      %v2970 = vpop.permute.xlu0 %2969
      %2971 = vrot.lane.b32.xlu0 %v2755, 1
      %v2972 = vpop.permute.xlu0 %2971
      %v2973 = vsel %vm482, %v2970, %v2972
      %v2974 = vsel %vm482, %v2972, %v2970
      %v2975 = vmul.f32 %v2974, %v491
      %v2976 = vmul.f32 %v2973, %v495
      %2977 = vset.pattern.permute.xlu0 114
      %2978 = vperm.xlu0 %2977, %v453
      %v2979 = vpop.permute.xlu0 %2978
      %v2981 = vmul.f32 %v2975, %v2979
      %v2982 = vmul.f32 %v2976, %v2979
      %v2983 = vadd.f32 %v2967, %v2981
      %v2984 = vadd.f32 %v2968, %v2982
      %2985 = vset.pattern.permute.xlu0 115
      %2986 = vperm.xlu0 %2985, %v453
      %v2987 = vpop.permute.xlu0 %2986
      %v2989 = vmul.f32 %v2753, %v2987
      %v2990 = vmul.f32 %v2755, %v2987
      %v2991 = vadd.f32 %v2983, %v2989
      %v2992 = vadd.f32 %v2984, %v2990
      %2993 = vrot.lane.b32.xlu0 %v2753, 127
      %v2994 = vpop.permute.xlu0 %2993
      %2995 = vrot.lane.b32.xlu0 %v2755, 127
      %v2996 = vpop.permute.xlu0 %2995
      %v2997 = vsel %vm519, %v2994, %v2996
      %v2998 = vsel %vm519, %v2996, %v2994
      %v2999 = vmul.f32 %v2997, %v528
      %v3000 = vmul.f32 %v2998, %v532
      %3001 = vset.pattern.permute.xlu0 116
      %3002 = vperm.xlu0 %3001, %v453
      %v3003 = vpop.permute.xlu0 %3002
      %v3005 = vmul.f32 %v2999, %v3003
      %v3006 = vmul.f32 %v3000, %v3003
      %v3007 = vadd.f32 %v2991, %v3005
      %v3008 = vadd.f32 %v2992, %v3006
      %3009 = vrot.lane.b32.xlu0 %v2753, 126
      %v3010 = vpop.permute.xlu0 %3009
      %3011 = vrot.lane.b32.xlu0 %v2755, 126
      %v3012 = vpop.permute.xlu0 %3011
      %v3013 = vsel %vm831, %v3010, %v3012
      %v3014 = vsel %vm831, %v3012, %v3010
      %v3015 = vmul.f32 %v3013, %v840
      %v3016 = vmul.f32 %v3014, %v844
      %3017 = vset.pattern.permute.xlu0 117
      %3018 = vperm.xlu0 %3017, %v453
      %v3019 = vpop.permute.xlu0 %3018
      %v3021 = vmul.f32 %v3015, %v3019
      %v3022 = vmul.f32 %v3016, %v3019
      %v3023 = vadd.f32 %v3007, %v3021
      %v3024 = vadd.f32 %v3008, %v3022
      %3025 = vrot.lane.b32.xlu0 %v2753, 125
      %v3026 = vpop.permute.xlu0 %3025
      %3027 = vrot.lane.b32.xlu0 %v2755, 125
      %v3028 = vpop.permute.xlu0 %3027
      %v3029 = vsel %vm1414, %v3026, %v3028
      %v3030 = vsel %vm1414, %v3028, %v3026
      %v3031 = vmul.f32 %v3029, %v1423
      %v3032 = vmul.f32 %v3030, %v1427
      %3033 = vset.pattern.permute.xlu0 118
      %3034 = vperm.xlu0 %3033, %v453
      %v3035 = vpop.permute.xlu0 %3034
      %v3037 = vmul.f32 %v3031, %v3035
      %v3038 = vmul.f32 %v3032, %v3035
      %v3039 = vadd.f32 %v3023, %v3037
      %v3040 = vadd.f32 %v3024, %v3038
      %3041 = vrot.lane.b32.xlu0 %v2753, 124
      %v3042 = vpop.permute.xlu0 %3041
      %3043 = vrot.lane.b32.xlu0 %v2755, 124
      %v3044 = vpop.permute.xlu0 %3043
      %v3045 = vsel %vm2389, %v3042, %v3044
      %v3046 = vsel %vm2389, %v3044, %v3042
      %v3047 = vmul.f32 %v3045, %v2398
      %v3048 = vmul.f32 %v3046, %v2402
      %3049 = vset.pattern.permute.xlu0 119
      %3050 = vperm.xlu0 %3049, %v453
      %v3051 = vpop.permute.xlu0 %3050
      %v3053 = vmul.f32 %v3047, %v3051
      %v3054 = vmul.f32 %v3048, %v3051
      %v3055 = vadd.f32 %v3039, %v3053
      %v3056 = vadd.f32 %v3040, %v3054
      %3057 = vrot.lane.b32.xlu0 %v2753, 123
      %v3058 = vpop.permute.xlu0 %3057
      %3059 = vrot.lane.b32.xlu0 %v2755, 123
      %v3060 = vpop.permute.xlu0 %3059
      %v3061 = vsel %vm2419, %v3058, %v3060
      %v3062 = vsel %vm2419, %v3060, %v3058
      %v3063 = vmul.f32 %v3061, %v2428
      %v3064 = vmul.f32 %v3062, %v2432
      %3065 = vset.pattern.permute.xlu0 120
      %3066 = vperm.xlu0 %3065, %v453
      %v3067 = vpop.permute.xlu0 %3066
      %v3069 = vmul.f32 %v3063, %v3067
      %v3070 = vmul.f32 %v3064, %v3067
      %v3071 = vadd.f32 %v3055, %v3069
      %v3072 = vadd.f32 %v3056, %v3070
      %3073 = vrot.lane.b32.xlu0 %v2753, 122
      %v3074 = vpop.permute.xlu0 %3073
      %3075 = vrot.lane.b32.xlu0 %v2755, 122
      %v3076 = vpop.permute.xlu0 %3075
      %vm3077 = vcmp.lt.s32.totalorder %v459, 122
      %v3078 = vsel %vm3077, %v3074, %v3076
      %v3079 = vsel %vm3077, %v3076, %v3074
      %s3080 = scalar_lea.vmem %s8, 37
      %v3081 = vld [vmem:[%s3080] ss:$8 sm:$0x3]
      %v3083 = vlaneseq
      %v3084 = vshrl.u32 %v3083, 7
      %v3085 = vsub.s32 0, %v3084
      %v3086 = vrot.slane %v3081, %v3085
      %v3087 = vlaneseq
      %v3088 = vshrl.u32 %v3087, 7
      %v3089 = vsub.s32 1, %v3088
      %v3090 = vrot.slane %v3081, %v3089
      %v3093 = vmul.f32 %v3078, %v3086
      %v3094 = vmul.f32 %v3079, %v3090
      %3095 = vset.pattern.permute.xlu0 121
      %3096 = vperm.xlu0 %3095, %v453
      %v3097 = vpop.permute.xlu0 %3096
      %v3099 = vmul.f32 %v3093, %v3097
      %v3100 = vmul.f32 %v3094, %v3097
      %v3101 = vadd.f32 %v3071, %v3099
      %v3102 = vadd.f32 %v3072, %v3100
      %3103 = vrot.lane.b32.xlu0 %v2753, 121
      %v3104 = vpop.permute.xlu0 %3103
      %3105 = vrot.lane.b32.xlu0 %v2755, 121
      %v3106 = vpop.permute.xlu0 %3105
      %vm3107 = vcmp.lt.s32.totalorder %v459, 121
      %v3108 = vsel %vm3107, %v3104, %v3106
      %v3109 = vsel %vm3107, %v3106, %v3104
      %s3110 = scalar_lea.vmem %s8, 38
      %v3111 = vld [vmem:[%s3110] ss:$8 sm:$0x3]
      %v3113 = vlaneseq
      %v3114 = vshrl.u32 %v3113, 7
      %v3115 = vsub.s32 0, %v3114
      %v3116 = vrot.slane %v3111, %v3115
      %v3117 = vlaneseq
      %v3118 = vshrl.u32 %v3117, 7
      %v3119 = vsub.s32 1, %v3118
      %v3120 = vrot.slane %v3111, %v3119
      %v3123 = vmul.f32 %v3108, %v3116
      %v3124 = vmul.f32 %v3109, %v3120
      %3125 = vset.pattern.permute.xlu0 122
      %3126 = vperm.xlu0 %3125, %v453
      %v3127 = vpop.permute.xlu0 %3126
      %v3129 = vmul.f32 %v3123, %v3127
      %v3130 = vmul.f32 %v3124, %v3127
      %v3131 = vadd.f32 %v3101, %v3129
      %v3132 = vadd.f32 %v3102, %v3130
      %3133 = vrot.lane.b32.xlu0 %v2753, 120
      %v3134 = vpop.permute.xlu0 %3133
      %3135 = vrot.lane.b32.xlu0 %v2755, 120
      %v3136 = vpop.permute.xlu0 %3135
      %vm3137 = vcmp.lt.s32.totalorder %v459, 120
      %v3138 = vsel %vm3137, %v3134, %v3136
      %v3139 = vsel %vm3137, %v3136, %v3134
      %s3140 = scalar_lea.vmem %s8, 39
      %v3141 = vld [vmem:[%s3140] ss:$8 sm:$0x3]
      %v3143 = vlaneseq
      %v3144 = vshrl.u32 %v3143, 7
      %v3145 = vsub.s32 0, %v3144
      %v3146 = vrot.slane %v3141, %v3145
      %v3147 = vlaneseq
      %v3148 = vshrl.u32 %v3147, 7
      %v3149 = vsub.s32 1, %v3148
      %v3150 = vrot.slane %v3141, %v3149
      %v3153 = vmul.f32 %v3138, %v3146
      %v3154 = vmul.f32 %v3139, %v3150
      %3155 = vset.pattern.permute.xlu0 123
      %3156 = vperm.xlu0 %3155, %v453
      %v3157 = vpop.permute.xlu0 %3156
      %v3159 = vmul.f32 %v3153, %v3157
      %v3160 = vmul.f32 %v3154, %v3157
      %v3161 = vadd.f32 %v3131, %v3159
      %v3162 = vadd.f32 %v3132, %v3160
      %3163 = vrot.lane.b32.xlu0 %v2753, 119
      %v3164 = vpop.permute.xlu0 %3163
      %3165 = vrot.lane.b32.xlu0 %v2755, 119
      %v3166 = vpop.permute.xlu0 %3165
      %vm3167 = vcmp.lt.s32.totalorder %v459, 119
      %v3168 = vsel %vm3167, %v3164, %v3166
      %v3169 = vsel %vm3167, %v3166, %v3164
      %s3170 = scalar_lea.vmem %s8, 48
      %v3171 = vld [vmem:[%s3170] ss:$8 sm:$0x3]
      %v3173 = vlaneseq
      %v3174 = vshrl.u32 %v3173, 7
      %v3175 = vsub.s32 0, %v3174
      %v3176 = vrot.slane %v3171, %v3175
      %v3177 = vlaneseq
      %v3178 = vshrl.u32 %v3177, 7
      %v3179 = vsub.s32 1, %v3178
      %v3180 = vrot.slane %v3171, %v3179
      %v3183 = vmul.f32 %v3168, %v3176
      %v3184 = vmul.f32 %v3169, %v3180
      %3185 = vset.pattern.permute.xlu0 124
      %3186 = vperm.xlu0 %3185, %v453
      %v3187 = vpop.permute.xlu0 %3186
      %v3189 = vmul.f32 %v3183, %v3187
      %v3190 = vmul.f32 %v3184, %v3187
      %v3191 = vadd.f32 %v3161, %v3189
      %v3192 = vadd.f32 %v3162, %v3190
      %3193 = vrot.lane.b32.xlu0 %v2753, 118
      %v3194 = vpop.permute.xlu0 %3193
      %3195 = vrot.lane.b32.xlu0 %v2755, 118
      %v3196 = vpop.permute.xlu0 %3195
      %vm3197 = vcmp.lt.s32.totalorder %v459, 118
      %v3198 = vsel %vm3197, %v3194, %v3196
      %v3199 = vsel %vm3197, %v3196, %v3194
      %s3200 = scalar_lea.vmem %s8, 49
      %v3201 = vld [vmem:[%s3200] ss:$8 sm:$0x3]
      %v3203 = vlaneseq
      %v3204 = vshrl.u32 %v3203, 7
      %v3205 = vsub.s32 0, %v3204
      %v3206 = vrot.slane %v3201, %v3205
      %v3207 = vlaneseq
      %v3208 = vshrl.u32 %v3207, 7
      %v3209 = vsub.s32 1, %v3208
      %v3210 = vrot.slane %v3201, %v3209
      %v3213 = vmul.f32 %v3198, %v3206
      %v3214 = vmul.f32 %v3199, %v3210
      %3215 = vset.pattern.permute.xlu0 125
      %3216 = vperm.xlu0 %3215, %v453
      %v3217 = vpop.permute.xlu0 %3216
      %v3219 = vmul.f32 %v3213, %v3217
      %v3220 = vmul.f32 %v3214, %v3217
      %v3221 = vadd.f32 %v3191, %v3219
      %v3222 = vadd.f32 %v3192, %v3220
      %3223 = vset.pattern.permute.xlu0 5
      %3224 = vperm.xlu0 %3223, %v647
      %v3225 = vpop.permute.xlu0 %3224
      %v3227 = vadd.f32 %v3221, %v3225
      %v3228 = vadd.f32 %v3222, %v3225
      %v3229 = vld [vmem:[%s5] sm:$0xff]
      %v3230 = vld [vmem:[%s5 + $0x8] sm:$0xff]
      %3231 = vrot.lane.b32.xlu0 %v3227, 32
      %v3232 = vpop.permute.xlu0 %3231
      %3233 = vrot.lane.b32.xlu0 %v3228, 32
      %v3234 = vpop.permute.xlu0 %3233
      %v3235 = vsel %vm741, %v3232, %v3234
      %v3236 = vsel %vm741, %v3234, %v3232
      %s3237 = scalar_lea.vmem %s7, 5
      %v3238 = vld [vmem:[%s3237] ss:$8 sm:$0x3]
      %v3240 = vlaneseq
      %v3241 = vshrl.u32 %v3240, 7
      %v3242 = vsub.s32 0, %v3241
      %v3243 = vrot.slane %v3238, %v3242
      %v3244 = vlaneseq
      %v3245 = vshrl.u32 %v3244, 7
      %v3246 = vsub.s32 1, %v3245
      %v3247 = vrot.slane %v3238, %v3246
      %v3250 = vmul.f32 %v3235, %v3243
      %v3251 = vmul.f32 %v3236, %v3247
      %3253 = vset.pattern.permute.xlu0 126
      %3254 = vperm.xlu0 %3253, %v3229
      %v3255 = vpop.permute.xlu0 %3254
      %v3257 = vmul.f32 %v3250, %v3255
      %v3258 = vmul.f32 %v3251, %v3255
      %3259 = vrot.lane.b32.xlu0 %v3227, 16
      %v3260 = vpop.permute.xlu0 %3259
      %3261 = vrot.lane.b32.xlu0 %v3228, 16
      %v3262 = vpop.permute.xlu0 %3261
      %v3263 = vsel %vm460, %v3260, %v3262
      %v3264 = vsel %vm460, %v3262, %v3260
      %s3265 = scalar_lea.vmem %s7, 6
      %v3266 = vld [vmem:[%s3265] ss:$8 sm:$0x3]
      %v3268 = vlaneseq
      %v3269 = vshrl.u32 %v3268, 7
      %v3270 = vsub.s32 0, %v3269
      %v3271 = vrot.slane %v3266, %v3270
      %v3272 = vlaneseq
      %v3273 = vshrl.u32 %v3272, 7
      %v3274 = vsub.s32 1, %v3273
      %v3275 = vrot.slane %v3266, %v3274
      %v3278 = vmul.f32 %v3263, %v3271
      %v3279 = vmul.f32 %v3264, %v3275
      %3280 = vset.pattern.permute.xlu0 127
      %3281 = vperm.xlu0 %3280, %v3229
      %v3282 = vpop.permute.xlu0 %3281
      %v3284 = vmul.f32 %v3278, %v3282
      %v3285 = vmul.f32 %v3279, %v3282
      %v3286 = vadd.f32 %v3257, %v3284
      %v3287 = vadd.f32 %v3258, %v3285
      %s3288 = scalar_lea.vmem %s7, 7
      %v3289 = vld [vmem:[%s3288] ss:$8 sm:$0x3]
      %v3291 = vlaneseq
      %v3292 = vshrl.u32 %v3291, 7
      %v3293 = vsub.s32 0, %v3292
      %v3294 = vrot.slane %v3289, %v3293
      %v3295 = vlaneseq
      %v3296 = vshrl.u32 %v3295, 7
      %v3297 = vsub.s32 1, %v3296
      %v3298 = vrot.slane %v3289, %v3297
      %v3301 = vmul.f32 %v3228, %v3294
      %v3302 = vmul.f32 %v3227, %v3298
      %3304 = vset.pattern.permute.xlu0 0
      %3305 = vperm.xlu0 %3304, %v3230
      %v3306 = vpop.permute.xlu0 %3305
      %v3308 = vmul.f32 %v3301, %v3306
      %v3309 = vmul.f32 %v3302, %v3306
      %v3310 = vadd.f32 %v3286, %v3308
      %v3311 = vadd.f32 %v3287, %v3309
      %3312 = vrot.lane.b32.xlu0 %v3227, 112
      %v3313 = vpop.permute.xlu0 %3312
      %3314 = vrot.lane.b32.xlu0 %v3228, 112
      %v3315 = vpop.permute.xlu0 %3314
      %v3316 = vsel %vm589, %v3313, %v3315
      %v3317 = vsel %vm589, %v3315, %v3313
      %s3318 = scalar_lea.vmem %s7, 16
      %v3319 = vld [vmem:[%s3318] ss:$8 sm:$0x3]
      %v3321 = vlaneseq
      %v3322 = vshrl.u32 %v3321, 7
      %v3323 = vsub.s32 0, %v3322
      %v3324 = vrot.slane %v3319, %v3323
      %v3325 = vlaneseq
      %v3326 = vshrl.u32 %v3325, 7
      %v3327 = vsub.s32 1, %v3326
      %v3328 = vrot.slane %v3319, %v3327
      %v3331 = vmul.f32 %v3317, %v3324
      %v3332 = vmul.f32 %v3316, %v3328
      %3333 = vset.pattern.permute.xlu0 1
      %3334 = vperm.xlu0 %3333, %v3230
      %v3335 = vpop.permute.xlu0 %3334
      %v3337 = vmul.f32 %v3331, %v3335
      %v3338 = vmul.f32 %v3332, %v3335
      %v3339 = vadd.f32 %v3310, %v3337
      %v3340 = vadd.f32 %v3311, %v3338
      %3341 = vrot.lane.b32.xlu0 %v3227, 96
      %v3342 = vpop.permute.xlu0 %3341
      %3343 = vrot.lane.b32.xlu0 %v3228, 96
      %v3344 = vpop.permute.xlu0 %3343
      %v3345 = vsel %vm1093, %v3342, %v3344
      %v3346 = vsel %vm1093, %v3344, %v3342
      %s3347 = scalar_lea.vmem %s7, 17
      %v3348 = vld [vmem:[%s3347] ss:$8 sm:$0x3]
      %v3350 = vlaneseq
      %v3351 = vshrl.u32 %v3350, 7
      %v3352 = vsub.s32 0, %v3351
      %v3353 = vrot.slane %v3348, %v3352
      %v3354 = vlaneseq
      %v3355 = vshrl.u32 %v3354, 7
      %v3356 = vsub.s32 1, %v3355
      %v3357 = vrot.slane %v3348, %v3356
      %v3360 = vmul.f32 %v3346, %v3353
      %v3361 = vmul.f32 %v3345, %v3357
      %3362 = vset.pattern.permute.xlu0 2
      %3363 = vperm.xlu0 %3362, %v3230
      %v3364 = vpop.permute.xlu0 %3363
      %v3366 = vmul.f32 %v3360, %v3364
      %v3367 = vmul.f32 %v3361, %v3364
      %v3368 = vadd.f32 %v3339, %v3366
      %v3369 = vadd.f32 %v3340, %v3367
      %3370 = vrot.lane.b32.xlu0 %v3227, 80
      %v3371 = vpop.permute.xlu0 %3370
      %3372 = vrot.lane.b32.xlu0 %v3228, 80
      %v3373 = vpop.permute.xlu0 %3372
      %v3374 = vsel %vm1996, %v3371, %v3373
      %v3375 = vsel %vm1996, %v3373, %v3371
      %v3376 = vmul.f32 %v3375, %v2463
      %v3377 = vmul.f32 %v3374, %v2467
      %3378 = vset.pattern.permute.xlu0 3
      %3379 = vperm.xlu0 %3378, %v3230
      %v3380 = vpop.permute.xlu0 %3379
      %v3382 = vmul.f32 %v3376, %v3380
      %v3383 = vmul.f32 %v3377, %v3380
      %v3384 = vadd.f32 %v3368, %v3382
      %v3385 = vadd.f32 %v3369, %v3383
      %3386 = vrot.lane.b32.xlu0 %v3227, 64
      %v3387 = vpop.permute.xlu0 %3386
      %3388 = vrot.lane.b32.xlu0 %v3228, 64
      %v3389 = vpop.permute.xlu0 %3388
      %v3390 = vsel %vm2482, %v3387, %v3389
      %v3391 = vsel %vm2482, %v3389, %v3387
      %v3392 = vmul.f32 %v3391, %v2491
      %v3393 = vmul.f32 %v3390, %v2495
      %3394 = vset.pattern.permute.xlu0 4
      %3395 = vperm.xlu0 %3394, %v3230
      %v3396 = vpop.permute.xlu0 %3395
      %v3398 = vmul.f32 %v3392, %v3396
      %v3399 = vmul.f32 %v3393, %v3396
      %v3400 = vadd.f32 %v3384, %v3398
      %v3401 = vadd.f32 %v3385, %v3399
      %3402 = vrot.lane.b32.xlu0 %v3227, 48
      %v3403 = vpop.permute.xlu0 %3402
      %3404 = vrot.lane.b32.xlu0 %v3228, 48
      %v3405 = vpop.permute.xlu0 %3404
      %v3406 = vsel %vm1292, %v3403, %v3405
      %v3407 = vsel %vm1292, %v3405, %v3403
      %v3408 = vmul.f32 %v3407, %v1301
      %v3409 = vmul.f32 %v3406, %v1305
      %3410 = vset.pattern.permute.xlu0 5
      %3411 = vperm.xlu0 %3410, %v3230
      %v3412 = vpop.permute.xlu0 %3411
      %v3414 = vmul.f32 %v3408, %v3412
      %v3415 = vmul.f32 %v3409, %v3412
      %v3416 = vadd.f32 %v3400, %v3414
      %v3417 = vadd.f32 %v3401, %v3415
      %v3418 = vmul.f32 %v3236, %v750
      %v3419 = vmul.f32 %v3235, %v754
      %3420 = vset.pattern.permute.xlu0 6
      %3421 = vperm.xlu0 %3420, %v3230
      %v3422 = vpop.permute.xlu0 %3421
      %v3424 = vmul.f32 %v3418, %v3422
      %v3425 = vmul.f32 %v3419, %v3422
      %v3426 = vadd.f32 %v3416, %v3424
      %v3427 = vadd.f32 %v3417, %v3425
      %v3428 = vmul.f32 %v3264, %v469
      %v3429 = vmul.f32 %v3263, %v473
      %3430 = vset.pattern.permute.xlu0 7
      %3431 = vperm.xlu0 %3430, %v3230
      %v3432 = vpop.permute.xlu0 %3431
      %v3434 = vmul.f32 %v3428, %v3432
      %v3435 = vmul.f32 %v3429, %v3432
      %v3436 = vadd.f32 %v3426, %v3434
      %v3437 = vadd.f32 %v3427, %v3435
      %3438 = vset.pattern.permute.xlu0 8
      %3439 = vperm.xlu0 %3438, %v3230
      %v3440 = vpop.permute.xlu0 %3439
      %v3442 = vmul.f32 %v3227, %v3440
      %v3443 = vmul.f32 %v3228, %v3440
      %v3444 = vadd.f32 %v3436, %v3442
      %v3445 = vadd.f32 %v3437, %v3443
      %v3446 = vmul.f32 %v3316, %v598
      %v3447 = vmul.f32 %v3317, %v602
      %3448 = vset.pattern.permute.xlu0 9
      %3449 = vperm.xlu0 %3448, %v3230
      %v3450 = vpop.permute.xlu0 %3449
      %v3452 = vmul.f32 %v3446, %v3450
      %v3453 = vmul.f32 %v3447, %v3450
      %v3454 = vadd.f32 %v3444, %v3452
      %v3455 = vadd.f32 %v3445, %v3453
      %v3456 = vmul.f32 %v3345, %v1102
      %v3457 = vmul.f32 %v3346, %v1106
      %3458 = vset.pattern.permute.xlu0 10
      %3459 = vperm.xlu0 %3458, %v3230
      %v3460 = vpop.permute.xlu0 %3459
      %v3462 = vmul.f32 %v3456, %v3460
      %v3463 = vmul.f32 %v3457, %v3460
      %v3464 = vadd.f32 %v3454, %v3462
      %v3465 = vadd.f32 %v3455, %v3463
      %v3466 = vmul.f32 %v3374, %v2005
      %v3467 = vmul.f32 %v3375, %v2009
      %3468 = vset.pattern.permute.xlu0 11
      %3469 = vperm.xlu0 %3468, %v3230
      %v3470 = vpop.permute.xlu0 %3469
      %v3472 = vmul.f32 %v3466, %v3470
      %v3473 = vmul.f32 %v3467, %v3470
      %v3474 = vadd.f32 %v3464, %v3472
      %v3475 = vadd.f32 %v3465, %v3473
      %v3476 = vmul.f32 %v3390, %v2612
      %v3477 = vmul.f32 %v3391, %v2616
      %3478 = vset.pattern.permute.xlu0 12
      %3479 = vperm.xlu0 %3478, %v3230
      %v3480 = vpop.permute.xlu0 %3479
      %v3482 = vmul.f32 %v3476, %v3480
      %v3483 = vmul.f32 %v3477, %v3480
      %v3484 = vadd.f32 %v3474, %v3482
      %v3485 = vadd.f32 %v3475, %v3483
      %v3486 = vmul.f32 %v3406, %v2635
      %v3487 = vmul.f32 %v3407, %v2639
      %3488 = vset.pattern.permute.xlu0 13
      %3489 = vperm.xlu0 %3488, %v3230
      %v3490 = vpop.permute.xlu0 %3489
      %v3492 = vmul.f32 %v3486, %v3490
      %v3493 = vmul.f32 %v3487, %v3490
      %v3494 = vadd.f32 %v3484, %v3492
      %v3495 = vadd.f32 %v3485, %v3493
      %s3496 = scalar_lea.vmem %s7, 37
      %v3497 = vld [vmem:[%s3496] ss:$8 sm:$0x3]
      %v3499 = vlaneseq
      %v3500 = vshrl.u32 %v3499, 7
      %v3501 = vsub.s32 0, %v3500
      %v3502 = vrot.slane %v3497, %v3501
      %v3503 = vlaneseq
      %v3504 = vshrl.u32 %v3503, 7
      %v3505 = vsub.s32 1, %v3504
      %v3506 = vrot.slane %v3497, %v3505
      %v3509 = vmul.f32 %v3235, %v3502
      %v3510 = vmul.f32 %v3236, %v3506
      %3511 = vset.pattern.permute.xlu0 14
      %3512 = vperm.xlu0 %3511, %v3230
      %v3513 = vpop.permute.xlu0 %3512
      %v3515 = vmul.f32 %v3509, %v3513
      %v3516 = vmul.f32 %v3510, %v3513
      %v3517 = vadd.f32 %v3494, %v3515
      %v3518 = vadd.f32 %v3495, %v3516
      %s3519 = scalar_lea.vmem %s7, 38
      %v3520 = vld [vmem:[%s3519] ss:$8 sm:$0x3]
      %v3522 = vlaneseq
      %v3523 = vshrl.u32 %v3522, 7
      %v3524 = vsub.s32 0, %v3523
      %v3525 = vrot.slane %v3520, %v3524
      %v3526 = vlaneseq
      %v3527 = vshrl.u32 %v3526, 7
      %v3528 = vsub.s32 1, %v3527
      %v3529 = vrot.slane %v3520, %v3528
      %v3532 = vmul.f32 %v3263, %v3525
      %v3533 = vmul.f32 %v3264, %v3529
      %3534 = vset.pattern.permute.xlu0 15
      %3535 = vperm.xlu0 %3534, %v3230
      %v3536 = vpop.permute.xlu0 %3535
      %v3538 = vmul.f32 %v3532, %v3536
      %v3539 = vmul.f32 %v3533, %v3536
      %v3540 = vadd.f32 %v3517, %v3538
      %v3541 = vadd.f32 %v3518, %v3539
      %s3542 = scalar_lea.vmem %s7, 39
      %v3543 = vld [vmem:[%s3542] ss:$8 sm:$0x3]
      %v3545 = vlaneseq
      %v3546 = vshrl.u32 %v3545, 7
      %v3547 = vsub.s32 0, %v3546
      %v3548 = vrot.slane %v3543, %v3547
      %v3549 = vlaneseq
      %v3550 = vshrl.u32 %v3549, 7
      %v3551 = vsub.s32 1, %v3550
      %v3552 = vrot.slane %v3543, %v3551
      %v3555 = vmul.f32 %v3228, %v3548
      %v3556 = vmul.f32 %v3227, %v3552
      %3557 = vset.pattern.permute.xlu0 16
      %3558 = vperm.xlu0 %3557, %v3230
      %v3559 = vpop.permute.xlu0 %3558
      %v3561 = vmul.f32 %v3555, %v3559
      %v3562 = vmul.f32 %v3556, %v3559
      %v3563 = vadd.f32 %v3540, %v3561
      %v3564 = vadd.f32 %v3541, %v3562
      %s3565 = scalar_lea.vmem %s7, 48
      %v3566 = vld [vmem:[%s3565] ss:$8 sm:$0x3]
      %v3568 = vlaneseq
      %v3569 = vshrl.u32 %v3568, 7
      %v3570 = vsub.s32 0, %v3569
      %v3571 = vrot.slane %v3566, %v3570
      %v3572 = vlaneseq
      %v3573 = vshrl.u32 %v3572, 7
      %v3574 = vsub.s32 1, %v3573
      %v3575 = vrot.slane %v3566, %v3574
      %v3578 = vmul.f32 %v3317, %v3571
      %v3579 = vmul.f32 %v3316, %v3575
      %3580 = vset.pattern.permute.xlu0 17
      %3581 = vperm.xlu0 %3580, %v3230
      %v3582 = vpop.permute.xlu0 %3581
      %v3584 = vmul.f32 %v3578, %v3582
      %v3585 = vmul.f32 %v3579, %v3582
      %v3586 = vadd.f32 %v3563, %v3584
      %v3587 = vadd.f32 %v3564, %v3585
      %s3588 = scalar_lea.vmem %s7, 49
      %v3589 = vld [vmem:[%s3588] ss:$8 sm:$0x3]
      %v3591 = vlaneseq
      %v3592 = vshrl.u32 %v3591, 7
      %v3593 = vsub.s32 0, %v3592
      %v3594 = vrot.slane %v3589, %v3593
      %v3595 = vlaneseq
      %v3596 = vshrl.u32 %v3595, 7
      %v3597 = vsub.s32 1, %v3596
      %v3598 = vrot.slane %v3589, %v3597
      %v3601 = vmul.f32 %v3346, %v3594
      %v3602 = vmul.f32 %v3345, %v3598
      %3603 = vset.pattern.permute.xlu0 18
      %3604 = vperm.xlu0 %3603, %v3230
      %v3605 = vpop.permute.xlu0 %3604
      %v3607 = vmul.f32 %v3601, %v3605
      %v3608 = vmul.f32 %v3602, %v3605
      %v3609 = vadd.f32 %v3586, %v3607
      %v3610 = vadd.f32 %v3587, %v3608
      %3611 = vset.pattern.permute.xlu0 6
      %3612 = vperm.xlu0 %3611, %v647
      %v3613 = vpop.permute.xlu0 %3612
      %v3615 = vadd.f32 %v3609, %v3613
      %v3616 = vadd.f32 %v3610, %v3613
      %v3617 = vadd.f32 %v3615, %v2672
      %v3618 = vadd.f32 %v3616, %v2673
      %v3619 = vsub.f32 0.0, %v3617
      %v3620 = vsub.f32 0.0, %v3618
      %v3621 = vmul.f32 %v3619, 1.442695
      %v3622 = vpow.pop %v3621
      %v3623 = vmul.f32 %v3620, 1.442695
      %v3624 = vpow.pop %v3623
      %v3625 = vadd.f32 %v3622, 1.0
      %v3626 = vadd.f32 %v3624, 1.0
      %v3627 = vrcp.pop %v3625
      %v3628 = vmul.f32 1.0, %v3627
      %v3629 = vrcp.pop %v3626
      %v3630 = vmul.f32 1.0, %v3629
      %v3631 = vmul.f32 %v3617, %v3628
      %v3632 = vmul.f32 %v3618, %v3630
      %s3633 = scalar_lea.vmem %s3, 32
      %v3634 = vld [vmem:[%s3633] sm:$0xff]
      %s3635 = scalar_lea.vmem %s4, 32
      %v3636 = vld [vmem:[%s3635] sm:$0xff]
      %3638 = vset.pattern.permute.xlu0 0
      %3639 = vperm.xlu0 %3638, %v3636
      %v3640 = vpop.permute.xlu0 %3639
      %v3643 = vsel %vm662, %v3634, 0
      %3645 = vmatprep.subr.mxu0 %v3632
      %3646 = vmatpush1.msra.mxu0 %v3631
      %3647 = vmatprep.subr.mxu0 0.0
      %3648 = vmatpush1.msra.mxu0 0.0
      %3649 = vmatprep.subr.mxu0 0.0
      %3650 = vmatpush1.msra.mxu0 0.0
      %3651 = vmatprep.subr.mxu0 0.0
      %3652 = vmatpush1.msra.mxu0 0.0
      %3653 = vmatprep.subr.mxu0 0.0
      %3654 = vmatpush1.msra.mxu0 0.0
      %3655 = vmatprep.subr.mxu0 0.0
      %3656 = vmatpush1.msra.mxu0 0.0
      %3657 = vmatprep.subr.mxu0 0.0
      %3658 = vmatpush1.msra.mxu0 0.0
      %3659 = vmatprep.subr.mxu0 0.0
      %3660 = vmatpush1.msra.mxu0 0.0
      %3661 = vmatprep.subr.mxu0 0.0
      %3662 = vmatpush1.msra.mxu0 0.0
      %3663 = vmatprep.subr.mxu0 0.0
      %3664 = vmatpush1.msra.mxu0 0.0
      %3665 = vmatprep.subr.mxu0 0.0
      %3666 = vmatpush1.msra.mxu0 0.0
      %3667 = vmatprep.subr.mxu0 0.0
      %3668 = vmatpush1.msra.mxu0 0.0
      %3669 = vmatprep.subr.mxu0 0.0
      %3670 = vmatpush1.msra.mxu0 0.0
      %3671 = vmatprep.subr.mxu0 0.0
      %3672 = vmatpush1.msra.mxu0 0.0
      %3673 = vmatprep.subr.mxu0 0.0
      %3674 = vmatpush1.msra.mxu0 0.0
      %3675 = vmatprep.subr.mxu0 0.0
      %3676 = vmatpush1.msra.mxu0 0.0
      %3677 = vmatprep.subr.mxu0 0.0
      %3678 = vmatpush1.msra.mxu0 0.0
      %3679 = vmatprep.subr.mxu0 0.0
      %3680 = vmatpush1.msra.mxu0 0.0
      %3681 = vmatprep.subr.mxu0 0.0
      %3682 = vmatpush1.msra.mxu0 0.0
      %3683 = vmatprep.subr.mxu0 0.0
      %3684 = vmatpush1.msra.mxu0 0.0
      %3685 = vmatprep.subr.mxu0 0.0
      %3686 = vmatpush1.msra.mxu0 0.0
      %3687 = vmatprep.subr.mxu0 0.0
      %3688 = vmatpush1.msra.mxu0 0.0
      %3689 = vmatprep.subr.mxu0 0.0
      %3690 = vmatpush1.msra.mxu0 0.0
      %3691 = vmatprep.subr.mxu0 0.0
      %3692 = vmatpush1.msra.mxu0 0.0
      %3693 = vmatprep.subr.mxu0 0.0
      %3694 = vmatpush1.msra.mxu0 0.0
      %3695 = vmatprep.subr.mxu0 0.0
      %3696 = vmatpush1.msra.mxu0 0.0
      %3697 = vmatprep.subr.mxu0 0.0
      %3698 = vmatpush1.msra.mxu0 0.0
      %3699 = vmatprep.subr.mxu0 0.0
      %3700 = vmatpush1.msra.mxu0 0.0
      %3701 = vmatprep.subr.mxu0 0.0
      %3702 = vmatpush1.msra.mxu0 0.0
      %3703 = vmatprep.subr.mxu0 0.0
      %3704 = vmatpush1.msra.mxu0 0.0
      %3705 = vmatprep.subr.mxu0 0.0
      %3706 = vmatpush1.msra.mxu0 0.0
      %3707 = vmatprep.subr.mxu0 0.0
      %3708 = vmatpush1.msra.mxu0 0.0
      %3709 = vmatprep.mubr.f32.mxu0 0.0
      %3710 = vmatmul.mubr.f32.gmra.mrb[0].mxu0 %v3643
      %v3711 = vpop.f32.mrb[0].mxu0
      %v3712 = vadd.f32 %v3640, %v3711
      %v3713 = vpop.f32.mrb[0].mxu0
      %v3714 = vadd.f32 %v3640, %v3713
      %3715 = vdwg.mxu0
      %3716 = vrot.lane.b32.xlu0 %v3712, 15
      %v3717 = vpop.permute.xlu0 %3716
      %3718 = vrot.lane.b32.xlu0 %v3714, 15
      %v3719 = vpop.permute.xlu0 %3718
      %vm3720 = vcmp.lt.s32.totalorder %v459, 15
      %v3721 = vsel %vm3720, %v3717, %v3719
      %v3722 = vsel %vm3720, %v3719, %v3717
      %v3723 = vld [vmem:[%s8] ss:$8 sm:$0x3]
      %v3725 = vlaneseq
      %v3726 = vshrl.u32 %v3725, 7
      %v3727 = vsub.s32 0, %v3726
      %v3728 = vrot.slane %v3723, %v3727
      %v3729 = vlaneseq
      %v3730 = vshrl.u32 %v3729, 7
      %v3731 = vsub.s32 1, %v3730
      %v3732 = vrot.slane %v3723, %v3731
      %v3735 = vmul.f32 %v3722, %v3728
      %v3736 = vmul.f32 %v3721, %v3732
      %3737 = vset.pattern.permute.xlu0 19
      %3738 = vperm.xlu0 %3737, %v3230
      %v3739 = vpop.permute.xlu0 %3738
      %v3741 = vmul.f32 %v3735, %v3739
      %v3742 = vmul.f32 %v3736, %v3739
      %3743 = vrot.lane.b32.xlu0 %v3712, 14
      %v3744 = vpop.permute.xlu0 %3743
      %3745 = vrot.lane.b32.xlu0 %v3714, 14
      %v3746 = vpop.permute.xlu0 %3745
      %vm3747 = vcmp.lt.s32.totalorder %v459, 14
      %v3748 = vsel %vm3747, %v3744, %v3746
      %v3749 = vsel %vm3747, %v3746, %v3744
      %s3750 = scalar_lea.vmem %s8, 1
      %v3751 = vld [vmem:[%s3750] ss:$8 sm:$0x3]
      %v3753 = vlaneseq
      %v3754 = vshrl.u32 %v3753, 7
      %v3755 = vsub.s32 0, %v3754
      %v3756 = vrot.slane %v3751, %v3755
      %v3757 = vlaneseq
      %v3758 = vshrl.u32 %v3757, 7
      %v3759 = vsub.s32 1, %v3758
      %v3760 = vrot.slane %v3751, %v3759
      %v3763 = vmul.f32 %v3749, %v3756
      %v3764 = vmul.f32 %v3748, %v3760
      %3765 = vset.pattern.permute.xlu0 20
      %3766 = vperm.xlu0 %3765, %v3230
      %v3767 = vpop.permute.xlu0 %3766
      %v3769 = vmul.f32 %v3763, %v3767
      %v3770 = vmul.f32 %v3764, %v3767
      %v3771 = vadd.f32 %v3741, %v3769
      %v3772 = vadd.f32 %v3742, %v3770
      %3773 = vrot.lane.b32.xlu0 %v3712, 13
      %v3774 = vpop.permute.xlu0 %3773
      %3775 = vrot.lane.b32.xlu0 %v3714, 13
      %v3776 = vpop.permute.xlu0 %3775
      %vm3777 = vcmp.lt.s32.totalorder %v459, 13
      %v3778 = vsel %vm3777, %v3774, %v3776
      %v3779 = vsel %vm3777, %v3776, %v3774
      %s3780 = scalar_lea.vmem %s8, 2
      %v3781 = vld [vmem:[%s3780] ss:$8 sm:$0x3]
      %v3783 = vlaneseq
      %v3784 = vshrl.u32 %v3783, 7
      %v3785 = vsub.s32 0, %v3784
      %v3786 = vrot.slane %v3781, %v3785
      %v3787 = vlaneseq
      %v3788 = vshrl.u32 %v3787, 7
      %v3789 = vsub.s32 1, %v3788
      %v3790 = vrot.slane %v3781, %v3789
      %v3793 = vmul.f32 %v3779, %v3786
      %v3794 = vmul.f32 %v3778, %v3790
      %3795 = vset.pattern.permute.xlu0 21
      %3796 = vperm.xlu0 %3795, %v3230
      %v3797 = vpop.permute.xlu0 %3796
      %v3799 = vmul.f32 %v3793, %v3797
      %v3800 = vmul.f32 %v3794, %v3797
      %v3801 = vadd.f32 %v3771, %v3799
      %v3802 = vadd.f32 %v3772, %v3800
      %3803 = vrot.lane.b32.xlu0 %v3712, 12
      %v3804 = vpop.permute.xlu0 %3803
      %3805 = vrot.lane.b32.xlu0 %v3714, 12
      %v3806 = vpop.permute.xlu0 %3805
      %vm3807 = vcmp.lt.s32.totalorder %v459, 12
      %v3808 = vsel %vm3807, %v3804, %v3806
      %v3809 = vsel %vm3807, %v3806, %v3804
      %s3810 = scalar_lea.vmem %s8, 3
      %v3811 = vld [vmem:[%s3810] ss:$8 sm:$0x3]
      %v3813 = vlaneseq
      %v3814 = vshrl.u32 %v3813, 7
      %v3815 = vsub.s32 0, %v3814
      %v3816 = vrot.slane %v3811, %v3815
      %v3817 = vlaneseq
      %v3818 = vshrl.u32 %v3817, 7
      %v3819 = vsub.s32 1, %v3818
      %v3820 = vrot.slane %v3811, %v3819
      %v3823 = vmul.f32 %v3809, %v3816
      %v3824 = vmul.f32 %v3808, %v3820
      %3825 = vset.pattern.permute.xlu0 22
      %3826 = vperm.xlu0 %3825, %v3230
      %v3827 = vpop.permute.xlu0 %3826
      %v3829 = vmul.f32 %v3823, %v3827
      %v3830 = vmul.f32 %v3824, %v3827
      %v3831 = vadd.f32 %v3801, %v3829
      %v3832 = vadd.f32 %v3802, %v3830
      %3833 = vrot.lane.b32.xlu0 %v3712, 11
      %v3834 = vpop.permute.xlu0 %3833
      %3835 = vrot.lane.b32.xlu0 %v3714, 11
      %v3836 = vpop.permute.xlu0 %3835
      %vm3837 = vcmp.lt.s32.totalorder %v459, 11
      %v3838 = vsel %vm3837, %v3834, %v3836
      %v3839 = vsel %vm3837, %v3836, %v3834
      %s3840 = scalar_lea.vmem %s8, 4
      %v3841 = vld [vmem:[%s3840] ss:$8 sm:$0x3]
      %v3843 = vlaneseq
      %v3844 = vshrl.u32 %v3843, 7
      %v3845 = vsub.s32 0, %v3844
      %v3846 = vrot.slane %v3841, %v3845
      %v3847 = vlaneseq
      %v3848 = vshrl.u32 %v3847, 7
      %v3849 = vsub.s32 1, %v3848
      %v3850 = vrot.slane %v3841, %v3849
      %v3853 = vmul.f32 %v3839, %v3846
      %v3854 = vmul.f32 %v3838, %v3850
      %3855 = vset.pattern.permute.xlu0 23
      %3856 = vperm.xlu0 %3855, %v3230
      %v3857 = vpop.permute.xlu0 %3856
      %v3859 = vmul.f32 %v3853, %v3857
      %v3860 = vmul.f32 %v3854, %v3857
      %v3861 = vadd.f32 %v3831, %v3859
      %v3862 = vadd.f32 %v3832, %v3860
      %3863 = vrot.lane.b32.xlu0 %v3712, 10
      %v3864 = vpop.permute.xlu0 %3863
      %3865 = vrot.lane.b32.xlu0 %v3714, 10
      %v3866 = vpop.permute.xlu0 %3865
      %v3867 = vsel %vm2761, %v3864, %v3866
      %v3868 = vsel %vm2761, %v3866, %v3864
      %v3869 = vmul.f32 %v3868, %v2770
      %v3870 = vmul.f32 %v3867, %v2774
      %3871 = vset.pattern.permute.xlu0 24
      %3872 = vperm.xlu0 %3871, %v3230
      %v3873 = vpop.permute.xlu0 %3872
      %v3875 = vmul.f32 %v3869, %v3873
      %v3876 = vmul.f32 %v3870, %v3873
      %v3877 = vadd.f32 %v3861, %v3875
      %v3878 = vadd.f32 %v3862, %v3876
      %3879 = vrot.lane.b32.xlu0 %v3712, 9
      %v3880 = vpop.permute.xlu0 %3879
      %3881 = vrot.lane.b32.xlu0 %v3714, 9
      %v3882 = vpop.permute.xlu0 %3881
      %v3883 = vsel %vm2789, %v3880, %v3882
      %v3884 = vsel %vm2789, %v3882, %v3880
      %v3885 = vmul.f32 %v3884, %v2798
      %v3886 = vmul.f32 %v3883, %v2802
      %3887 = vset.pattern.permute.xlu0 25
      %3888 = vperm.xlu0 %3887, %v3230
      %v3889 = vpop.permute.xlu0 %3888
      %v3891 = vmul.f32 %v3885, %v3889
      %v3892 = vmul.f32 %v3886, %v3889
      %v3893 = vadd.f32 %v3877, %v3891
      %v3894 = vadd.f32 %v3878, %v3892
      %3895 = vrot.lane.b32.xlu0 %v3712, 8
      %v3896 = vpop.permute.xlu0 %3895
      %3897 = vrot.lane.b32.xlu0 %v3714, 8
      %v3898 = vpop.permute.xlu0 %3897
      %v3899 = vsel %vm2819, %v3896, %v3898
      %v3900 = vsel %vm2819, %v3898, %v3896
      %v3901 = vmul.f32 %v3900, %v2828
      %v3902 = vmul.f32 %v3899, %v2832
      %3903 = vset.pattern.permute.xlu0 26
      %3904 = vperm.xlu0 %3903, %v3230
      %v3905 = vpop.permute.xlu0 %3904
      %v3907 = vmul.f32 %v3901, %v3905
      %v3908 = vmul.f32 %v3902, %v3905
      %v3909 = vadd.f32 %v3893, %v3907
      %v3910 = vadd.f32 %v3894, %v3908
      %3911 = vrot.lane.b32.xlu0 %v3712, 7
      %v3912 = vpop.permute.xlu0 %3911
      %3913 = vrot.lane.b32.xlu0 %v3714, 7
      %v3914 = vpop.permute.xlu0 %3913
      %v3915 = vsel %vm2849, %v3912, %v3914
      %v3916 = vsel %vm2849, %v3914, %v3912
      %v3917 = vmul.f32 %v3916, %v2858
      %v3918 = vmul.f32 %v3915, %v2862
      %3919 = vset.pattern.permute.xlu0 27
      %3920 = vperm.xlu0 %3919, %v3230
      %v3921 = vpop.permute.xlu0 %3920
      %v3923 = vmul.f32 %v3917, %v3921
      %v3924 = vmul.f32 %v3918, %v3921
      %v3925 = vadd.f32 %v3909, %v3923
      %v3926 = vadd.f32 %v3910, %v3924
      %3927 = vrot.lane.b32.xlu0 %v3712, 6
      %v3928 = vpop.permute.xlu0 %3927
      %3929 = vrot.lane.b32.xlu0 %v3714, 6
      %v3930 = vpop.permute.xlu0 %3929
      %v3931 = vsel %vm2879, %v3928, %v3930
      %v3932 = vsel %vm2879, %v3930, %v3928
      %v3933 = vmul.f32 %v3932, %v2888
      %v3934 = vmul.f32 %v3931, %v2892
      %3935 = vset.pattern.permute.xlu0 28
      %3936 = vperm.xlu0 %3935, %v3230
      %v3937 = vpop.permute.xlu0 %3936
      %v3939 = vmul.f32 %v3933, %v3937
      %v3940 = vmul.f32 %v3934, %v3937
      %v3941 = vadd.f32 %v3925, %v3939
      %v3942 = vadd.f32 %v3926, %v3940
      %3943 = vrot.lane.b32.xlu0 %v3712, 5
      %v3944 = vpop.permute.xlu0 %3943
      %3945 = vrot.lane.b32.xlu0 %v3714, 5
      %v3946 = vpop.permute.xlu0 %3945
      %v3947 = vsel %vm2227, %v3944, %v3946
      %v3948 = vsel %vm2227, %v3946, %v3944
      %v3949 = vmul.f32 %v3948, %v2236
      %v3950 = vmul.f32 %v3947, %v2240
      %3951 = vset.pattern.permute.xlu0 29
      %3952 = vperm.xlu0 %3951, %v3230
      %v3953 = vpop.permute.xlu0 %3952
      %v3955 = vmul.f32 %v3949, %v3953
      %v3956 = vmul.f32 %v3950, %v3953
      %v3957 = vadd.f32 %v3941, %v3955
      %v3958 = vadd.f32 %v3942, %v3956
      %3959 = vrot.lane.b32.xlu0 %v3712, 4
      %v3960 = vpop.permute.xlu0 %3959
      %3961 = vrot.lane.b32.xlu0 %v3714, 4
      %v3962 = vpop.permute.xlu0 %3961
      %v3963 = vsel %vm2255, %v3960, %v3962
      %v3964 = vsel %vm2255, %v3962, %v3960
      %v3965 = vmul.f32 %v3964, %v2264
      %v3966 = vmul.f32 %v3963, %v2268
      %3967 = vset.pattern.permute.xlu0 30
      %3968 = vperm.xlu0 %3967, %v3230
      %v3969 = vpop.permute.xlu0 %3968
      %v3971 = vmul.f32 %v3965, %v3969
      %v3972 = vmul.f32 %v3966, %v3969
      %v3973 = vadd.f32 %v3957, %v3971
      %v3974 = vadd.f32 %v3958, %v3972
      %3975 = vrot.lane.b32.xlu0 %v3712, 3
      %v3976 = vpop.permute.xlu0 %3975
      %3977 = vrot.lane.b32.xlu0 %v3714, 3
      %v3978 = vpop.permute.xlu0 %3977
      %v3979 = vsel %vm1314, %v3976, %v3978
      %v3980 = vsel %vm1314, %v3978, %v3976
      %v3981 = vmul.f32 %v3980, %v1323
      %v3982 = vmul.f32 %v3979, %v1327
      %3983 = vset.pattern.permute.xlu0 31
      %3984 = vperm.xlu0 %3983, %v3230
      %v3985 = vpop.permute.xlu0 %3984
      %v3987 = vmul.f32 %v3981, %v3985
      %v3988 = vmul.f32 %v3982, %v3985
      %v3989 = vadd.f32 %v3973, %v3987
      %v3990 = vadd.f32 %v3974, %v3988
      %3991 = vrot.lane.b32.xlu0 %v3712, 2
      %v3992 = vpop.permute.xlu0 %3991
      %3993 = vrot.lane.b32.xlu0 %v3714, 2
      %v3994 = vpop.permute.xlu0 %3993
      %v3995 = vsel %vm763, %v3992, %v3994
      %v3996 = vsel %vm763, %v3994, %v3992
      %v3997 = vmul.f32 %v3996, %v772
      %v3998 = vmul.f32 %v3995, %v776
      %3999 = vset.pattern.permute.xlu0 32
      %4000 = vperm.xlu0 %3999, %v3230
      %v4001 = vpop.permute.xlu0 %4000
      %v4003 = vmul.f32 %v3997, %v4001
      %v4004 = vmul.f32 %v3998, %v4001
      %v4005 = vadd.f32 %v3989, %v4003
      %v4006 = vadd.f32 %v3990, %v4004
      %4007 = vrot.lane.b32.xlu0 %v3712, 1
      %v4008 = vpop.permute.xlu0 %4007
      %4009 = vrot.lane.b32.xlu0 %v3714, 1
      %v4010 = vpop.permute.xlu0 %4009
      %v4011 = vsel %vm482, %v4008, %v4010
      %v4012 = vsel %vm482, %v4010, %v4008
      %v4013 = vmul.f32 %v4012, %v491
      %v4014 = vmul.f32 %v4011, %v495
      %4015 = vset.pattern.permute.xlu0 33
      %4016 = vperm.xlu0 %4015, %v3230
      %v4017 = vpop.permute.xlu0 %4016
      %v4019 = vmul.f32 %v4013, %v4017
      %v4020 = vmul.f32 %v4014, %v4017
      %v4021 = vadd.f32 %v4005, %v4019
      %v4022 = vadd.f32 %v4006, %v4020
      %4023 = vset.pattern.permute.xlu0 34
      %4024 = vperm.xlu0 %4023, %v3230
      %v4025 = vpop.permute.xlu0 %4024
      %v4027 = vmul.f32 %v3712, %v4025
      %v4028 = vmul.f32 %v3714, %v4025
      %v4029 = vadd.f32 %v4021, %v4027
      %v4030 = vadd.f32 %v4022, %v4028
      %4031 = vrot.lane.b32.xlu0 %v3712, 127
      %v4032 = vpop.permute.xlu0 %4031
      %4033 = vrot.lane.b32.xlu0 %v3714, 127
      %v4034 = vpop.permute.xlu0 %4033
      %v4035 = vsel %vm519, %v4032, %v4034
      %v4036 = vsel %vm519, %v4034, %v4032
      %v4037 = vmul.f32 %v4035, %v528
      %v4038 = vmul.f32 %v4036, %v532
      %4039 = vset.pattern.permute.xlu0 35
      %4040 = vperm.xlu0 %4039, %v3230
      %v4041 = vpop.permute.xlu0 %4040
      %v4043 = vmul.f32 %v4037, %v4041
      %v4044 = vmul.f32 %v4038, %v4041
      %v4045 = vadd.f32 %v4029, %v4043
      %v4046 = vadd.f32 %v4030, %v4044
      %4047 = vrot.lane.b32.xlu0 %v3712, 126
      %v4048 = vpop.permute.xlu0 %4047
      %4049 = vrot.lane.b32.xlu0 %v3714, 126
      %v4050 = vpop.permute.xlu0 %4049
      %v4051 = vsel %vm831, %v4048, %v4050
      %v4052 = vsel %vm831, %v4050, %v4048
      %v4053 = vmul.f32 %v4051, %v840
      %v4054 = vmul.f32 %v4052, %v844
      %4055 = vset.pattern.permute.xlu0 36
      %4056 = vperm.xlu0 %4055, %v3230
      %v4057 = vpop.permute.xlu0 %4056
      %v4059 = vmul.f32 %v4053, %v4057
      %v4060 = vmul.f32 %v4054, %v4057
      %v4061 = vadd.f32 %v4045, %v4059
      %v4062 = vadd.f32 %v4046, %v4060
      %4063 = vrot.lane.b32.xlu0 %v3712, 125
      %v4064 = vpop.permute.xlu0 %4063
      %4065 = vrot.lane.b32.xlu0 %v3714, 125
      %v4066 = vpop.permute.xlu0 %4065
      %v4067 = vsel %vm1414, %v4064, %v4066
      %v4068 = vsel %vm1414, %v4066, %v4064
      %v4069 = vmul.f32 %v4067, %v1423
      %v4070 = vmul.f32 %v4068, %v1427
      %4071 = vset.pattern.permute.xlu0 37
      %4072 = vperm.xlu0 %4071, %v3230
      %v4073 = vpop.permute.xlu0 %4072
      %v4075 = vmul.f32 %v4069, %v4073
      %v4076 = vmul.f32 %v4070, %v4073
      %v4077 = vadd.f32 %v4061, %v4075
      %v4078 = vadd.f32 %v4062, %v4076
      %4079 = vrot.lane.b32.xlu0 %v3712, 124
      %v4080 = vpop.permute.xlu0 %4079
      %4081 = vrot.lane.b32.xlu0 %v3714, 124
      %v4082 = vpop.permute.xlu0 %4081
      %v4083 = vsel %vm2389, %v4080, %v4082
      %v4084 = vsel %vm2389, %v4082, %v4080
      %v4085 = vmul.f32 %v4083, %v2398
      %v4086 = vmul.f32 %v4084, %v2402
      %4087 = vset.pattern.permute.xlu0 38
      %4088 = vperm.xlu0 %4087, %v3230
      %v4089 = vpop.permute.xlu0 %4088
      %v4091 = vmul.f32 %v4085, %v4089
      %v4092 = vmul.f32 %v4086, %v4089
      %v4093 = vadd.f32 %v4077, %v4091
      %v4094 = vadd.f32 %v4078, %v4092
      %4095 = vrot.lane.b32.xlu0 %v3712, 123
      %v4096 = vpop.permute.xlu0 %4095
      %4097 = vrot.lane.b32.xlu0 %v3714, 123
      %v4098 = vpop.permute.xlu0 %4097
      %v4099 = vsel %vm2419, %v4096, %v4098
      %v4100 = vsel %vm2419, %v4098, %v4096
      %v4101 = vmul.f32 %v4099, %v2428
      %v4102 = vmul.f32 %v4100, %v2432
      %4103 = vset.pattern.permute.xlu0 39
      %4104 = vperm.xlu0 %4103, %v3230
      %v4105 = vpop.permute.xlu0 %4104
      %v4107 = vmul.f32 %v4101, %v4105
      %v4108 = vmul.f32 %v4102, %v4105
      %v4109 = vadd.f32 %v4093, %v4107
      %v4110 = vadd.f32 %v4094, %v4108
      %4111 = vrot.lane.b32.xlu0 %v3712, 122
      %v4112 = vpop.permute.xlu0 %4111
      %4113 = vrot.lane.b32.xlu0 %v3714, 122
      %v4114 = vpop.permute.xlu0 %4113
      %v4115 = vsel %vm3077, %v4112, %v4114
      %v4116 = vsel %vm3077, %v4114, %v4112
      %v4117 = vmul.f32 %v4115, %v3086
      %v4118 = vmul.f32 %v4116, %v3090
      %4119 = vset.pattern.permute.xlu0 40
      %4120 = vperm.xlu0 %4119, %v3230
      %v4121 = vpop.permute.xlu0 %4120
      %v4123 = vmul.f32 %v4117, %v4121
      %v4124 = vmul.f32 %v4118, %v4121
      %v4125 = vadd.f32 %v4109, %v4123
      %v4126 = vadd.f32 %v4110, %v4124
      %4127 = vrot.lane.b32.xlu0 %v3712, 121
      %v4128 = vpop.permute.xlu0 %4127
      %4129 = vrot.lane.b32.xlu0 %v3714, 121
      %v4130 = vpop.permute.xlu0 %4129
      %v4131 = vsel %vm3107, %v4128, %v4130
      %v4132 = vsel %vm3107, %v4130, %v4128
      %v4133 = vmul.f32 %v4131, %v3116
      %v4134 = vmul.f32 %v4132, %v3120
      %4135 = vset.pattern.permute.xlu0 41
      %4136 = vperm.xlu0 %4135, %v3230
      %v4137 = vpop.permute.xlu0 %4136
      %v4139 = vmul.f32 %v4133, %v4137
      %v4140 = vmul.f32 %v4134, %v4137
      %v4141 = vadd.f32 %v4125, %v4139
      %v4142 = vadd.f32 %v4126, %v4140
      %4143 = vrot.lane.b32.xlu0 %v3712, 120
      %v4144 = vpop.permute.xlu0 %4143
      %4145 = vrot.lane.b32.xlu0 %v3714, 120
      %v4146 = vpop.permute.xlu0 %4145
      %v4147 = vsel %vm3137, %v4144, %v4146
      %v4148 = vsel %vm3137, %v4146, %v4144
      %v4149 = vmul.f32 %v4147, %v3146
      %v4150 = vmul.f32 %v4148, %v3150
      %4151 = vset.pattern.permute.xlu0 42
      %4152 = vperm.xlu0 %4151, %v3230
      %v4153 = vpop.permute.xlu0 %4152
      %v4155 = vmul.f32 %v4149, %v4153
      %v4156 = vmul.f32 %v4150, %v4153
      %v4157 = vadd.f32 %v4141, %v4155
      %v4158 = vadd.f32 %v4142, %v4156
      %4159 = vrot.lane.b32.xlu0 %v3712, 119
      %v4160 = vpop.permute.xlu0 %4159
      %4161 = vrot.lane.b32.xlu0 %v3714, 119
      %v4162 = vpop.permute.xlu0 %4161
      %v4163 = vsel %vm3167, %v4160, %v4162
      %v4164 = vsel %vm3167, %v4162, %v4160
      %v4165 = vmul.f32 %v4163, %v3176
      %v4166 = vmul.f32 %v4164, %v3180
      %4167 = vset.pattern.permute.xlu0 43
      %4168 = vperm.xlu0 %4167, %v3230
      %v4169 = vpop.permute.xlu0 %4168
      %v4171 = vmul.f32 %v4165, %v4169
      %v4172 = vmul.f32 %v4166, %v4169
      %v4173 = vadd.f32 %v4157, %v4171
      %v4174 = vadd.f32 %v4158, %v4172
      %4175 = vrot.lane.b32.xlu0 %v3712, 118
      %v4176 = vpop.permute.xlu0 %4175
      %4177 = vrot.lane.b32.xlu0 %v3714, 118
      %v4178 = vpop.permute.xlu0 %4177
      %v4179 = vsel %vm3197, %v4176, %v4178
      %v4180 = vsel %vm3197, %v4178, %v4176
      %v4181 = vmul.f32 %v4179, %v3206
      %v4182 = vmul.f32 %v4180, %v3210
      %4183 = vset.pattern.permute.xlu0 44
      %4184 = vperm.xlu0 %4183, %v3230
      %v4185 = vpop.permute.xlu0 %4184
      %v4187 = vmul.f32 %v4181, %v4185
      %v4188 = vmul.f32 %v4182, %v4185
      %v4189 = vadd.f32 %v4173, %v4187
      %v4190 = vadd.f32 %v4174, %v4188
      %4191 = vrot.lane.b32.xlu0 %v3712, 117
      %v4192 = vpop.permute.xlu0 %4191
      %4193 = vrot.lane.b32.xlu0 %v3714, 117
      %v4194 = vpop.permute.xlu0 %4193
      %vm4195 = vcmp.lt.s32.totalorder %v459, 117
      %v4196 = vsel %vm4195, %v4192, %v4194
      %v4197 = vsel %vm4195, %v4194, %v4192
      %s4198 = scalar_lea.vmem %s8, 50
      %v4199 = vld [vmem:[%s4198] ss:$8 sm:$0x3]
      %v4201 = vlaneseq
      %v4202 = vshrl.u32 %v4201, 7
      %v4203 = vsub.s32 0, %v4202
      %v4204 = vrot.slane %v4199, %v4203
      %v4205 = vlaneseq
      %v4206 = vshrl.u32 %v4205, 7
      %v4207 = vsub.s32 1, %v4206
      %v4208 = vrot.slane %v4199, %v4207
      %v4211 = vmul.f32 %v4196, %v4204
      %v4212 = vmul.f32 %v4197, %v4208
      %4213 = vset.pattern.permute.xlu0 45
      %4214 = vperm.xlu0 %4213, %v3230
      %v4215 = vpop.permute.xlu0 %4214
      %v4217 = vmul.f32 %v4211, %v4215
      %v4218 = vmul.f32 %v4212, %v4215
      %v4219 = vadd.f32 %v4189, %v4217
      %v4220 = vadd.f32 %v4190, %v4218
      %4221 = vrot.lane.b32.xlu0 %v3712, 116
      %v4222 = vpop.permute.xlu0 %4221
      %4223 = vrot.lane.b32.xlu0 %v3714, 116
      %v4224 = vpop.permute.xlu0 %4223
      %vm4225 = vcmp.lt.s32.totalorder %v459, 116
      %v4226 = vsel %vm4225, %v4222, %v4224
      %v4227 = vsel %vm4225, %v4224, %v4222
      %s4228 = scalar_lea.vmem %s8, 51
      %v4229 = vld [vmem:[%s4228] ss:$8 sm:$0x3]
      %v4231 = vlaneseq
      %v4232 = vshrl.u32 %v4231, 7
      %v4233 = vsub.s32 0, %v4232
      %v4234 = vrot.slane %v4229, %v4233
      %v4235 = vlaneseq
      %v4236 = vshrl.u32 %v4235, 7
      %v4237 = vsub.s32 1, %v4236
      %v4238 = vrot.slane %v4229, %v4237
      %v4241 = vmul.f32 %v4226, %v4234
      %v4242 = vmul.f32 %v4227, %v4238
      %4243 = vset.pattern.permute.xlu0 46
      %4244 = vperm.xlu0 %4243, %v3230
      %v4245 = vpop.permute.xlu0 %4244
      %v4247 = vmul.f32 %v4241, %v4245
      %v4248 = vmul.f32 %v4242, %v4245
      %v4249 = vadd.f32 %v4219, %v4247
      %v4250 = vadd.f32 %v4220, %v4248
      %4251 = vrot.lane.b32.xlu0 %v3712, 115
      %v4252 = vpop.permute.xlu0 %4251
      %4253 = vrot.lane.b32.xlu0 %v3714, 115
      %v4254 = vpop.permute.xlu0 %4253
      %vm4255 = vcmp.lt.s32.totalorder %v459, 115
      %v4256 = vsel %vm4255, %v4252, %v4254
      %v4257 = vsel %vm4255, %v4254, %v4252
      %s4258 = scalar_lea.vmem %s8, 52
      %v4259 = vld [vmem:[%s4258] ss:$8 sm:$0x3]
      %v4261 = vlaneseq
      %v4262 = vshrl.u32 %v4261, 7
      %v4263 = vsub.s32 0, %v4262
      %v4264 = vrot.slane %v4259, %v4263
      %v4265 = vlaneseq
      %v4266 = vshrl.u32 %v4265, 7
      %v4267 = vsub.s32 1, %v4266
      %v4268 = vrot.slane %v4259, %v4267
      %v4271 = vmul.f32 %v4256, %v4264
      %v4272 = vmul.f32 %v4257, %v4268
      %4273 = vset.pattern.permute.xlu0 47
      %4274 = vperm.xlu0 %4273, %v3230
      %v4275 = vpop.permute.xlu0 %4274
      %v4277 = vmul.f32 %v4271, %v4275
      %v4278 = vmul.f32 %v4272, %v4275
      %v4279 = vadd.f32 %v4249, %v4277
      %v4280 = vadd.f32 %v4250, %v4278
      %4281 = vrot.lane.b32.xlu0 %v3712, 114
      %v4282 = vpop.permute.xlu0 %4281
      %4283 = vrot.lane.b32.xlu0 %v3714, 114
      %v4284 = vpop.permute.xlu0 %4283
      %vm4285 = vcmp.lt.s32.totalorder %v459, 114
      %v4286 = vsel %vm4285, %v4282, %v4284
      %v4287 = vsel %vm4285, %v4284, %v4282
      %s4288 = scalar_lea.vmem %s8, 53
      %v4289 = vld [vmem:[%s4288] ss:$8 sm:$0x3]
      %v4291 = vlaneseq
      %v4292 = vshrl.u32 %v4291, 7
      %v4293 = vsub.s32 0, %v4292
      %v4294 = vrot.slane %v4289, %v4293
      %v4295 = vlaneseq
      %v4296 = vshrl.u32 %v4295, 7
      %v4297 = vsub.s32 1, %v4296
      %v4298 = vrot.slane %v4289, %v4297
      %v4301 = vmul.f32 %v4286, %v4294
      %v4302 = vmul.f32 %v4287, %v4298
      %4303 = vset.pattern.permute.xlu0 48
      %4304 = vperm.xlu0 %4303, %v3230
      %v4305 = vpop.permute.xlu0 %4304
      %v4307 = vmul.f32 %v4301, %v4305
      %v4308 = vmul.f32 %v4302, %v4305
      %v4309 = vadd.f32 %v4279, %v4307
      %v4310 = vadd.f32 %v4280, %v4308
      %4311 = vrot.lane.b32.xlu0 %v3712, 113
      %v4312 = vpop.permute.xlu0 %4311
      %4313 = vrot.lane.b32.xlu0 %v3714, 113
      %v4314 = vpop.permute.xlu0 %4313
      %vm4315 = vcmp.lt.s32.totalorder %v459, 113
      %v4316 = vsel %vm4315, %v4312, %v4314
      %v4317 = vsel %vm4315, %v4314, %v4312
      %s4318 = scalar_lea.vmem %s8, 54
      %v4319 = vld [vmem:[%s4318] ss:$8 sm:$0x3]
      %v4321 = vlaneseq
      %v4322 = vshrl.u32 %v4321, 7
      %v4323 = vsub.s32 0, %v4322
      %v4324 = vrot.slane %v4319, %v4323
      %v4325 = vlaneseq
      %v4326 = vshrl.u32 %v4325, 7
      %v4327 = vsub.s32 1, %v4326
      %v4328 = vrot.slane %v4319, %v4327
      %v4331 = vmul.f32 %v4316, %v4324
      %v4332 = vmul.f32 %v4317, %v4328
      %4333 = vset.pattern.permute.xlu0 49
      %4334 = vperm.xlu0 %4333, %v3230
      %v4335 = vpop.permute.xlu0 %4334
      %v4337 = vmul.f32 %v4331, %v4335
      %v4338 = vmul.f32 %v4332, %v4335
      %v4339 = vadd.f32 %v4309, %v4337
      %v4340 = vadd.f32 %v4310, %v4338
      %4341 = vset.pattern.permute.xlu0 7
      %4342 = vperm.xlu0 %4341, %v647
      %v4343 = vpop.permute.xlu0 %4342
      %v4345 = vadd.f32 %v4339, %v4343
      %v4346 = vadd.f32 %v4340, %v4343
      %4347 = vrot.lane.b32.xlu0 %v4345, 112
      %v4348 = vpop.permute.xlu0 %4347
      %4349 = vrot.lane.b32.xlu0 %v4346, 112
      %v4350 = vpop.permute.xlu0 %4349
      %v4351 = vsel %vm589, %v4348, %v4350
      %v4352 = vsel %vm589, %v4350, %v4348
      %v4353 = vld [vmem:[%s7] ss:$8 sm:$0x3]
      %v4355 = vlaneseq
      %v4356 = vshrl.u32 %v4355, 7
      %v4357 = vsub.s32 0, %v4356
      %v4358 = vrot.slane %v4353, %v4357
      %v4359 = vlaneseq
      %v4360 = vshrl.u32 %v4359, 7
      %v4361 = vsub.s32 1, %v4360
      %v4362 = vrot.slane %v4353, %v4361
      %v4365 = vmul.f32 %v4351, %v4358
      %v4366 = vmul.f32 %v4352, %v4362
      %4367 = vset.pattern.permute.xlu0 50
      %4368 = vperm.xlu0 %4367, %v3230
      %v4369 = vpop.permute.xlu0 %4368
      %v4371 = vmul.f32 %v4365, %v4369
      %v4372 = vmul.f32 %v4366, %v4369
      %4373 = vrot.lane.b32.xlu0 %v4345, 96
      %v4374 = vpop.permute.xlu0 %4373
      %4375 = vrot.lane.b32.xlu0 %v4346, 96
      %v4376 = vpop.permute.xlu0 %4375
      %v4377 = vsel %vm1093, %v4374, %v4376
      %v4378 = vsel %vm1093, %v4376, %v4374
      %s4379 = scalar_lea.vmem %s7, 1
      %v4380 = vld [vmem:[%s4379] ss:$8 sm:$0x3]
      %v4382 = vlaneseq
      %v4383 = vshrl.u32 %v4382, 7
      %v4384 = vsub.s32 0, %v4383
      %v4385 = vrot.slane %v4380, %v4384
      %v4386 = vlaneseq
      %v4387 = vshrl.u32 %v4386, 7
      %v4388 = vsub.s32 1, %v4387
      %v4389 = vrot.slane %v4380, %v4388
      %v4392 = vmul.f32 %v4377, %v4385
      %v4393 = vmul.f32 %v4378, %v4389
      %4394 = vset.pattern.permute.xlu0 51
      %4395 = vperm.xlu0 %4394, %v3230
      %v4396 = vpop.permute.xlu0 %4395
      %v4398 = vmul.f32 %v4392, %v4396
      %v4399 = vmul.f32 %v4393, %v4396
      %v4400 = vadd.f32 %v4371, %v4398
      %v4401 = vadd.f32 %v4372, %v4399
      %4402 = vrot.lane.b32.xlu0 %v4345, 80
      %v4403 = vpop.permute.xlu0 %4402
      %4404 = vrot.lane.b32.xlu0 %v4346, 80
      %v4405 = vpop.permute.xlu0 %4404
      %v4406 = vsel %vm1996, %v4403, %v4405
      %v4407 = vsel %vm1996, %v4405, %v4403
      %s4408 = scalar_lea.vmem %s7, 2
      %v4409 = vld [vmem:[%s4408] ss:$8 sm:$0x3]
      %v4411 = vlaneseq
      %v4412 = vshrl.u32 %v4411, 7
      %v4413 = vsub.s32 0, %v4412
      %v4414 = vrot.slane %v4409, %v4413
      %v4415 = vlaneseq
      %v4416 = vshrl.u32 %v4415, 7
      %v4417 = vsub.s32 1, %v4416
      %v4418 = vrot.slane %v4409, %v4417
      %v4421 = vmul.f32 %v4406, %v4414
      %v4422 = vmul.f32 %v4407, %v4418
      %4423 = vset.pattern.permute.xlu0 52
      %4424 = vperm.xlu0 %4423, %v3230
      %v4425 = vpop.permute.xlu0 %4424
      %v4427 = vmul.f32 %v4421, %v4425
      %v4428 = vmul.f32 %v4422, %v4425
      %v4429 = vadd.f32 %v4400, %v4427
      %v4430 = vadd.f32 %v4401, %v4428
      %4431 = vrot.lane.b32.xlu0 %v4345, 64
      %v4432 = vpop.permute.xlu0 %4431
      %4433 = vrot.lane.b32.xlu0 %v4346, 64
      %v4434 = vpop.permute.xlu0 %4433
      %v4435 = vsel %vm2482, %v4432, %v4434
      %v4436 = vsel %vm2482, %v4434, %v4432
      %s4437 = scalar_lea.vmem %s7, 3
      %v4438 = vld [vmem:[%s4437] ss:$8 sm:$0x3]
      %v4440 = vlaneseq
      %v4441 = vshrl.u32 %v4440, 7
      %v4442 = vsub.s32 0, %v4441
      %v4443 = vrot.slane %v4438, %v4442
      %v4444 = vlaneseq
      %v4445 = vshrl.u32 %v4444, 7
      %v4446 = vsub.s32 1, %v4445
      %v4447 = vrot.slane %v4438, %v4446
      %v4450 = vmul.f32 %v4435, %v4443
      %v4451 = vmul.f32 %v4436, %v4447
      %4452 = vset.pattern.permute.xlu0 53
      %4453 = vperm.xlu0 %4452, %v3230
      %v4454 = vpop.permute.xlu0 %4453
      %v4456 = vmul.f32 %v4450, %v4454
      %v4457 = vmul.f32 %v4451, %v4454
      %v4458 = vadd.f32 %v4429, %v4456
      %v4459 = vadd.f32 %v4430, %v4457
      %4460 = vrot.lane.b32.xlu0 %v4345, 48
      %v4461 = vpop.permute.xlu0 %4460
      %4462 = vrot.lane.b32.xlu0 %v4346, 48
      %v4463 = vpop.permute.xlu0 %4462
      %v4464 = vsel %vm1292, %v4461, %v4463
      %v4465 = vsel %vm1292, %v4463, %v4461
      %s4466 = scalar_lea.vmem %s7, 4
      %v4467 = vld [vmem:[%s4466] ss:$8 sm:$0x3]
      %v4469 = vlaneseq
      %v4470 = vshrl.u32 %v4469, 7
      %v4471 = vsub.s32 0, %v4470
      %v4472 = vrot.slane %v4467, %v4471
      %v4473 = vlaneseq
      %v4474 = vshrl.u32 %v4473, 7
      %v4475 = vsub.s32 1, %v4474
      %v4476 = vrot.slane %v4467, %v4475
      %v4479 = vmul.f32 %v4464, %v4472
      %v4480 = vmul.f32 %v4465, %v4476
      %4481 = vset.pattern.permute.xlu0 54
      %4482 = vperm.xlu0 %4481, %v3230
      %v4483 = vpop.permute.xlu0 %4482
      %v4485 = vmul.f32 %v4479, %v4483
      %v4486 = vmul.f32 %v4480, %v4483
      %v4487 = vadd.f32 %v4458, %v4485
      %v4488 = vadd.f32 %v4459, %v4486
      %4489 = vrot.lane.b32.xlu0 %v4345, 32
      %v4490 = vpop.permute.xlu0 %4489
      %4491 = vrot.lane.b32.xlu0 %v4346, 32
      %v4492 = vpop.permute.xlu0 %4491
      %v4493 = vsel %vm741, %v4490, %v4492
      %v4494 = vsel %vm741, %v4492, %v4490
      %v4495 = vmul.f32 %v4493, %v3243
      %v4496 = vmul.f32 %v4494, %v3247
      %4497 = vset.pattern.permute.xlu0 55
      %4498 = vperm.xlu0 %4497, %v3230
      %v4499 = vpop.permute.xlu0 %4498
      %v4501 = vmul.f32 %v4495, %v4499
      %v4502 = vmul.f32 %v4496, %v4499
      %v4503 = vadd.f32 %v4487, %v4501
      %v4504 = vadd.f32 %v4488, %v4502
      %4505 = vrot.lane.b32.xlu0 %v4345, 16
      %v4506 = vpop.permute.xlu0 %4505
      %4507 = vrot.lane.b32.xlu0 %v4346, 16
      %v4508 = vpop.permute.xlu0 %4507
      %v4509 = vsel %vm460, %v4506, %v4508
      %v4510 = vsel %vm460, %v4508, %v4506
      %v4511 = vmul.f32 %v4509, %v3271
      %v4512 = vmul.f32 %v4510, %v3275
      %4513 = vset.pattern.permute.xlu0 56
      %4514 = vperm.xlu0 %4513, %v3230
      %v4515 = vpop.permute.xlu0 %4514
      %v4517 = vmul.f32 %v4511, %v4515
      %v4518 = vmul.f32 %v4512, %v4515
      %v4519 = vadd.f32 %v4503, %v4517
      %v4520 = vadd.f32 %v4504, %v4518
      %v4521 = vmul.f32 %v4346, %v3294
      %v4522 = vmul.f32 %v4345, %v3298
      %4523 = vset.pattern.permute.xlu0 57
      %4524 = vperm.xlu0 %4523, %v3230
      %v4525 = vpop.permute.xlu0 %4524
      %v4527 = vmul.f32 %v4521, %v4525
      %v4528 = vmul.f32 %v4522, %v4525
      %v4529 = vadd.f32 %v4519, %v4527
      %v4530 = vadd.f32 %v4520, %v4528
      %v4531 = vmul.f32 %v4352, %v3324
      %v4532 = vmul.f32 %v4351, %v3328
      %4533 = vset.pattern.permute.xlu0 58
      %4534 = vperm.xlu0 %4533, %v3230
      %v4535 = vpop.permute.xlu0 %4534
      %v4537 = vmul.f32 %v4531, %v4535
      %v4538 = vmul.f32 %v4532, %v4535
      %v4539 = vadd.f32 %v4529, %v4537
      %v4540 = vadd.f32 %v4530, %v4538
      %v4541 = vmul.f32 %v4378, %v3353
      %v4542 = vmul.f32 %v4377, %v3357
      %4543 = vset.pattern.permute.xlu0 59
      %4544 = vperm.xlu0 %4543, %v3230
      %v4545 = vpop.permute.xlu0 %4544
      %v4547 = vmul.f32 %v4541, %v4545
      %v4548 = vmul.f32 %v4542, %v4545
      %v4549 = vadd.f32 %v4539, %v4547
      %v4550 = vadd.f32 %v4540, %v4548
      %v4551 = vmul.f32 %v4407, %v2463
      %v4552 = vmul.f32 %v4406, %v2467
      %4553 = vset.pattern.permute.xlu0 60
      %4554 = vperm.xlu0 %4553, %v3230
      %v4555 = vpop.permute.xlu0 %4554
      %v4557 = vmul.f32 %v4551, %v4555
      %v4558 = vmul.f32 %v4552, %v4555
      %v4559 = vadd.f32 %v4549, %v4557
      %v4560 = vadd.f32 %v4550, %v4558
      %v4561 = vmul.f32 %v4436, %v2491
      %v4562 = vmul.f32 %v4435, %v2495
      %4563 = vset.pattern.permute.xlu0 61
      %4564 = vperm.xlu0 %4563, %v3230
      %v4565 = vpop.permute.xlu0 %4564
      %v4567 = vmul.f32 %v4561, %v4565
      %v4568 = vmul.f32 %v4562, %v4565
      %v4569 = vadd.f32 %v4559, %v4567
      %v4570 = vadd.f32 %v4560, %v4568
      %v4571 = vmul.f32 %v4465, %v1301
      %v4572 = vmul.f32 %v4464, %v1305
      %4573 = vset.pattern.permute.xlu0 62
      %4574 = vperm.xlu0 %4573, %v3230
      %v4575 = vpop.permute.xlu0 %4574
      %v4577 = vmul.f32 %v4571, %v4575
      %v4578 = vmul.f32 %v4572, %v4575
      %v4579 = vadd.f32 %v4569, %v4577
      %v4580 = vadd.f32 %v4570, %v4578
      %v4581 = vmul.f32 %v4494, %v750
      %v4582 = vmul.f32 %v4493, %v754
      %4583 = vset.pattern.permute.xlu0 63
      %4584 = vperm.xlu0 %4583, %v3230
      %v4585 = vpop.permute.xlu0 %4584
      %v4587 = vmul.f32 %v4581, %v4585
      %v4588 = vmul.f32 %v4582, %v4585
      %v4589 = vadd.f32 %v4579, %v4587
      %v4590 = vadd.f32 %v4580, %v4588
      %v4591 = vmul.f32 %v4510, %v469
      %v4592 = vmul.f32 %v4509, %v473
      %4593 = vset.pattern.permute.xlu0 64
      %4594 = vperm.xlu0 %4593, %v3230
      %v4595 = vpop.permute.xlu0 %4594
      %v4597 = vmul.f32 %v4591, %v4595
      %v4598 = vmul.f32 %v4592, %v4595
      %v4599 = vadd.f32 %v4589, %v4597
      %v4600 = vadd.f32 %v4590, %v4598
      %4601 = vset.pattern.permute.xlu0 65
      %4602 = vperm.xlu0 %4601, %v3230
      %v4603 = vpop.permute.xlu0 %4602
      %v4605 = vmul.f32 %v4345, %v4603
      %v4606 = vmul.f32 %v4346, %v4603
      %v4607 = vadd.f32 %v4599, %v4605
      %v4608 = vadd.f32 %v4600, %v4606
      %v4609 = vmul.f32 %v4351, %v598
      %v4610 = vmul.f32 %v4352, %v602
      %4611 = vset.pattern.permute.xlu0 66
      %4612 = vperm.xlu0 %4611, %v3230
      %v4613 = vpop.permute.xlu0 %4612
      %v4615 = vmul.f32 %v4609, %v4613
      %v4616 = vmul.f32 %v4610, %v4613
      %v4617 = vadd.f32 %v4607, %v4615
      %v4618 = vadd.f32 %v4608, %v4616
      %v4619 = vmul.f32 %v4377, %v1102
      %v4620 = vmul.f32 %v4378, %v1106
      %4621 = vset.pattern.permute.xlu0 67
      %4622 = vperm.xlu0 %4621, %v3230
      %v4623 = vpop.permute.xlu0 %4622
      %v4625 = vmul.f32 %v4619, %v4623
      %v4626 = vmul.f32 %v4620, %v4623
      %v4627 = vadd.f32 %v4617, %v4625
      %v4628 = vadd.f32 %v4618, %v4626
      %v4629 = vmul.f32 %v4406, %v2005
      %v4630 = vmul.f32 %v4407, %v2009
      %4631 = vset.pattern.permute.xlu0 68
      %4632 = vperm.xlu0 %4631, %v3230
      %v4633 = vpop.permute.xlu0 %4632
      %v4635 = vmul.f32 %v4629, %v4633
      %v4636 = vmul.f32 %v4630, %v4633
      %v4637 = vadd.f32 %v4627, %v4635
      %v4638 = vadd.f32 %v4628, %v4636
      %v4639 = vmul.f32 %v4435, %v2612
      %v4640 = vmul.f32 %v4436, %v2616
      %4641 = vset.pattern.permute.xlu0 69
      %4642 = vperm.xlu0 %4641, %v3230
      %v4643 = vpop.permute.xlu0 %4642
      %v4645 = vmul.f32 %v4639, %v4643
      %v4646 = vmul.f32 %v4640, %v4643
      %v4647 = vadd.f32 %v4637, %v4645
      %v4648 = vadd.f32 %v4638, %v4646
      %v4649 = vmul.f32 %v4464, %v2635
      %v4650 = vmul.f32 %v4465, %v2639
      %4651 = vset.pattern.permute.xlu0 70
      %4652 = vperm.xlu0 %4651, %v3230
      %v4653 = vpop.permute.xlu0 %4652
      %v4655 = vmul.f32 %v4649, %v4653
      %v4656 = vmul.f32 %v4650, %v4653
      %v4657 = vadd.f32 %v4647, %v4655
      %v4658 = vadd.f32 %v4648, %v4656
      %v4659 = vmul.f32 %v4493, %v3502
      %v4660 = vmul.f32 %v4494, %v3506
      %4661 = vset.pattern.permute.xlu0 71
      %4662 = vperm.xlu0 %4661, %v3230
      %v4663 = vpop.permute.xlu0 %4662
      %v4665 = vmul.f32 %v4659, %v4663
      %v4666 = vmul.f32 %v4660, %v4663
      %v4667 = vadd.f32 %v4657, %v4665
      %v4668 = vadd.f32 %v4658, %v4666
      %v4669 = vmul.f32 %v4509, %v3525
      %v4670 = vmul.f32 %v4510, %v3529
      %4671 = vset.pattern.permute.xlu0 72
      %4672 = vperm.xlu0 %4671, %v3230
      %v4673 = vpop.permute.xlu0 %4672
      %v4675 = vmul.f32 %v4669, %v4673
      %v4676 = vmul.f32 %v4670, %v4673
      %v4677 = vadd.f32 %v4667, %v4675
      %v4678 = vadd.f32 %v4668, %v4676
      %v4679 = vmul.f32 %v4346, %v3548
      %v4680 = vmul.f32 %v4345, %v3552
      %4681 = vset.pattern.permute.xlu0 73
      %4682 = vperm.xlu0 %4681, %v3230
      %v4683 = vpop.permute.xlu0 %4682
      %v4685 = vmul.f32 %v4679, %v4683
      %v4686 = vmul.f32 %v4680, %v4683
      %v4687 = vadd.f32 %v4677, %v4685
      %v4688 = vadd.f32 %v4678, %v4686
      %v4689 = vmul.f32 %v4352, %v3571
      %v4690 = vmul.f32 %v4351, %v3575
      %4691 = vset.pattern.permute.xlu0 74
      %4692 = vperm.xlu0 %4691, %v3230
      %v4693 = vpop.permute.xlu0 %4692
      %v4695 = vmul.f32 %v4689, %v4693
      %v4696 = vmul.f32 %v4690, %v4693
      %v4697 = vadd.f32 %v4687, %v4695
      %v4698 = vadd.f32 %v4688, %v4696
      %v4699 = vmul.f32 %v4378, %v3594
      %v4700 = vmul.f32 %v4377, %v3598
      %4701 = vset.pattern.permute.xlu0 75
      %4702 = vperm.xlu0 %4701, %v3230
      %v4703 = vpop.permute.xlu0 %4702
      %v4705 = vmul.f32 %v4699, %v4703
      %v4706 = vmul.f32 %v4700, %v4703
      %v4707 = vadd.f32 %v4697, %v4705
      %v4708 = vadd.f32 %v4698, %v4706
      %s4709 = scalar_lea.vmem %s7, 50
      %v4710 = vld [vmem:[%s4709] ss:$8 sm:$0x3]
      %v4712 = vlaneseq
      %v4713 = vshrl.u32 %v4712, 7
      %v4714 = vsub.s32 0, %v4713
      %v4715 = vrot.slane %v4710, %v4714
      %v4716 = vlaneseq
      %v4717 = vshrl.u32 %v4716, 7
      %v4718 = vsub.s32 1, %v4717
      %v4719 = vrot.slane %v4710, %v4718
      %v4722 = vmul.f32 %v4407, %v4715
      %v4723 = vmul.f32 %v4406, %v4719
      %4724 = vset.pattern.permute.xlu0 76
      %4725 = vperm.xlu0 %4724, %v3230
      %v4726 = vpop.permute.xlu0 %4725
      %v4728 = vmul.f32 %v4722, %v4726
      %v4729 = vmul.f32 %v4723, %v4726
      %v4730 = vadd.f32 %v4707, %v4728
      %v4731 = vadd.f32 %v4708, %v4729
      %s4732 = scalar_lea.vmem %s7, 51
      %v4733 = vld [vmem:[%s4732] ss:$8 sm:$0x3]
      %v4735 = vlaneseq
      %v4736 = vshrl.u32 %v4735, 7
      %v4737 = vsub.s32 0, %v4736
      %v4738 = vrot.slane %v4733, %v4737
      %v4739 = vlaneseq
      %v4740 = vshrl.u32 %v4739, 7
      %v4741 = vsub.s32 1, %v4740
      %v4742 = vrot.slane %v4733, %v4741
      %v4745 = vmul.f32 %v4436, %v4738
      %v4746 = vmul.f32 %v4435, %v4742
      %4747 = vset.pattern.permute.xlu0 77
      %4748 = vperm.xlu0 %4747, %v3230
      %v4749 = vpop.permute.xlu0 %4748
      %v4751 = vmul.f32 %v4745, %v4749
      %v4752 = vmul.f32 %v4746, %v4749
      %v4753 = vadd.f32 %v4730, %v4751
      %v4754 = vadd.f32 %v4731, %v4752
      %s4755 = scalar_lea.vmem %s7, 52
      %v4756 = vld [vmem:[%s4755] ss:$8 sm:$0x3]
      %v4758 = vlaneseq
      %v4759 = vshrl.u32 %v4758, 7
      %v4760 = vsub.s32 0, %v4759
      %v4761 = vrot.slane %v4756, %v4760
      %v4762 = vlaneseq
      %v4763 = vshrl.u32 %v4762, 7
      %v4764 = vsub.s32 1, %v4763
      %v4765 = vrot.slane %v4756, %v4764
      %v4768 = vmul.f32 %v4465, %v4761
      %v4769 = vmul.f32 %v4464, %v4765
      %4770 = vset.pattern.permute.xlu0 78
      %4771 = vperm.xlu0 %4770, %v3230
      %v4772 = vpop.permute.xlu0 %4771
      %v4774 = vmul.f32 %v4768, %v4772
      %v4775 = vmul.f32 %v4769, %v4772
      %v4776 = vadd.f32 %v4753, %v4774
      %v4777 = vadd.f32 %v4754, %v4775
      %s4778 = scalar_lea.vmem %s7, 53
      %v4779 = vld [vmem:[%s4778] ss:$8 sm:$0x3]
      %v4781 = vlaneseq
      %v4782 = vshrl.u32 %v4781, 7
      %v4783 = vsub.s32 0, %v4782
      %v4784 = vrot.slane %v4779, %v4783
      %v4785 = vlaneseq
      %v4786 = vshrl.u32 %v4785, 7
      %v4787 = vsub.s32 1, %v4786
      %v4788 = vrot.slane %v4779, %v4787
      %v4791 = vmul.f32 %v4494, %v4784
      %v4792 = vmul.f32 %v4493, %v4788
      %4793 = vset.pattern.permute.xlu0 79
      %4794 = vperm.xlu0 %4793, %v3230
      %v4795 = vpop.permute.xlu0 %4794
      %v4797 = vmul.f32 %v4791, %v4795
      %v4798 = vmul.f32 %v4792, %v4795
      %v4799 = vadd.f32 %v4776, %v4797
      %v4800 = vadd.f32 %v4777, %v4798
      %s4801 = scalar_lea.vmem %s7, 54
      %v4802 = vld [vmem:[%s4801] ss:$8 sm:$0x3]
      %v4804 = vlaneseq
      %v4805 = vshrl.u32 %v4804, 7
      %v4806 = vsub.s32 0, %v4805
      %v4807 = vrot.slane %v4802, %v4806
      %v4808 = vlaneseq
      %v4809 = vshrl.u32 %v4808, 7
      %v4810 = vsub.s32 1, %v4809
      %v4811 = vrot.slane %v4802, %v4810
      %v4814 = vmul.f32 %v4510, %v4807
      %v4815 = vmul.f32 %v4509, %v4811
      %4816 = vset.pattern.permute.xlu0 80
      %4817 = vperm.xlu0 %4816, %v3230
      %v4818 = vpop.permute.xlu0 %4817
      %v4820 = vmul.f32 %v4814, %v4818
      %v4821 = vmul.f32 %v4815, %v4818
      %v4822 = vadd.f32 %v4799, %v4820
      %v4823 = vadd.f32 %v4800, %v4821
      %4824 = vset.pattern.permute.xlu0 8
      %4825 = vperm.xlu0 %4824, %v647
      %v4826 = vpop.permute.xlu0 %4825
      %v4828 = vadd.f32 %v4822, %v4826
      %v4829 = vadd.f32 %v4823, %v4826
      %v4830 = vadd.f32 %v4828, %v3631
      %v4831 = vadd.f32 %v4829, %v3632
      %v4832 = vsub.f32 0.0, %v4830
      %v4833 = vsub.f32 0.0, %v4831
      %v4834 = vmul.f32 %v4832, 1.442695
      %v4835 = vpow.pop %v4834
      %v4836 = vmul.f32 %v4833, 1.442695
      %v4837 = vpow.pop %v4836
      %v4838 = vadd.f32 %v4835, 1.0
      %v4839 = vadd.f32 %v4837, 1.0
      %v4840 = vrcp.pop %v4838
      %v4841 = vmul.f32 1.0, %v4840
      %v4842 = vrcp.pop %v4839
      %v4843 = vmul.f32 1.0, %v4842
      %v4844 = vmul.f32 %v4830, %v4841
      %v4845 = vmul.f32 %v4831, %v4843
      %s4846 = scalar_lea.vmem %s3, 40
      %v4847 = vld [vmem:[%s4846] sm:$0xff]
      %s4848 = scalar_lea.vmem %s4, 40
      %v4849 = vld [vmem:[%s4848] sm:$0xff]
      %4851 = vset.pattern.permute.xlu0 0
      %4852 = vperm.xlu0 %4851, %v4849
      %v4853 = vpop.permute.xlu0 %4852
      %v4856 = vsel %vm662, %v4847, 0
      %4858 = vmatprep.subr.mxu0 %v4845
      %4859 = vmatpush1.msra.mxu0 %v4844
      %4860 = vmatprep.subr.mxu0 0.0
      %4861 = vmatpush1.msra.mxu0 0.0
      %4862 = vmatprep.subr.mxu0 0.0
      %4863 = vmatpush1.msra.mxu0 0.0
      %4864 = vmatprep.subr.mxu0 0.0
      %4865 = vmatpush1.msra.mxu0 0.0
      %4866 = vmatprep.subr.mxu0 0.0
      %4867 = vmatpush1.msra.mxu0 0.0
      %4868 = vmatprep.subr.mxu0 0.0
      %4869 = vmatpush1.msra.mxu0 0.0
      %4870 = vmatprep.subr.mxu0 0.0
      %4871 = vmatpush1.msra.mxu0 0.0
      %4872 = vmatprep.subr.mxu0 0.0
      %4873 = vmatpush1.msra.mxu0 0.0
      %4874 = vmatprep.subr.mxu0 0.0
      %4875 = vmatpush1.msra.mxu0 0.0
      %4876 = vmatprep.subr.mxu0 0.0
      %4877 = vmatpush1.msra.mxu0 0.0
      %4878 = vmatprep.subr.mxu0 0.0
      %4879 = vmatpush1.msra.mxu0 0.0
      %4880 = vmatprep.subr.mxu0 0.0
      %4881 = vmatpush1.msra.mxu0 0.0
      %4882 = vmatprep.subr.mxu0 0.0
      %4883 = vmatpush1.msra.mxu0 0.0
      %4884 = vmatprep.subr.mxu0 0.0
      %4885 = vmatpush1.msra.mxu0 0.0
      %4886 = vmatprep.subr.mxu0 0.0
      %4887 = vmatpush1.msra.mxu0 0.0
      %4888 = vmatprep.subr.mxu0 0.0
      %4889 = vmatpush1.msra.mxu0 0.0
      %4890 = vmatprep.subr.mxu0 0.0
      %4891 = vmatpush1.msra.mxu0 0.0
      %4892 = vmatprep.subr.mxu0 0.0
      %4893 = vmatpush1.msra.mxu0 0.0
      %4894 = vmatprep.subr.mxu0 0.0
      %4895 = vmatpush1.msra.mxu0 0.0
      %4896 = vmatprep.subr.mxu0 0.0
      %4897 = vmatpush1.msra.mxu0 0.0
      %4898 = vmatprep.subr.mxu0 0.0
      %4899 = vmatpush1.msra.mxu0 0.0
      %4900 = vmatprep.subr.mxu0 0.0
      %4901 = vmatpush1.msra.mxu0 0.0
      %4902 = vmatprep.subr.mxu0 0.0
      %4903 = vmatpush1.msra.mxu0 0.0
      %4904 = vmatprep.subr.mxu0 0.0
      %4905 = vmatpush1.msra.mxu0 0.0
      %4906 = vmatprep.subr.mxu0 0.0
      %4907 = vmatpush1.msra.mxu0 0.0
      %4908 = vmatprep.subr.mxu0 0.0
      %4909 = vmatpush1.msra.mxu0 0.0
      %4910 = vmatprep.subr.mxu0 0.0
      %4911 = vmatpush1.msra.mxu0 0.0
      %4912 = vmatprep.subr.mxu0 0.0
      %4913 = vmatpush1.msra.mxu0 0.0
      %4914 = vmatprep.subr.mxu0 0.0
      %4915 = vmatpush1.msra.mxu0 0.0
      %4916 = vmatprep.subr.mxu0 0.0
      %4917 = vmatpush1.msra.mxu0 0.0
      %4918 = vmatprep.subr.mxu0 0.0
      %4919 = vmatpush1.msra.mxu0 0.0
      %4920 = vmatprep.subr.mxu0 0.0
      %4921 = vmatpush1.msra.mxu0 0.0
      %4922 = vmatprep.mubr.f32.mxu0 0.0
      %4923 = vmatmul.mubr.f32.gmra.mrb[0].mxu0 %v4856
      %v4924 = vpop.f32.mrb[0].mxu0
      %v4925 = vadd.f32 %v4853, %v4924
      %v4926 = vpop.f32.mrb[0].mxu0
      %v4927 = vadd.f32 %v4853, %v4926
      %4928 = vdwg.mxu0
      %v4929 = vmul.f32 %v429, %v4925
      %v4930 = vmul.f32 %v431, %v4927
      %s4931 = scalar_lea.vmem %s3, 48
      %v4932 = vld [vmem:[%s4931] sm:$0xff]
      %s4933 = scalar_lea.vmem %s4, 48
      %v4934 = vld [vmem:[%s4933] sm:$0xff]
      %4936 = vset.pattern.permute.xlu0 0
      %4937 = vperm.xlu0 %4936, %v4934
      %v4938 = vpop.permute.xlu0 %4937
      %v4941 = vsel %vm662, %v4932, 0
      %4943 = vmatprep.subr.mxu0 %v4930
      %4944 = vmatpush1.msra.mxu0 %v4929
      %4945 = vmatprep.subr.mxu0 0.0
      %4946 = vmatpush1.msra.mxu0 0.0
      %4947 = vmatprep.subr.mxu0 0.0
      %4948 = vmatpush1.msra.mxu0 0.0
      %4949 = vmatprep.subr.mxu0 0.0
      %4950 = vmatpush1.msra.mxu0 0.0
      %4951 = vmatprep.subr.mxu0 0.0
      %4952 = vmatpush1.msra.mxu0 0.0
      %4953 = vmatprep.subr.mxu0 0.0
      %4954 = vmatpush1.msra.mxu0 0.0
      %4955 = vmatprep.subr.mxu0 0.0
      %4956 = vmatpush1.msra.mxu0 0.0
      %4957 = vmatprep.subr.mxu0 0.0
      %4958 = vmatpush1.msra.mxu0 0.0
      %4959 = vmatprep.subr.mxu0 0.0
      %4960 = vmatpush1.msra.mxu0 0.0
      %4961 = vmatprep.subr.mxu0 0.0
      %4962 = vmatpush1.msra.mxu0 0.0
      %4963 = vmatprep.subr.mxu0 0.0
      %4964 = vmatpush1.msra.mxu0 0.0
      %4965 = vmatprep.subr.mxu0 0.0
      %4966 = vmatpush1.msra.mxu0 0.0
      %4967 = vmatprep.subr.mxu0 0.0
      %4968 = vmatpush1.msra.mxu0 0.0
      %4969 = vmatprep.subr.mxu0 0.0
      %4970 = vmatpush1.msra.mxu0 0.0
      %4971 = vmatprep.subr.mxu0 0.0
      %4972 = vmatpush1.msra.mxu0 0.0
      %4973 = vmatprep.subr.mxu0 0.0
      %4974 = vmatpush1.msra.mxu0 0.0
      %4975 = vmatprep.subr.mxu0 0.0
      %4976 = vmatpush1.msra.mxu0 0.0
      %4977 = vmatprep.subr.mxu0 0.0
      %4978 = vmatpush1.msra.mxu0 0.0
      %4979 = vmatprep.subr.mxu0 0.0
      %4980 = vmatpush1.msra.mxu0 0.0
      %4981 = vmatprep.subr.mxu0 0.0
      %4982 = vmatpush1.msra.mxu0 0.0
      %4983 = vmatprep.subr.mxu0 0.0
      %4984 = vmatpush1.msra.mxu0 0.0
      %4985 = vmatprep.subr.mxu0 0.0
      %4986 = vmatpush1.msra.mxu0 0.0
      %4987 = vmatprep.subr.mxu0 0.0
      %4988 = vmatpush1.msra.mxu0 0.0
      %4989 = vmatprep.subr.mxu0 0.0
      %4990 = vmatpush1.msra.mxu0 0.0
      %4991 = vmatprep.subr.mxu0 0.0
      %4992 = vmatpush1.msra.mxu0 0.0
      %4993 = vmatprep.subr.mxu0 0.0
      %4994 = vmatpush1.msra.mxu0 0.0
      %4995 = vmatprep.subr.mxu0 0.0
      %4996 = vmatpush1.msra.mxu0 0.0
      %4997 = vmatprep.subr.mxu0 0.0
      %4998 = vmatpush1.msra.mxu0 0.0
      %4999 = vmatprep.subr.mxu0 0.0
      %5000 = vmatpush1.msra.mxu0 0.0
      %5001 = vmatprep.subr.mxu0 0.0
      %5002 = vmatpush1.msra.mxu0 0.0
      %5003 = vmatprep.subr.mxu0 0.0
      %5004 = vmatpush1.msra.mxu0 0.0
      %5005 = vmatprep.subr.mxu0 0.0
      %5006 = vmatpush1.msra.mxu0 0.0
      %5007 = vmatprep.mubr.f32.mxu0 0.0
      %5008 = vmatmul.mubr.f32.gmra.mrb[0].mxu0 %v4941
      %v5009 = vpop.f32.mrb[0].mxu0
      %v5010 = vadd.f32 %v4938, %v5009
      %v5011 = vpop.f32.mrb[0].mxu0
      %v5012 = vadd.f32 %v4938, %v5011
      %5013 = vdwg.mxu0
      %v5016 = vcombine.low %v5010, %v5012
      %5018 = vst [vmem:[%s332] sm:$0xff] %v5016
      %p5019 = scmp.lt.s32.totalorder %s20, 1
      %s5020 = scalar_select %p5019, %s20, 1
      %s5021 = smul.addr %s5020, 2
      %s5022 = smul.addr %s5021, 4
      %s5023 = scalar_lea.vmem %s9, %s5022
      // Predicated region
      $region57: #{lka_forward.1} parent=55 // pred_check
        %p5024 = pneg %p232
      $region58: #{lka_forward.1} parent=55 // pred_check_branch
        %5026 = sbr.rel (%p5024) target = $region60
      $region59: #{lka_forward.1} parent=55 // pred_region
        _
      $region60: #{lka_forward.1} parent=55 // pred_fallthru
        _
    $region56: #{lka_forward.1} parent=5 // pred_fallthru
      _
    %p5027 = scmp.le.s32.totalorder 2, %s15
    // Predicated region
    $region61: #{lka_forward.1} parent=5 // pred_check
      %p5028 = pneg %p5027
    $region62: #{lka_forward.1} parent=5 // pred_check_branch
      %5030 = sbr.rel (%p5028) target = $region64
    $region63: #{lka_forward.1} parent=5 // pred_region
      %s5031 = ssub.s32 %s15, 2
      // Predicated region
      $region65: #{lka_forward.1} parent=63 // pred_check
        %p5032 = pneg %p238
      $region66: #{lka_forward.1} parent=63 // pred_check_branch
        %5034 = sbr.rel (%p5032) target = $region68
      $region67: #{lka_forward.1} parent=63 // pred_region
        %p5035 = scmp.lt.s32.totalorder %s21, 1
        %s5036 = scalar_select %p5035, %s21, 1
        %s5037 = smul.addr %s5036, 2
        %s5038 = smul.addr %s5037, 4
        %s5039 = scalar_lea.vmem %s9, %s5038
      $region68: #{lka_forward.1} parent=63 // pred_fallthru
        _
    $region64: #{lka_forward.1} parent=5 // pred_fallthru
      _
  $region6: #{lka_forward.1} parent=0 // loop_footer
    %s19 = sadd.s32 1, %s15
  $region7: #{lka_forward.1} parent=0 // loop_footer_branch
    %14 = sbr.rel target = $region3
  $region8: #{lka_forward.1} parent=0 // loop_exit
    _

</llo_original>
